<compile_context>
chip_gen: v6e
topology: v6e:2x2x1
jax: 0.10.0
libtpu: 0.0.40
codegen_flags: <defaults>
</compile_context>

<pallas_src>
import math

import jax
import jax.numpy as jnp
from jax import lax
from jax.experimental import pallas as pl
from jax.experimental.pallas import tpu as pltpu

LEAKY_SLOPE = 0.01   # nn.LeakyReLU default
BN_EPS = 1e-5        # nn.BatchNorm2d default


# ----------------------------- kernel helpers ------------------------------

def _leaky(x):
    return jnp.where(x > 0, x, LEAKY_SLOPE * x)


def _shift_h(x, dy):
    """out[:, h] = x[:, h+dy] along H (an outer, vreg-granular axis); zero outside."""
    if dy == 0:
        return x
    H = x.shape[1]
    z = jnp.zeros_like(x[:, :1])
    if dy > 0:                              # read one row below
        return jnp.concatenate([x[:, 1:], z], axis=1)
    return jnp.concatenate([z, x[:, :H - 1]], axis=1)


def _shift_w(x, dx):
    """out[..., w, :] = x[..., w+dx, :] along W (the sublane axis); zero outside.

    Uses pltpu.roll (XLU) + a boundary zero-mask instead of slice+concat copies.
    """
    if dx == 0:
        return x
    W = x.shape[2]
    rolled = pltpu.roll(x, shift=(-dx) % W, axis=2)
    col = lax.broadcasted_iota(jnp.int32, x.shape, 2)
    valid = (col < (W - dx)) if dx > 0 else (col >= (-dx))
    return jnp.where(valid, rolled, 0.0)


def _im2col_3x3(x):
    """(N, H, W, C) f32 -> (N*H*W, 9*C) f32 ; column order (ky, kx, cin)."""
    N, H, W, C = x.shape
    taps = []
    for dy in (-1, 0, 1):                   # dy shift hoisted out of the dx loop
        xr = _shift_h(x, dy)
        for dx in (-1, 0, 1):
            taps.append(_shift_w(xr, dx))
    cols = jnp.concatenate(taps, axis=-1)   # (N, H, W, 9*C)
    return cols.reshape(N * H * W, 9 * C)   # layout-preserving (W % 8 == 0)


def _conv3x3(x, w_ref, b_ref):
    """3x3 'same' conv as a single MXU matmul over the packed (tap, cin) axis.

    x:     (N, H, W, C) f32
    w_ref: (9*C, C) bf16   rows ordered (ky, kx, cin)
    b_ref: (1, C)   f32
    returns (N*H*W, C) f32
    """
    a = _im2col_3x3(x).astype(jnp.bfloat16)               # bf16 MXU operand
    h = jnp.dot(a, w_ref[...], preferred_element_type=jnp.float32)  # f32 accumulation
    return h + b_ref[...]


def _bn_train(h, g_ref, be_ref):
    """Training-mode BatchNorm on the flat (rows, C) view; stats stay f32."""
    rows = h.shape[0]
    inv_cnt = 1.0 / rows
    s1 = jnp.sum(h, axis=0, keepdims=True)                # (1, C)
    s2 = jnp.sum(h * h, axis=0, keepdims=True)            # (1, C)
    mean = s1 * inv_cnt
    var = jnp.maximum(s2 * inv_cnt - mean * mean, 0.0)    # biased variance
    inv = lax.rsqrt(var + BN_EPS)
    return (h - mean) * (inv * g_ref[...]) + be_ref[...]


# --------------------------------- kernel ----------------------------------

def residual_block_kernel(x_ref, w1_ref, b1_ref, g1_ref, be1_ref,
                          w2_ref, b2_ref, g2_ref, be2_ref, out_ref):
    N, H, W, C = x_ref.shape
    rows = N * H * W
    x = x_ref[...]                                         # (N, H, W, C) f32

    h = _conv3x3(x, w1_ref, b1_ref)                        # conv1  (rows, C)
    h = _bn_train(h, g1_ref, be1_ref)                      # bn1
    h = _leaky(h)                                          # leaky relu

    h = _conv3x3(h.reshape(N, H, W, C), w2_ref, b2_ref)    # conv2
    h = _bn_train(h, g2_ref, be2_ref)                      # bn2

    out = _leaky(h + x.reshape(rows, C))                   # +residual, leaky relu
    out_ref[...] = out.reshape(N, H, W, C).astype(out_ref.dtype)


# -------------------------------- wrapper ----------------------------------

@jax.jit
def residual_block(x_nchw, params):
    """Forward pass of ResidualBlock. x_nchw: (N, C, H, W) f32 -> (N, C, H, W) f32."""
    w1, b1, g1, be1, w2, b2, g2, be2 = params
    N, C, H, W = x_nchw.shape
    # Layout-preserving (N,H,W,C) -> (rows, C) collapse requires sublane-aligned W.
    assert W % 8 == 0, f"W={W} must be a multiple of 8 (sublane alignment)"

    # NCHW -> NHWC, compact channels (no 128-lane padding round-tripped via HBM).
    x = jnp.transpose(x_nchw, (0, 2, 3, 1)).astype(jnp.float32)

    def prep_w(w):   # (3,3,C,C) HWIO -> (9*C, C) bf16, rows ordered (ky, kx, cin)
        return w.astype(jnp.float32).reshape(9 * C, C).astype(jnp.bfloat16)

    def prep_v(v):   # (C,) -> (1, C) f32
        return v.astype(jnp.float32).reshape(1, C)

    out = pl.pallas_call(
        residual_block_kernel,
        out_shape=jax.ShapeDtypeStruct((N, H, W, C), jnp.float32),
        in_specs=[pl.BlockSpec(memory_space=pltpu.MemorySpace.VMEM)] * 9,
        out_specs=pl.BlockSpec(memory_space=pltpu.MemorySpace.VMEM),
        compiler_params=pltpu.CompilerParams(vmem_limit_bytes=32 * 1024 * 1024),
    )(x, prep_w(w1), prep_v(b1), prep_v(g1), prep_v(be1),
      prep_w(w2), prep_v(b2), prep_v(g2), prep_v(be2))

    return jnp.transpose(out, (0, 3, 1, 2))   # NHWC -> NCHW


# ------------------------- pure-JAX reference (check) -----------------------

def residual_block_reference(x_nchw, params, matmul_dtype=jnp.bfloat16):
    """Reference forward pass.

    matmul_dtype=bf16 mirrors the kernel's MXU operand precision (f32 accumulation),
    so it can be compared at tight tolerance; matmul_dtype=f32 gives the exact
    PyTorch-style f32 forward for an informational deviation measurement.
    """
    w1, b1, g1, be1, w2, b2, g2, be2 = params

    def conv(x, w, b):
        y = lax.conv_general_dilated(
            x.astype(matmul_dtype), w.astype(matmul_dtype),
            window_strides=(1, 1), padding="SAME",
            dimension_numbers=("NHWC", "HWIO", "NHWC"),
            preferred_element_type=jnp.float32)
        return y + b.reshape(1, 1, 1, -1).astype(jnp.float32)

    def bn(h, g, be):
        mean = jnp.mean(h, axis=(0, 1, 2), keepdims=True)
        var = jnp.mean(jnp.square(h - mean), axis=(0, 1, 2), keepdims=True)
        return (h - mean) * lax.rsqrt(var + BN_EPS) * g.reshape(1, 1, 1, -1) \
               + be.reshape(1, 1, 1, -1)

    x = jnp.transpose(x_nchw, (0, 2, 3, 1)).astype(jnp.float32)
    h = _leaky(bn(conv(x, w1, b1), g1, be1))
    o = bn(conv(h, w2, b2), g2, be2)
    o = _leaky(o + x)
    return jnp.transpose(o, (0, 3, 1, 2))


# ---------------------------------- main ------------------------------------

def init_params(key, n_channels):
    C = n_channels
    fan_in = C * 3 * 3
    bound = 1.0 / math.sqrt(fan_in)
    k1, k2, k3, k4 = jax.random.split(key, 4)
    w1 = jax.random.uniform(k1, (3, 3, C, C), jnp.float32, -bound, bound)
    b1 = jax.random.uniform(k2, (C,), jnp.float32, -bound, bound)
    w2 = jax.random.uniform(k3, (3, 3, C, C), jnp.float32, -bound, bound)
    b2 = jax.random.uniform(k4, (C,), jnp.float32, -bound, bound)
    g1 = jnp.ones((C,), jnp.float32)
    be1 = jnp.zeros((C,), jnp.float32)
    g2 = jnp.ones((C,), jnp.float32)
    be2 = jnp.zeros((C,), jnp.float32)
    return (w1, b1, g1, be1, w2, b2, g2, be2)


if __name__ == "__main__":
    key = jax.random.PRNGKey(0)
    kx, kp = jax.random.split(key)

    N, C, H, W = 2, 4, 16, 16
    x = jax.random.normal(kx, (N, C, H, W), jnp.float32)
    params = init_params(kp, C)

    out = jax.block_until_ready(residual_block(x, params))
    assert out.shape == (N, C, H, W), out.shape

    # Tight check against the numerics-matched reference (bf16 MXU operands,
    # f32 accumulation) -- verifies the conv/BN/residual math of the kernel.
    ref = jax.block_until_ready(residual_block_reference(x, params, jnp.bfloat16))
    max_err = float(jnp.max(jnp.abs(out - ref)))
    assert max_err < 2e-3, f"max abs error vs bf16-matched reference too large: {max_err}"

    # Informational: deviation from the full-f32 forward (bf16 operand rounding only).
    ref_f32 = residual_block_reference(x, params, jnp.float32)
    f32_dev = float(jnp.max(jnp.abs(out - ref_f32)))

    print("KERNEL_OK")
</pallas_src>

<mosaic_0001>
module attributes {stable_mosaic.version = 11 : i64} {
  func.func @residual_block_kernel(%arg0: memref<2x16x16x4xf32, #tpu.memory_space<vmem>>, %arg1: memref<36x4xbf16, #tpu.memory_space<vmem>>, %arg2: memref<1x4xf32, #tpu.memory_space<vmem>>, %arg3: memref<1x4xf32, #tpu.memory_space<vmem>>, %arg4: memref<1x4xf32, #tpu.memory_space<vmem>>, %arg5: memref<36x4xbf16, #tpu.memory_space<vmem>>, %arg6: memref<1x4xf32, #tpu.memory_space<vmem>>, %arg7: memref<1x4xf32, #tpu.memory_space<vmem>>, %arg8: memref<1x4xf32, #tpu.memory_space<vmem>>, %arg9: memref<2x16x16x4xf32, #tpu.memory_space<vmem>>) attributes {dimension_semantics = [], scalar_prefetch = 0 : i64, scratch_operands = 0 : i64, tpu.core_type = #tpu.core_type<tc>} {
    %c0 = arith.constant 0 : index
    %c0_0 = arith.constant 0 : index
    %c0_1 = arith.constant 0 : index
    %c0_2 = arith.constant 0 : index
    %0 = vector.load %arg0[%c0, %c0_0, %c0_1, %c0_2] : memref<2x16x16x4xf32, #tpu.memory_space<vmem>>, vector<2x16x16x4xf32>
    %cst = arith.constant 0.000000e+00 : f32
    %1 = vector.broadcast %cst : f32 to vector<2x1x16x4xf32>
    %2 = vector.extract_strided_slice %0 {offsets = [0, 0, 0, 0], sizes = [2, 15, 16, 4], strides = [1, 1, 1, 1]} : vector<2x16x16x4xf32> to vector<2x15x16x4xf32>
    %3 = tpu.concatenate %1, %2 in 1 : vector<2x1x16x4xf32>, vector<2x15x16x4xf32> -> vector<2x16x16x4xf32>
    %c1_i32 = arith.constant 1 : i32
    %4 = tpu.dynamic_rotate %3 by %c1_i32 dim 2 : vector<2x16x16x4xf32>, i32 -> vector<2x16x16x4xf32>
    %5 = tpu.iota {dimensions = array<i32: 2>} : vector<2x16x16x4xi32>
    %c1_i32_3 = arith.constant 1 : i32
    %6 = vector.broadcast %c1_i32_3 : i32 to vector<2x16x16x4xi32>
    %7 = arith.cmpi sge, %5, %6 : vector<2x16x16x4xi32>
    %cst_4 = arith.constant 0.000000e+00 : f32
    %8 = vector.broadcast %cst_4 : f32 to vector<2x16x16x4xf32>
    %9 = arith.select %7, %4, %8 : vector<2x16x16x4xi1>, vector<2x16x16x4xf32>
    %c15_i32 = arith.constant 15 : i32
    %10 = tpu.dynamic_rotate %3 by %c15_i32 dim 2 : vector<2x16x16x4xf32>, i32 -> vector<2x16x16x4xf32>
    %11 = tpu.iota {dimensions = array<i32: 2>} : vector<2x16x16x4xi32>
    %c15_i32_5 = arith.constant 15 : i32
    %12 = vector.broadcast %c15_i32_5 : i32 to vector<2x16x16x4xi32>
    %13 = arith.cmpi slt, %11, %12 : vector<2x16x16x4xi32>
    %cst_6 = arith.constant 0.000000e+00 : f32
    %14 = vector.broadcast %cst_6 : f32 to vector<2x16x16x4xf32>
    %15 = arith.select %13, %10, %14 : vector<2x16x16x4xi1>, vector<2x16x16x4xf32>
    %c1_i32_7 = arith.constant 1 : i32
    %16 = tpu.dynamic_rotate %0 by %c1_i32_7 dim 2 : vector<2x16x16x4xf32>, i32 -> vector<2x16x16x4xf32>
    %17 = tpu.iota {dimensions = array<i32: 2>} : vector<2x16x16x4xi32>
    %c1_i32_8 = arith.constant 1 : i32
    %18 = vector.broadcast %c1_i32_8 : i32 to vector<2x16x16x4xi32>
    %19 = arith.cmpi sge, %17, %18 : vector<2x16x16x4xi32>
    %cst_9 = arith.constant 0.000000e+00 : f32
    %20 = vector.broadcast %cst_9 : f32 to vector<2x16x16x4xf32>
    %21 = arith.select %19, %16, %20 : vector<2x16x16x4xi1>, vector<2x16x16x4xf32>
    %c15_i32_10 = arith.constant 15 : i32
    %22 = tpu.dynamic_rotate %0 by %c15_i32_10 dim 2 : vector<2x16x16x4xf32>, i32 -> vector<2x16x16x4xf32>
    %23 = tpu.iota {dimensions = array<i32: 2>} : vector<2x16x16x4xi32>
    %c15_i32_11 = arith.constant 15 : i32
    %24 = vector.broadcast %c15_i32_11 : i32 to vector<2x16x16x4xi32>
    %25 = arith.cmpi slt, %23, %24 : vector<2x16x16x4xi32>
    %cst_12 = arith.constant 0.000000e+00 : f32
    %26 = vector.broadcast %cst_12 : f32 to vector<2x16x16x4xf32>
    %27 = arith.select %25, %22, %26 : vector<2x16x16x4xi1>, vector<2x16x16x4xf32>
    %cst_13 = arith.constant 0.000000e+00 : f32
    %28 = vector.broadcast %cst_13 : f32 to vector<2x1x16x4xf32>
    %29 = vector.extract_strided_slice %0 {offsets = [0, 1, 0, 0], sizes = [2, 15, 16, 4], strides = [1, 1, 1, 1]} : vector<2x16x16x4xf32> to vector<2x15x16x4xf32>
    %30 = tpu.concatenate %29, %28 in 1 : vector<2x15x16x4xf32>, vector<2x1x16x4xf32> -> vector<2x16x16x4xf32>
    %c1_i32_14 = arith.constant 1 : i32
    %31 = tpu.dynamic_rotate %30 by %c1_i32_14 dim 2 : vector<2x16x16x4xf32>, i32 -> vector<2x16x16x4xf32>
    %32 = tpu.iota {dimensions = array<i32: 2>} : vector<2x16x16x4xi32>
    %c1_i32_15 = arith.constant 1 : i32
    %33 = vector.broadcast %c1_i32_15 : i32 to vector<2x16x16x4xi32>
    %34 = arith.cmpi sge, %32, %33 : vector<2x16x16x4xi32>
    %cst_16 = arith.constant 0.000000e+00 : f32
    %35 = vector.broadcast %cst_16 : f32 to vector<2x16x16x4xf32>
    %36 = arith.select %34, %31, %35 : vector<2x16x16x4xi1>, vector<2x16x16x4xf32>
    %c15_i32_17 = arith.constant 15 : i32
    %37 = tpu.dynamic_rotate %30 by %c15_i32_17 dim 2 : vector<2x16x16x4xf32>, i32 -> vector<2x16x16x4xf32>
    %38 = tpu.iota {dimensions = array<i32: 2>} : vector<2x16x16x4xi32>
    %c15_i32_18 = arith.constant 15 : i32
    %39 = vector.broadcast %c15_i32_18 : i32 to vector<2x16x16x4xi32>
    %40 = arith.cmpi slt, %38, %39 : vector<2x16x16x4xi32>
    %cst_19 = arith.constant 0.000000e+00 : f32
    %41 = vector.broadcast %cst_19 : f32 to vector<2x16x16x4xf32>
    %42 = arith.select %40, %37, %41 : vector<2x16x16x4xi1>, vector<2x16x16x4xf32>
    %43 = tpu.concatenate %9, %3, %15, %21, %0, %27, %36, %30, %42 in 3 : vector<2x16x16x4xf32>, vector<2x16x16x4xf32>, vector<2x16x16x4xf32>, vector<2x16x16x4xf32>, vector<2x16x16x4xf32>, vector<2x16x16x4xf32>, vector<2x16x16x4xf32>, vector<2x16x16x4xf32>, vector<2x16x16x4xf32> -> vector<2x16x16x36xf32>
    %44 = vector.shape_cast %43 : vector<2x16x16x36xf32> to vector<512x36xf32>
    %45 = arith.truncf %44 : vector<512x36xf32> to vector<512x36xbf16>
    %c0_20 = arith.constant 0 : index
    %c0_21 = arith.constant 0 : index
    %46 = vector.load %arg1[%c0_20, %c0_21] : memref<36x4xbf16, #tpu.memory_space<vmem>>, vector<36x4xbf16>
    %cst_22 = arith.constant dense<0.000000e+00> : vector<512x4xf32>
    %47 = tpu.matmul %45, %46, %cst_22 {dimension_numbers = #tpu.dot_dimension_numbers<[1], [0], [0], [1], [0, 0, 1, 1], [], []>} : vector<512x36xbf16>, vector<36x4xbf16>, vector<512x4xf32> -> vector<512x4xf32>
    %c0_23 = arith.constant 0 : index
    %c0_24 = arith.constant 0 : index
    %48 = vector.load %arg2[%c0_23, %c0_24] : memref<1x4xf32, #tpu.memory_space<vmem>>, vector<1x4xf32>
    %49 = vector.broadcast %48 : vector<1x4xf32> to vector<512x4xf32>
    %50 = arith.addf %47, %49 : vector<512x4xf32>
    %cst_25 = arith.constant dense<0.000000e+00> : vector<4xf32>
    %51 = vector.multi_reduction <add>, %50, %cst_25 [0] : vector<512x4xf32> to vector<4xf32>
    %52 = vector.shape_cast %51 : vector<4xf32> to vector<1x4xf32>
    %53 = arith.mulf %50, %50 : vector<512x4xf32>
    %cst_26 = arith.constant dense<0.000000e+00> : vector<4xf32>
    %54 = vector.multi_reduction <add>, %53, %cst_26 [0] : vector<512x4xf32> to vector<4xf32>
    %55 = vector.shape_cast %54 : vector<4xf32> to vector<1x4xf32>
    %cst_27 = arith.constant 0.001953125 : f32
    %56 = vector.broadcast %cst_27 : f32 to vector<1x4xf32>
    %57 = arith.mulf %52, %56 : vector<1x4xf32>
    %cst_28 = arith.constant 0.001953125 : f32
    %58 = vector.broadcast %cst_28 : f32 to vector<1x4xf32>
    %59 = arith.mulf %55, %58 : vector<1x4xf32>
    %60 = arith.mulf %57, %57 : vector<1x4xf32>
    %61 = arith.subf %59, %60 : vector<1x4xf32>
    %cst_29 = arith.constant 0.000000e+00 : f32
    %62 = vector.broadcast %cst_29 : f32 to vector<1x4xf32>
    %63 = arith.maximumf %61, %62 : vector<1x4xf32>
    %cst_30 = arith.constant 9.99999974E-6 : f32
    %64 = vector.broadcast %cst_30 : f32 to vector<1x4xf32>
    %65 = arith.addf %63, %64 : vector<1x4xf32>
    %66 = math.rsqrt %65 : vector<1x4xf32>
    %67 = vector.broadcast %57 : vector<1x4xf32> to vector<512x4xf32>
    %68 = arith.subf %50, %67 : vector<512x4xf32>
    %c0_31 = arith.constant 0 : index
    %c0_32 = arith.constant 0 : index
    %69 = vector.load %arg3[%c0_31, %c0_32] : memref<1x4xf32, #tpu.memory_space<vmem>>, vector<1x4xf32>
    %70 = arith.mulf %66, %69 : vector<1x4xf32>
    %71 = vector.broadcast %70 : vector<1x4xf32> to vector<512x4xf32>
    %72 = arith.mulf %68, %71 : vector<512x4xf32>
    %c0_33 = arith.constant 0 : index
    %c0_34 = arith.constant 0 : index
    %73 = vector.load %arg4[%c0_33, %c0_34] : memref<1x4xf32, #tpu.memory_space<vmem>>, vector<1x4xf32>
    %74 = vector.broadcast %73 : vector<1x4xf32> to vector<512x4xf32>
    %75 = arith.addf %72, %74 : vector<512x4xf32>
    %cst_35 = arith.constant 0.000000e+00 : f32
    %76 = vector.broadcast %cst_35 : f32 to vector<512x4xf32>
    %77 = arith.cmpf ogt, %75, %76 : vector<512x4xf32>
    %cst_36 = arith.constant 0.00999999977 : f32
    %78 = vector.broadcast %cst_36 : f32 to vector<512x4xf32>
    %79 = arith.mulf %78, %75 : vector<512x4xf32>
    %80 = arith.select %77, %75, %79 : vector<512x4xi1>, vector<512x4xf32>
    %81 = vector.shape_cast %80 : vector<512x4xf32> to vector<2x16x16x4xf32>
    %cst_37 = arith.constant 0.000000e+00 : f32
    %82 = vector.broadcast %cst_37 : f32 to vector<2x1x16x4xf32>
    %83 = vector.extract_strided_slice %81 {offsets = [0, 0, 0, 0], sizes = [2, 15, 16, 4], strides = [1, 1, 1, 1]} : vector<2x16x16x4xf32> to vector<2x15x16x4xf32>
    %84 = tpu.concatenate %82, %83 in 1 : vector<2x1x16x4xf32>, vector<2x15x16x4xf32> -> vector<2x16x16x4xf32>
    %c1_i32_38 = arith.constant 1 : i32
    %85 = tpu.dynamic_rotate %84 by %c1_i32_38 dim 2 : vector<2x16x16x4xf32>, i32 -> vector<2x16x16x4xf32>
    %86 = tpu.iota {dimensions = array<i32: 2>} : vector<2x16x16x4xi32>
    %c1_i32_39 = arith.constant 1 : i32
    %87 = vector.broadcast %c1_i32_39 : i32 to vector<2x16x16x4xi32>
    %88 = arith.cmpi sge, %86, %87 : vector<2x16x16x4xi32>
    %cst_40 = arith.constant 0.000000e+00 : f32
    %89 = vector.broadcast %cst_40 : f32 to vector<2x16x16x4xf32>
    %90 = arith.select %88, %85, %89 : vector<2x16x16x4xi1>, vector<2x16x16x4xf32>
    %c15_i32_41 = arith.constant 15 : i32
    %91 = tpu.dynamic_rotate %84 by %c15_i32_41 dim 2 : vector<2x16x16x4xf32>, i32 -> vector<2x16x16x4xf32>
    %92 = tpu.iota {dimensions = array<i32: 2>} : vector<2x16x16x4xi32>
    %c15_i32_42 = arith.constant 15 : i32
    %93 = vector.broadcast %c15_i32_42 : i32 to vector<2x16x16x4xi32>
    %94 = arith.cmpi slt, %92, %93 : vector<2x16x16x4xi32>
    %cst_43 = arith.constant 0.000000e+00 : f32
    %95 = vector.broadcast %cst_43 : f32 to vector<2x16x16x4xf32>
    %96 = arith.select %94, %91, %95 : vector<2x16x16x4xi1>, vector<2x16x16x4xf32>
    %c1_i32_44 = arith.constant 1 : i32
    %97 = tpu.dynamic_rotate %81 by %c1_i32_44 dim 2 : vector<2x16x16x4xf32>, i32 -> vector<2x16x16x4xf32>
    %98 = tpu.iota {dimensions = array<i32: 2>} : vector<2x16x16x4xi32>
    %c1_i32_45 = arith.constant 1 : i32
    %99 = vector.broadcast %c1_i32_45 : i32 to vector<2x16x16x4xi32>
    %100 = arith.cmpi sge, %98, %99 : vector<2x16x16x4xi32>
    %cst_46 = arith.constant 0.000000e+00 : f32
    %101 = vector.broadcast %cst_46 : f32 to vector<2x16x16x4xf32>
    %102 = arith.select %100, %97, %101 : vector<2x16x16x4xi1>, vector<2x16x16x4xf32>
    %c15_i32_47 = arith.constant 15 : i32
    %103 = tpu.dynamic_rotate %81 by %c15_i32_47 dim 2 : vector<2x16x16x4xf32>, i32 -> vector<2x16x16x4xf32>
    %104 = tpu.iota {dimensions = array<i32: 2>} : vector<2x16x16x4xi32>
    %c15_i32_48 = arith.constant 15 : i32
    %105 = vector.broadcast %c15_i32_48 : i32 to vector<2x16x16x4xi32>
    %106 = arith.cmpi slt, %104, %105 : vector<2x16x16x4xi32>
    %cst_49 = arith.constant 0.000000e+00 : f32
    %107 = vector.broadcast %cst_49 : f32 to vector<2x16x16x4xf32>
    %108 = arith.select %106, %103, %107 : vector<2x16x16x4xi1>, vector<2x16x16x4xf32>
    %cst_50 = arith.constant 0.000000e+00 : f32
    %109 = vector.broadcast %cst_50 : f32 to vector<2x1x16x4xf32>
    %110 = vector.extract_strided_slice %81 {offsets = [0, 1, 0, 0], sizes = [2, 15, 16, 4], strides = [1, 1, 1, 1]} : vector<2x16x16x4xf32> to vector<2x15x16x4xf32>
    %111 = tpu.concatenate %110, %109 in 1 : vector<2x15x16x4xf32>, vector<2x1x16x4xf32> -> vector<2x16x16x4xf32>
    %c1_i32_51 = arith.constant 1 : i32
    %112 = tpu.dynamic_rotate %111 by %c1_i32_51 dim 2 : vector<2x16x16x4xf32>, i32 -> vector<2x16x16x4xf32>
    %113 = tpu.iota {dimensions = array<i32: 2>} : vector<2x16x16x4xi32>
    %c1_i32_52 = arith.constant 1 : i32
    %114 = vector.broadcast %c1_i32_52 : i32 to vector<2x16x16x4xi32>
    %115 = arith.cmpi sge, %113, %114 : vector<2x16x16x4xi32>
    %cst_53 = arith.constant 0.000000e+00 : f32
    %116 = vector.broadcast %cst_53 : f32 to vector<2x16x16x4xf32>
    %117 = arith.select %115, %112, %116 : vector<2x16x16x4xi1>, vector<2x16x16x4xf32>
    %c15_i32_54 = arith.constant 15 : i32
    %118 = tpu.dynamic_rotate %111 by %c15_i32_54 dim 2 : vector<2x16x16x4xf32>, i32 -> vector<2x16x16x4xf32>
    %119 = tpu.iota {dimensions = array<i32: 2>} : vector<2x16x16x4xi32>
    %c15_i32_55 = arith.constant 15 : i32
    %120 = vector.broadcast %c15_i32_55 : i32 to vector<2x16x16x4xi32>
    %121 = arith.cmpi slt, %119, %120 : vector<2x16x16x4xi32>
    %cst_56 = arith.constant 0.000000e+00 : f32
    %122 = vector.broadcast %cst_56 : f32 to vector<2x16x16x4xf32>
    %123 = arith.select %121, %118, %122 : vector<2x16x16x4xi1>, vector<2x16x16x4xf32>
    %124 = tpu.concatenate %90, %84, %96, %102, %81, %108, %117, %111, %123 in 3 : vector<2x16x16x4xf32>, vector<2x16x16x4xf32>, vector<2x16x16x4xf32>, vector<2x16x16x4xf32>, vector<2x16x16x4xf32>, vector<2x16x16x4xf32>, vector<2x16x16x4xf32>, vector<2x16x16x4xf32>, vector<2x16x16x4xf32> -> vector<2x16x16x36xf32>
    %125 = vector.shape_cast %124 : vector<2x16x16x36xf32> to vector<512x36xf32>
    %126 = arith.truncf %125 : vector<512x36xf32> to vector<512x36xbf16>
    %c0_57 = arith.constant 0 : index
    %c0_58 = arith.constant 0 : index
    %127 = vector.load %arg5[%c0_57, %c0_58] : memref<36x4xbf16, #tpu.memory_space<vmem>>, vector<36x4xbf16>
    %cst_59 = arith.constant dense<0.000000e+00> : vector<512x4xf32>
    %128 = tpu.matmul %126, %127, %cst_59 {dimension_numbers = #tpu.dot_dimension_numbers<[1], [0], [0], [1], [0, 0, 1, 1], [], []>} : vector<512x36xbf16>, vector<36x4xbf16>, vector<512x4xf32> -> vector<512x4xf32>
    %c0_60 = arith.constant 0 : index
    %c0_61 = arith.constant 0 : index
    %129 = vector.load %arg6[%c0_60, %c0_61] : memref<1x4xf32, #tpu.memory_space<vmem>>, vector<1x4xf32>
    %130 = vector.broadcast %129 : vector<1x4xf32> to vector<512x4xf32>
    %131 = arith.addf %128, %130 : vector<512x4xf32>
    %cst_62 = arith.constant dense<0.000000e+00> : vector<4xf32>
    %132 = vector.multi_reduction <add>, %131, %cst_62 [0] : vector<512x4xf32> to vector<4xf32>
    %133 = vector.shape_cast %132 : vector<4xf32> to vector<1x4xf32>
    %134 = arith.mulf %131, %131 : vector<512x4xf32>
    %cst_63 = arith.constant dense<0.000000e+00> : vector<4xf32>
    %135 = vector.multi_reduction <add>, %134, %cst_63 [0] : vector<512x4xf32> to vector<4xf32>
    %136 = vector.shape_cast %135 : vector<4xf32> to vector<1x4xf32>
    %cst_64 = arith.constant 0.001953125 : f32
    %137 = vector.broadcast %cst_64 : f32 to vector<1x4xf32>
    %138 = arith.mulf %133, %137 : vector<1x4xf32>
    %cst_65 = arith.constant 0.001953125 : f32
    %139 = vector.broadcast %cst_65 : f32 to vector<1x4xf32>
    %140 = arith.mulf %136, %139 : vector<1x4xf32>
    %141 = arith.mulf %138, %138 : vector<1x4xf32>
    %142 = arith.subf %140, %141 : vector<1x4xf32>
    %cst_66 = arith.constant 0.000000e+00 : f32
    %143 = vector.broadcast %cst_66 : f32 to vector<1x4xf32>
    %144 = arith.maximumf %142, %143 : vector<1x4xf32>
    %cst_67 = arith.constant 9.99999974E-6 : f32
    %145 = vector.broadcast %cst_67 : f32 to vector<1x4xf32>
    %146 = arith.addf %144, %145 : vector<1x4xf32>
    %147 = math.rsqrt %146 : vector<1x4xf32>
    %148 = vector.broadcast %138 : vector<1x4xf32> to vector<512x4xf32>
    %149 = arith.subf %131, %148 : vector<512x4xf32>
    %c0_68 = arith.constant 0 : index
    %c0_69 = arith.constant 0 : index
    %150 = vector.load %arg7[%c0_68, %c0_69] : memref<1x4xf32, #tpu.memory_space<vmem>>, vector<1x4xf32>
    %151 = arith.mulf %147, %150 : vector<1x4xf32>
    %152 = vector.broadcast %151 : vector<1x4xf32> to vector<512x4xf32>
    %153 = arith.mulf %149, %152 : vector<512x4xf32>
    %c0_70 = arith.constant 0 : index
    %c0_71 = arith.constant 0 : index
    %154 = vector.load %arg8[%c0_70, %c0_71] : memref<1x4xf32, #tpu.memory_space<vmem>>, vector<1x4xf32>
    %155 = vector.broadcast %154 : vector<1x4xf32> to vector<512x4xf32>
    %156 = arith.addf %153, %155 : vector<512x4xf32>
    %157 = vector.shape_cast %0 : vector<2x16x16x4xf32> to vector<512x4xf32>
    %158 = arith.addf %156, %157 : vector<512x4xf32>
    %cst_72 = arith.constant 0.000000e+00 : f32
    %159 = vector.broadcast %cst_72 : f32 to vector<512x4xf32>
    %160 = arith.cmpf ogt, %158, %159 : vector<512x4xf32>
    %cst_73 = arith.constant 0.00999999977 : f32
    %161 = vector.broadcast %cst_73 : f32 to vector<512x4xf32>
    %162 = arith.mulf %161, %158 : vector<512x4xf32>
    %163 = arith.select %160, %158, %162 : vector<512x4xi1>, vector<512x4xf32>
    %164 = vector.shape_cast %163 : vector<512x4xf32> to vector<2x16x16x4xf32>
    %c0_74 = arith.constant 0 : index
    %c0_75 = arith.constant 0 : index
    %c0_76 = arith.constant 0 : index
    %c0_77 = arith.constant 0 : index
    %165 = vector.load %arg9[%c0_74, %c0_75, %c0_76, %c0_77] : memref<2x16x16x4xf32, #tpu.memory_space<vmem>>, vector<2x16x16x4xf32>
    tpu.vector_store %arg9[%c0_74, %c0_75, %c0_76, %c0_77], %164 {strides = array<i32>} : memref<2x16x16x4xf32, #tpu.memory_space<vmem>>, vector<2x16x16x4xf32>,
    return
  }
}

</mosaic_0001>

<llo_original>
// kernel: residual_block.1
$region0: #{residual_block.1}
  #allocation0 [shape = 'u32[]', space=smem, size = 0x4, offset = 0x4, fixed_abs, tag = 'smem constant byte address 0x4 - core index']
  #allocation1 [shape = 'u32[144,128]{1,0:T(1,128)}', space=vmem, size = 0x12000, scoped, tag = 'internal scratch']
  %s0 = inlined_call_operand.vmem [shape: f32[2,16,16,4], index: 0, kind: input, shape index: {}]
  %s1 = inlined_call_operand.vmem [shape: bf16[36,4], index: 1, kind: input, shape index: {}]
  %s2 = inlined_call_operand.vmem [shape: f32[1,4], index: 2, kind: input, shape index: {}]
  %s3 = inlined_call_operand.vmem [shape: f32[1,4], index: 3, kind: input, shape index: {}]
  %s4 = inlined_call_operand.vmem [shape: f32[1,4], index: 4, kind: input, shape index: {}]
  %s5 = inlined_call_operand.vmem [shape: bf16[36,4], index: 5, kind: input, shape index: {}]
  %s6 = inlined_call_operand.vmem [shape: f32[1,4], index: 6, kind: input, shape index: {}]
  %s7 = inlined_call_operand.vmem [shape: f32[1,4], index: 7, kind: input, shape index: {}]
  %s8 = inlined_call_operand.vmem [shape: f32[1,4], index: 8, kind: input, shape index: {}]
  %s9 = inlined_call_operand.vmem [shape: f32[2,16,16,4], index: 9, kind: output, shape index: {}]
  %s10 = sld [smem:[#allocation0]]
  $region46: #{residual_block.1} parent=0
    _
  %s12 = ssub.s32 1, %s10
  %s13 = scalar_select 0, %s12, %s10
  // Predicated region
  $region2: #{residual_block.1} parent=0 // pred_check
    _
  $region3: #{residual_block.1} parent=0 // pred_check_branch
    %15 = sbr.rel (0) target = $region5
  $region4: #{residual_block.1} parent=0 // pred_region
    _
  $region5: #{residual_block.1} parent=0 // pred_fallthru
    _
  // Predicated region
  $region6: #{residual_block.1} parent=0 // pred_check
    _
  $region7: #{residual_block.1} parent=0 // pred_check_branch
    %17 = sbr.rel (0) target = $region9
  $region8: #{residual_block.1} parent=0 // pred_region
    _
  $region9: #{residual_block.1} parent=0 // pred_fallthru
    _
  // Predicated region
  $region10: #{residual_block.1} parent=0 // pred_check
    _
  $region11: #{residual_block.1} parent=0 // pred_check_branch
    %19 = sbr.rel (0) target = $region13
  $region12: #{residual_block.1} parent=0 // pred_region
    _
  $region13: #{residual_block.1} parent=0 // pred_fallthru
    _
  // Predicated region
  $region14: #{residual_block.1} parent=0 // pred_check
    _
  $region15: #{residual_block.1} parent=0 // pred_check_branch
    %21 = sbr.rel (0) target = $region17
  $region16: #{residual_block.1} parent=0 // pred_region
    _
  $region17: #{residual_block.1} parent=0 // pred_fallthru
    _
  // Predicated region
  $region18: #{residual_block.1} parent=0 // pred_check
    _
  $region19: #{residual_block.1} parent=0 // pred_check_branch
    %23 = sbr.rel (0) target = $region21
  $region20: #{residual_block.1} parent=0 // pred_region
    _
  $region21: #{residual_block.1} parent=0 // pred_fallthru
    _
  // Predicated region
  $region22: #{residual_block.1} parent=0 // pred_check
    _
  $region23: #{residual_block.1} parent=0 // pred_check_branch
    %25 = sbr.rel (0) target = $region25
  $region24: #{residual_block.1} parent=0 // pred_region
    _
  $region25: #{residual_block.1} parent=0 // pred_fallthru
    _
  // Predicated region
  $region26: #{residual_block.1} parent=0 // pred_check
    _
  $region27: #{residual_block.1} parent=0 // pred_check_branch
    %27 = sbr.rel (0) target = $region29
  $region28: #{residual_block.1} parent=0 // pred_region
    _
  $region29: #{residual_block.1} parent=0 // pred_fallthru
    _
  // Predicated region
  $region30: #{residual_block.1} parent=0 // pred_check
    _
  $region31: #{residual_block.1} parent=0 // pred_check_branch
    %29 = sbr.rel (0) target = $region33
  $region32: #{residual_block.1} parent=0 // pred_region
    _
  $region33: #{residual_block.1} parent=0 // pred_fallthru
    _
  // Predicated region
  $region34: #{residual_block.1} parent=0 // pred_check
    _
  $region35: #{residual_block.1} parent=0 // pred_check_branch
    %31 = sbr.rel (0) target = $region37
  $region36: #{residual_block.1} parent=0 // pred_region
    _
  $region37: #{residual_block.1} parent=0 // pred_fallthru
    _
  %v33 = vld [vmem:[%s0] sm:$0xff]
  %v34 = vld [vmem:[%s0 + $0x8] sm:$0xff]
  %v35 = vld [vmem:[%s0 + $0x10] sm:$0xff]
  %v36 = vld [vmem:[%s0 + $0x18] sm:$0xff]
  %v37 = vld [vmem:[%s0 + $0x20] sm:$0xff]
  %v38 = vld [vmem:[%s0 + $0x28] sm:$0xff]
  %v39 = vld [vmem:[%s0 + $0x30] sm:$0xff]
  %v40 = vld [vmem:[%s0 + $0x38] sm:$0xff]
  %v41 = vld [vmem:[%s0 + $0x40] sm:$0xff]
  %v42 = vld [vmem:[%s0 + $0x48] sm:$0xff]
  %v43 = vld [vmem:[%s0 + $0x50] sm:$0xff]
  %v44 = vld [vmem:[%s0 + $0x58] sm:$0xff]
  %v45 = vld [vmem:[%s0 + $0x60] sm:$0xff]
  %v46 = vld [vmem:[%s0 + $0x68] sm:$0xff]
  %v47 = vld [vmem:[%s0 + $0x70] sm:$0xff]
  %v48 = vld [vmem:[%s0 + $0x78] sm:$0xff]
  %v49 = vld [vmem:[%s0 + $0x80] sm:$0xff]
  %v50 = vld [vmem:[%s0 + $0x88] sm:$0xff]
  %v51 = vld [vmem:[%s0 + $0x90] sm:$0xff]
  %v52 = vld [vmem:[%s0 + $0x98] sm:$0xff]
  %v53 = vld [vmem:[%s0 + $0xa0] sm:$0xff]
  %v54 = vld [vmem:[%s0 + $0xa8] sm:$0xff]
  %v55 = vld [vmem:[%s0 + $0xb0] sm:$0xff]
  %v56 = vld [vmem:[%s0 + $0xb8] sm:$0xff]
  %v57 = vld [vmem:[%s0 + $0xc0] sm:$0xff]
  %v58 = vld [vmem:[%s0 + $0xc8] sm:$0xff]
  %v59 = vld [vmem:[%s0 + $0xd0] sm:$0xff]
  %v60 = vld [vmem:[%s0 + $0xd8] sm:$0xff]
  %v61 = vld [vmem:[%s0 + $0xe0] sm:$0xff]
  %v62 = vld [vmem:[%s0 + $0xe8] sm:$0xff]
  %v63 = vld [vmem:[%s0 + $0xf0] sm:$0xff]
  %v64 = vld [vmem:[%s0 + $0xf8] sm:$0xff]
  %v65 = vld [vmem:[%s0 + $0x100] sm:$0xff]
  %v66 = vld [vmem:[%s0 + $0x108] sm:$0xff]
  %v67 = vld [vmem:[%s0 + $0x110] sm:$0xff]
  %v68 = vld [vmem:[%s0 + $0x118] sm:$0xff]
  %v69 = vld [vmem:[%s0 + $0x120] sm:$0xff]
  %v70 = vld [vmem:[%s0 + $0x128] sm:$0xff]
  %v71 = vld [vmem:[%s0 + $0x130] sm:$0xff]
  %v72 = vld [vmem:[%s0 + $0x138] sm:$0xff]
  %v73 = vld [vmem:[%s0 + $0x140] sm:$0xff]
  %v74 = vld [vmem:[%s0 + $0x148] sm:$0xff]
  %v75 = vld [vmem:[%s0 + $0x150] sm:$0xff]
  %v76 = vld [vmem:[%s0 + $0x158] sm:$0xff]
  %v77 = vld [vmem:[%s0 + $0x160] sm:$0xff]
  %v78 = vld [vmem:[%s0 + $0x168] sm:$0xff]
  %v79 = vld [vmem:[%s0 + $0x170] sm:$0xff]
  %v80 = vld [vmem:[%s0 + $0x178] sm:$0xff]
  %v81 = vld [vmem:[%s0 + $0x180] sm:$0xff]
  %v82 = vld [vmem:[%s0 + $0x188] sm:$0xff]
  %v83 = vld [vmem:[%s0 + $0x190] sm:$0xff]
  %v84 = vld [vmem:[%s0 + $0x198] sm:$0xff]
  %v85 = vld [vmem:[%s0 + $0x1a0] sm:$0xff]
  %v86 = vld [vmem:[%s0 + $0x1a8] sm:$0xff]
  %v87 = vld [vmem:[%s0 + $0x1b0] sm:$0xff]
  %v88 = vld [vmem:[%s0 + $0x1b8] sm:$0xff]
  %v89 = vld [vmem:[%s0 + $0x1c0] sm:$0xff]
  %v90 = vld [vmem:[%s0 + $0x1c8] sm:$0xff]
  %v91 = vld [vmem:[%s0 + $0x1d0] sm:$0xff]
  %v92 = vld [vmem:[%s0 + $0x1d8] sm:$0xff]
  %v93 = vld [vmem:[%s0 + $0x1e0] sm:$0xff]
  %v94 = vld [vmem:[%s0 + $0x1e8] sm:$0xff]
  %v95 = vld [vmem:[%s0 + $0x1f0] sm:$0xff]
  %v96 = vld [vmem:[%s0 + $0x1f8] sm:$0xff]
  %v97 = vrot.slane %v33, 7
  %v98 = vrot.slane %v35, 7
  %v99 = vrot.slane %v37, 7
  %v100 = vrot.slane %v39, 7
  %v101 = vrot.slane %v41, 7
  %v102 = vrot.slane %v43, 7
  %v103 = vrot.slane %v45, 7
  %v104 = vrot.slane %v47, 7
  %v105 = vrot.slane %v49, 7
  %v106 = vrot.slane %v51, 7
  %v107 = vrot.slane %v53, 7
  %v108 = vrot.slane %v55, 7
  %v109 = vrot.slane %v57, 7
  %v110 = vrot.slane %v59, 7
  %v111 = vrot.slane %v61, 7
  %v112 = vrot.slane %v65, 7
  %v113 = vrot.slane %v67, 7
  %v114 = vrot.slane %v69, 7
  %v115 = vrot.slane %v71, 7
  %v116 = vrot.slane %v73, 7
  %v117 = vrot.slane %v75, 7
  %v118 = vrot.slane %v77, 7
  %v119 = vrot.slane %v79, 7
  %v120 = vrot.slane %v81, 7
  %v121 = vrot.slane %v83, 7
  %v122 = vrot.slane %v85, 7
  %v123 = vrot.slane %v87, 7
  %v124 = vrot.slane %v89, 7
  %v125 = vrot.slane %v91, 7
  %v126 = vrot.slane %v93, 7
  %v127 = vrot.slane %v34, 7
  %v128 = vrot.slane %v36, 7
  %v129 = vrot.slane %v38, 7
  %v130 = vrot.slane %v40, 7
  %v131 = vrot.slane %v42, 7
  %v132 = vrot.slane %v44, 7
  %v133 = vrot.slane %v46, 7
  %v134 = vrot.slane %v48, 7
  %v135 = vrot.slane %v50, 7
  %v136 = vrot.slane %v52, 7
  %v137 = vrot.slane %v54, 7
  %v138 = vrot.slane %v56, 7
  %v139 = vrot.slane %v58, 7
  %v140 = vrot.slane %v60, 7
  %v141 = vrot.slane %v62, 7
  %v142 = vrot.slane %v66, 7
  %v143 = vrot.slane %v68, 7
  %v144 = vrot.slane %v70, 7
  %v145 = vrot.slane %v72, 7
  %v146 = vrot.slane %v74, 7
  %v147 = vrot.slane %v76, 7
  %v148 = vrot.slane %v78, 7
  %v149 = vrot.slane %v80, 7
  %v150 = vrot.slane %v82, 7
  %v151 = vrot.slane %v84, 7
  %v152 = vrot.slane %v86, 7
  %v153 = vrot.slane %v88, 7
  %v154 = vrot.slane %v90, 7
  %v155 = vrot.slane %v92, 7
  %v156 = vrot.slane %v94, 7
  %v157 = vlaneseq
  %v158 = vshrl.u32 %v157, 7
  %vm159 = vcmp.lt.s32.totalorder %v158, 1
  %v160 = vsel %vm159, %v97, %v127
  %v161 = vsel %vm159, %v98, %v128
  %v162 = vsel %vm159, %v99, %v129
  %v163 = vsel %vm159, %v100, %v130
  %v164 = vsel %vm159, %v101, %v131
  %v165 = vsel %vm159, %v102, %v132
  %v166 = vsel %vm159, %v103, %v133
  %v167 = vsel %vm159, %v104, %v134
  %v168 = vsel %vm159, %v105, %v135
  %v169 = vsel %vm159, %v106, %v136
  %v170 = vsel %vm159, %v107, %v137
  %v171 = vsel %vm159, %v108, %v138
  %v172 = vsel %vm159, %v109, %v139
  %v173 = vsel %vm159, %v110, %v140
  %v174 = vsel %vm159, %v111, %v141
  %v175 = vsel %vm159, %v112, %v142
  %v176 = vsel %vm159, %v113, %v143
  %v177 = vsel %vm159, %v114, %v144
  %v178 = vsel %vm159, %v115, %v145
  %v179 = vsel %vm159, %v116, %v146
  %v180 = vsel %vm159, %v117, %v147
  %v181 = vsel %vm159, %v118, %v148
  %v182 = vsel %vm159, %v119, %v149
  %v183 = vsel %vm159, %v120, %v150
  %v184 = vsel %vm159, %v121, %v151
  %v185 = vsel %vm159, %v122, %v152
  %v186 = vsel %vm159, %v123, %v153
  %v187 = vsel %vm159, %v124, %v154
  %v188 = vsel %vm159, %v125, %v155
  %v189 = vsel %vm159, %v126, %v156
  %v190 = vsel %vm159, %v127, %v97
  %v191 = vsel %vm159, %v128, %v98
  %v192 = vsel %vm159, %v129, %v99
  %v193 = vsel %vm159, %v130, %v100
  %v194 = vsel %vm159, %v131, %v101
  %v195 = vsel %vm159, %v132, %v102
  %v196 = vsel %vm159, %v133, %v103
  %v197 = vsel %vm159, %v134, %v104
  %v198 = vsel %vm159, %v135, %v105
  %v199 = vsel %vm159, %v136, %v106
  %v200 = vsel %vm159, %v137, %v107
  %v201 = vsel %vm159, %v138, %v108
  %v202 = vsel %vm159, %v139, %v109
  %v203 = vsel %vm159, %v140, %v110
  %v204 = vsel %vm159, %v141, %v111
  %v205 = vsel %vm159, %v142, %v112
  %v206 = vsel %vm159, %v143, %v113
  %v207 = vsel %vm159, %v144, %v114
  %v208 = vsel %vm159, %v145, %v115
  %v209 = vsel %vm159, %v146, %v116
  %v210 = vsel %vm159, %v147, %v117
  %v211 = vsel %vm159, %v148, %v118
  %v212 = vsel %vm159, %v149, %v119
  %v213 = vsel %vm159, %v150, %v120
  %v214 = vsel %vm159, %v151, %v121
  %v215 = vsel %vm159, %v152, %v122
  %v216 = vsel %vm159, %v153, %v123
  %v217 = vsel %vm159, %v154, %v124
  %v218 = vsel %vm159, %v155, %v125
  %v219 = vsel %vm159, %v156, %v126
  %v220 = vadd.s32 %v158, 8
  %vm221 = vcmp.ge.s32.totalorder %v158, 1
  %vm222 = vcmp.ge.s32.totalorder %v220, 1
  %v223 = vsel %vm221, 0.0, 0.0
  %v224 = vsel %vm222, 0.0, 0.0
  %v225 = vsel %vm221, %v190, 0.0
  %v226 = vsel %vm222, %v160, 0.0
  %v227 = vsel %vm221, %v191, 0.0
  %v228 = vsel %vm222, %v161, 0.0
  %v229 = vsel %vm221, %v192, 0.0
  %v230 = vsel %vm222, %v162, 0.0
  %v231 = vsel %vm221, %v193, 0.0
  %v232 = vsel %vm222, %v163, 0.0
  %v233 = vsel %vm221, %v194, 0.0
  %v234 = vsel %vm222, %v164, 0.0
  %v235 = vsel %vm221, %v195, 0.0
  %v236 = vsel %vm222, %v165, 0.0
  %v237 = vsel %vm221, %v196, 0.0
  %v238 = vsel %vm222, %v166, 0.0
  %v239 = vsel %vm221, %v197, 0.0
  %v240 = vsel %vm222, %v167, 0.0
  %v241 = vsel %vm221, %v198, 0.0
  %v242 = vsel %vm222, %v168, 0.0
  %v243 = vsel %vm221, %v199, 0.0
  %v244 = vsel %vm222, %v169, 0.0
  %v245 = vsel %vm221, %v200, 0.0
  %v246 = vsel %vm222, %v170, 0.0
  %v247 = vsel %vm221, %v201, 0.0
  %v248 = vsel %vm222, %v171, 0.0
  %v249 = vsel %vm221, %v202, 0.0
  %v250 = vsel %vm222, %v172, 0.0
  %v251 = vsel %vm221, %v203, 0.0
  %v252 = vsel %vm222, %v173, 0.0
  %v253 = vsel %vm221, %v204, 0.0
  %v254 = vsel %vm222, %v174, 0.0
  %v255 = vsel %vm221, %v205, 0.0
  %v256 = vsel %vm222, %v175, 0.0
  %v257 = vsel %vm221, %v206, 0.0
  %v258 = vsel %vm222, %v176, 0.0
  %v259 = vsel %vm221, %v207, 0.0
  %v260 = vsel %vm222, %v177, 0.0
  %v261 = vsel %vm221, %v208, 0.0
  %v262 = vsel %vm222, %v178, 0.0
  %v263 = vsel %vm221, %v209, 0.0
  %v264 = vsel %vm222, %v179, 0.0
  %v265 = vsel %vm221, %v210, 0.0
  %v266 = vsel %vm222, %v180, 0.0
  %v267 = vsel %vm221, %v211, 0.0
  %v268 = vsel %vm222, %v181, 0.0
  %v269 = vsel %vm221, %v212, 0.0
  %v270 = vsel %vm222, %v182, 0.0
  %v271 = vsel %vm221, %v213, 0.0
  %v272 = vsel %vm222, %v183, 0.0
  %v273 = vsel %vm221, %v214, 0.0
  %v274 = vsel %vm222, %v184, 0.0
  %v275 = vsel %vm221, %v215, 0.0
  %v276 = vsel %vm222, %v185, 0.0
  %v277 = vsel %vm221, %v216, 0.0
  %v278 = vsel %vm222, %v186, 0.0
  %v279 = vsel %vm221, %v217, 0.0
  %v280 = vsel %vm222, %v187, 0.0
  %v281 = vsel %vm221, %v218, 0.0
  %v282 = vsel %vm222, %v188, 0.0
  %v283 = vsel %vm221, %v219, 0.0
  %v284 = vsel %vm222, %v189, 0.0
  %v285 = vrot.slane %v33, 1
  %v286 = vrot.slane %v35, 1
  %v287 = vrot.slane %v37, 1
  %v288 = vrot.slane %v39, 1
  %v289 = vrot.slane %v41, 1
  %v290 = vrot.slane %v43, 1
  %v291 = vrot.slane %v45, 1
  %v292 = vrot.slane %v47, 1
  %v293 = vrot.slane %v49, 1
  %v294 = vrot.slane %v51, 1
  %v295 = vrot.slane %v53, 1
  %v296 = vrot.slane %v55, 1
  %v297 = vrot.slane %v57, 1
  %v298 = vrot.slane %v59, 1
  %v299 = vrot.slane %v61, 1
  %v300 = vrot.slane %v65, 1
  %v301 = vrot.slane %v67, 1
  %v302 = vrot.slane %v69, 1
  %v303 = vrot.slane %v71, 1
  %v304 = vrot.slane %v73, 1
  %v305 = vrot.slane %v75, 1
  %v306 = vrot.slane %v77, 1
  %v307 = vrot.slane %v79, 1
  %v308 = vrot.slane %v81, 1
  %v309 = vrot.slane %v83, 1
  %v310 = vrot.slane %v85, 1
  %v311 = vrot.slane %v87, 1
  %v312 = vrot.slane %v89, 1
  %v313 = vrot.slane %v91, 1
  %v314 = vrot.slane %v93, 1
  %v315 = vrot.slane %v34, 1
  %v316 = vrot.slane %v36, 1
  %v317 = vrot.slane %v38, 1
  %v318 = vrot.slane %v40, 1
  %v319 = vrot.slane %v42, 1
  %v320 = vrot.slane %v44, 1
  %v321 = vrot.slane %v46, 1
  %v322 = vrot.slane %v48, 1
  %v323 = vrot.slane %v50, 1
  %v324 = vrot.slane %v52, 1
  %v325 = vrot.slane %v54, 1
  %v326 = vrot.slane %v56, 1
  %v327 = vrot.slane %v58, 1
  %v328 = vrot.slane %v60, 1
  %v329 = vrot.slane %v62, 1
  %v330 = vrot.slane %v66, 1
  %v331 = vrot.slane %v68, 1
  %v332 = vrot.slane %v70, 1
  %v333 = vrot.slane %v72, 1
  %v334 = vrot.slane %v74, 1
  %v335 = vrot.slane %v76, 1
  %v336 = vrot.slane %v78, 1
  %v337 = vrot.slane %v80, 1
  %v338 = vrot.slane %v82, 1
  %v339 = vrot.slane %v84, 1
  %v340 = vrot.slane %v86, 1
  %v341 = vrot.slane %v88, 1
  %v342 = vrot.slane %v90, 1
  %v343 = vrot.slane %v92, 1
  %v344 = vrot.slane %v94, 1
  %vm345 = vcmp.lt.s32.totalorder %v158, 7
  %v346 = vsel %vm345, %v285, %v315
  %v347 = vsel %vm345, %v286, %v316
  %v348 = vsel %vm345, %v287, %v317
  %v349 = vsel %vm345, %v288, %v318
  %v350 = vsel %vm345, %v289, %v319
  %v351 = vsel %vm345, %v290, %v320
  %v352 = vsel %vm345, %v291, %v321
  %v353 = vsel %vm345, %v292, %v322
  %v354 = vsel %vm345, %v293, %v323
  %v355 = vsel %vm345, %v294, %v324
  %v356 = vsel %vm345, %v295, %v325
  %v357 = vsel %vm345, %v296, %v326
  %v358 = vsel %vm345, %v297, %v327
  %v359 = vsel %vm345, %v298, %v328
  %v360 = vsel %vm345, %v299, %v329
  %v361 = vsel %vm345, %v300, %v330
  %v362 = vsel %vm345, %v301, %v331
  %v363 = vsel %vm345, %v302, %v332
  %v364 = vsel %vm345, %v303, %v333
  %v365 = vsel %vm345, %v304, %v334
  %v366 = vsel %vm345, %v305, %v335
  %v367 = vsel %vm345, %v306, %v336
  %v368 = vsel %vm345, %v307, %v337
  %v369 = vsel %vm345, %v308, %v338
  %v370 = vsel %vm345, %v309, %v339
  %v371 = vsel %vm345, %v310, %v340
  %v372 = vsel %vm345, %v311, %v341
  %v373 = vsel %vm345, %v312, %v342
  %v374 = vsel %vm345, %v313, %v343
  %v375 = vsel %vm345, %v314, %v344
  %v376 = vsel %vm345, %v315, %v285
  %v377 = vsel %vm345, %v316, %v286
  %v378 = vsel %vm345, %v317, %v287
  %v379 = vsel %vm345, %v318, %v288
  %v380 = vsel %vm345, %v319, %v289
  %v381 = vsel %vm345, %v320, %v290
  %v382 = vsel %vm345, %v321, %v291
  %v383 = vsel %vm345, %v322, %v292
  %v384 = vsel %vm345, %v323, %v293
  %v385 = vsel %vm345, %v324, %v294
  %v386 = vsel %vm345, %v325, %v295
  %v387 = vsel %vm345, %v326, %v296
  %v388 = vsel %vm345, %v327, %v297
  %v389 = vsel %vm345, %v328, %v298
  %v390 = vsel %vm345, %v329, %v299
  %v391 = vsel %vm345, %v330, %v300
  %v392 = vsel %vm345, %v331, %v301
  %v393 = vsel %vm345, %v332, %v302
  %v394 = vsel %vm345, %v333, %v303
  %v395 = vsel %vm345, %v334, %v304
  %v396 = vsel %vm345, %v335, %v305
  %v397 = vsel %vm345, %v336, %v306
  %v398 = vsel %vm345, %v337, %v307
  %v399 = vsel %vm345, %v338, %v308
  %v400 = vsel %vm345, %v339, %v309
  %v401 = vsel %vm345, %v340, %v310
  %v402 = vsel %vm345, %v341, %v311
  %v403 = vsel %vm345, %v342, %v312
  %v404 = vsel %vm345, %v343, %v313
  %v405 = vsel %vm345, %v344, %v314
  %vm406 = vcmp.lt.s32.totalorder %v158, 15
  %vm407 = vcmp.lt.s32.totalorder %v220, 15
  %v408 = vsel %vm406, 0.0, 0.0
  %v409 = vsel %vm407, 0.0, 0.0
  %v410 = vsel %vm406, %v346, 0.0
  %v411 = vsel %vm407, %v376, 0.0
  %v412 = vsel %vm406, %v347, 0.0
  %v413 = vsel %vm407, %v377, 0.0
  %v414 = vsel %vm406, %v348, 0.0
  %v415 = vsel %vm407, %v378, 0.0
  %v416 = vsel %vm406, %v349, 0.0
  %v417 = vsel %vm407, %v379, 0.0
  %v418 = vsel %vm406, %v350, 0.0
  %v419 = vsel %vm407, %v380, 0.0
  %v420 = vsel %vm406, %v351, 0.0
  %v421 = vsel %vm407, %v381, 0.0
  %v422 = vsel %vm406, %v352, 0.0
  %v423 = vsel %vm407, %v382, 0.0
  %v424 = vsel %vm406, %v353, 0.0
  %v425 = vsel %vm407, %v383, 0.0
  %v426 = vsel %vm406, %v354, 0.0
  %v427 = vsel %vm407, %v384, 0.0
  %v428 = vsel %vm406, %v355, 0.0
  %v429 = vsel %vm407, %v385, 0.0
  %v430 = vsel %vm406, %v356, 0.0
  %v431 = vsel %vm407, %v386, 0.0
  %v432 = vsel %vm406, %v357, 0.0
  %v433 = vsel %vm407, %v387, 0.0
  %v434 = vsel %vm406, %v358, 0.0
  %v435 = vsel %vm407, %v388, 0.0
  %v436 = vsel %vm406, %v359, 0.0
  %v437 = vsel %vm407, %v389, 0.0
  %v438 = vsel %vm406, %v360, 0.0
  %v439 = vsel %vm407, %v390, 0.0
  %v440 = vsel %vm406, %v361, 0.0
  %v441 = vsel %vm407, %v391, 0.0
  %v442 = vsel %vm406, %v362, 0.0
  %v443 = vsel %vm407, %v392, 0.0
  %v444 = vsel %vm406, %v363, 0.0
  %v445 = vsel %vm407, %v393, 0.0
  %v446 = vsel %vm406, %v364, 0.0
  %v447 = vsel %vm407, %v394, 0.0
  %v448 = vsel %vm406, %v365, 0.0
  %v449 = vsel %vm407, %v395, 0.0
  %v450 = vsel %vm406, %v366, 0.0
  %v451 = vsel %vm407, %v396, 0.0
  %v452 = vsel %vm406, %v367, 0.0
  %v453 = vsel %vm407, %v397, 0.0
  %v454 = vsel %vm406, %v368, 0.0
  %v455 = vsel %vm407, %v398, 0.0
  %v456 = vsel %vm406, %v369, 0.0
  %v457 = vsel %vm407, %v399, 0.0
  %v458 = vsel %vm406, %v370, 0.0
  %v459 = vsel %vm407, %v400, 0.0
  %v460 = vsel %vm406, %v371, 0.0
  %v461 = vsel %vm407, %v401, 0.0
  %v462 = vsel %vm406, %v372, 0.0
  %v463 = vsel %vm407, %v402, 0.0
  %v464 = vsel %vm406, %v373, 0.0
  %v465 = vsel %vm407, %v403, 0.0
  %v466 = vsel %vm406, %v374, 0.0
  %v467 = vsel %vm407, %v404, 0.0
  %v468 = vsel %vm406, %v375, 0.0
  %v469 = vsel %vm407, %v405, 0.0
  %v470 = vrot.slane %v63, 7
  %v471 = vrot.slane %v95, 7
  %v472 = vrot.slane %v64, 7
  %v473 = vrot.slane %v96, 7
  %v474 = vsel %vm159, %v470, %v472
  %v475 = vsel %vm159, %v471, %v473
  %v476 = vsel %vm159, %v472, %v470
  %v477 = vsel %vm159, %v473, %v471
  %v478 = vsel %vm221, %v476, 0.0
  %v479 = vsel %vm222, %v474, 0.0
  %v480 = vsel %vm221, %v477, 0.0
  %v481 = vsel %vm222, %v475, 0.0
  %v482 = vrot.slane %v63, 1
  %v483 = vrot.slane %v95, 1
  %v484 = vrot.slane %v64, 1
  %v485 = vrot.slane %v96, 1
  %v486 = vsel %vm345, %v482, %v484
  %v487 = vsel %vm345, %v483, %v485
  %v488 = vsel %vm345, %v484, %v482
  %v489 = vsel %vm345, %v485, %v483
  %v490 = vsel %vm406, %v486, 0.0
  %v491 = vsel %vm407, %v488, 0.0
  %v492 = vsel %vm406, %v487, 0.0
  %v493 = vsel %vm407, %v489, 0.0
  %555 = vrot.lane.b32.xlu0 0.0, 4
  %v556 = vpop.permute.xlu0 %555
  %557 = vrot.lane.b32.xlu0 %v33, 4
  %v558 = vpop.permute.xlu0 %557
  %559 = vrot.lane.b32.xlu0 %v34, 4
  %v560 = vpop.permute.xlu0 %559
  %561 = vrot.lane.b32.xlu0 %v35, 4
  %v562 = vpop.permute.xlu0 %561
  %563 = vrot.lane.b32.xlu0 %v36, 4
  %v564 = vpop.permute.xlu0 %563
  %565 = vrot.lane.b32.xlu0 %v37, 4
  %v566 = vpop.permute.xlu0 %565
  %567 = vrot.lane.b32.xlu0 %v38, 4
  %v568 = vpop.permute.xlu0 %567
  %569 = vrot.lane.b32.xlu0 %v39, 4
  %v570 = vpop.permute.xlu0 %569
  %571 = vrot.lane.b32.xlu0 %v40, 4
  %v572 = vpop.permute.xlu0 %571
  %573 = vrot.lane.b32.xlu0 %v41, 4
  %v574 = vpop.permute.xlu0 %573
  %575 = vrot.lane.b32.xlu0 %v42, 4
  %v576 = vpop.permute.xlu0 %575
  %577 = vrot.lane.b32.xlu0 %v43, 4
  %v578 = vpop.permute.xlu0 %577
  %579 = vrot.lane.b32.xlu0 %v44, 4
  %v580 = vpop.permute.xlu0 %579
  %581 = vrot.lane.b32.xlu0 %v45, 4
  %v582 = vpop.permute.xlu0 %581
  %583 = vrot.lane.b32.xlu0 %v46, 4
  %v584 = vpop.permute.xlu0 %583
  %585 = vrot.lane.b32.xlu0 %v47, 4
  %v586 = vpop.permute.xlu0 %585
  %587 = vrot.lane.b32.xlu0 %v48, 4
  %v588 = vpop.permute.xlu0 %587
  %589 = vrot.lane.b32.xlu0 %v49, 4
  %v590 = vpop.permute.xlu0 %589
  %591 = vrot.lane.b32.xlu0 %v50, 4
  %v592 = vpop.permute.xlu0 %591
  %593 = vrot.lane.b32.xlu0 %v51, 4
  %v594 = vpop.permute.xlu0 %593
  %595 = vrot.lane.b32.xlu0 %v52, 4
  %v596 = vpop.permute.xlu0 %595
  %597 = vrot.lane.b32.xlu0 %v53, 4
  %v598 = vpop.permute.xlu0 %597
  %599 = vrot.lane.b32.xlu0 %v54, 4
  %v600 = vpop.permute.xlu0 %599
  %601 = vrot.lane.b32.xlu0 %v55, 4
  %v602 = vpop.permute.xlu0 %601
  %603 = vrot.lane.b32.xlu0 %v56, 4
  %v604 = vpop.permute.xlu0 %603
  %605 = vrot.lane.b32.xlu0 %v57, 4
  %v606 = vpop.permute.xlu0 %605
  %607 = vrot.lane.b32.xlu0 %v58, 4
  %v608 = vpop.permute.xlu0 %607
  %609 = vrot.lane.b32.xlu0 %v59, 4
  %v610 = vpop.permute.xlu0 %609
  %611 = vrot.lane.b32.xlu0 %v60, 4
  %v612 = vpop.permute.xlu0 %611
  %613 = vrot.lane.b32.xlu0 %v61, 4
  %v614 = vpop.permute.xlu0 %613
  %615 = vrot.lane.b32.xlu0 %v62, 4
  %v616 = vpop.permute.xlu0 %615
  %617 = vrot.lane.b32.xlu0 %v65, 4
  %v618 = vpop.permute.xlu0 %617
  %619 = vrot.lane.b32.xlu0 %v66, 4
  %v620 = vpop.permute.xlu0 %619
  %621 = vrot.lane.b32.xlu0 %v67, 4
  %v622 = vpop.permute.xlu0 %621
  %623 = vrot.lane.b32.xlu0 %v68, 4
  %v624 = vpop.permute.xlu0 %623
  %625 = vrot.lane.b32.xlu0 %v69, 4
  %v626 = vpop.permute.xlu0 %625
  %627 = vrot.lane.b32.xlu0 %v70, 4
  %v628 = vpop.permute.xlu0 %627
  %629 = vrot.lane.b32.xlu0 %v71, 4
  %v630 = vpop.permute.xlu0 %629
  %631 = vrot.lane.b32.xlu0 %v72, 4
  %v632 = vpop.permute.xlu0 %631
  %633 = vrot.lane.b32.xlu0 %v73, 4
  %v634 = vpop.permute.xlu0 %633
  %635 = vrot.lane.b32.xlu0 %v74, 4
  %v636 = vpop.permute.xlu0 %635
  %637 = vrot.lane.b32.xlu0 %v75, 4
  %v638 = vpop.permute.xlu0 %637
  %639 = vrot.lane.b32.xlu0 %v76, 4
  %v640 = vpop.permute.xlu0 %639
  %641 = vrot.lane.b32.xlu0 %v77, 4
  %v642 = vpop.permute.xlu0 %641
  %643 = vrot.lane.b32.xlu0 %v78, 4
  %v644 = vpop.permute.xlu0 %643
  %645 = vrot.lane.b32.xlu0 %v79, 4
  %v646 = vpop.permute.xlu0 %645
  %647 = vrot.lane.b32.xlu0 %v80, 4
  %v648 = vpop.permute.xlu0 %647
  %649 = vrot.lane.b32.xlu0 %v81, 4
  %v650 = vpop.permute.xlu0 %649
  %651 = vrot.lane.b32.xlu0 %v82, 4
  %v652 = vpop.permute.xlu0 %651
  %653 = vrot.lane.b32.xlu0 %v83, 4
  %v654 = vpop.permute.xlu0 %653
  %655 = vrot.lane.b32.xlu0 %v84, 4
  %v656 = vpop.permute.xlu0 %655
  %657 = vrot.lane.b32.xlu0 %v85, 4
  %v658 = vpop.permute.xlu0 %657
  %659 = vrot.lane.b32.xlu0 %v86, 4
  %v660 = vpop.permute.xlu0 %659
  %661 = vrot.lane.b32.xlu0 %v87, 4
  %v662 = vpop.permute.xlu0 %661
  %663 = vrot.lane.b32.xlu0 %v88, 4
  %v664 = vpop.permute.xlu0 %663
  %665 = vrot.lane.b32.xlu0 %v89, 4
  %v666 = vpop.permute.xlu0 %665
  %667 = vrot.lane.b32.xlu0 %v90, 4
  %v668 = vpop.permute.xlu0 %667
  %669 = vrot.lane.b32.xlu0 %v91, 4
  %v670 = vpop.permute.xlu0 %669
  %671 = vrot.lane.b32.xlu0 %v92, 4
  %v672 = vpop.permute.xlu0 %671
  %673 = vrot.lane.b32.xlu0 %v93, 4
  %v674 = vpop.permute.xlu0 %673
  %675 = vrot.lane.b32.xlu0 %v94, 4
  %v676 = vpop.permute.xlu0 %675
  %800 = vrot.lane.b32.xlu0 %v408, 8
  %v801 = vpop.permute.xlu0 %800
  %802 = vrot.lane.b32.xlu0 %v409, 8
  %v803 = vpop.permute.xlu0 %802
  %804 = vrot.lane.b32.xlu0 %v410, 8
  %v805 = vpop.permute.xlu0 %804
  %806 = vrot.lane.b32.xlu0 %v411, 8
  %v807 = vpop.permute.xlu0 %806
  %808 = vrot.lane.b32.xlu0 %v412, 8
  %v809 = vpop.permute.xlu0 %808
  %810 = vrot.lane.b32.xlu0 %v413, 8
  %v811 = vpop.permute.xlu0 %810
  %812 = vrot.lane.b32.xlu0 %v414, 8
  %v813 = vpop.permute.xlu0 %812
  %814 = vrot.lane.b32.xlu0 %v415, 8
  %v815 = vpop.permute.xlu0 %814
  %816 = vrot.lane.b32.xlu0 %v416, 8
  %v817 = vpop.permute.xlu0 %816
  %818 = vrot.lane.b32.xlu0 %v417, 8
  %v819 = vpop.permute.xlu0 %818
  %820 = vrot.lane.b32.xlu0 %v418, 8
  %v821 = vpop.permute.xlu0 %820
  %822 = vrot.lane.b32.xlu0 %v419, 8
  %v823 = vpop.permute.xlu0 %822
  %824 = vrot.lane.b32.xlu0 %v420, 8
  %v825 = vpop.permute.xlu0 %824
  %826 = vrot.lane.b32.xlu0 %v421, 8
  %v827 = vpop.permute.xlu0 %826
  %828 = vrot.lane.b32.xlu0 %v422, 8
  %v829 = vpop.permute.xlu0 %828
  %830 = vrot.lane.b32.xlu0 %v423, 8
  %v831 = vpop.permute.xlu0 %830
  %832 = vrot.lane.b32.xlu0 %v424, 8
  %v833 = vpop.permute.xlu0 %832
  %834 = vrot.lane.b32.xlu0 %v425, 8
  %v835 = vpop.permute.xlu0 %834
  %836 = vrot.lane.b32.xlu0 %v426, 8
  %v837 = vpop.permute.xlu0 %836
  %838 = vrot.lane.b32.xlu0 %v427, 8
  %v839 = vpop.permute.xlu0 %838
  %840 = vrot.lane.b32.xlu0 %v428, 8
  %v841 = vpop.permute.xlu0 %840
  %842 = vrot.lane.b32.xlu0 %v429, 8
  %v843 = vpop.permute.xlu0 %842
  %844 = vrot.lane.b32.xlu0 %v430, 8
  %v845 = vpop.permute.xlu0 %844
  %846 = vrot.lane.b32.xlu0 %v431, 8
  %v847 = vpop.permute.xlu0 %846
  %848 = vrot.lane.b32.xlu0 %v432, 8
  %v849 = vpop.permute.xlu0 %848
  %850 = vrot.lane.b32.xlu0 %v433, 8
  %v851 = vpop.permute.xlu0 %850
  %852 = vrot.lane.b32.xlu0 %v434, 8
  %v853 = vpop.permute.xlu0 %852
  %854 = vrot.lane.b32.xlu0 %v435, 8
  %v855 = vpop.permute.xlu0 %854
  %856 = vrot.lane.b32.xlu0 %v436, 8
  %v857 = vpop.permute.xlu0 %856
  %858 = vrot.lane.b32.xlu0 %v437, 8
  %v859 = vpop.permute.xlu0 %858
  %860 = vrot.lane.b32.xlu0 %v438, 8
  %v861 = vpop.permute.xlu0 %860
  %862 = vrot.lane.b32.xlu0 %v439, 8
  %v863 = vpop.permute.xlu0 %862
  %864 = vrot.lane.b32.xlu0 %v440, 8
  %v865 = vpop.permute.xlu0 %864
  %866 = vrot.lane.b32.xlu0 %v441, 8
  %v867 = vpop.permute.xlu0 %866
  %868 = vrot.lane.b32.xlu0 %v442, 8
  %v869 = vpop.permute.xlu0 %868
  %870 = vrot.lane.b32.xlu0 %v443, 8
  %v871 = vpop.permute.xlu0 %870
  %872 = vrot.lane.b32.xlu0 %v444, 8
  %v873 = vpop.permute.xlu0 %872
  %874 = vrot.lane.b32.xlu0 %v445, 8
  %v875 = vpop.permute.xlu0 %874
  %876 = vrot.lane.b32.xlu0 %v446, 8
  %v877 = vpop.permute.xlu0 %876
  %878 = vrot.lane.b32.xlu0 %v447, 8
  %v879 = vpop.permute.xlu0 %878
  %880 = vrot.lane.b32.xlu0 %v448, 8
  %v881 = vpop.permute.xlu0 %880
  %882 = vrot.lane.b32.xlu0 %v449, 8
  %v883 = vpop.permute.xlu0 %882
  %884 = vrot.lane.b32.xlu0 %v450, 8
  %v885 = vpop.permute.xlu0 %884
  %886 = vrot.lane.b32.xlu0 %v451, 8
  %v887 = vpop.permute.xlu0 %886
  %888 = vrot.lane.b32.xlu0 %v452, 8
  %v889 = vpop.permute.xlu0 %888
  %890 = vrot.lane.b32.xlu0 %v453, 8
  %v891 = vpop.permute.xlu0 %890
  %892 = vrot.lane.b32.xlu0 %v454, 8
  %v893 = vpop.permute.xlu0 %892
  %894 = vrot.lane.b32.xlu0 %v455, 8
  %v895 = vpop.permute.xlu0 %894
  %896 = vrot.lane.b32.xlu0 %v456, 8
  %v897 = vpop.permute.xlu0 %896
  %898 = vrot.lane.b32.xlu0 %v457, 8
  %v899 = vpop.permute.xlu0 %898
  %900 = vrot.lane.b32.xlu0 %v458, 8
  %v901 = vpop.permute.xlu0 %900
  %902 = vrot.lane.b32.xlu0 %v459, 8
  %v903 = vpop.permute.xlu0 %902
  %904 = vrot.lane.b32.xlu0 %v460, 8
  %v905 = vpop.permute.xlu0 %904
  %906 = vrot.lane.b32.xlu0 %v461, 8
  %v907 = vpop.permute.xlu0 %906
  %908 = vrot.lane.b32.xlu0 %v462, 8
  %v909 = vpop.permute.xlu0 %908
  %910 = vrot.lane.b32.xlu0 %v463, 8
  %v911 = vpop.permute.xlu0 %910
  %912 = vrot.lane.b32.xlu0 %v464, 8
  %v913 = vpop.permute.xlu0 %912
  %914 = vrot.lane.b32.xlu0 %v465, 8
  %v915 = vpop.permute.xlu0 %914
  %916 = vrot.lane.b32.xlu0 %v466, 8
  %v917 = vpop.permute.xlu0 %916
  %918 = vrot.lane.b32.xlu0 %v467, 8
  %v919 = vpop.permute.xlu0 %918
  %920 = vrot.lane.b32.xlu0 %v468, 8
  %v921 = vpop.permute.xlu0 %920
  %922 = vrot.lane.b32.xlu0 %v469, 8
  %v923 = vpop.permute.xlu0 %922
  %1050 = vrot.lane.b32.xlu0 %v225, 12
  %v1051 = vpop.permute.xlu0 %1050
  %1052 = vrot.lane.b32.xlu0 %v226, 12
  %v1053 = vpop.permute.xlu0 %1052
  %1054 = vrot.lane.b32.xlu0 %v227, 12
  %v1055 = vpop.permute.xlu0 %1054
  %1056 = vrot.lane.b32.xlu0 %v228, 12
  %v1057 = vpop.permute.xlu0 %1056
  %1058 = vrot.lane.b32.xlu0 %v229, 12
  %v1059 = vpop.permute.xlu0 %1058
  %1060 = vrot.lane.b32.xlu0 %v230, 12
  %v1061 = vpop.permute.xlu0 %1060
  %1062 = vrot.lane.b32.xlu0 %v231, 12
  %v1063 = vpop.permute.xlu0 %1062
  %1064 = vrot.lane.b32.xlu0 %v232, 12
  %v1065 = vpop.permute.xlu0 %1064
  %1066 = vrot.lane.b32.xlu0 %v233, 12
  %v1067 = vpop.permute.xlu0 %1066
  %1068 = vrot.lane.b32.xlu0 %v234, 12
  %v1069 = vpop.permute.xlu0 %1068
  %1070 = vrot.lane.b32.xlu0 %v235, 12
  %v1071 = vpop.permute.xlu0 %1070
  %1072 = vrot.lane.b32.xlu0 %v236, 12
  %v1073 = vpop.permute.xlu0 %1072
  %1074 = vrot.lane.b32.xlu0 %v237, 12
  %v1075 = vpop.permute.xlu0 %1074
  %1076 = vrot.lane.b32.xlu0 %v238, 12
  %v1077 = vpop.permute.xlu0 %1076
  %1078 = vrot.lane.b32.xlu0 %v239, 12
  %v1079 = vpop.permute.xlu0 %1078
  %1080 = vrot.lane.b32.xlu0 %v240, 12
  %v1081 = vpop.permute.xlu0 %1080
  %1082 = vrot.lane.b32.xlu0 %v241, 12
  %v1083 = vpop.permute.xlu0 %1082
  %1084 = vrot.lane.b32.xlu0 %v242, 12
  %v1085 = vpop.permute.xlu0 %1084
  %1086 = vrot.lane.b32.xlu0 %v243, 12
  %v1087 = vpop.permute.xlu0 %1086
  %1088 = vrot.lane.b32.xlu0 %v244, 12
  %v1089 = vpop.permute.xlu0 %1088
  %1090 = vrot.lane.b32.xlu0 %v245, 12
  %v1091 = vpop.permute.xlu0 %1090
  %1092 = vrot.lane.b32.xlu0 %v246, 12
  %v1093 = vpop.permute.xlu0 %1092
  %1094 = vrot.lane.b32.xlu0 %v247, 12
  %v1095 = vpop.permute.xlu0 %1094
  %1096 = vrot.lane.b32.xlu0 %v248, 12
  %v1097 = vpop.permute.xlu0 %1096
  %1098 = vrot.lane.b32.xlu0 %v249, 12
  %v1099 = vpop.permute.xlu0 %1098
  %1100 = vrot.lane.b32.xlu0 %v250, 12
  %v1101 = vpop.permute.xlu0 %1100
  %1102 = vrot.lane.b32.xlu0 %v251, 12
  %v1103 = vpop.permute.xlu0 %1102
  %1104 = vrot.lane.b32.xlu0 %v252, 12
  %v1105 = vpop.permute.xlu0 %1104
  %1106 = vrot.lane.b32.xlu0 %v253, 12
  %v1107 = vpop.permute.xlu0 %1106
  %1108 = vrot.lane.b32.xlu0 %v254, 12
  %v1109 = vpop.permute.xlu0 %1108
  %1110 = vrot.lane.b32.xlu0 %v478, 12
  %v1111 = vpop.permute.xlu0 %1110
  %1112 = vrot.lane.b32.xlu0 %v479, 12
  %v1113 = vpop.permute.xlu0 %1112
  %1114 = vrot.lane.b32.xlu0 %v255, 12
  %v1115 = vpop.permute.xlu0 %1114
  %1116 = vrot.lane.b32.xlu0 %v256, 12
  %v1117 = vpop.permute.xlu0 %1116
  %1118 = vrot.lane.b32.xlu0 %v257, 12
  %v1119 = vpop.permute.xlu0 %1118
  %1120 = vrot.lane.b32.xlu0 %v258, 12
  %v1121 = vpop.permute.xlu0 %1120
  %1122 = vrot.lane.b32.xlu0 %v259, 12
  %v1123 = vpop.permute.xlu0 %1122
  %1124 = vrot.lane.b32.xlu0 %v260, 12
  %v1125 = vpop.permute.xlu0 %1124
  %1126 = vrot.lane.b32.xlu0 %v261, 12
  %v1127 = vpop.permute.xlu0 %1126
  %1128 = vrot.lane.b32.xlu0 %v262, 12
  %v1129 = vpop.permute.xlu0 %1128
  %1130 = vrot.lane.b32.xlu0 %v263, 12
  %v1131 = vpop.permute.xlu0 %1130
  %1132 = vrot.lane.b32.xlu0 %v264, 12
  %v1133 = vpop.permute.xlu0 %1132
  %1134 = vrot.lane.b32.xlu0 %v265, 12
  %v1135 = vpop.permute.xlu0 %1134
  %1136 = vrot.lane.b32.xlu0 %v266, 12
  %v1137 = vpop.permute.xlu0 %1136
  %1138 = vrot.lane.b32.xlu0 %v267, 12
  %v1139 = vpop.permute.xlu0 %1138
  %1140 = vrot.lane.b32.xlu0 %v268, 12
  %v1141 = vpop.permute.xlu0 %1140
  %1142 = vrot.lane.b32.xlu0 %v269, 12
  %v1143 = vpop.permute.xlu0 %1142
  %1144 = vrot.lane.b32.xlu0 %v270, 12
  %v1145 = vpop.permute.xlu0 %1144
  %1146 = vrot.lane.b32.xlu0 %v271, 12
  %v1147 = vpop.permute.xlu0 %1146
  %1148 = vrot.lane.b32.xlu0 %v272, 12
  %v1149 = vpop.permute.xlu0 %1148
  %1150 = vrot.lane.b32.xlu0 %v273, 12
  %v1151 = vpop.permute.xlu0 %1150
  %1152 = vrot.lane.b32.xlu0 %v274, 12
  %v1153 = vpop.permute.xlu0 %1152
  %1154 = vrot.lane.b32.xlu0 %v275, 12
  %v1155 = vpop.permute.xlu0 %1154
  %1156 = vrot.lane.b32.xlu0 %v276, 12
  %v1157 = vpop.permute.xlu0 %1156
  %1158 = vrot.lane.b32.xlu0 %v277, 12
  %v1159 = vpop.permute.xlu0 %1158
  %1160 = vrot.lane.b32.xlu0 %v278, 12
  %v1161 = vpop.permute.xlu0 %1160
  %1162 = vrot.lane.b32.xlu0 %v279, 12
  %v1163 = vpop.permute.xlu0 %1162
  %1164 = vrot.lane.b32.xlu0 %v280, 12
  %v1165 = vpop.permute.xlu0 %1164
  %1166 = vrot.lane.b32.xlu0 %v281, 12
  %v1167 = vpop.permute.xlu0 %1166
  %1168 = vrot.lane.b32.xlu0 %v282, 12
  %v1169 = vpop.permute.xlu0 %1168
  %1170 = vrot.lane.b32.xlu0 %v283, 12
  %v1171 = vpop.permute.xlu0 %1170
  %1172 = vrot.lane.b32.xlu0 %v284, 12
  %v1173 = vpop.permute.xlu0 %1172
  %1174 = vrot.lane.b32.xlu0 %v480, 12
  %v1175 = vpop.permute.xlu0 %1174
  %1176 = vrot.lane.b32.xlu0 %v481, 12
  %v1177 = vpop.permute.xlu0 %1176
  %1246 = vrot.lane.b32.xlu0 %v33, 16
  %v1247 = vpop.permute.xlu0 %1246
  %1248 = vrot.lane.b32.xlu0 %v34, 16
  %v1249 = vpop.permute.xlu0 %1248
  %1250 = vrot.lane.b32.xlu0 %v35, 16
  %v1251 = vpop.permute.xlu0 %1250
  %1252 = vrot.lane.b32.xlu0 %v36, 16
  %v1253 = vpop.permute.xlu0 %1252
  %1254 = vrot.lane.b32.xlu0 %v37, 16
  %v1255 = vpop.permute.xlu0 %1254
  %1256 = vrot.lane.b32.xlu0 %v38, 16
  %v1257 = vpop.permute.xlu0 %1256
  %1258 = vrot.lane.b32.xlu0 %v39, 16
  %v1259 = vpop.permute.xlu0 %1258
  %1260 = vrot.lane.b32.xlu0 %v40, 16
  %v1261 = vpop.permute.xlu0 %1260
  %1262 = vrot.lane.b32.xlu0 %v41, 16
  %v1263 = vpop.permute.xlu0 %1262
  %1264 = vrot.lane.b32.xlu0 %v42, 16
  %v1265 = vpop.permute.xlu0 %1264
  %1266 = vrot.lane.b32.xlu0 %v43, 16
  %v1267 = vpop.permute.xlu0 %1266
  %1268 = vrot.lane.b32.xlu0 %v44, 16
  %v1269 = vpop.permute.xlu0 %1268
  %1270 = vrot.lane.b32.xlu0 %v45, 16
  %v1271 = vpop.permute.xlu0 %1270
  %1272 = vrot.lane.b32.xlu0 %v46, 16
  %v1273 = vpop.permute.xlu0 %1272
  %1274 = vrot.lane.b32.xlu0 %v47, 16
  %v1275 = vpop.permute.xlu0 %1274
  %1276 = vrot.lane.b32.xlu0 %v48, 16
  %v1277 = vpop.permute.xlu0 %1276
  %1278 = vrot.lane.b32.xlu0 %v49, 16
  %v1279 = vpop.permute.xlu0 %1278
  %1280 = vrot.lane.b32.xlu0 %v50, 16
  %v1281 = vpop.permute.xlu0 %1280
  %1282 = vrot.lane.b32.xlu0 %v51, 16
  %v1283 = vpop.permute.xlu0 %1282
  %1284 = vrot.lane.b32.xlu0 %v52, 16
  %v1285 = vpop.permute.xlu0 %1284
  %1286 = vrot.lane.b32.xlu0 %v53, 16
  %v1287 = vpop.permute.xlu0 %1286
  %1288 = vrot.lane.b32.xlu0 %v54, 16
  %v1289 = vpop.permute.xlu0 %1288
  %1290 = vrot.lane.b32.xlu0 %v55, 16
  %v1291 = vpop.permute.xlu0 %1290
  %1292 = vrot.lane.b32.xlu0 %v56, 16
  %v1293 = vpop.permute.xlu0 %1292
  %1294 = vrot.lane.b32.xlu0 %v57, 16
  %v1295 = vpop.permute.xlu0 %1294
  %1296 = vrot.lane.b32.xlu0 %v58, 16
  %v1297 = vpop.permute.xlu0 %1296
  %1298 = vrot.lane.b32.xlu0 %v59, 16
  %v1299 = vpop.permute.xlu0 %1298
  %1300 = vrot.lane.b32.xlu0 %v60, 16
  %v1301 = vpop.permute.xlu0 %1300
  %1302 = vrot.lane.b32.xlu0 %v61, 16
  %v1303 = vpop.permute.xlu0 %1302
  %1304 = vrot.lane.b32.xlu0 %v62, 16
  %v1305 = vpop.permute.xlu0 %1304
  %1306 = vrot.lane.b32.xlu0 %v63, 16
  %v1307 = vpop.permute.xlu0 %1306
  %1308 = vrot.lane.b32.xlu0 %v64, 16
  %v1309 = vpop.permute.xlu0 %1308
  %1310 = vrot.lane.b32.xlu0 %v65, 16
  %v1311 = vpop.permute.xlu0 %1310
  %1312 = vrot.lane.b32.xlu0 %v66, 16
  %v1313 = vpop.permute.xlu0 %1312
  %1314 = vrot.lane.b32.xlu0 %v67, 16
  %v1315 = vpop.permute.xlu0 %1314
  %1316 = vrot.lane.b32.xlu0 %v68, 16
  %v1317 = vpop.permute.xlu0 %1316
  %1318 = vrot.lane.b32.xlu0 %v69, 16
  %v1319 = vpop.permute.xlu0 %1318
  %1320 = vrot.lane.b32.xlu0 %v70, 16
  %v1321 = vpop.permute.xlu0 %1320
  %1322 = vrot.lane.b32.xlu0 %v71, 16
  %v1323 = vpop.permute.xlu0 %1322
  %1324 = vrot.lane.b32.xlu0 %v72, 16
  %v1325 = vpop.permute.xlu0 %1324
  %1326 = vrot.lane.b32.xlu0 %v73, 16
  %v1327 = vpop.permute.xlu0 %1326
  %1328 = vrot.lane.b32.xlu0 %v74, 16
  %v1329 = vpop.permute.xlu0 %1328
  %1330 = vrot.lane.b32.xlu0 %v75, 16
  %v1331 = vpop.permute.xlu0 %1330
  %1332 = vrot.lane.b32.xlu0 %v76, 16
  %v1333 = vpop.permute.xlu0 %1332
  %1334 = vrot.lane.b32.xlu0 %v77, 16
  %v1335 = vpop.permute.xlu0 %1334
  %1336 = vrot.lane.b32.xlu0 %v78, 16
  %v1337 = vpop.permute.xlu0 %1336
  %1338 = vrot.lane.b32.xlu0 %v79, 16
  %v1339 = vpop.permute.xlu0 %1338
  %1340 = vrot.lane.b32.xlu0 %v80, 16
  %v1341 = vpop.permute.xlu0 %1340
  %1342 = vrot.lane.b32.xlu0 %v81, 16
  %v1343 = vpop.permute.xlu0 %1342
  %1344 = vrot.lane.b32.xlu0 %v82, 16
  %v1345 = vpop.permute.xlu0 %1344
  %1346 = vrot.lane.b32.xlu0 %v83, 16
  %v1347 = vpop.permute.xlu0 %1346
  %1348 = vrot.lane.b32.xlu0 %v84, 16
  %v1349 = vpop.permute.xlu0 %1348
  %1350 = vrot.lane.b32.xlu0 %v85, 16
  %v1351 = vpop.permute.xlu0 %1350
  %1352 = vrot.lane.b32.xlu0 %v86, 16
  %v1353 = vpop.permute.xlu0 %1352
  %1354 = vrot.lane.b32.xlu0 %v87, 16
  %v1355 = vpop.permute.xlu0 %1354
  %1356 = vrot.lane.b32.xlu0 %v88, 16
  %v1357 = vpop.permute.xlu0 %1356
  %1358 = vrot.lane.b32.xlu0 %v89, 16
  %v1359 = vpop.permute.xlu0 %1358
  %1360 = vrot.lane.b32.xlu0 %v90, 16
  %v1361 = vpop.permute.xlu0 %1360
  %1362 = vrot.lane.b32.xlu0 %v91, 16
  %v1363 = vpop.permute.xlu0 %1362
  %1364 = vrot.lane.b32.xlu0 %v92, 16
  %v1365 = vpop.permute.xlu0 %1364
  %1366 = vrot.lane.b32.xlu0 %v93, 16
  %v1367 = vpop.permute.xlu0 %1366
  %1368 = vrot.lane.b32.xlu0 %v94, 16
  %v1369 = vpop.permute.xlu0 %1368
  %1370 = vrot.lane.b32.xlu0 %v95, 16
  %v1371 = vpop.permute.xlu0 %1370
  %1372 = vrot.lane.b32.xlu0 %v96, 16
  %v1373 = vpop.permute.xlu0 %1372
  %1442 = vrot.lane.b32.xlu0 %v410, 20
  %v1443 = vpop.permute.xlu0 %1442
  %1444 = vrot.lane.b32.xlu0 %v411, 20
  %v1445 = vpop.permute.xlu0 %1444
  %1446 = vrot.lane.b32.xlu0 %v412, 20
  %v1447 = vpop.permute.xlu0 %1446
  %1448 = vrot.lane.b32.xlu0 %v413, 20
  %v1449 = vpop.permute.xlu0 %1448
  %1450 = vrot.lane.b32.xlu0 %v414, 20
  %v1451 = vpop.permute.xlu0 %1450
  %1452 = vrot.lane.b32.xlu0 %v415, 20
  %v1453 = vpop.permute.xlu0 %1452
  %1454 = vrot.lane.b32.xlu0 %v416, 20
  %v1455 = vpop.permute.xlu0 %1454
  %1456 = vrot.lane.b32.xlu0 %v417, 20
  %v1457 = vpop.permute.xlu0 %1456
  %1458 = vrot.lane.b32.xlu0 %v418, 20
  %v1459 = vpop.permute.xlu0 %1458
  %1460 = vrot.lane.b32.xlu0 %v419, 20
  %v1461 = vpop.permute.xlu0 %1460
  %1462 = vrot.lane.b32.xlu0 %v420, 20
  %v1463 = vpop.permute.xlu0 %1462
  %1464 = vrot.lane.b32.xlu0 %v421, 20
  %v1465 = vpop.permute.xlu0 %1464
  %1466 = vrot.lane.b32.xlu0 %v422, 20
  %v1467 = vpop.permute.xlu0 %1466
  %1468 = vrot.lane.b32.xlu0 %v423, 20
  %v1469 = vpop.permute.xlu0 %1468
  %1470 = vrot.lane.b32.xlu0 %v424, 20
  %v1471 = vpop.permute.xlu0 %1470
  %1472 = vrot.lane.b32.xlu0 %v425, 20
  %v1473 = vpop.permute.xlu0 %1472
  %1474 = vrot.lane.b32.xlu0 %v426, 20
  %v1475 = vpop.permute.xlu0 %1474
  %1476 = vrot.lane.b32.xlu0 %v427, 20
  %v1477 = vpop.permute.xlu0 %1476
  %1478 = vrot.lane.b32.xlu0 %v428, 20
  %v1479 = vpop.permute.xlu0 %1478
  %1480 = vrot.lane.b32.xlu0 %v429, 20
  %v1481 = vpop.permute.xlu0 %1480
  %1482 = vrot.lane.b32.xlu0 %v430, 20
  %v1483 = vpop.permute.xlu0 %1482
  %1484 = vrot.lane.b32.xlu0 %v431, 20
  %v1485 = vpop.permute.xlu0 %1484
  %1486 = vrot.lane.b32.xlu0 %v432, 20
  %v1487 = vpop.permute.xlu0 %1486
  %1488 = vrot.lane.b32.xlu0 %v433, 20
  %v1489 = vpop.permute.xlu0 %1488
  %1490 = vrot.lane.b32.xlu0 %v434, 20
  %v1491 = vpop.permute.xlu0 %1490
  %1492 = vrot.lane.b32.xlu0 %v435, 20
  %v1493 = vpop.permute.xlu0 %1492
  %1494 = vrot.lane.b32.xlu0 %v436, 20
  %v1495 = vpop.permute.xlu0 %1494
  %1496 = vrot.lane.b32.xlu0 %v437, 20
  %v1497 = vpop.permute.xlu0 %1496
  %1498 = vrot.lane.b32.xlu0 %v438, 20
  %v1499 = vpop.permute.xlu0 %1498
  %1500 = vrot.lane.b32.xlu0 %v439, 20
  %v1501 = vpop.permute.xlu0 %1500
  %1502 = vrot.lane.b32.xlu0 %v490, 20
  %v1503 = vpop.permute.xlu0 %1502
  %1504 = vrot.lane.b32.xlu0 %v491, 20
  %v1505 = vpop.permute.xlu0 %1504
  %1506 = vrot.lane.b32.xlu0 %v440, 20
  %v1507 = vpop.permute.xlu0 %1506
  %1508 = vrot.lane.b32.xlu0 %v441, 20
  %v1509 = vpop.permute.xlu0 %1508
  %1510 = vrot.lane.b32.xlu0 %v442, 20
  %v1511 = vpop.permute.xlu0 %1510
  %1512 = vrot.lane.b32.xlu0 %v443, 20
  %v1513 = vpop.permute.xlu0 %1512
  %1514 = vrot.lane.b32.xlu0 %v444, 20
  %v1515 = vpop.permute.xlu0 %1514
  %1516 = vrot.lane.b32.xlu0 %v445, 20
  %v1517 = vpop.permute.xlu0 %1516
  %1518 = vrot.lane.b32.xlu0 %v446, 20
  %v1519 = vpop.permute.xlu0 %1518
  %1520 = vrot.lane.b32.xlu0 %v447, 20
  %v1521 = vpop.permute.xlu0 %1520
  %1522 = vrot.lane.b32.xlu0 %v448, 20
  %v1523 = vpop.permute.xlu0 %1522
  %1524 = vrot.lane.b32.xlu0 %v449, 20
  %v1525 = vpop.permute.xlu0 %1524
  %1526 = vrot.lane.b32.xlu0 %v450, 20
  %v1527 = vpop.permute.xlu0 %1526
  %1528 = vrot.lane.b32.xlu0 %v451, 20
  %v1529 = vpop.permute.xlu0 %1528
  %1530 = vrot.lane.b32.xlu0 %v452, 20
  %v1531 = vpop.permute.xlu0 %1530
  %1532 = vrot.lane.b32.xlu0 %v453, 20
  %v1533 = vpop.permute.xlu0 %1532
  %1534 = vrot.lane.b32.xlu0 %v454, 20
  %v1535 = vpop.permute.xlu0 %1534
  %1536 = vrot.lane.b32.xlu0 %v455, 20
  %v1537 = vpop.permute.xlu0 %1536
  %1538 = vrot.lane.b32.xlu0 %v456, 20
  %v1539 = vpop.permute.xlu0 %1538
  %1540 = vrot.lane.b32.xlu0 %v457, 20
  %v1541 = vpop.permute.xlu0 %1540
  %1542 = vrot.lane.b32.xlu0 %v458, 20
  %v1543 = vpop.permute.xlu0 %1542
  %1544 = vrot.lane.b32.xlu0 %v459, 20
  %v1545 = vpop.permute.xlu0 %1544
  %1546 = vrot.lane.b32.xlu0 %v460, 20
  %v1547 = vpop.permute.xlu0 %1546
  %1548 = vrot.lane.b32.xlu0 %v461, 20
  %v1549 = vpop.permute.xlu0 %1548
  %1550 = vrot.lane.b32.xlu0 %v462, 20
  %v1551 = vpop.permute.xlu0 %1550
  %1552 = vrot.lane.b32.xlu0 %v463, 20
  %v1553 = vpop.permute.xlu0 %1552
  %1554 = vrot.lane.b32.xlu0 %v464, 20
  %v1555 = vpop.permute.xlu0 %1554
  %1556 = vrot.lane.b32.xlu0 %v465, 20
  %v1557 = vpop.permute.xlu0 %1556
  %1558 = vrot.lane.b32.xlu0 %v466, 20
  %v1559 = vpop.permute.xlu0 %1558
  %1560 = vrot.lane.b32.xlu0 %v467, 20
  %v1561 = vpop.permute.xlu0 %1560
  %1562 = vrot.lane.b32.xlu0 %v468, 20
  %v1563 = vpop.permute.xlu0 %1562
  %1564 = vrot.lane.b32.xlu0 %v469, 20
  %v1565 = vpop.permute.xlu0 %1564
  %1566 = vrot.lane.b32.xlu0 %v492, 20
  %v1567 = vpop.permute.xlu0 %1566
  %1568 = vrot.lane.b32.xlu0 %v493, 20
  %v1569 = vpop.permute.xlu0 %1568
  %1636 = vrot.lane.b32.xlu0 %v227, 24
  %v1637 = vpop.permute.xlu0 %1636
  %1638 = vrot.lane.b32.xlu0 %v228, 24
  %v1639 = vpop.permute.xlu0 %1638
  %1640 = vrot.lane.b32.xlu0 %v229, 24
  %v1641 = vpop.permute.xlu0 %1640
  %1642 = vrot.lane.b32.xlu0 %v230, 24
  %v1643 = vpop.permute.xlu0 %1642
  %1644 = vrot.lane.b32.xlu0 %v231, 24
  %v1645 = vpop.permute.xlu0 %1644
  %1646 = vrot.lane.b32.xlu0 %v232, 24
  %v1647 = vpop.permute.xlu0 %1646
  %1648 = vrot.lane.b32.xlu0 %v233, 24
  %v1649 = vpop.permute.xlu0 %1648
  %1650 = vrot.lane.b32.xlu0 %v234, 24
  %v1651 = vpop.permute.xlu0 %1650
  %1652 = vrot.lane.b32.xlu0 %v235, 24
  %v1653 = vpop.permute.xlu0 %1652
  %1654 = vrot.lane.b32.xlu0 %v236, 24
  %v1655 = vpop.permute.xlu0 %1654
  %1656 = vrot.lane.b32.xlu0 %v237, 24
  %v1657 = vpop.permute.xlu0 %1656
  %1658 = vrot.lane.b32.xlu0 %v238, 24
  %v1659 = vpop.permute.xlu0 %1658
  %1660 = vrot.lane.b32.xlu0 %v239, 24
  %v1661 = vpop.permute.xlu0 %1660
  %1662 = vrot.lane.b32.xlu0 %v240, 24
  %v1663 = vpop.permute.xlu0 %1662
  %1664 = vrot.lane.b32.xlu0 %v241, 24
  %v1665 = vpop.permute.xlu0 %1664
  %1666 = vrot.lane.b32.xlu0 %v242, 24
  %v1667 = vpop.permute.xlu0 %1666
  %1668 = vrot.lane.b32.xlu0 %v243, 24
  %v1669 = vpop.permute.xlu0 %1668
  %1670 = vrot.lane.b32.xlu0 %v244, 24
  %v1671 = vpop.permute.xlu0 %1670
  %1672 = vrot.lane.b32.xlu0 %v245, 24
  %v1673 = vpop.permute.xlu0 %1672
  %1674 = vrot.lane.b32.xlu0 %v246, 24
  %v1675 = vpop.permute.xlu0 %1674
  %1676 = vrot.lane.b32.xlu0 %v247, 24
  %v1677 = vpop.permute.xlu0 %1676
  %1678 = vrot.lane.b32.xlu0 %v248, 24
  %v1679 = vpop.permute.xlu0 %1678
  %1680 = vrot.lane.b32.xlu0 %v249, 24
  %v1681 = vpop.permute.xlu0 %1680
  %1682 = vrot.lane.b32.xlu0 %v250, 24
  %v1683 = vpop.permute.xlu0 %1682
  %1684 = vrot.lane.b32.xlu0 %v251, 24
  %v1685 = vpop.permute.xlu0 %1684
  %1686 = vrot.lane.b32.xlu0 %v252, 24
  %v1687 = vpop.permute.xlu0 %1686
  %1688 = vrot.lane.b32.xlu0 %v253, 24
  %v1689 = vpop.permute.xlu0 %1688
  %1690 = vrot.lane.b32.xlu0 %v254, 24
  %v1691 = vpop.permute.xlu0 %1690
  %1692 = vrot.lane.b32.xlu0 %v478, 24
  %v1693 = vpop.permute.xlu0 %1692
  %1694 = vrot.lane.b32.xlu0 %v479, 24
  %v1695 = vpop.permute.xlu0 %1694
  %1696 = vrot.lane.b32.xlu0 %v223, 24
  %v1697 = vpop.permute.xlu0 %1696
  %1698 = vrot.lane.b32.xlu0 %v224, 24
  %v1699 = vpop.permute.xlu0 %1698
  %1700 = vrot.lane.b32.xlu0 %v257, 24
  %v1701 = vpop.permute.xlu0 %1700
  %1702 = vrot.lane.b32.xlu0 %v258, 24
  %v1703 = vpop.permute.xlu0 %1702
  %1704 = vrot.lane.b32.xlu0 %v259, 24
  %v1705 = vpop.permute.xlu0 %1704
  %1706 = vrot.lane.b32.xlu0 %v260, 24
  %v1707 = vpop.permute.xlu0 %1706
  %1708 = vrot.lane.b32.xlu0 %v261, 24
  %v1709 = vpop.permute.xlu0 %1708
  %1710 = vrot.lane.b32.xlu0 %v262, 24
  %v1711 = vpop.permute.xlu0 %1710
  %1712 = vrot.lane.b32.xlu0 %v263, 24
  %v1713 = vpop.permute.xlu0 %1712
  %1714 = vrot.lane.b32.xlu0 %v264, 24
  %v1715 = vpop.permute.xlu0 %1714
  %1716 = vrot.lane.b32.xlu0 %v265, 24
  %v1717 = vpop.permute.xlu0 %1716
  %1718 = vrot.lane.b32.xlu0 %v266, 24
  %v1719 = vpop.permute.xlu0 %1718
  %1720 = vrot.lane.b32.xlu0 %v267, 24
  %v1721 = vpop.permute.xlu0 %1720
  %1722 = vrot.lane.b32.xlu0 %v268, 24
  %v1723 = vpop.permute.xlu0 %1722
  %1724 = vrot.lane.b32.xlu0 %v269, 24
  %v1725 = vpop.permute.xlu0 %1724
  %1726 = vrot.lane.b32.xlu0 %v270, 24
  %v1727 = vpop.permute.xlu0 %1726
  %1728 = vrot.lane.b32.xlu0 %v271, 24
  %v1729 = vpop.permute.xlu0 %1728
  %1730 = vrot.lane.b32.xlu0 %v272, 24
  %v1731 = vpop.permute.xlu0 %1730
  %1732 = vrot.lane.b32.xlu0 %v273, 24
  %v1733 = vpop.permute.xlu0 %1732
  %1734 = vrot.lane.b32.xlu0 %v274, 24
  %v1735 = vpop.permute.xlu0 %1734
  %1736 = vrot.lane.b32.xlu0 %v275, 24
  %v1737 = vpop.permute.xlu0 %1736
  %1738 = vrot.lane.b32.xlu0 %v276, 24
  %v1739 = vpop.permute.xlu0 %1738
  %1740 = vrot.lane.b32.xlu0 %v277, 24
  %v1741 = vpop.permute.xlu0 %1740
  %1742 = vrot.lane.b32.xlu0 %v278, 24
  %v1743 = vpop.permute.xlu0 %1742
  %1744 = vrot.lane.b32.xlu0 %v279, 24
  %v1745 = vpop.permute.xlu0 %1744
  %1746 = vrot.lane.b32.xlu0 %v280, 24
  %v1747 = vpop.permute.xlu0 %1746
  %1748 = vrot.lane.b32.xlu0 %v281, 24
  %v1749 = vpop.permute.xlu0 %1748
  %1750 = vrot.lane.b32.xlu0 %v282, 24
  %v1751 = vpop.permute.xlu0 %1750
  %1752 = vrot.lane.b32.xlu0 %v283, 24
  %v1753 = vpop.permute.xlu0 %1752
  %1754 = vrot.lane.b32.xlu0 %v284, 24
  %v1755 = vpop.permute.xlu0 %1754
  %1756 = vrot.lane.b32.xlu0 %v480, 24
  %v1757 = vpop.permute.xlu0 %1756
  %1758 = vrot.lane.b32.xlu0 %v481, 24
  %v1759 = vpop.permute.xlu0 %1758
  %1822 = vrot.lane.b32.xlu0 %v35, 28
  %v1823 = vpop.permute.xlu0 %1822
  %1824 = vrot.lane.b32.xlu0 %v36, 28
  %v1825 = vpop.permute.xlu0 %1824
  %1826 = vrot.lane.b32.xlu0 %v37, 28
  %v1827 = vpop.permute.xlu0 %1826
  %1828 = vrot.lane.b32.xlu0 %v38, 28
  %v1829 = vpop.permute.xlu0 %1828
  %1830 = vrot.lane.b32.xlu0 %v39, 28
  %v1831 = vpop.permute.xlu0 %1830
  %1832 = vrot.lane.b32.xlu0 %v40, 28
  %v1833 = vpop.permute.xlu0 %1832
  %1834 = vrot.lane.b32.xlu0 %v41, 28
  %v1835 = vpop.permute.xlu0 %1834
  %1836 = vrot.lane.b32.xlu0 %v42, 28
  %v1837 = vpop.permute.xlu0 %1836
  %1838 = vrot.lane.b32.xlu0 %v43, 28
  %v1839 = vpop.permute.xlu0 %1838
  %1840 = vrot.lane.b32.xlu0 %v44, 28
  %v1841 = vpop.permute.xlu0 %1840
  %1842 = vrot.lane.b32.xlu0 %v45, 28
  %v1843 = vpop.permute.xlu0 %1842
  %1844 = vrot.lane.b32.xlu0 %v46, 28
  %v1845 = vpop.permute.xlu0 %1844
  %1846 = vrot.lane.b32.xlu0 %v47, 28
  %v1847 = vpop.permute.xlu0 %1846
  %1848 = vrot.lane.b32.xlu0 %v48, 28
  %v1849 = vpop.permute.xlu0 %1848
  %1850 = vrot.lane.b32.xlu0 %v49, 28
  %v1851 = vpop.permute.xlu0 %1850
  %1852 = vrot.lane.b32.xlu0 %v50, 28
  %v1853 = vpop.permute.xlu0 %1852
  %1854 = vrot.lane.b32.xlu0 %v51, 28
  %v1855 = vpop.permute.xlu0 %1854
  %1856 = vrot.lane.b32.xlu0 %v52, 28
  %v1857 = vpop.permute.xlu0 %1856
  %1858 = vrot.lane.b32.xlu0 %v53, 28
  %v1859 = vpop.permute.xlu0 %1858
  %1860 = vrot.lane.b32.xlu0 %v54, 28
  %v1861 = vpop.permute.xlu0 %1860
  %1862 = vrot.lane.b32.xlu0 %v55, 28
  %v1863 = vpop.permute.xlu0 %1862
  %1864 = vrot.lane.b32.xlu0 %v56, 28
  %v1865 = vpop.permute.xlu0 %1864
  %1866 = vrot.lane.b32.xlu0 %v57, 28
  %v1867 = vpop.permute.xlu0 %1866
  %1868 = vrot.lane.b32.xlu0 %v58, 28
  %v1869 = vpop.permute.xlu0 %1868
  %1870 = vrot.lane.b32.xlu0 %v59, 28
  %v1871 = vpop.permute.xlu0 %1870
  %1872 = vrot.lane.b32.xlu0 %v60, 28
  %v1873 = vpop.permute.xlu0 %1872
  %1874 = vrot.lane.b32.xlu0 %v61, 28
  %v1875 = vpop.permute.xlu0 %1874
  %1876 = vrot.lane.b32.xlu0 %v62, 28
  %v1877 = vpop.permute.xlu0 %1876
  %1878 = vrot.lane.b32.xlu0 %v63, 28
  %v1879 = vpop.permute.xlu0 %1878
  %1880 = vrot.lane.b32.xlu0 %v64, 28
  %v1881 = vpop.permute.xlu0 %1880
  %1882 = vrot.lane.b32.xlu0 0.0, 28
  %v1883 = vpop.permute.xlu0 %1882
  %1884 = vrot.lane.b32.xlu0 %v67, 28
  %v1885 = vpop.permute.xlu0 %1884
  %1886 = vrot.lane.b32.xlu0 %v68, 28
  %v1887 = vpop.permute.xlu0 %1886
  %1888 = vrot.lane.b32.xlu0 %v69, 28
  %v1889 = vpop.permute.xlu0 %1888
  %1890 = vrot.lane.b32.xlu0 %v70, 28
  %v1891 = vpop.permute.xlu0 %1890
  %1892 = vrot.lane.b32.xlu0 %v71, 28
  %v1893 = vpop.permute.xlu0 %1892
  %1894 = vrot.lane.b32.xlu0 %v72, 28
  %v1895 = vpop.permute.xlu0 %1894
  %1896 = vrot.lane.b32.xlu0 %v73, 28
  %v1897 = vpop.permute.xlu0 %1896
  %1898 = vrot.lane.b32.xlu0 %v74, 28
  %v1899 = vpop.permute.xlu0 %1898
  %1900 = vrot.lane.b32.xlu0 %v75, 28
  %v1901 = vpop.permute.xlu0 %1900
  %1902 = vrot.lane.b32.xlu0 %v76, 28
  %v1903 = vpop.permute.xlu0 %1902
  %1904 = vrot.lane.b32.xlu0 %v77, 28
  %v1905 = vpop.permute.xlu0 %1904
  %1906 = vrot.lane.b32.xlu0 %v78, 28
  %v1907 = vpop.permute.xlu0 %1906
  %1908 = vrot.lane.b32.xlu0 %v79, 28
  %v1909 = vpop.permute.xlu0 %1908
  %1910 = vrot.lane.b32.xlu0 %v80, 28
  %v1911 = vpop.permute.xlu0 %1910
  %1912 = vrot.lane.b32.xlu0 %v81, 28
  %v1913 = vpop.permute.xlu0 %1912
  %1914 = vrot.lane.b32.xlu0 %v82, 28
  %v1915 = vpop.permute.xlu0 %1914
  %1916 = vrot.lane.b32.xlu0 %v83, 28
  %v1917 = vpop.permute.xlu0 %1916
  %1918 = vrot.lane.b32.xlu0 %v84, 28
  %v1919 = vpop.permute.xlu0 %1918
  %1920 = vrot.lane.b32.xlu0 %v85, 28
  %v1921 = vpop.permute.xlu0 %1920
  %1922 = vrot.lane.b32.xlu0 %v86, 28
  %v1923 = vpop.permute.xlu0 %1922
  %1924 = vrot.lane.b32.xlu0 %v87, 28
  %v1925 = vpop.permute.xlu0 %1924
  %1926 = vrot.lane.b32.xlu0 %v88, 28
  %v1927 = vpop.permute.xlu0 %1926
  %1928 = vrot.lane.b32.xlu0 %v89, 28
  %v1929 = vpop.permute.xlu0 %1928
  %1930 = vrot.lane.b32.xlu0 %v90, 28
  %v1931 = vpop.permute.xlu0 %1930
  %1932 = vrot.lane.b32.xlu0 %v91, 28
  %v1933 = vpop.permute.xlu0 %1932
  %1934 = vrot.lane.b32.xlu0 %v92, 28
  %v1935 = vpop.permute.xlu0 %1934
  %1936 = vrot.lane.b32.xlu0 %v93, 28
  %v1937 = vpop.permute.xlu0 %1936
  %1938 = vrot.lane.b32.xlu0 %v94, 28
  %v1939 = vpop.permute.xlu0 %1938
  %1940 = vrot.lane.b32.xlu0 %v95, 28
  %v1941 = vpop.permute.xlu0 %1940
  %1942 = vrot.lane.b32.xlu0 %v96, 28
  %v1943 = vpop.permute.xlu0 %1942
  %2005 = vrot.lane.b32.xlu0 %v412, 32
  %v2006 = vpop.permute.xlu0 %2005
  %2007 = vrot.lane.b32.xlu0 %v413, 32
  %v2008 = vpop.permute.xlu0 %2007
  %2009 = vrot.lane.b32.xlu0 %v414, 32
  %v2010 = vpop.permute.xlu0 %2009
  %2011 = vrot.lane.b32.xlu0 %v415, 32
  %v2012 = vpop.permute.xlu0 %2011
  %2013 = vrot.lane.b32.xlu0 %v416, 32
  %v2014 = vpop.permute.xlu0 %2013
  %2015 = vrot.lane.b32.xlu0 %v417, 32
  %v2016 = vpop.permute.xlu0 %2015
  %2017 = vrot.lane.b32.xlu0 %v418, 32
  %v2018 = vpop.permute.xlu0 %2017
  %2019 = vrot.lane.b32.xlu0 %v419, 32
  %v2020 = vpop.permute.xlu0 %2019
  %2021 = vrot.lane.b32.xlu0 %v420, 32
  %v2022 = vpop.permute.xlu0 %2021
  %2023 = vrot.lane.b32.xlu0 %v421, 32
  %v2024 = vpop.permute.xlu0 %2023
  %2025 = vrot.lane.b32.xlu0 %v422, 32
  %v2026 = vpop.permute.xlu0 %2025
  %2027 = vrot.lane.b32.xlu0 %v423, 32
  %v2028 = vpop.permute.xlu0 %2027
  %2029 = vrot.lane.b32.xlu0 %v424, 32
  %v2030 = vpop.permute.xlu0 %2029
  %2031 = vrot.lane.b32.xlu0 %v425, 32
  %v2032 = vpop.permute.xlu0 %2031
  %2033 = vrot.lane.b32.xlu0 %v426, 32
  %v2034 = vpop.permute.xlu0 %2033
  %2035 = vrot.lane.b32.xlu0 %v427, 32
  %v2036 = vpop.permute.xlu0 %2035
  %2037 = vrot.lane.b32.xlu0 %v428, 32
  %v2038 = vpop.permute.xlu0 %2037
  %2039 = vrot.lane.b32.xlu0 %v429, 32
  %v2040 = vpop.permute.xlu0 %2039
  %2041 = vrot.lane.b32.xlu0 %v430, 32
  %v2042 = vpop.permute.xlu0 %2041
  %2043 = vrot.lane.b32.xlu0 %v431, 32
  %v2044 = vpop.permute.xlu0 %2043
  %2045 = vrot.lane.b32.xlu0 %v432, 32
  %v2046 = vpop.permute.xlu0 %2045
  %2047 = vrot.lane.b32.xlu0 %v433, 32
  %v2048 = vpop.permute.xlu0 %2047
  %2049 = vrot.lane.b32.xlu0 %v434, 32
  %v2050 = vpop.permute.xlu0 %2049
  %2051 = vrot.lane.b32.xlu0 %v435, 32
  %v2052 = vpop.permute.xlu0 %2051
  %2053 = vrot.lane.b32.xlu0 %v436, 32
  %v2054 = vpop.permute.xlu0 %2053
  %2055 = vrot.lane.b32.xlu0 %v437, 32
  %v2056 = vpop.permute.xlu0 %2055
  %2057 = vrot.lane.b32.xlu0 %v438, 32
  %v2058 = vpop.permute.xlu0 %2057
  %2059 = vrot.lane.b32.xlu0 %v439, 32
  %v2060 = vpop.permute.xlu0 %2059
  %2061 = vrot.lane.b32.xlu0 %v490, 32
  %v2062 = vpop.permute.xlu0 %2061
  %2063 = vrot.lane.b32.xlu0 %v491, 32
  %v2064 = vpop.permute.xlu0 %2063
  %2065 = vrot.lane.b32.xlu0 %v408, 32
  %v2066 = vpop.permute.xlu0 %2065
  %2067 = vrot.lane.b32.xlu0 %v409, 32
  %v2068 = vpop.permute.xlu0 %2067
  %2069 = vrot.lane.b32.xlu0 %v442, 32
  %v2070 = vpop.permute.xlu0 %2069
  %2071 = vrot.lane.b32.xlu0 %v443, 32
  %v2072 = vpop.permute.xlu0 %2071
  %2073 = vrot.lane.b32.xlu0 %v444, 32
  %v2074 = vpop.permute.xlu0 %2073
  %2075 = vrot.lane.b32.xlu0 %v445, 32
  %v2076 = vpop.permute.xlu0 %2075
  %2077 = vrot.lane.b32.xlu0 %v446, 32
  %v2078 = vpop.permute.xlu0 %2077
  %2079 = vrot.lane.b32.xlu0 %v447, 32
  %v2080 = vpop.permute.xlu0 %2079
  %2081 = vrot.lane.b32.xlu0 %v448, 32
  %v2082 = vpop.permute.xlu0 %2081
  %2083 = vrot.lane.b32.xlu0 %v449, 32
  %v2084 = vpop.permute.xlu0 %2083
  %2085 = vrot.lane.b32.xlu0 %v450, 32
  %v2086 = vpop.permute.xlu0 %2085
  %2087 = vrot.lane.b32.xlu0 %v451, 32
  %v2088 = vpop.permute.xlu0 %2087
  %2089 = vrot.lane.b32.xlu0 %v452, 32
  %v2090 = vpop.permute.xlu0 %2089
  %2091 = vrot.lane.b32.xlu0 %v453, 32
  %v2092 = vpop.permute.xlu0 %2091
  %2093 = vrot.lane.b32.xlu0 %v454, 32
  %v2094 = vpop.permute.xlu0 %2093
  %2095 = vrot.lane.b32.xlu0 %v455, 32
  %v2096 = vpop.permute.xlu0 %2095
  %2097 = vrot.lane.b32.xlu0 %v456, 32
  %v2098 = vpop.permute.xlu0 %2097
  %2099 = vrot.lane.b32.xlu0 %v457, 32
  %v2100 = vpop.permute.xlu0 %2099
  %2101 = vrot.lane.b32.xlu0 %v458, 32
  %v2102 = vpop.permute.xlu0 %2101
  %2103 = vrot.lane.b32.xlu0 %v459, 32
  %v2104 = vpop.permute.xlu0 %2103
  %2105 = vrot.lane.b32.xlu0 %v460, 32
  %v2106 = vpop.permute.xlu0 %2105
  %2107 = vrot.lane.b32.xlu0 %v461, 32
  %v2108 = vpop.permute.xlu0 %2107
  %2109 = vrot.lane.b32.xlu0 %v462, 32
  %v2110 = vpop.permute.xlu0 %2109
  %2111 = vrot.lane.b32.xlu0 %v463, 32
  %v2112 = vpop.permute.xlu0 %2111
  %2113 = vrot.lane.b32.xlu0 %v464, 32
  %v2114 = vpop.permute.xlu0 %2113
  %2115 = vrot.lane.b32.xlu0 %v465, 32
  %v2116 = vpop.permute.xlu0 %2115
  %2117 = vrot.lane.b32.xlu0 %v466, 32
  %v2118 = vpop.permute.xlu0 %2117
  %2119 = vrot.lane.b32.xlu0 %v467, 32
  %v2120 = vpop.permute.xlu0 %2119
  %2121 = vrot.lane.b32.xlu0 %v468, 32
  %v2122 = vpop.permute.xlu0 %2121
  %2123 = vrot.lane.b32.xlu0 %v469, 32
  %v2124 = vpop.permute.xlu0 %2123
  %2125 = vrot.lane.b32.xlu0 %v492, 32
  %v2126 = vpop.permute.xlu0 %2125
  %2127 = vrot.lane.b32.xlu0 %v493, 32
  %v2128 = vpop.permute.xlu0 %2127
  %vm2191 = vcmask 31744
  %v2192 = vsel %vm2191, %v223, %v556
  %v2193 = vsel %vm2191, %v224, %v556
  %v2194 = vsel %vm2191, %v225, %v558
  %v2195 = vsel %vm2191, %v226, %v560
  %v2196 = vsel %vm2191, %v227, %v562
  %v2197 = vsel %vm2191, %v228, %v564
  %v2198 = vsel %vm2191, %v229, %v566
  %v2199 = vsel %vm2191, %v230, %v568
  %v2200 = vsel %vm2191, %v231, %v570
  %v2201 = vsel %vm2191, %v232, %v572
  %v2202 = vsel %vm2191, %v233, %v574
  %v2203 = vsel %vm2191, %v234, %v576
  %v2204 = vsel %vm2191, %v235, %v578
  %v2205 = vsel %vm2191, %v236, %v580
  %v2206 = vsel %vm2191, %v237, %v582
  %v2207 = vsel %vm2191, %v238, %v584
  %v2208 = vsel %vm2191, %v239, %v586
  %v2209 = vsel %vm2191, %v240, %v588
  %v2210 = vsel %vm2191, %v241, %v590
  %v2211 = vsel %vm2191, %v242, %v592
  %v2212 = vsel %vm2191, %v243, %v594
  %v2213 = vsel %vm2191, %v244, %v596
  %v2214 = vsel %vm2191, %v245, %v598
  %v2215 = vsel %vm2191, %v246, %v600
  %v2216 = vsel %vm2191, %v247, %v602
  %v2217 = vsel %vm2191, %v248, %v604
  %v2218 = vsel %vm2191, %v249, %v606
  %v2219 = vsel %vm2191, %v250, %v608
  %v2220 = vsel %vm2191, %v251, %v610
  %v2221 = vsel %vm2191, %v252, %v612
  %v2222 = vsel %vm2191, %v253, %v614
  %v2223 = vsel %vm2191, %v254, %v616
  %v2224 = vsel %vm2191, %v255, %v618
  %v2225 = vsel %vm2191, %v256, %v620
  %v2226 = vsel %vm2191, %v257, %v622
  %v2227 = vsel %vm2191, %v258, %v624
  %v2228 = vsel %vm2191, %v259, %v626
  %v2229 = vsel %vm2191, %v260, %v628
  %v2230 = vsel %vm2191, %v261, %v630
  %v2231 = vsel %vm2191, %v262, %v632
  %v2232 = vsel %vm2191, %v263, %v634
  %v2233 = vsel %vm2191, %v264, %v636
  %v2234 = vsel %vm2191, %v265, %v638
  %v2235 = vsel %vm2191, %v266, %v640
  %v2236 = vsel %vm2191, %v267, %v642
  %v2237 = vsel %vm2191, %v268, %v644
  %v2238 = vsel %vm2191, %v269, %v646
  %v2239 = vsel %vm2191, %v270, %v648
  %v2240 = vsel %vm2191, %v271, %v650
  %v2241 = vsel %vm2191, %v272, %v652
  %v2242 = vsel %vm2191, %v273, %v654
  %v2243 = vsel %vm2191, %v274, %v656
  %v2244 = vsel %vm2191, %v275, %v658
  %v2245 = vsel %vm2191, %v276, %v660
  %v2246 = vsel %vm2191, %v277, %v662
  %v2247 = vsel %vm2191, %v278, %v664
  %v2248 = vsel %vm2191, %v279, %v666
  %v2249 = vsel %vm2191, %v280, %v668
  %v2250 = vsel %vm2191, %v281, %v670
  %v2251 = vsel %vm2191, %v282, %v672
  %v2252 = vsel %vm2191, %v283, %v674
  %v2253 = vsel %vm2191, %v284, %v676
  %vm2254 = vcmask 64512
  %v2255 = vsel %vm2254, %v2192, %v801
  %v2256 = vsel %vm2254, %v2193, %v803
  %v2257 = vsel %vm2254, %v2194, %v805
  %v2258 = vsel %vm2254, %v2195, %v807
  %v2259 = vsel %vm2254, %v2196, %v809
  %v2260 = vsel %vm2254, %v2197, %v811
  %v2261 = vsel %vm2254, %v2198, %v813
  %v2262 = vsel %vm2254, %v2199, %v815
  %v2263 = vsel %vm2254, %v2200, %v817
  %v2264 = vsel %vm2254, %v2201, %v819
  %v2265 = vsel %vm2254, %v2202, %v821
  %v2266 = vsel %vm2254, %v2203, %v823
  %v2267 = vsel %vm2254, %v2204, %v825
  %v2268 = vsel %vm2254, %v2205, %v827
  %v2269 = vsel %vm2254, %v2206, %v829
  %v2270 = vsel %vm2254, %v2207, %v831
  %v2271 = vsel %vm2254, %v2208, %v833
  %v2272 = vsel %vm2254, %v2209, %v835
  %v2273 = vsel %vm2254, %v2210, %v837
  %v2274 = vsel %vm2254, %v2211, %v839
  %v2275 = vsel %vm2254, %v2212, %v841
  %v2276 = vsel %vm2254, %v2213, %v843
  %v2277 = vsel %vm2254, %v2214, %v845
  %v2278 = vsel %vm2254, %v2215, %v847
  %v2279 = vsel %vm2254, %v2216, %v849
  %v2280 = vsel %vm2254, %v2217, %v851
  %v2281 = vsel %vm2254, %v2218, %v853
  %v2282 = vsel %vm2254, %v2219, %v855
  %v2283 = vsel %vm2254, %v2220, %v857
  %v2284 = vsel %vm2254, %v2221, %v859
  %v2285 = vsel %vm2254, %v2222, %v861
  %v2286 = vsel %vm2254, %v2223, %v863
  %v2287 = vsel %vm2254, %v2224, %v865
  %v2288 = vsel %vm2254, %v2225, %v867
  %v2289 = vsel %vm2254, %v2226, %v869
  %v2290 = vsel %vm2254, %v2227, %v871
  %v2291 = vsel %vm2254, %v2228, %v873
  %v2292 = vsel %vm2254, %v2229, %v875
  %v2293 = vsel %vm2254, %v2230, %v877
  %v2294 = vsel %vm2254, %v2231, %v879
  %v2295 = vsel %vm2254, %v2232, %v881
  %v2296 = vsel %vm2254, %v2233, %v883
  %v2297 = vsel %vm2254, %v2234, %v885
  %v2298 = vsel %vm2254, %v2235, %v887
  %v2299 = vsel %vm2254, %v2236, %v889
  %v2300 = vsel %vm2254, %v2237, %v891
  %v2301 = vsel %vm2254, %v2238, %v893
  %v2302 = vsel %vm2254, %v2239, %v895
  %v2303 = vsel %vm2254, %v2240, %v897
  %v2304 = vsel %vm2254, %v2241, %v899
  %v2305 = vsel %vm2254, %v2242, %v901
  %v2306 = vsel %vm2254, %v2243, %v903
  %v2307 = vsel %vm2254, %v2244, %v905
  %v2308 = vsel %vm2254, %v2245, %v907
  %v2309 = vsel %vm2254, %v2246, %v909
  %v2310 = vsel %vm2254, %v2247, %v911
  %v2311 = vsel %vm2254, %v2248, %v913
  %v2312 = vsel %vm2254, %v2249, %v915
  %v2313 = vsel %vm2254, %v2250, %v917
  %v2314 = vsel %vm2254, %v2251, %v919
  %v2315 = vsel %vm2254, %v2252, %v921
  %v2316 = vsel %vm2254, %v2253, %v923
  %vm2317 = vcmask 97280
  %v2318 = vsel %vm2317, %v2255, %v1051
  %v2319 = vsel %vm2317, %v2256, %v1053
  %v2320 = vsel %vm2317, %v2257, %v1055
  %v2321 = vsel %vm2317, %v2258, %v1057
  %v2322 = vsel %vm2317, %v2259, %v1059
  %v2323 = vsel %vm2317, %v2260, %v1061
  %v2324 = vsel %vm2317, %v2261, %v1063
  %v2325 = vsel %vm2317, %v2262, %v1065
  %v2326 = vsel %vm2317, %v2263, %v1067
  %v2327 = vsel %vm2317, %v2264, %v1069
  %v2328 = vsel %vm2317, %v2265, %v1071
  %v2329 = vsel %vm2317, %v2266, %v1073
  %v2330 = vsel %vm2317, %v2267, %v1075
  %v2331 = vsel %vm2317, %v2268, %v1077
  %v2332 = vsel %vm2317, %v2269, %v1079
  %v2333 = vsel %vm2317, %v2270, %v1081
  %v2334 = vsel %vm2317, %v2271, %v1083
  %v2335 = vsel %vm2317, %v2272, %v1085
  %v2336 = vsel %vm2317, %v2273, %v1087
  %v2337 = vsel %vm2317, %v2274, %v1089
  %v2338 = vsel %vm2317, %v2275, %v1091
  %v2339 = vsel %vm2317, %v2276, %v1093
  %v2340 = vsel %vm2317, %v2277, %v1095
  %v2341 = vsel %vm2317, %v2278, %v1097
  %v2342 = vsel %vm2317, %v2279, %v1099
  %v2343 = vsel %vm2317, %v2280, %v1101
  %v2344 = vsel %vm2317, %v2281, %v1103
  %v2345 = vsel %vm2317, %v2282, %v1105
  %v2346 = vsel %vm2317, %v2283, %v1107
  %v2347 = vsel %vm2317, %v2284, %v1109
  %v2348 = vsel %vm2317, %v2285, %v1111
  %v2349 = vsel %vm2317, %v2286, %v1113
  %v2350 = vsel %vm2317, %v2255, %v1115
  %v2351 = vsel %vm2317, %v2256, %v1117
  %v2352 = vsel %vm2317, %v2287, %v1119
  %v2353 = vsel %vm2317, %v2288, %v1121
  %v2354 = vsel %vm2317, %v2289, %v1123
  %v2355 = vsel %vm2317, %v2290, %v1125
  %v2356 = vsel %vm2317, %v2291, %v1127
  %v2357 = vsel %vm2317, %v2292, %v1129
  %v2358 = vsel %vm2317, %v2293, %v1131
  %v2359 = vsel %vm2317, %v2294, %v1133
  %v2360 = vsel %vm2317, %v2295, %v1135
  %v2361 = vsel %vm2317, %v2296, %v1137
  %v2362 = vsel %vm2317, %v2297, %v1139
  %v2363 = vsel %vm2317, %v2298, %v1141
  %v2364 = vsel %vm2317, %v2299, %v1143
  %v2365 = vsel %vm2317, %v2300, %v1145
  %v2366 = vsel %vm2317, %v2301, %v1147
  %v2367 = vsel %vm2317, %v2302, %v1149
  %v2368 = vsel %vm2317, %v2303, %v1151
  %v2369 = vsel %vm2317, %v2304, %v1153
  %v2370 = vsel %vm2317, %v2305, %v1155
  %v2371 = vsel %vm2317, %v2306, %v1157
  %v2372 = vsel %vm2317, %v2307, %v1159
  %v2373 = vsel %vm2317, %v2308, %v1161
  %v2374 = vsel %vm2317, %v2309, %v1163
  %v2375 = vsel %vm2317, %v2310, %v1165
  %v2376 = vsel %vm2317, %v2311, %v1167
  %v2377 = vsel %vm2317, %v2312, %v1169
  %v2378 = vsel %vm2317, %v2313, %v1171
  %v2379 = vsel %vm2317, %v2314, %v1173
  %v2380 = vsel %vm2317, %v2315, %v1175
  %v2381 = vsel %vm2317, %v2316, %v1177
  %vm2382 = vcmask 130048
  %v2383 = vsel %vm2382, %v2318, %v1247
  %v2384 = vsel %vm2382, %v2319, %v1249
  %v2385 = vsel %vm2382, %v2320, %v1251
  %v2386 = vsel %vm2382, %v2321, %v1253
  %v2387 = vsel %vm2382, %v2322, %v1255
  %v2388 = vsel %vm2382, %v2323, %v1257
  %v2389 = vsel %vm2382, %v2324, %v1259
  %v2390 = vsel %vm2382, %v2325, %v1261
  %v2391 = vsel %vm2382, %v2326, %v1263
  %v2392 = vsel %vm2382, %v2327, %v1265
  %v2393 = vsel %vm2382, %v2328, %v1267
  %v2394 = vsel %vm2382, %v2329, %v1269
  %v2395 = vsel %vm2382, %v2330, %v1271
  %v2396 = vsel %vm2382, %v2331, %v1273
  %v2397 = vsel %vm2382, %v2332, %v1275
  %v2398 = vsel %vm2382, %v2333, %v1277
  %v2399 = vsel %vm2382, %v2334, %v1279
  %v2400 = vsel %vm2382, %v2335, %v1281
  %v2401 = vsel %vm2382, %v2336, %v1283
  %v2402 = vsel %vm2382, %v2337, %v1285
  %v2403 = vsel %vm2382, %v2338, %v1287
  %v2404 = vsel %vm2382, %v2339, %v1289
  %v2405 = vsel %vm2382, %v2340, %v1291
  %v2406 = vsel %vm2382, %v2341, %v1293
  %v2407 = vsel %vm2382, %v2342, %v1295
  %v2408 = vsel %vm2382, %v2343, %v1297
  %v2409 = vsel %vm2382, %v2344, %v1299
  %v2410 = vsel %vm2382, %v2345, %v1301
  %v2411 = vsel %vm2382, %v2346, %v1303
  %v2412 = vsel %vm2382, %v2347, %v1305
  %v2413 = vsel %vm2382, %v2348, %v1307
  %v2414 = vsel %vm2382, %v2349, %v1309
  %v2415 = vsel %vm2382, %v2350, %v1311
  %v2416 = vsel %vm2382, %v2351, %v1313
  %v2417 = vsel %vm2382, %v2352, %v1315
  %v2418 = vsel %vm2382, %v2353, %v1317
  %v2419 = vsel %vm2382, %v2354, %v1319
  %v2420 = vsel %vm2382, %v2355, %v1321
  %v2421 = vsel %vm2382, %v2356, %v1323
  %v2422 = vsel %vm2382, %v2357, %v1325
  %v2423 = vsel %vm2382, %v2358, %v1327
  %v2424 = vsel %vm2382, %v2359, %v1329
  %v2425 = vsel %vm2382, %v2360, %v1331
  %v2426 = vsel %vm2382, %v2361, %v1333
  %v2427 = vsel %vm2382, %v2362, %v1335
  %v2428 = vsel %vm2382, %v2363, %v1337
  %v2429 = vsel %vm2382, %v2364, %v1339
  %v2430 = vsel %vm2382, %v2365, %v1341
  %v2431 = vsel %vm2382, %v2366, %v1343
  %v2432 = vsel %vm2382, %v2367, %v1345
  %v2433 = vsel %vm2382, %v2368, %v1347
  %v2434 = vsel %vm2382, %v2369, %v1349
  %v2435 = vsel %vm2382, %v2370, %v1351
  %v2436 = vsel %vm2382, %v2371, %v1353
  %v2437 = vsel %vm2382, %v2372, %v1355
  %v2438 = vsel %vm2382, %v2373, %v1357
  %v2439 = vsel %vm2382, %v2374, %v1359
  %v2440 = vsel %vm2382, %v2375, %v1361
  %v2441 = vsel %vm2382, %v2376, %v1363
  %v2442 = vsel %vm2382, %v2377, %v1365
  %v2443 = vsel %vm2382, %v2378, %v1367
  %v2444 = vsel %vm2382, %v2379, %v1369
  %v2445 = vsel %vm2382, %v2380, %v1371
  %v2446 = vsel %vm2382, %v2381, %v1373
  %vm2447 = vcmask 162816
  %v2448 = vsel %vm2447, %v2383, %v1443
  %v2449 = vsel %vm2447, %v2384, %v1445
  %v2450 = vsel %vm2447, %v2385, %v1447
  %v2451 = vsel %vm2447, %v2386, %v1449
  %v2452 = vsel %vm2447, %v2387, %v1451
  %v2453 = vsel %vm2447, %v2388, %v1453
  %v2454 = vsel %vm2447, %v2389, %v1455
  %v2455 = vsel %vm2447, %v2390, %v1457
  %v2456 = vsel %vm2447, %v2391, %v1459
  %v2457 = vsel %vm2447, %v2392, %v1461
  %v2458 = vsel %vm2447, %v2393, %v1463
  %v2459 = vsel %vm2447, %v2394, %v1465
  %v2460 = vsel %vm2447, %v2395, %v1467
  %v2461 = vsel %vm2447, %v2396, %v1469
  %v2462 = vsel %vm2447, %v2397, %v1471
  %v2463 = vsel %vm2447, %v2398, %v1473
  %v2464 = vsel %vm2447, %v2399, %v1475
  %v2465 = vsel %vm2447, %v2400, %v1477
  %v2466 = vsel %vm2447, %v2401, %v1479
  %v2467 = vsel %vm2447, %v2402, %v1481
  %v2468 = vsel %vm2447, %v2403, %v1483
  %v2469 = vsel %vm2447, %v2404, %v1485
  %v2470 = vsel %vm2447, %v2405, %v1487
  %v2471 = vsel %vm2447, %v2406, %v1489
  %v2472 = vsel %vm2447, %v2407, %v1491
  %v2473 = vsel %vm2447, %v2408, %v1493
  %v2474 = vsel %vm2447, %v2409, %v1495
  %v2475 = vsel %vm2447, %v2410, %v1497
  %v2476 = vsel %vm2447, %v2411, %v1499
  %v2477 = vsel %vm2447, %v2412, %v1501
  %v2478 = vsel %vm2447, %v2413, %v1503
  %v2479 = vsel %vm2447, %v2414, %v1505
  %v2480 = vsel %vm2447, %v2415, %v1507
  %v2481 = vsel %vm2447, %v2416, %v1509
  %v2482 = vsel %vm2447, %v2417, %v1511
  %v2483 = vsel %vm2447, %v2418, %v1513
  %v2484 = vsel %vm2447, %v2419, %v1515
  %v2485 = vsel %vm2447, %v2420, %v1517
  %v2486 = vsel %vm2447, %v2421, %v1519
  %v2487 = vsel %vm2447, %v2422, %v1521
  %v2488 = vsel %vm2447, %v2423, %v1523
  %v2489 = vsel %vm2447, %v2424, %v1525
  %v2490 = vsel %vm2447, %v2425, %v1527
  %v2491 = vsel %vm2447, %v2426, %v1529
  %v2492 = vsel %vm2447, %v2427, %v1531
  %v2493 = vsel %vm2447, %v2428, %v1533
  %v2494 = vsel %vm2447, %v2429, %v1535
  %v2495 = vsel %vm2447, %v2430, %v1537
  %v2496 = vsel %vm2447, %v2431, %v1539
  %v2497 = vsel %vm2447, %v2432, %v1541
  %v2498 = vsel %vm2447, %v2433, %v1543
  %v2499 = vsel %vm2447, %v2434, %v1545
  %v2500 = vsel %vm2447, %v2435, %v1547
  %v2501 = vsel %vm2447, %v2436, %v1549
  %v2502 = vsel %vm2447, %v2437, %v1551
  %v2503 = vsel %vm2447, %v2438, %v1553
  %v2504 = vsel %vm2447, %v2439, %v1555
  %v2505 = vsel %vm2447, %v2440, %v1557
  %v2506 = vsel %vm2447, %v2441, %v1559
  %v2507 = vsel %vm2447, %v2442, %v1561
  %v2508 = vsel %vm2447, %v2443, %v1563
  %v2509 = vsel %vm2447, %v2444, %v1565
  %v2510 = vsel %vm2447, %v2445, %v1567
  %v2511 = vsel %vm2447, %v2446, %v1569
  %vm2512 = vcmask 195584
  %v2513 = vsel %vm2512, %v2448, %v1637
  %v2514 = vsel %vm2512, %v2449, %v1639
  %v2515 = vsel %vm2512, %v2450, %v1641
  %v2516 = vsel %vm2512, %v2451, %v1643
  %v2517 = vsel %vm2512, %v2452, %v1645
  %v2518 = vsel %vm2512, %v2453, %v1647
  %v2519 = vsel %vm2512, %v2454, %v1649
  %v2520 = vsel %vm2512, %v2455, %v1651
  %v2521 = vsel %vm2512, %v2456, %v1653
  %v2522 = vsel %vm2512, %v2457, %v1655
  %v2523 = vsel %vm2512, %v2458, %v1657
  %v2524 = vsel %vm2512, %v2459, %v1659
  %v2525 = vsel %vm2512, %v2460, %v1661
  %v2526 = vsel %vm2512, %v2461, %v1663
  %v2527 = vsel %vm2512, %v2462, %v1665
  %v2528 = vsel %vm2512, %v2463, %v1667
  %v2529 = vsel %vm2512, %v2464, %v1669
  %v2530 = vsel %vm2512, %v2465, %v1671
  %v2531 = vsel %vm2512, %v2466, %v1673
  %v2532 = vsel %vm2512, %v2467, %v1675
  %v2533 = vsel %vm2512, %v2468, %v1677
  %v2534 = vsel %vm2512, %v2469, %v1679
  %v2535 = vsel %vm2512, %v2470, %v1681
  %v2536 = vsel %vm2512, %v2471, %v1683
  %v2537 = vsel %vm2512, %v2472, %v1685
  %v2538 = vsel %vm2512, %v2473, %v1687
  %v2539 = vsel %vm2512, %v2474, %v1689
  %v2540 = vsel %vm2512, %v2475, %v1691
  %v2541 = vsel %vm2512, %v2476, %v1693
  %v2542 = vsel %vm2512, %v2477, %v1695
  %v2543 = vsel %vm2512, %v2478, %v1697
  %v2544 = vsel %vm2512, %v2479, %v1699
  %v2545 = vsel %vm2512, %v2480, %v1701
  %v2546 = vsel %vm2512, %v2481, %v1703
  %v2547 = vsel %vm2512, %v2482, %v1705
  %v2548 = vsel %vm2512, %v2483, %v1707
  %v2549 = vsel %vm2512, %v2484, %v1709
  %v2550 = vsel %vm2512, %v2485, %v1711
  %v2551 = vsel %vm2512, %v2486, %v1713
  %v2552 = vsel %vm2512, %v2487, %v1715
  %v2553 = vsel %vm2512, %v2488, %v1717
  %v2554 = vsel %vm2512, %v2489, %v1719
  %v2555 = vsel %vm2512, %v2490, %v1721
  %v2556 = vsel %vm2512, %v2491, %v1723
  %v2557 = vsel %vm2512, %v2492, %v1725
  %v2558 = vsel %vm2512, %v2493, %v1727
  %v2559 = vsel %vm2512, %v2494, %v1729
  %v2560 = vsel %vm2512, %v2495, %v1731
  %v2561 = vsel %vm2512, %v2496, %v1733
  %v2562 = vsel %vm2512, %v2497, %v1735
  %v2563 = vsel %vm2512, %v2498, %v1737
  %v2564 = vsel %vm2512, %v2499, %v1739
  %v2565 = vsel %vm2512, %v2500, %v1741
  %v2566 = vsel %vm2512, %v2501, %v1743
  %v2567 = vsel %vm2512, %v2502, %v1745
  %v2568 = vsel %vm2512, %v2503, %v1747
  %v2569 = vsel %vm2512, %v2504, %v1749
  %v2570 = vsel %vm2512, %v2505, %v1751
  %v2571 = vsel %vm2512, %v2506, %v1753
  %v2572 = vsel %vm2512, %v2507, %v1755
  %v2573 = vsel %vm2512, %v2508, %v1757
  %v2574 = vsel %vm2512, %v2509, %v1759
  %v2575 = vsel %vm2512, %v2510, %v1697
  %v2576 = vsel %vm2512, %v2511, %v1699
  %vm2577 = vcmask 228352
  %v2578 = vsel %vm2577, %v2513, %v1823
  %v2579 = vsel %vm2577, %v2514, %v1825
  %v2580 = vsel %vm2577, %v2515, %v1827
  %v2581 = vsel %vm2577, %v2516, %v1829
  %v2582 = vsel %vm2577, %v2517, %v1831
  %v2583 = vsel %vm2577, %v2518, %v1833
  %v2584 = vsel %vm2577, %v2519, %v1835
  %v2585 = vsel %vm2577, %v2520, %v1837
  %v2586 = vsel %vm2577, %v2521, %v1839
  %v2587 = vsel %vm2577, %v2522, %v1841
  %v2588 = vsel %vm2577, %v2523, %v1843
  %v2589 = vsel %vm2577, %v2524, %v1845
  %v2590 = vsel %vm2577, %v2525, %v1847
  %v2591 = vsel %vm2577, %v2526, %v1849
  %v2592 = vsel %vm2577, %v2527, %v1851
  %v2593 = vsel %vm2577, %v2528, %v1853
  %v2594 = vsel %vm2577, %v2529, %v1855
  %v2595 = vsel %vm2577, %v2530, %v1857
  %v2596 = vsel %vm2577, %v2531, %v1859
  %v2597 = vsel %vm2577, %v2532, %v1861
  %v2598 = vsel %vm2577, %v2533, %v1863
  %v2599 = vsel %vm2577, %v2534, %v1865
  %v2600 = vsel %vm2577, %v2535, %v1867
  %v2601 = vsel %vm2577, %v2536, %v1869
  %v2602 = vsel %vm2577, %v2537, %v1871
  %v2603 = vsel %vm2577, %v2538, %v1873
  %v2604 = vsel %vm2577, %v2539, %v1875
  %v2605 = vsel %vm2577, %v2540, %v1877
  %v2606 = vsel %vm2577, %v2541, %v1879
  %v2607 = vsel %vm2577, %v2542, %v1881
  %v2608 = vsel %vm2577, %v2543, %v1883
  %v2609 = vsel %vm2577, %v2544, %v1883
  %v2610 = vsel %vm2577, %v2545, %v1885
  %v2611 = vsel %vm2577, %v2546, %v1887
  %v2612 = vsel %vm2577, %v2547, %v1889
  %v2613 = vsel %vm2577, %v2548, %v1891
  %v2614 = vsel %vm2577, %v2549, %v1893
  %v2615 = vsel %vm2577, %v2550, %v1895
  %v2616 = vsel %vm2577, %v2551, %v1897
  %v2617 = vsel %vm2577, %v2552, %v1899
  %v2618 = vsel %vm2577, %v2553, %v1901
  %v2619 = vsel %vm2577, %v2554, %v1903
  %v2620 = vsel %vm2577, %v2555, %v1905
  %v2621 = vsel %vm2577, %v2556, %v1907
  %v2622 = vsel %vm2577, %v2557, %v1909
  %v2623 = vsel %vm2577, %v2558, %v1911
  %v2624 = vsel %vm2577, %v2559, %v1913
  %v2625 = vsel %vm2577, %v2560, %v1915
  %v2626 = vsel %vm2577, %v2561, %v1917
  %v2627 = vsel %vm2577, %v2562, %v1919
  %v2628 = vsel %vm2577, %v2563, %v1921
  %v2629 = vsel %vm2577, %v2564, %v1923
  %v2630 = vsel %vm2577, %v2565, %v1925
  %v2631 = vsel %vm2577, %v2566, %v1927
  %v2632 = vsel %vm2577, %v2567, %v1929
  %v2633 = vsel %vm2577, %v2568, %v1931
  %v2634 = vsel %vm2577, %v2569, %v1933
  %v2635 = vsel %vm2577, %v2570, %v1935
  %v2636 = vsel %vm2577, %v2571, %v1937
  %v2637 = vsel %vm2577, %v2572, %v1939
  %v2638 = vsel %vm2577, %v2573, %v1941
  %v2639 = vsel %vm2577, %v2574, %v1943
  %v2640 = vsel %vm2577, %v2575, %v1883
  %v2641 = vsel %vm2577, %v2576, %v1883
  %vm2642 = vcmask 261120
  %v2643 = vsel %vm2642, %v2578, %v2006
  %v2644 = vsel %vm2642, %v2579, %v2008
  %v2645 = vsel %vm2642, %v2580, %v2010
  %v2646 = vsel %vm2642, %v2581, %v2012
  %v2647 = vsel %vm2642, %v2582, %v2014
  %v2648 = vsel %vm2642, %v2583, %v2016
  %v2649 = vsel %vm2642, %v2584, %v2018
  %v2650 = vsel %vm2642, %v2585, %v2020
  %v2651 = vsel %vm2642, %v2586, %v2022
  %v2652 = vsel %vm2642, %v2587, %v2024
  %v2653 = vsel %vm2642, %v2588, %v2026
  %v2654 = vsel %vm2642, %v2589, %v2028
  %v2655 = vsel %vm2642, %v2590, %v2030
  %v2656 = vsel %vm2642, %v2591, %v2032
  %v2657 = vsel %vm2642, %v2592, %v2034
  %v2658 = vsel %vm2642, %v2593, %v2036
  %v2659 = vsel %vm2642, %v2594, %v2038
  %v2660 = vsel %vm2642, %v2595, %v2040
  %v2661 = vsel %vm2642, %v2596, %v2042
  %v2662 = vsel %vm2642, %v2597, %v2044
  %v2663 = vsel %vm2642, %v2598, %v2046
  %v2664 = vsel %vm2642, %v2599, %v2048
  %v2665 = vsel %vm2642, %v2600, %v2050
  %v2666 = vsel %vm2642, %v2601, %v2052
  %v2667 = vsel %vm2642, %v2602, %v2054
  %v2668 = vsel %vm2642, %v2603, %v2056
  %v2669 = vsel %vm2642, %v2604, %v2058
  %v2670 = vsel %vm2642, %v2605, %v2060
  %v2671 = vsel %vm2642, %v2606, %v2062
  %v2672 = vsel %vm2642, %v2607, %v2064
  %v2673 = vsel %vm2642, %v2608, %v2066
  %v2674 = vsel %vm2642, %v2609, %v2068
  %v2675 = vsel %vm2642, %v2610, %v2070
  %v2676 = vsel %vm2642, %v2611, %v2072
  %v2677 = vsel %vm2642, %v2612, %v2074
  %v2678 = vsel %vm2642, %v2613, %v2076
  %v2679 = vsel %vm2642, %v2614, %v2078
  %v2680 = vsel %vm2642, %v2615, %v2080
  %v2681 = vsel %vm2642, %v2616, %v2082
  %v2682 = vsel %vm2642, %v2617, %v2084
  %v2683 = vsel %vm2642, %v2618, %v2086
  %v2684 = vsel %vm2642, %v2619, %v2088
  %v2685 = vsel %vm2642, %v2620, %v2090
  %v2686 = vsel %vm2642, %v2621, %v2092
  %v2687 = vsel %vm2642, %v2622, %v2094
  %v2688 = vsel %vm2642, %v2623, %v2096
  %v2689 = vsel %vm2642, %v2624, %v2098
  %v2690 = vsel %vm2642, %v2625, %v2100
  %v2691 = vsel %vm2642, %v2626, %v2102
  %v2692 = vsel %vm2642, %v2627, %v2104
  %v2693 = vsel %vm2642, %v2628, %v2106
  %v2694 = vsel %vm2642, %v2629, %v2108
  %v2695 = vsel %vm2642, %v2630, %v2110
  %v2696 = vsel %vm2642, %v2631, %v2112
  %v2697 = vsel %vm2642, %v2632, %v2114
  %v2698 = vsel %vm2642, %v2633, %v2116
  %v2699 = vsel %vm2642, %v2634, %v2118
  %v2700 = vsel %vm2642, %v2635, %v2120
  %v2701 = vsel %vm2642, %v2636, %v2122
  %v2702 = vsel %vm2642, %v2637, %v2124
  %v2703 = vsel %vm2642, %v2638, %v2126
  %v2704 = vsel %vm2642, %v2639, %v2128
  %v2705 = vsel %vm2642, %v2640, %v2066
  %v2706 = vsel %vm2642, %v2641, %v2068
  %v2707 = vpack.c.bf16 %v2644, %v2643
  %v2708 = vpack.c.bf16 %v2646, %v2645
  %v2709 = vpack.c.bf16 %v2648, %v2647
  %v2710 = vpack.c.bf16 %v2650, %v2649
  %v2711 = vpack.c.bf16 %v2652, %v2651
  %v2712 = vpack.c.bf16 %v2654, %v2653
  %v2713 = vpack.c.bf16 %v2656, %v2655
  %v2714 = vpack.c.bf16 %v2658, %v2657
  %v2715 = vpack.c.bf16 %v2660, %v2659
  %v2716 = vpack.c.bf16 %v2662, %v2661
  %v2717 = vpack.c.bf16 %v2664, %v2663
  %v2718 = vpack.c.bf16 %v2666, %v2665
  %v2719 = vpack.c.bf16 %v2668, %v2667
  %v2720 = vpack.c.bf16 %v2670, %v2669
  %v2721 = vpack.c.bf16 %v2672, %v2671
  %v2722 = vpack.c.bf16 %v2674, %v2673
  %v2723 = vpack.c.bf16 %v2676, %v2675
  %v2724 = vpack.c.bf16 %v2678, %v2677
  %v2725 = vpack.c.bf16 %v2680, %v2679
  %v2726 = vpack.c.bf16 %v2682, %v2681
  %v2727 = vpack.c.bf16 %v2684, %v2683
  %v2728 = vpack.c.bf16 %v2686, %v2685
  %v2729 = vpack.c.bf16 %v2688, %v2687
  %v2730 = vpack.c.bf16 %v2690, %v2689
  %v2731 = vpack.c.bf16 %v2692, %v2691
  %v2732 = vpack.c.bf16 %v2694, %v2693
  %v2733 = vpack.c.bf16 %v2696, %v2695
  %v2734 = vpack.c.bf16 %v2698, %v2697
  %v2735 = vpack.c.bf16 %v2700, %v2699
  %v2736 = vpack.c.bf16 %v2702, %v2701
  %v2737 = vpack.c.bf16 %v2704, %v2703
  %v2738 = vpack.c.bf16 %v2706, %v2705
  %v2739 = vld [vmem:[%s1] sm:$0xf]
  %v2740 = vld [vmem:[%s1 + $0x4] sm:$0xf]
  %v2741 = vld [vmem:[%s1 + $0x8] sm:$0xf]
  %v2742 = vld [vmem:[%s1 + $0xc] sm:$0xf]
  %v2743 = vld [vmem:[%s1 + $0x10] sm:$0x3]
  %v2744 = vld [vmem:[%s2] sm:$0x1]
  %v2746 = vlaneseq
  %v2747 = vshrl.u32 %v2746, 7
  %v2748 = vsub.s32 0, %v2747
  %v2749 = vrot.slane %v2744, %v2748
  %v2756 = vunpack.c.l.b16 %v2739
  %v2757 = vunpack.c.l.b16 %v2740
  %v2758 = vunpack.c.l.b16 %v2741
  %v2759 = vunpack.c.l.b16 %v2742
  %v2760 = vunpack.c.l.b16 %v2743
  %v2761 = vpack.c.b16 %v2757, %v2756
  %v2762 = vpack.c.b16 %v2759, %v2758
  %v2763 = vpack.c.b16 %v2760, %v2760
  %vm2766 = vcmask 293888
  %v2768 = vsel %vm2766, %v2707, 0
  %v2771 = vsel %vm2766, %v2708, 0
  %v2774 = vsel %vm2766, %v2709, 0
  %v2777 = vsel %vm2766, %v2710, 0
  %v2780 = vsel %vm2766, %v2711, 0
  %v2783 = vsel %vm2766, %v2712, 0
  %v2786 = vsel %vm2766, %v2713, 0
  %v2789 = vsel %vm2766, %v2714, 0
  %v2792 = vsel %vm2766, %v2715, 0
  %v2795 = vsel %vm2766, %v2716, 0
  %v2798 = vsel %vm2766, %v2717, 0
  %v2801 = vsel %vm2766, %v2718, 0
  %v2804 = vsel %vm2766, %v2719, 0
  %v2807 = vsel %vm2766, %v2720, 0
  %v2810 = vsel %vm2766, %v2721, 0
  %v2813 = vsel %vm2766, %v2722, 0
  %v2816 = vsel %vm2766, %v2723, 0
  %v2819 = vsel %vm2766, %v2724, 0
  %v2822 = vsel %vm2766, %v2725, 0
  %v2825 = vsel %vm2766, %v2726, 0
  %v2828 = vsel %vm2766, %v2727, 0
  %v2831 = vsel %vm2766, %v2728, 0
  %v2834 = vsel %vm2766, %v2729, 0
  %v2837 = vsel %vm2766, %v2730, 0
  %v2840 = vsel %vm2766, %v2731, 0
  %v2843 = vsel %vm2766, %v2732, 0
  %v2846 = vsel %vm2766, %v2733, 0
  %v2849 = vsel %vm2766, %v2734, 0
  %v2852 = vsel %vm2766, %v2735, 0
  %v2855 = vsel %vm2766, %v2736, 0
  %v2858 = vsel %vm2766, %v2737, 0
  %v2861 = vsel %vm2766, %v2738, 0
  %vm2863 = vcmask 1041408
  %v2865 = vsel %vm2863, %v2763, 0
  %2867 = vmatprep.subr.bf16.mxu0 0
  %2868 = vmatpush1.bf16.msra.mxu0 0
  %2869 = vmatprep.subr.bf16.mxu0 0
  %2870 = vmatpush1.bf16.msra.mxu0 0
  %2871 = vmatprep.subr.bf16.mxu0 0
  %2872 = vmatpush1.bf16.msra.mxu0 0
  %2873 = vmatprep.subr.bf16.mxu0 0
  %2874 = vmatpush1.bf16.msra.mxu0 0
  %2875 = vmatprep.subr.bf16.mxu0 0
  %2876 = vmatpush1.bf16.msra.mxu0 0
  %2877 = vmatprep.subr.bf16.mxu0 0
  %2878 = vmatpush1.bf16.msra.mxu0 %v2865
  %2879 = vmatprep.subr.bf16.mxu0 0
  %2880 = vmatpush1.bf16.msra.mxu0 %v2762
  %2881 = vmatprep.subr.bf16.mxu0 0
  %2882 = vmatpush1.bf16.msra.mxu0 %v2761
  %2883 = vmatprep.subr.bf16.mxu0 0
  %2884 = vmatpush2.bf16.msra.mxu0 0
  %2885 = vmatprep.subr.bf16.mxu0 0
  %2886 = vmatpush2.bf16.msra.mxu0 0
  %2887 = vmatprep.subr.bf16.mxu0 0
  %2888 = vmatpush2.bf16.msra.mxu0 0
  %2889 = vmatprep.subr.bf16.mxu0 0
  %2890 = vmatpush2.bf16.msra.mxu0 0
  %2891 = vmatprep.subr.bf16.mxu0 0
  %2892 = vmatpush2.bf16.msra.mxu0 0
  %2893 = vmatprep.subr.bf16.mxu0 0
  %2894 = vmatpush2.bf16.msra.mxu0 0
  %2895 = vmatprep.subr.bf16.mxu0 0
  %2896 = vmatpush2.bf16.msra.mxu0 0
  %2897 = vmatprep.subr.bf16.mxu0 0
  %2898 = vmatpush2.bf16.msra.mxu0 0
  %2899 = vmatprep.mubr.bf16.mxu0 0
  %2900 = vmatmul.mubr.bf16.gmra.mxu0 %v2768
  %v2901 = vpop.f32.mrf.mxu0
  %v2902 = vadd.f32 %v2749, %v2901
  %v2903 = vpop.f32.mrf.mxu0
  %v2904 = vpop.f32.mrf.mxu0
  %v2905 = vadd.f32 %v2749, %v2904
  %v2906 = vpop.f32.mrf.mxu0
  %2907 = vmatprep.mubr.bf16.mxu0 0
  %2908 = vmatmul.mubr.bf16.gmra.mxu0 %v2771
  %v2909 = vpop.f32.mrf.mxu0
  %v2910 = vadd.f32 %v2749, %v2909
  %v2911 = vpop.f32.mrf.mxu0
  %v2912 = vpop.f32.mrf.mxu0
  %v2913 = vadd.f32 %v2749, %v2912
  %v2914 = vpop.f32.mrf.mxu0
  %2915 = vmatprep.mubr.bf16.mxu0 0
  %2916 = vmatmul.mubr.bf16.gmra.mxu0 %v2774
  %v2917 = vpop.f32.mrf.mxu0
  %v2918 = vadd.f32 %v2749, %v2917
  %v2919 = vpop.f32.mrf.mxu0
  %v2920 = vpop.f32.mrf.mxu0
  %v2921 = vadd.f32 %v2749, %v2920
  %v2922 = vpop.f32.mrf.mxu0
  %2923 = vmatprep.mubr.bf16.mxu0 0
  %2924 = vmatmul.mubr.bf16.gmra.mxu0 %v2777
  %v2925 = vpop.f32.mrf.mxu0
  %v2926 = vadd.f32 %v2749, %v2925
  %v2927 = vpop.f32.mrf.mxu0
  %v2928 = vpop.f32.mrf.mxu0
  %v2929 = vadd.f32 %v2749, %v2928
  %v2930 = vpop.f32.mrf.mxu0
  %2931 = vmatprep.mubr.bf16.mxu0 0
  %2932 = vmatmul.mubr.bf16.gmra.mxu0 %v2780
  %v2933 = vpop.f32.mrf.mxu0
  %v2934 = vadd.f32 %v2749, %v2933
  %v2935 = vpop.f32.mrf.mxu0
  %v2936 = vpop.f32.mrf.mxu0
  %v2937 = vadd.f32 %v2749, %v2936
  %v2938 = vpop.f32.mrf.mxu0
  %2939 = vmatprep.mubr.bf16.mxu0 0
  %2940 = vmatmul.mubr.bf16.gmra.mxu0 %v2783
  %v2941 = vpop.f32.mrf.mxu0
  %v2942 = vadd.f32 %v2749, %v2941
  %v2943 = vpop.f32.mrf.mxu0
  %v2944 = vpop.f32.mrf.mxu0
  %v2945 = vadd.f32 %v2749, %v2944
  %v2946 = vpop.f32.mrf.mxu0
  %2947 = vmatprep.mubr.bf16.mxu0 0
  %2948 = vmatmul.mubr.bf16.gmra.mxu0 %v2786
  %v2949 = vpop.f32.mrf.mxu0
  %v2950 = vadd.f32 %v2749, %v2949
  %v2951 = vpop.f32.mrf.mxu0
  %v2952 = vpop.f32.mrf.mxu0
  %v2953 = vadd.f32 %v2749, %v2952
  %v2954 = vpop.f32.mrf.mxu0
  %2955 = vmatprep.mubr.bf16.mxu0 0
  %2956 = vmatmul.mubr.bf16.gmra.mxu0 %v2789
  %v2957 = vpop.f32.mrf.mxu0
  %v2958 = vadd.f32 %v2749, %v2957
  %v2959 = vpop.f32.mrf.mxu0
  %v2960 = vpop.f32.mrf.mxu0
  %v2961 = vadd.f32 %v2749, %v2960
  %v2962 = vpop.f32.mrf.mxu0
  %2963 = vmatprep.mubr.bf16.mxu0 0
  %2964 = vmatmul.mubr.bf16.gmra.mxu0 %v2792
  %v2965 = vpop.f32.mrf.mxu0
  %v2966 = vadd.f32 %v2749, %v2965
  %v2967 = vpop.f32.mrf.mxu0
  %v2968 = vpop.f32.mrf.mxu0
  %v2969 = vadd.f32 %v2749, %v2968
  %v2970 = vpop.f32.mrf.mxu0
  %2971 = vmatprep.mubr.bf16.mxu0 0
  %2972 = vmatmul.mubr.bf16.gmra.mxu0 %v2795
  %v2973 = vpop.f32.mrf.mxu0
  %v2974 = vadd.f32 %v2749, %v2973
  %v2975 = vpop.f32.mrf.mxu0
  %v2976 = vpop.f32.mrf.mxu0
  %v2977 = vadd.f32 %v2749, %v2976
  %v2978 = vpop.f32.mrf.mxu0
  %2979 = vmatprep.mubr.bf16.mxu0 0
  %2980 = vmatmul.mubr.bf16.gmra.mxu0 %v2798
  %v2981 = vpop.f32.mrf.mxu0
  %v2982 = vadd.f32 %v2749, %v2981
  %v2983 = vpop.f32.mrf.mxu0
  %v2984 = vpop.f32.mrf.mxu0
  %v2985 = vadd.f32 %v2749, %v2984
  %v2986 = vpop.f32.mrf.mxu0
  %2987 = vmatprep.mubr.bf16.mxu0 0
  %2988 = vmatmul.mubr.bf16.gmra.mxu0 %v2801
  %v2989 = vpop.f32.mrf.mxu0
  %v2990 = vadd.f32 %v2749, %v2989
  %v2991 = vpop.f32.mrf.mxu0
  %v2992 = vpop.f32.mrf.mxu0
  %v2993 = vadd.f32 %v2749, %v2992
  %v2994 = vpop.f32.mrf.mxu0
  %2995 = vmatprep.mubr.bf16.mxu0 0
  %2996 = vmatmul.mubr.bf16.gmra.mxu0 %v2804
  %v2997 = vpop.f32.mrf.mxu0
  %v2998 = vadd.f32 %v2749, %v2997
  %v2999 = vpop.f32.mrf.mxu0
  %v3000 = vpop.f32.mrf.mxu0
  %v3001 = vadd.f32 %v2749, %v3000
  %v3002 = vpop.f32.mrf.mxu0
  %3003 = vmatprep.mubr.bf16.mxu0 0
  %3004 = vmatmul.mubr.bf16.gmra.mxu0 %v2807
  %v3005 = vpop.f32.mrf.mxu0
  %v3006 = vadd.f32 %v2749, %v3005
  %v3007 = vpop.f32.mrf.mxu0
  %v3008 = vpop.f32.mrf.mxu0
  %v3009 = vadd.f32 %v2749, %v3008
  %v3010 = vpop.f32.mrf.mxu0
  %3011 = vmatprep.mubr.bf16.mxu0 0
  %3012 = vmatmul.mubr.bf16.gmra.mxu0 %v2810
  %v3013 = vpop.f32.mrf.mxu0
  %v3014 = vadd.f32 %v2749, %v3013
  %v3015 = vpop.f32.mrf.mxu0
  %v3016 = vpop.f32.mrf.mxu0
  %v3017 = vadd.f32 %v2749, %v3016
  %v3018 = vpop.f32.mrf.mxu0
  %3019 = vmatprep.mubr.bf16.mxu0 0
  %3020 = vmatmul.mubr.bf16.gmra.mxu0 %v2813
  %v3021 = vpop.f32.mrf.mxu0
  %v3022 = vadd.f32 %v2749, %v3021
  %v3023 = vpop.f32.mrf.mxu0
  %v3024 = vpop.f32.mrf.mxu0
  %v3025 = vadd.f32 %v2749, %v3024
  %v3026 = vpop.f32.mrf.mxu0
  %3027 = vmatprep.mubr.bf16.mxu0 0
  %3028 = vmatmul.mubr.bf16.gmra.mxu0 %v2816
  %v3029 = vpop.f32.mrf.mxu0
  %v3030 = vadd.f32 %v2749, %v3029
  %v3031 = vpop.f32.mrf.mxu0
  %v3032 = vpop.f32.mrf.mxu0
  %v3033 = vadd.f32 %v2749, %v3032
  %v3034 = vpop.f32.mrf.mxu0
  %3035 = vmatprep.mubr.bf16.mxu0 0
  %3036 = vmatmul.mubr.bf16.gmra.mxu0 %v2819
  %v3037 = vpop.f32.mrf.mxu0
  %v3038 = vadd.f32 %v2749, %v3037
  %v3039 = vpop.f32.mrf.mxu0
  %v3040 = vpop.f32.mrf.mxu0
  %v3041 = vadd.f32 %v2749, %v3040
  %v3042 = vpop.f32.mrf.mxu0
  %3043 = vmatprep.mubr.bf16.mxu0 0
  %3044 = vmatmul.mubr.bf16.gmra.mxu0 %v2822
  %v3045 = vpop.f32.mrf.mxu0
  %v3046 = vadd.f32 %v2749, %v3045
  %v3047 = vpop.f32.mrf.mxu0
  %v3048 = vpop.f32.mrf.mxu0
  %v3049 = vadd.f32 %v2749, %v3048
  %v3050 = vpop.f32.mrf.mxu0
  %3051 = vmatprep.mubr.bf16.mxu0 0
  %3052 = vmatmul.mubr.bf16.gmra.mxu0 %v2825
  %v3053 = vpop.f32.mrf.mxu0
  %v3054 = vadd.f32 %v2749, %v3053
  %v3055 = vpop.f32.mrf.mxu0
  %v3056 = vpop.f32.mrf.mxu0
  %v3057 = vadd.f32 %v2749, %v3056
  %v3058 = vpop.f32.mrf.mxu0
  %3059 = vmatprep.mubr.bf16.mxu0 0
  %3060 = vmatmul.mubr.bf16.gmra.mxu0 %v2828
  %v3061 = vpop.f32.mrf.mxu0
  %v3062 = vadd.f32 %v2749, %v3061
  %v3063 = vpop.f32.mrf.mxu0
  %v3064 = vpop.f32.mrf.mxu0
  %v3065 = vadd.f32 %v2749, %v3064
  %v3066 = vpop.f32.mrf.mxu0
  %3067 = vmatprep.mubr.bf16.mxu0 0
  %3068 = vmatmul.mubr.bf16.gmra.mxu0 %v2831
  %v3069 = vpop.f32.mrf.mxu0
  %v3070 = vadd.f32 %v2749, %v3069
  %v3071 = vpop.f32.mrf.mxu0
  %v3072 = vpop.f32.mrf.mxu0
  %v3073 = vadd.f32 %v2749, %v3072
  %v3074 = vpop.f32.mrf.mxu0
  %3075 = vmatprep.mubr.bf16.mxu0 0
  %3076 = vmatmul.mubr.bf16.gmra.mxu0 %v2834
  %v3077 = vpop.f32.mrf.mxu0
  %v3078 = vadd.f32 %v2749, %v3077
  %v3079 = vpop.f32.mrf.mxu0
  %v3080 = vpop.f32.mrf.mxu0
  %v3081 = vadd.f32 %v2749, %v3080
  %v3082 = vpop.f32.mrf.mxu0
  %3083 = vmatprep.mubr.bf16.mxu0 0
  %3084 = vmatmul.mubr.bf16.gmra.mxu0 %v2837
  %v3085 = vpop.f32.mrf.mxu0
  %v3086 = vadd.f32 %v2749, %v3085
  %v3087 = vpop.f32.mrf.mxu0
  %v3088 = vpop.f32.mrf.mxu0
  %v3089 = vadd.f32 %v2749, %v3088
  %v3090 = vpop.f32.mrf.mxu0
  %3091 = vmatprep.mubr.bf16.mxu0 0
  %3092 = vmatmul.mubr.bf16.gmra.mxu0 %v2840
  %v3093 = vpop.f32.mrf.mxu0
  %v3094 = vadd.f32 %v2749, %v3093
  %v3095 = vpop.f32.mrf.mxu0
  %v3096 = vpop.f32.mrf.mxu0
  %v3097 = vadd.f32 %v2749, %v3096
  %v3098 = vpop.f32.mrf.mxu0
  %3099 = vmatprep.mubr.bf16.mxu0 0
  %3100 = vmatmul.mubr.bf16.gmra.mxu0 %v2843
  %v3101 = vpop.f32.mrf.mxu0
  %v3102 = vadd.f32 %v2749, %v3101
  %v3103 = vpop.f32.mrf.mxu0
  %v3104 = vpop.f32.mrf.mxu0
  %v3105 = vadd.f32 %v2749, %v3104
  %v3106 = vpop.f32.mrf.mxu0
  %3107 = vmatprep.mubr.bf16.mxu0 0
  %3108 = vmatmul.mubr.bf16.gmra.mxu0 %v2846
  %v3109 = vpop.f32.mrf.mxu0
  %v3110 = vadd.f32 %v2749, %v3109
  %v3111 = vpop.f32.mrf.mxu0
  %v3112 = vpop.f32.mrf.mxu0
  %v3113 = vadd.f32 %v2749, %v3112
  %v3114 = vpop.f32.mrf.mxu0
  %3115 = vmatprep.mubr.bf16.mxu0 0
  %3116 = vmatmul.mubr.bf16.gmra.mxu0 %v2849
  %v3117 = vpop.f32.mrf.mxu0
  %v3118 = vadd.f32 %v2749, %v3117
  %v3119 = vpop.f32.mrf.mxu0
  %v3120 = vpop.f32.mrf.mxu0
  %v3121 = vadd.f32 %v2749, %v3120
  %v3122 = vpop.f32.mrf.mxu0
  %3123 = vmatprep.mubr.bf16.mxu0 0
  %3124 = vmatmul.mubr.bf16.gmra.mxu0 %v2852
  %v3125 = vpop.f32.mrf.mxu0
  %v3126 = vadd.f32 %v2749, %v3125
  %v3127 = vpop.f32.mrf.mxu0
  %v3128 = vpop.f32.mrf.mxu0
  %v3129 = vadd.f32 %v2749, %v3128
  %v3130 = vpop.f32.mrf.mxu0
  %3131 = vmatprep.mubr.bf16.mxu0 0
  %3132 = vmatmul.mubr.bf16.gmra.mxu0 %v2855
  %v3133 = vpop.f32.mrf.mxu0
  %v3134 = vadd.f32 %v2749, %v3133
  %v3135 = vpop.f32.mrf.mxu0
  %v3136 = vpop.f32.mrf.mxu0
  %v3137 = vadd.f32 %v2749, %v3136
  %v3138 = vpop.f32.mrf.mxu0
  %3139 = vmatprep.mubr.bf16.mxu0 0
  %3140 = vmatmul.mubr.bf16.gmra.mxu0 %v2858
  %v3141 = vpop.f32.mrf.mxu0
  %v3142 = vadd.f32 %v2749, %v3141
  %v3143 = vpop.f32.mrf.mxu0
  %v3144 = vpop.f32.mrf.mxu0
  %v3145 = vadd.f32 %v2749, %v3144
  %v3146 = vpop.f32.mrf.mxu0
  %3147 = vmatprep.mubr.bf16.mxu0 0
  %3148 = vmatmul.mubr.bf16.gmra.mxu0 %v2861
  %v3149 = vpop.f32.mrf.mxu0
  %v3150 = vadd.f32 %v2749, %v3149
  %v3151 = vpop.f32.mrf.mxu0
  %v3152 = vpop.f32.mrf.mxu0
  %v3153 = vadd.f32 %v2749, %v3152
  %v3154 = vpop.f32.mrf.mxu0
  %3155 = vdwg.mxu0
  %v3156 = vsel %vm2191, %v2902, 0.0
  %v3157 = vsel %vm2191, %v2905, 0.0
  %v3158 = vadd.f32 %v3156, %v3157
  %v3159 = vsel %vm2191, %v2910, 0.0
  %v3160 = vadd.f32 %v3158, %v3159
  %v3161 = vsel %vm2191, %v2913, 0.0
  %v3162 = vadd.f32 %v3160, %v3161
  %v3163 = vsel %vm2191, %v2918, 0.0
  %v3164 = vadd.f32 %v3162, %v3163
  %v3165 = vsel %vm2191, %v2921, 0.0
  %v3166 = vadd.f32 %v3164, %v3165
  %v3167 = vsel %vm2191, %v2926, 0.0
  %v3168 = vadd.f32 %v3166, %v3167
  %v3169 = vsel %vm2191, %v2929, 0.0
  %v3170 = vadd.f32 %v3168, %v3169
  %v3171 = vsel %vm2191, %v2934, 0.0
  %v3172 = vadd.f32 %v3170, %v3171
  %v3173 = vsel %vm2191, %v2937, 0.0
  %v3174 = vadd.f32 %v3172, %v3173
  %v3175 = vsel %vm2191, %v2942, 0.0
  %v3176 = vadd.f32 %v3174, %v3175
  %v3177 = vsel %vm2191, %v2945, 0.0
  %v3178 = vadd.f32 %v3176, %v3177
  %v3179 = vsel %vm2191, %v2950, 0.0
  %v3180 = vadd.f32 %v3178, %v3179
  %v3181 = vsel %vm2191, %v2953, 0.0
  %v3182 = vadd.f32 %v3180, %v3181
  %v3183 = vsel %vm2191, %v2958, 0.0
  %v3184 = vadd.f32 %v3182, %v3183
  %v3185 = vsel %vm2191, %v2961, 0.0
  %v3186 = vadd.f32 %v3184, %v3185
  %v3187 = vsel %vm2191, %v2966, 0.0
  %v3188 = vadd.f32 %v3186, %v3187
  %v3189 = vsel %vm2191, %v2969, 0.0
  %v3190 = vadd.f32 %v3188, %v3189
  %v3191 = vsel %vm2191, %v2974, 0.0
  %v3192 = vadd.f32 %v3190, %v3191
  %v3193 = vsel %vm2191, %v2977, 0.0
  %v3194 = vadd.f32 %v3192, %v3193
  %v3195 = vsel %vm2191, %v2982, 0.0
  %v3196 = vadd.f32 %v3194, %v3195
  %v3197 = vsel %vm2191, %v2985, 0.0
  %v3198 = vadd.f32 %v3196, %v3197
  %v3199 = vsel %vm2191, %v2990, 0.0
  %v3200 = vadd.f32 %v3198, %v3199
  %v3201 = vsel %vm2191, %v2993, 0.0
  %v3202 = vadd.f32 %v3200, %v3201
  %v3203 = vsel %vm2191, %v2998, 0.0
  %v3204 = vadd.f32 %v3202, %v3203
  %v3205 = vsel %vm2191, %v3001, 0.0
  %v3206 = vadd.f32 %v3204, %v3205
  %v3207 = vsel %vm2191, %v3006, 0.0
  %v3208 = vadd.f32 %v3206, %v3207
  %v3209 = vsel %vm2191, %v3009, 0.0
  %v3210 = vadd.f32 %v3208, %v3209
  %v3211 = vsel %vm2191, %v3014, 0.0
  %v3212 = vadd.f32 %v3210, %v3211
  %v3213 = vsel %vm2191, %v3017, 0.0
  %v3214 = vadd.f32 %v3212, %v3213
  %v3215 = vsel %vm2191, %v3022, 0.0
  %v3216 = vadd.f32 %v3214, %v3215
  %v3217 = vsel %vm2191, %v3025, 0.0
  %v3218 = vadd.f32 %v3216, %v3217
  %v3219 = vsel %vm2191, %v3030, 0.0
  %v3220 = vadd.f32 %v3218, %v3219
  %v3221 = vsel %vm2191, %v3033, 0.0
  %v3222 = vadd.f32 %v3220, %v3221
  %v3223 = vsel %vm2191, %v3038, 0.0
  %v3224 = vadd.f32 %v3222, %v3223
  %v3225 = vsel %vm2191, %v3041, 0.0
  %v3226 = vadd.f32 %v3224, %v3225
  %v3227 = vsel %vm2191, %v3046, 0.0
  %v3228 = vadd.f32 %v3226, %v3227
  %v3229 = vsel %vm2191, %v3049, 0.0
  %v3230 = vadd.f32 %v3228, %v3229
  %v3231 = vsel %vm2191, %v3054, 0.0
  %v3232 = vadd.f32 %v3230, %v3231
  %v3233 = vsel %vm2191, %v3057, 0.0
  %v3234 = vadd.f32 %v3232, %v3233
  %v3235 = vsel %vm2191, %v3062, 0.0
  %v3236 = vadd.f32 %v3234, %v3235
  %v3237 = vsel %vm2191, %v3065, 0.0
  %v3238 = vadd.f32 %v3236, %v3237
  %v3239 = vsel %vm2191, %v3070, 0.0
  %v3240 = vadd.f32 %v3238, %v3239
  %v3241 = vsel %vm2191, %v3073, 0.0
  %v3242 = vadd.f32 %v3240, %v3241
  %v3243 = vsel %vm2191, %v3078, 0.0
  %v3244 = vadd.f32 %v3242, %v3243
  %v3245 = vsel %vm2191, %v3081, 0.0
  %v3246 = vadd.f32 %v3244, %v3245
  %v3247 = vsel %vm2191, %v3086, 0.0
  %v3248 = vadd.f32 %v3246, %v3247
  %v3249 = vsel %vm2191, %v3089, 0.0
  %v3250 = vadd.f32 %v3248, %v3249
  %v3251 = vsel %vm2191, %v3094, 0.0
  %v3252 = vadd.f32 %v3250, %v3251
  %v3253 = vsel %vm2191, %v3097, 0.0
  %v3254 = vadd.f32 %v3252, %v3253
  %v3255 = vsel %vm2191, %v3102, 0.0
  %v3256 = vadd.f32 %v3254, %v3255
  %v3257 = vsel %vm2191, %v3105, 0.0
  %v3258 = vadd.f32 %v3256, %v3257
  %v3259 = vsel %vm2191, %v3110, 0.0
  %v3260 = vadd.f32 %v3258, %v3259
  %v3261 = vsel %vm2191, %v3113, 0.0
  %v3262 = vadd.f32 %v3260, %v3261
  %v3263 = vsel %vm2191, %v3118, 0.0
  %v3264 = vadd.f32 %v3262, %v3263
  %v3265 = vsel %vm2191, %v3121, 0.0
  %v3266 = vadd.f32 %v3264, %v3265
  %v3267 = vsel %vm2191, %v3126, 0.0
  %v3268 = vadd.f32 %v3266, %v3267
  %v3269 = vsel %vm2191, %v3129, 0.0
  %v3270 = vadd.f32 %v3268, %v3269
  %v3271 = vsel %vm2191, %v3134, 0.0
  %v3272 = vadd.f32 %v3270, %v3271
  %v3273 = vsel %vm2191, %v3137, 0.0
  %v3274 = vadd.f32 %v3272, %v3273
  %v3275 = vsel %vm2191, %v3142, 0.0
  %v3276 = vadd.f32 %v3274, %v3275
  %v3277 = vsel %vm2191, %v3145, 0.0
  %v3278 = vadd.f32 %v3276, %v3277
  %v3279 = vsel %vm2191, %v3150, 0.0
  %v3280 = vadd.f32 %v3278, %v3279
  %v3281 = vsel %vm2191, %v3153, 0.0
  %v3282 = vadd.f32 %v3280, %v3281
  %v3283 = vrot.slane %v3282, 4
  %v3284 = vadd.f32 %v3282, %v3283
  %v3285 = vrot.slane %v3284, 2
  %v3286 = vadd.f32 %v3284, %v3285
  %v3287 = vrot.slane %v3286, 1
  %v3288 = vadd.f32 %v3286, %v3287
  %v3289 = vmul.f32 %v2902, %v2902
  %v3290 = vmul.f32 %v2905, %v2905
  %v3291 = vmul.f32 %v2910, %v2910
  %v3292 = vmul.f32 %v2913, %v2913
  %v3293 = vmul.f32 %v2918, %v2918
  %v3294 = vmul.f32 %v2921, %v2921
  %v3295 = vmul.f32 %v2926, %v2926
  %v3296 = vmul.f32 %v2929, %v2929
  %v3297 = vmul.f32 %v2934, %v2934
  %v3298 = vmul.f32 %v2937, %v2937
  %v3299 = vmul.f32 %v2942, %v2942
  %v3300 = vmul.f32 %v2945, %v2945
  %v3301 = vmul.f32 %v2950, %v2950
  %v3302 = vmul.f32 %v2953, %v2953
  %v3303 = vmul.f32 %v2958, %v2958
  %v3304 = vmul.f32 %v2961, %v2961
  %v3305 = vmul.f32 %v2966, %v2966
  %v3306 = vmul.f32 %v2969, %v2969
  %v3307 = vmul.f32 %v2974, %v2974
  %v3308 = vmul.f32 %v2977, %v2977
  %v3309 = vmul.f32 %v2982, %v2982
  %v3310 = vmul.f32 %v2985, %v2985
  %v3311 = vmul.f32 %v2990, %v2990
  %v3312 = vmul.f32 %v2993, %v2993
  %v3313 = vmul.f32 %v2998, %v2998
  %v3314 = vmul.f32 %v3001, %v3001
  %v3315 = vmul.f32 %v3006, %v3006
  %v3316 = vmul.f32 %v3009, %v3009
  %v3317 = vmul.f32 %v3014, %v3014
  %v3318 = vmul.f32 %v3017, %v3017
  %v3319 = vmul.f32 %v3022, %v3022
  %v3320 = vmul.f32 %v3025, %v3025
  %v3321 = vmul.f32 %v3030, %v3030
  %v3322 = vmul.f32 %v3033, %v3033
  %v3323 = vmul.f32 %v3038, %v3038
  %v3324 = vmul.f32 %v3041, %v3041
  %v3325 = vmul.f32 %v3046, %v3046
  %v3326 = vmul.f32 %v3049, %v3049
  %v3327 = vmul.f32 %v3054, %v3054
  %v3328 = vmul.f32 %v3057, %v3057
  %v3329 = vmul.f32 %v3062, %v3062
  %v3330 = vmul.f32 %v3065, %v3065
  %v3331 = vmul.f32 %v3070, %v3070
  %v3332 = vmul.f32 %v3073, %v3073
  %v3333 = vmul.f32 %v3078, %v3078
  %v3334 = vmul.f32 %v3081, %v3081
  %v3335 = vmul.f32 %v3086, %v3086
  %v3336 = vmul.f32 %v3089, %v3089
  %v3337 = vmul.f32 %v3094, %v3094
  %v3338 = vmul.f32 %v3097, %v3097
  %v3339 = vmul.f32 %v3102, %v3102
  %v3340 = vmul.f32 %v3105, %v3105
  %v3341 = vmul.f32 %v3110, %v3110
  %v3342 = vmul.f32 %v3113, %v3113
  %v3343 = vmul.f32 %v3118, %v3118
  %v3344 = vmul.f32 %v3121, %v3121
  %v3345 = vmul.f32 %v3126, %v3126
  %v3346 = vmul.f32 %v3129, %v3129
  %v3347 = vmul.f32 %v3134, %v3134
  %v3348 = vmul.f32 %v3137, %v3137
  %v3349 = vmul.f32 %v3142, %v3142
  %v3350 = vmul.f32 %v3145, %v3145
  %v3351 = vmul.f32 %v3150, %v3150
  %v3352 = vmul.f32 %v3153, %v3153
  %v3353 = vsel %vm2191, %v3289, 0.0
  %v3354 = vsel %vm2191, %v3290, 0.0
  %v3355 = vadd.f32 %v3353, %v3354
  %v3356 = vsel %vm2191, %v3291, 0.0
  %v3357 = vadd.f32 %v3355, %v3356
  %v3358 = vsel %vm2191, %v3292, 0.0
  %v3359 = vadd.f32 %v3357, %v3358
  %v3360 = vsel %vm2191, %v3293, 0.0
  %v3361 = vadd.f32 %v3359, %v3360
  %v3362 = vsel %vm2191, %v3294, 0.0
  %v3363 = vadd.f32 %v3361, %v3362
  %v3364 = vsel %vm2191, %v3295, 0.0
  %v3365 = vadd.f32 %v3363, %v3364
  %v3366 = vsel %vm2191, %v3296, 0.0
  %v3367 = vadd.f32 %v3365, %v3366
  %v3368 = vsel %vm2191, %v3297, 0.0
  %v3369 = vadd.f32 %v3367, %v3368
  %v3370 = vsel %vm2191, %v3298, 0.0
  %v3371 = vadd.f32 %v3369, %v3370
  %v3372 = vsel %vm2191, %v3299, 0.0
  %v3373 = vadd.f32 %v3371, %v3372
  %v3374 = vsel %vm2191, %v3300, 0.0
  %v3375 = vadd.f32 %v3373, %v3374
  %v3376 = vsel %vm2191, %v3301, 0.0
  %v3377 = vadd.f32 %v3375, %v3376
  %v3378 = vsel %vm2191, %v3302, 0.0
  %v3379 = vadd.f32 %v3377, %v3378
  %v3380 = vsel %vm2191, %v3303, 0.0
  %v3381 = vadd.f32 %v3379, %v3380
  %v3382 = vsel %vm2191, %v3304, 0.0
  %v3383 = vadd.f32 %v3381, %v3382
  %v3384 = vsel %vm2191, %v3305, 0.0
  %v3385 = vadd.f32 %v3383, %v3384
  %v3386 = vsel %vm2191, %v3306, 0.0
  %v3387 = vadd.f32 %v3385, %v3386
  %v3388 = vsel %vm2191, %v3307, 0.0
  %v3389 = vadd.f32 %v3387, %v3388
  %v3390 = vsel %vm2191, %v3308, 0.0
  %v3391 = vadd.f32 %v3389, %v3390
  %v3392 = vsel %vm2191, %v3309, 0.0
  %v3393 = vadd.f32 %v3391, %v3392
  %v3394 = vsel %vm2191, %v3310, 0.0
  %v3395 = vadd.f32 %v3393, %v3394
  %v3396 = vsel %vm2191, %v3311, 0.0
  %v3397 = vadd.f32 %v3395, %v3396
  %v3398 = vsel %vm2191, %v3312, 0.0
  %v3399 = vadd.f32 %v3397, %v3398
  %v3400 = vsel %vm2191, %v3313, 0.0
  %v3401 = vadd.f32 %v3399, %v3400
  %v3402 = vsel %vm2191, %v3314, 0.0
  %v3403 = vadd.f32 %v3401, %v3402
  %v3404 = vsel %vm2191, %v3315, 0.0
  %v3405 = vadd.f32 %v3403, %v3404
  %v3406 = vsel %vm2191, %v3316, 0.0
  %v3407 = vadd.f32 %v3405, %v3406
  %v3408 = vsel %vm2191, %v3317, 0.0
  %v3409 = vadd.f32 %v3407, %v3408
  %v3410 = vsel %vm2191, %v3318, 0.0
  %v3411 = vadd.f32 %v3409, %v3410
  %v3412 = vsel %vm2191, %v3319, 0.0
  %v3413 = vadd.f32 %v3411, %v3412
  %v3414 = vsel %vm2191, %v3320, 0.0
  %v3415 = vadd.f32 %v3413, %v3414
  %v3416 = vsel %vm2191, %v3321, 0.0
  %v3417 = vadd.f32 %v3415, %v3416
  %v3418 = vsel %vm2191, %v3322, 0.0
  %v3419 = vadd.f32 %v3417, %v3418
  %v3420 = vsel %vm2191, %v3323, 0.0
  %v3421 = vadd.f32 %v3419, %v3420
  %v3422 = vsel %vm2191, %v3324, 0.0
  %v3423 = vadd.f32 %v3421, %v3422
  %v3424 = vsel %vm2191, %v3325, 0.0
  %v3425 = vadd.f32 %v3423, %v3424
  %v3426 = vsel %vm2191, %v3326, 0.0
  %v3427 = vadd.f32 %v3425, %v3426
  %v3428 = vsel %vm2191, %v3327, 0.0
  %v3429 = vadd.f32 %v3427, %v3428
  %v3430 = vsel %vm2191, %v3328, 0.0
  %v3431 = vadd.f32 %v3429, %v3430
  %v3432 = vsel %vm2191, %v3329, 0.0
  %v3433 = vadd.f32 %v3431, %v3432
  %v3434 = vsel %vm2191, %v3330, 0.0
  %v3435 = vadd.f32 %v3433, %v3434
  %v3436 = vsel %vm2191, %v3331, 0.0
  %v3437 = vadd.f32 %v3435, %v3436
  %v3438 = vsel %vm2191, %v3332, 0.0
  %v3439 = vadd.f32 %v3437, %v3438
  %v3440 = vsel %vm2191, %v3333, 0.0
  %v3441 = vadd.f32 %v3439, %v3440
  %v3442 = vsel %vm2191, %v3334, 0.0
  %v3443 = vadd.f32 %v3441, %v3442
  %v3444 = vsel %vm2191, %v3335, 0.0
  %v3445 = vadd.f32 %v3443, %v3444
  %v3446 = vsel %vm2191, %v3336, 0.0
  %v3447 = vadd.f32 %v3445, %v3446
  %v3448 = vsel %vm2191, %v3337, 0.0
  %v3449 = vadd.f32 %v3447, %v3448
  %v3450 = vsel %vm2191, %v3338, 0.0
  %v3451 = vadd.f32 %v3449, %v3450
  %v3452 = vsel %vm2191, %v3339, 0.0
  %v3453 = vadd.f32 %v3451, %v3452
  %v3454 = vsel %vm2191, %v3340, 0.0
  %v3455 = vadd.f32 %v3453, %v3454
  %v3456 = vsel %vm2191, %v3341, 0.0
  %v3457 = vadd.f32 %v3455, %v3456
  %v3458 = vsel %vm2191, %v3342, 0.0
  %v3459 = vadd.f32 %v3457, %v3458
  %v3460 = vsel %vm2191, %v3343, 0.0
  %v3461 = vadd.f32 %v3459, %v3460
  %v3462 = vsel %vm2191, %v3344, 0.0
  %v3463 = vadd.f32 %v3461, %v3462
  %v3464 = vsel %vm2191, %v3345, 0.0
  %v3465 = vadd.f32 %v3463, %v3464
  %v3466 = vsel %vm2191, %v3346, 0.0
  %v3467 = vadd.f32 %v3465, %v3466
  %v3468 = vsel %vm2191, %v3347, 0.0
  %v3469 = vadd.f32 %v3467, %v3468
  %v3470 = vsel %vm2191, %v3348, 0.0
  %v3471 = vadd.f32 %v3469, %v3470
  %v3472 = vsel %vm2191, %v3349, 0.0
  %v3473 = vadd.f32 %v3471, %v3472
  %v3474 = vsel %vm2191, %v3350, 0.0
  %v3475 = vadd.f32 %v3473, %v3474
  %v3476 = vsel %vm2191, %v3351, 0.0
  %v3477 = vadd.f32 %v3475, %v3476
  %v3478 = vsel %vm2191, %v3352, 0.0
  %v3479 = vadd.f32 %v3477, %v3478
  %v3480 = vrot.slane %v3479, 4
  %v3481 = vadd.f32 %v3479, %v3480
  %v3482 = vrot.slane %v3481, 2
  %v3483 = vadd.f32 %v3481, %v3482
  %v3484 = vrot.slane %v3483, 1
  %v3485 = vadd.f32 %v3483, %v3484
  %v3486 = vmul.f32 %v3288, 0.001953125
  %v3487 = vmul.f32 %v3485, 0.001953125
  %v3488 = vmul.f32 %v3486, %v3486
  %v3489 = vsub.f32 %v3487, %v3488
  %v3490 = vmax.f32 %v3489, 0.0
  %v3491 = vadd.f32 %v3490, 1e-05
  %v3492 = vrsqrt.pop %v3491
  %v3493 = vsub.f32 %v2902, %v3486
  %v3494 = vsub.f32 %v2905, %v3486
  %v3495 = vsub.f32 %v2910, %v3486
  %v3496 = vsub.f32 %v2913, %v3486
  %v3497 = vsub.f32 %v2918, %v3486
  %v3498 = vsub.f32 %v2921, %v3486
  %v3499 = vsub.f32 %v2926, %v3486
  %v3500 = vsub.f32 %v2929, %v3486
  %v3501 = vsub.f32 %v2934, %v3486
  %v3502 = vsub.f32 %v2937, %v3486
  %v3503 = vsub.f32 %v2942, %v3486
  %v3504 = vsub.f32 %v2945, %v3486
  %v3505 = vsub.f32 %v2950, %v3486
  %v3506 = vsub.f32 %v2953, %v3486
  %v3507 = vsub.f32 %v2958, %v3486
  %v3508 = vsub.f32 %v2961, %v3486
  %v3509 = vsub.f32 %v2966, %v3486
  %v3510 = vsub.f32 %v2969, %v3486
  %v3511 = vsub.f32 %v2974, %v3486
  %v3512 = vsub.f32 %v2977, %v3486
  %v3513 = vsub.f32 %v2982, %v3486
  %v3514 = vsub.f32 %v2985, %v3486
  %v3515 = vsub.f32 %v2990, %v3486
  %v3516 = vsub.f32 %v2993, %v3486
  %v3517 = vsub.f32 %v2998, %v3486
  %v3518 = vsub.f32 %v3001, %v3486
  %v3519 = vsub.f32 %v3006, %v3486
  %v3520 = vsub.f32 %v3009, %v3486
  %v3521 = vsub.f32 %v3014, %v3486
  %v3522 = vsub.f32 %v3017, %v3486
  %v3523 = vsub.f32 %v3022, %v3486
  %v3524 = vsub.f32 %v3025, %v3486
  %v3525 = vsub.f32 %v3030, %v3486
  %v3526 = vsub.f32 %v3033, %v3486
  %v3527 = vsub.f32 %v3038, %v3486
  %v3528 = vsub.f32 %v3041, %v3486
  %v3529 = vsub.f32 %v3046, %v3486
  %v3530 = vsub.f32 %v3049, %v3486
  %v3531 = vsub.f32 %v3054, %v3486
  %v3532 = vsub.f32 %v3057, %v3486
  %v3533 = vsub.f32 %v3062, %v3486
  %v3534 = vsub.f32 %v3065, %v3486
  %v3535 = vsub.f32 %v3070, %v3486
  %v3536 = vsub.f32 %v3073, %v3486
  %v3537 = vsub.f32 %v3078, %v3486
  %v3538 = vsub.f32 %v3081, %v3486
  %v3539 = vsub.f32 %v3086, %v3486
  %v3540 = vsub.f32 %v3089, %v3486
  %v3541 = vsub.f32 %v3094, %v3486
  %v3542 = vsub.f32 %v3097, %v3486
  %v3543 = vsub.f32 %v3102, %v3486
  %v3544 = vsub.f32 %v3105, %v3486
  %v3545 = vsub.f32 %v3110, %v3486
  %v3546 = vsub.f32 %v3113, %v3486
  %v3547 = vsub.f32 %v3118, %v3486
  %v3548 = vsub.f32 %v3121, %v3486
  %v3549 = vsub.f32 %v3126, %v3486
  %v3550 = vsub.f32 %v3129, %v3486
  %v3551 = vsub.f32 %v3134, %v3486
  %v3552 = vsub.f32 %v3137, %v3486
  %v3553 = vsub.f32 %v3142, %v3486
  %v3554 = vsub.f32 %v3145, %v3486
  %v3555 = vsub.f32 %v3150, %v3486
  %v3556 = vsub.f32 %v3153, %v3486
  %v3557 = vld [vmem:[%s3] sm:$0x1]
  %v3558 = vmul.f32 %v3492, %v3557
  %v3559 = vlaneseq
  %v3560 = vshrl.u32 %v3559, 7
  %v3561 = vsub.s32 0, %v3560
  %v3562 = vrot.slane %v3558, %v3561
  %v3563 = vmul.f32 %v3493, %v3562
  %v3564 = vmul.f32 %v3494, %v3562
  %v3565 = vmul.f32 %v3495, %v3562
  %v3566 = vmul.f32 %v3496, %v3562
  %v3567 = vmul.f32 %v3497, %v3562
  %v3568 = vmul.f32 %v3498, %v3562
  %v3569 = vmul.f32 %v3499, %v3562
  %v3570 = vmul.f32 %v3500, %v3562
  %v3571 = vmul.f32 %v3501, %v3562
  %v3572 = vmul.f32 %v3502, %v3562
  %v3573 = vmul.f32 %v3503, %v3562
  %v3574 = vmul.f32 %v3504, %v3562
  %v3575 = vmul.f32 %v3505, %v3562
  %v3576 = vmul.f32 %v3506, %v3562
  %v3577 = vmul.f32 %v3507, %v3562
  %v3578 = vmul.f32 %v3508, %v3562
  %v3579 = vmul.f32 %v3509, %v3562
  %v3580 = vmul.f32 %v3510, %v3562
  %v3581 = vmul.f32 %v3511, %v3562
  %v3582 = vmul.f32 %v3512, %v3562
  %v3583 = vmul.f32 %v3513, %v3562
  %v3584 = vmul.f32 %v3514, %v3562
  %v3585 = vmul.f32 %v3515, %v3562
  %v3586 = vmul.f32 %v3516, %v3562
  %v3587 = vmul.f32 %v3517, %v3562
  %v3588 = vmul.f32 %v3518, %v3562
  %v3589 = vmul.f32 %v3519, %v3562
  %v3590 = vmul.f32 %v3520, %v3562
  %v3591 = vmul.f32 %v3521, %v3562
  %v3592 = vmul.f32 %v3522, %v3562
  %v3593 = vmul.f32 %v3523, %v3562
  %v3594 = vmul.f32 %v3524, %v3562
  %v3595 = vmul.f32 %v3525, %v3562
  %v3596 = vmul.f32 %v3526, %v3562
  %v3597 = vmul.f32 %v3527, %v3562
  %v3598 = vmul.f32 %v3528, %v3562
  %v3599 = vmul.f32 %v3529, %v3562
  %v3600 = vmul.f32 %v3530, %v3562
  %v3601 = vmul.f32 %v3531, %v3562
  %v3602 = vmul.f32 %v3532, %v3562
  %v3603 = vmul.f32 %v3533, %v3562
  %v3604 = vmul.f32 %v3534, %v3562
  %v3605 = vmul.f32 %v3535, %v3562
  %v3606 = vmul.f32 %v3536, %v3562
  %v3607 = vmul.f32 %v3537, %v3562
  %v3608 = vmul.f32 %v3538, %v3562
  %v3609 = vmul.f32 %v3539, %v3562
  %v3610 = vmul.f32 %v3540, %v3562
  %v3611 = vmul.f32 %v3541, %v3562
  %v3612 = vmul.f32 %v3542, %v3562
  %v3613 = vmul.f32 %v3543, %v3562
  %v3614 = vmul.f32 %v3544, %v3562
  %v3615 = vmul.f32 %v3545, %v3562
  %v3616 = vmul.f32 %v3546, %v3562
  %v3617 = vmul.f32 %v3547, %v3562
  %v3618 = vmul.f32 %v3548, %v3562
  %v3619 = vmul.f32 %v3549, %v3562
  %v3620 = vmul.f32 %v3550, %v3562
  %v3621 = vmul.f32 %v3551, %v3562
  %v3622 = vmul.f32 %v3552, %v3562
  %v3623 = vmul.f32 %v3553, %v3562
  %v3624 = vmul.f32 %v3554, %v3562
  %v3625 = vmul.f32 %v3555, %v3562
  %v3626 = vmul.f32 %v3556, %v3562
  %v3627 = vld [vmem:[%s4] sm:$0x1]
  %v3629 = vlaneseq
  %v3630 = vshrl.u32 %v3629, 7
  %v3631 = vsub.s32 0, %v3630
  %v3632 = vrot.slane %v3627, %v3631
  %v3634 = vadd.f32 %v3563, %v3632
  %v3635 = vadd.f32 %v3564, %v3632
  %v3636 = vadd.f32 %v3565, %v3632
  %v3637 = vadd.f32 %v3566, %v3632
  %v3638 = vadd.f32 %v3567, %v3632
  %v3639 = vadd.f32 %v3568, %v3632
  %v3640 = vadd.f32 %v3569, %v3632
  %v3641 = vadd.f32 %v3570, %v3632
  %v3642 = vadd.f32 %v3571, %v3632
  %v3643 = vadd.f32 %v3572, %v3632
  %v3644 = vadd.f32 %v3573, %v3632
  %v3645 = vadd.f32 %v3574, %v3632
  %v3646 = vadd.f32 %v3575, %v3632
  %v3647 = vadd.f32 %v3576, %v3632
  %v3648 = vadd.f32 %v3577, %v3632
  %v3649 = vadd.f32 %v3578, %v3632
  %v3650 = vadd.f32 %v3579, %v3632
  %v3651 = vadd.f32 %v3580, %v3632
  %v3652 = vadd.f32 %v3581, %v3632
  %v3653 = vadd.f32 %v3582, %v3632
  %v3654 = vadd.f32 %v3583, %v3632
  %v3655 = vadd.f32 %v3584, %v3632
  %v3656 = vadd.f32 %v3585, %v3632
  %v3657 = vadd.f32 %v3586, %v3632
  %v3658 = vadd.f32 %v3587, %v3632
  %v3659 = vadd.f32 %v3588, %v3632
  %v3660 = vadd.f32 %v3589, %v3632
  %v3661 = vadd.f32 %v3590, %v3632
  %v3662 = vadd.f32 %v3591, %v3632
  %v3663 = vadd.f32 %v3592, %v3632
  %v3664 = vadd.f32 %v3593, %v3632
  %v3665 = vadd.f32 %v3594, %v3632
  %v3666 = vadd.f32 %v3595, %v3632
  %v3667 = vadd.f32 %v3596, %v3632
  %v3668 = vadd.f32 %v3597, %v3632
  %v3669 = vadd.f32 %v3598, %v3632
  %v3670 = vadd.f32 %v3599, %v3632
  %v3671 = vadd.f32 %v3600, %v3632
  %v3672 = vadd.f32 %v3601, %v3632
  %v3673 = vadd.f32 %v3602, %v3632
  %v3674 = vadd.f32 %v3603, %v3632
  %v3675 = vadd.f32 %v3604, %v3632
  %v3676 = vadd.f32 %v3605, %v3632
  %v3677 = vadd.f32 %v3606, %v3632
  %v3678 = vadd.f32 %v3607, %v3632
  %v3679 = vadd.f32 %v3608, %v3632
  %v3680 = vadd.f32 %v3609, %v3632
  %v3681 = vadd.f32 %v3610, %v3632
  %v3682 = vadd.f32 %v3611, %v3632
  %v3683 = vadd.f32 %v3612, %v3632
  %v3684 = vadd.f32 %v3613, %v3632
  %v3685 = vadd.f32 %v3614, %v3632
  %v3686 = vadd.f32 %v3615, %v3632
  %v3687 = vadd.f32 %v3616, %v3632
  %v3688 = vadd.f32 %v3617, %v3632
  %v3689 = vadd.f32 %v3618, %v3632
  %v3690 = vadd.f32 %v3619, %v3632
  %v3691 = vadd.f32 %v3620, %v3632
  %v3692 = vadd.f32 %v3621, %v3632
  %v3693 = vadd.f32 %v3622, %v3632
  %v3694 = vadd.f32 %v3623, %v3632
  %v3695 = vadd.f32 %v3624, %v3632
  %v3696 = vadd.f32 %v3625, %v3632
  %v3697 = vadd.f32 %v3626, %v3632
  %vm3698 = vcmp.gt.f32.partialorder %v3634, 0.0
  %vm3699 = vcmp.gt.f32.partialorder %v3635, 0.0
  %vm3700 = vcmp.gt.f32.partialorder %v3636, 0.0
  %vm3701 = vcmp.gt.f32.partialorder %v3637, 0.0
  %vm3702 = vcmp.gt.f32.partialorder %v3638, 0.0
  %vm3703 = vcmp.gt.f32.partialorder %v3639, 0.0
  %vm3704 = vcmp.gt.f32.partialorder %v3640, 0.0
  %vm3705 = vcmp.gt.f32.partialorder %v3641, 0.0
  %vm3706 = vcmp.gt.f32.partialorder %v3642, 0.0
  %vm3707 = vcmp.gt.f32.partialorder %v3643, 0.0
  %vm3708 = vcmp.gt.f32.partialorder %v3644, 0.0
  %vm3709 = vcmp.gt.f32.partialorder %v3645, 0.0
  %vm3710 = vcmp.gt.f32.partialorder %v3646, 0.0
  %vm3711 = vcmp.gt.f32.partialorder %v3647, 0.0
  %vm3712 = vcmp.gt.f32.partialorder %v3648, 0.0
  %vm3713 = vcmp.gt.f32.partialorder %v3649, 0.0
  %vm3714 = vcmp.gt.f32.partialorder %v3650, 0.0
  %vm3715 = vcmp.gt.f32.partialorder %v3651, 0.0
  %vm3716 = vcmp.gt.f32.partialorder %v3652, 0.0
  %vm3717 = vcmp.gt.f32.partialorder %v3653, 0.0
  %vm3718 = vcmp.gt.f32.partialorder %v3654, 0.0
  %vm3719 = vcmp.gt.f32.partialorder %v3655, 0.0
  %vm3720 = vcmp.gt.f32.partialorder %v3656, 0.0
  %vm3721 = vcmp.gt.f32.partialorder %v3657, 0.0
  %vm3722 = vcmp.gt.f32.partialorder %v3658, 0.0
  %vm3723 = vcmp.gt.f32.partialorder %v3659, 0.0
  %vm3724 = vcmp.gt.f32.partialorder %v3660, 0.0
  %vm3725 = vcmp.gt.f32.partialorder %v3661, 0.0
  %vm3726 = vcmp.gt.f32.partialorder %v3662, 0.0
  %vm3727 = vcmp.gt.f32.partialorder %v3663, 0.0
  %vm3728 = vcmp.gt.f32.partialorder %v3664, 0.0
  %vm3729 = vcmp.gt.f32.partialorder %v3665, 0.0
  %vm3730 = vcmp.gt.f32.partialorder %v3666, 0.0
  %vm3731 = vcmp.gt.f32.partialorder %v3667, 0.0
  %vm3732 = vcmp.gt.f32.partialorder %v3668, 0.0
  %vm3733 = vcmp.gt.f32.partialorder %v3669, 0.0
  %vm3734 = vcmp.gt.f32.partialorder %v3670, 0.0
  %vm3735 = vcmp.gt.f32.partialorder %v3671, 0.0
  %vm3736 = vcmp.gt.f32.partialorder %v3672, 0.0
  %vm3737 = vcmp.gt.f32.partialorder %v3673, 0.0
  %vm3738 = vcmp.gt.f32.partialorder %v3674, 0.0
  %vm3739 = vcmp.gt.f32.partialorder %v3675, 0.0
  %vm3740 = vcmp.gt.f32.partialorder %v3676, 0.0
  %vm3741 = vcmp.gt.f32.partialorder %v3677, 0.0
  %vm3742 = vcmp.gt.f32.partialorder %v3678, 0.0
  %vm3743 = vcmp.gt.f32.partialorder %v3679, 0.0
  %vm3744 = vcmp.gt.f32.partialorder %v3680, 0.0
  %vm3745 = vcmp.gt.f32.partialorder %v3681, 0.0
  %vm3746 = vcmp.gt.f32.partialorder %v3682, 0.0
  %vm3747 = vcmp.gt.f32.partialorder %v3683, 0.0
  %vm3748 = vcmp.gt.f32.partialorder %v3684, 0.0
  %vm3749 = vcmp.gt.f32.partialorder %v3685, 0.0
  %vm3750 = vcmp.gt.f32.partialorder %v3686, 0.0
  %vm3751 = vcmp.gt.f32.partialorder %v3687, 0.0
  %vm3752 = vcmp.gt.f32.partialorder %v3688, 0.0
  %vm3753 = vcmp.gt.f32.partialorder %v3689, 0.0
  %vm3754 = vcmp.gt.f32.partialorder %v3690, 0.0
  %vm3755 = vcmp.gt.f32.partialorder %v3691, 0.0
  %vm3756 = vcmp.gt.f32.partialorder %v3692, 0.0
  %vm3757 = vcmp.gt.f32.partialorder %v3693, 0.0
  %vm3758 = vcmp.gt.f32.partialorder %v3694, 0.0
  %vm3759 = vcmp.gt.f32.partialorder %v3695, 0.0
  %vm3760 = vcmp.gt.f32.partialorder %v3696, 0.0
  %vm3761 = vcmp.gt.f32.partialorder %v3697, 0.0
  %v3762 = vmul.f32 %v3634, 0.01
  %v3763 = vmul.f32 %v3635, 0.01
  %v3764 = vmul.f32 %v3636, 0.01
  %v3765 = vmul.f32 %v3637, 0.01
  %v3766 = vmul.f32 %v3638, 0.01
  %v3767 = vmul.f32 %v3639, 0.01
  %v3768 = vmul.f32 %v3640, 0.01
  %v3769 = vmul.f32 %v3641, 0.01
  %v3770 = vmul.f32 %v3642, 0.01
  %v3771 = vmul.f32 %v3643, 0.01
  %v3772 = vmul.f32 %v3644, 0.01
  %v3773 = vmul.f32 %v3645, 0.01
  %v3774 = vmul.f32 %v3646, 0.01
  %v3775 = vmul.f32 %v3647, 0.01
  %v3776 = vmul.f32 %v3648, 0.01
  %v3777 = vmul.f32 %v3649, 0.01
  %v3778 = vmul.f32 %v3650, 0.01
  %v3779 = vmul.f32 %v3651, 0.01
  %v3780 = vmul.f32 %v3652, 0.01
  %v3781 = vmul.f32 %v3653, 0.01
  %v3782 = vmul.f32 %v3654, 0.01
  %v3783 = vmul.f32 %v3655, 0.01
  %v3784 = vmul.f32 %v3656, 0.01
  %v3785 = vmul.f32 %v3657, 0.01
  %v3786 = vmul.f32 %v3658, 0.01
  %v3787 = vmul.f32 %v3659, 0.01
  %v3788 = vmul.f32 %v3660, 0.01
  %v3789 = vmul.f32 %v3661, 0.01
  %v3790 = vmul.f32 %v3662, 0.01
  %v3791 = vmul.f32 %v3663, 0.01
  %v3792 = vmul.f32 %v3664, 0.01
  %v3793 = vmul.f32 %v3665, 0.01
  %v3794 = vmul.f32 %v3666, 0.01
  %v3795 = vmul.f32 %v3667, 0.01
  %v3796 = vmul.f32 %v3668, 0.01
  %v3797 = vmul.f32 %v3669, 0.01
  %v3798 = vmul.f32 %v3670, 0.01
  %v3799 = vmul.f32 %v3671, 0.01
  %v3800 = vmul.f32 %v3672, 0.01
  %v3801 = vmul.f32 %v3673, 0.01
  %v3802 = vmul.f32 %v3674, 0.01
  %v3803 = vmul.f32 %v3675, 0.01
  %v3804 = vmul.f32 %v3676, 0.01
  %v3805 = vmul.f32 %v3677, 0.01
  %v3806 = vmul.f32 %v3678, 0.01
  %v3807 = vmul.f32 %v3679, 0.01
  %v3808 = vmul.f32 %v3680, 0.01
  %v3809 = vmul.f32 %v3681, 0.01
  %v3810 = vmul.f32 %v3682, 0.01
  %v3811 = vmul.f32 %v3683, 0.01
  %v3812 = vmul.f32 %v3684, 0.01
  %v3813 = vmul.f32 %v3685, 0.01
  %v3814 = vmul.f32 %v3686, 0.01
  %v3815 = vmul.f32 %v3687, 0.01
  %v3816 = vmul.f32 %v3688, 0.01
  %v3817 = vmul.f32 %v3689, 0.01
  %v3818 = vmul.f32 %v3690, 0.01
  %v3819 = vmul.f32 %v3691, 0.01
  %v3820 = vmul.f32 %v3692, 0.01
  %v3821 = vmul.f32 %v3693, 0.01
  %v3822 = vmul.f32 %v3694, 0.01
  %v3823 = vmul.f32 %v3695, 0.01
  %v3824 = vmul.f32 %v3696, 0.01
  %v3825 = vmul.f32 %v3697, 0.01
  %v3826 = vsel %vm3698, %v3634, %v3762
  %v3827 = vsel %vm3699, %v3635, %v3763
  %v3828 = vsel %vm3700, %v3636, %v3764
  %v3829 = vsel %vm3701, %v3637, %v3765
  %v3830 = vsel %vm3702, %v3638, %v3766
  %v3831 = vsel %vm3703, %v3639, %v3767
  %v3832 = vsel %vm3704, %v3640, %v3768
  %v3833 = vsel %vm3705, %v3641, %v3769
  %v3834 = vsel %vm3706, %v3642, %v3770
  %v3835 = vsel %vm3707, %v3643, %v3771
  %v3836 = vsel %vm3708, %v3644, %v3772
  %v3837 = vsel %vm3709, %v3645, %v3773
  %v3838 = vsel %vm3710, %v3646, %v3774
  %v3839 = vsel %vm3711, %v3647, %v3775
  %v3840 = vsel %vm3712, %v3648, %v3776
  %v3841 = vsel %vm3713, %v3649, %v3777
  %v3842 = vsel %vm3714, %v3650, %v3778
  %v3843 = vsel %vm3715, %v3651, %v3779
  %v3844 = vsel %vm3716, %v3652, %v3780
  %v3845 = vsel %vm3717, %v3653, %v3781
  %v3846 = vsel %vm3718, %v3654, %v3782
  %v3847 = vsel %vm3719, %v3655, %v3783
  %v3848 = vsel %vm3720, %v3656, %v3784
  %v3849 = vsel %vm3721, %v3657, %v3785
  %v3850 = vsel %vm3722, %v3658, %v3786
  %v3851 = vsel %vm3723, %v3659, %v3787
  %v3852 = vsel %vm3724, %v3660, %v3788
  %v3853 = vsel %vm3725, %v3661, %v3789
  %v3854 = vsel %vm3726, %v3662, %v3790
  %v3855 = vsel %vm3727, %v3663, %v3791
  %v3856 = vsel %vm3728, %v3664, %v3792
  %v3857 = vsel %vm3729, %v3665, %v3793
  %v3858 = vsel %vm3730, %v3666, %v3794
  %v3859 = vsel %vm3731, %v3667, %v3795
  %v3860 = vsel %vm3732, %v3668, %v3796
  %v3861 = vsel %vm3733, %v3669, %v3797
  %v3862 = vsel %vm3734, %v3670, %v3798
  %v3863 = vsel %vm3735, %v3671, %v3799
  %v3864 = vsel %vm3736, %v3672, %v3800
  %v3865 = vsel %vm3737, %v3673, %v3801
  %v3866 = vsel %vm3738, %v3674, %v3802
  %v3867 = vsel %vm3739, %v3675, %v3803
  %v3868 = vsel %vm3740, %v3676, %v3804
  %v3869 = vsel %vm3741, %v3677, %v3805
  %v3870 = vsel %vm3742, %v3678, %v3806
  %v3871 = vsel %vm3743, %v3679, %v3807
  %v3872 = vsel %vm3744, %v3680, %v3808
  %v3873 = vsel %vm3745, %v3681, %v3809
  %v3874 = vsel %vm3746, %v3682, %v3810
  %v3875 = vsel %vm3747, %v3683, %v3811
  %v3876 = vsel %vm3748, %v3684, %v3812
  %v3877 = vsel %vm3749, %v3685, %v3813
  %v3878 = vsel %vm3750, %v3686, %v3814
  %v3879 = vsel %vm3751, %v3687, %v3815
  %v3880 = vsel %vm3752, %v3688, %v3816
  %v3881 = vsel %vm3753, %v3689, %v3817
  %v3882 = vsel %vm3754, %v3690, %v3818
  %v3883 = vsel %vm3755, %v3691, %v3819
  %v3884 = vsel %vm3756, %v3692, %v3820
  %v3885 = vsel %vm3757, %v3693, %v3821
  %v3886 = vsel %vm3758, %v3694, %v3822
  %v3887 = vsel %vm3759, %v3695, %v3823
  %v3888 = vsel %vm3760, %v3696, %v3824
  %v3889 = vsel %vm3761, %v3697, %v3825
  %v3890 = vrot.slane %v3826, 7
  %v3891 = vrot.slane %v3828, 7
  %v3892 = vrot.slane %v3830, 7
  %v3893 = vrot.slane %v3832, 7
  %v3894 = vrot.slane %v3834, 7
  %v3895 = vrot.slane %v3836, 7
  %v3896 = vrot.slane %v3838, 7
  %v3897 = vrot.slane %v3840, 7
  %v3898 = vrot.slane %v3842, 7
  %v3899 = vrot.slane %v3844, 7
  %v3900 = vrot.slane %v3846, 7
  %v3901 = vrot.slane %v3848, 7
  %v3902 = vrot.slane %v3850, 7
  %v3903 = vrot.slane %v3852, 7
  %v3904 = vrot.slane %v3854, 7
  %v3905 = vrot.slane %v3858, 7
  %v3906 = vrot.slane %v3860, 7
  %v3907 = vrot.slane %v3862, 7
  %v3908 = vrot.slane %v3864, 7
  %v3909 = vrot.slane %v3866, 7
  %v3910 = vrot.slane %v3868, 7
  %v3911 = vrot.slane %v3870, 7
  %v3912 = vrot.slane %v3872, 7
  %v3913 = vrot.slane %v3874, 7
  %v3914 = vrot.slane %v3876, 7
  %v3915 = vrot.slane %v3878, 7
  %v3916 = vrot.slane %v3880, 7
  %v3917 = vrot.slane %v3882, 7
  %v3918 = vrot.slane %v3884, 7
  %v3919 = vrot.slane %v3886, 7
  %v3920 = vrot.slane %v3827, 7
  %v3921 = vrot.slane %v3829, 7
  %v3922 = vrot.slane %v3831, 7
  %v3923 = vrot.slane %v3833, 7
  %v3924 = vrot.slane %v3835, 7
  %v3925 = vrot.slane %v3837, 7
  %v3926 = vrot.slane %v3839, 7
  %v3927 = vrot.slane %v3841, 7
  %v3928 = vrot.slane %v3843, 7
  %v3929 = vrot.slane %v3845, 7
  %v3930 = vrot.slane %v3847, 7
  %v3931 = vrot.slane %v3849, 7
  %v3932 = vrot.slane %v3851, 7
  %v3933 = vrot.slane %v3853, 7
  %v3934 = vrot.slane %v3855, 7
  %v3935 = vrot.slane %v3859, 7
  %v3936 = vrot.slane %v3861, 7
  %v3937 = vrot.slane %v3863, 7
  %v3938 = vrot.slane %v3865, 7
  %v3939 = vrot.slane %v3867, 7
  %v3940 = vrot.slane %v3869, 7
  %v3941 = vrot.slane %v3871, 7
  %v3942 = vrot.slane %v3873, 7
  %v3943 = vrot.slane %v3875, 7
  %v3944 = vrot.slane %v3877, 7
  %v3945 = vrot.slane %v3879, 7
  %v3946 = vrot.slane %v3881, 7
  %v3947 = vrot.slane %v3883, 7
  %v3948 = vrot.slane %v3885, 7
  %v3949 = vrot.slane %v3887, 7
  %v3950 = vsel %vm159, %v3890, %v3920
  %v3951 = vsel %vm159, %v3891, %v3921
  %v3952 = vsel %vm159, %v3892, %v3922
  %v3953 = vsel %vm159, %v3893, %v3923
  %v3954 = vsel %vm159, %v3894, %v3924
  %v3955 = vsel %vm159, %v3895, %v3925
  %v3956 = vsel %vm159, %v3896, %v3926
  %v3957 = vsel %vm159, %v3897, %v3927
  %v3958 = vsel %vm159, %v3898, %v3928
  %v3959 = vsel %vm159, %v3899, %v3929
  %v3960 = vsel %vm159, %v3900, %v3930
  %v3961 = vsel %vm159, %v3901, %v3931
  %v3962 = vsel %vm159, %v3902, %v3932
  %v3963 = vsel %vm159, %v3903, %v3933
  %v3964 = vsel %vm159, %v3904, %v3934
  %v3965 = vsel %vm159, %v3905, %v3935
  %v3966 = vsel %vm159, %v3906, %v3936
  %v3967 = vsel %vm159, %v3907, %v3937
  %v3968 = vsel %vm159, %v3908, %v3938
  %v3969 = vsel %vm159, %v3909, %v3939
  %v3970 = vsel %vm159, %v3910, %v3940
  %v3971 = vsel %vm159, %v3911, %v3941
  %v3972 = vsel %vm159, %v3912, %v3942
  %v3973 = vsel %vm159, %v3913, %v3943
  %v3974 = vsel %vm159, %v3914, %v3944
  %v3975 = vsel %vm159, %v3915, %v3945
  %v3976 = vsel %vm159, %v3916, %v3946
  %v3977 = vsel %vm159, %v3917, %v3947
  %v3978 = vsel %vm159, %v3918, %v3948
  %v3979 = vsel %vm159, %v3919, %v3949
  %v3980 = vsel %vm159, %v3920, %v3890
  %v3981 = vsel %vm159, %v3921, %v3891
  %v3982 = vsel %vm159, %v3922, %v3892
  %v3983 = vsel %vm159, %v3923, %v3893
  %v3984 = vsel %vm159, %v3924, %v3894
  %v3985 = vsel %vm159, %v3925, %v3895
  %v3986 = vsel %vm159, %v3926, %v3896
  %v3987 = vsel %vm159, %v3927, %v3897
  %v3988 = vsel %vm159, %v3928, %v3898
  %v3989 = vsel %vm159, %v3929, %v3899
  %v3990 = vsel %vm159, %v3930, %v3900
  %v3991 = vsel %vm159, %v3931, %v3901
  %v3992 = vsel %vm159, %v3932, %v3902
  %v3993 = vsel %vm159, %v3933, %v3903
  %v3994 = vsel %vm159, %v3934, %v3904
  %v3995 = vsel %vm159, %v3935, %v3905
  %v3996 = vsel %vm159, %v3936, %v3906
  %v3997 = vsel %vm159, %v3937, %v3907
  %v3998 = vsel %vm159, %v3938, %v3908
  %v3999 = vsel %vm159, %v3939, %v3909
  %v4000 = vsel %vm159, %v3940, %v3910
  %v4001 = vsel %vm159, %v3941, %v3911
  %v4002 = vsel %vm159, %v3942, %v3912
  %v4003 = vsel %vm159, %v3943, %v3913
  %v4004 = vsel %vm159, %v3944, %v3914
  %v4005 = vsel %vm159, %v3945, %v3915
  %v4006 = vsel %vm159, %v3946, %v3916
  %v4007 = vsel %vm159, %v3947, %v3917
  %v4008 = vsel %vm159, %v3948, %v3918
  %v4009 = vsel %vm159, %v3949, %v3919
  %v4010 = vsel %vm221, %v3980, 0.0
  %v4011 = vsel %vm222, %v3950, 0.0
  %v4012 = vsel %vm221, %v3981, 0.0
  %v4013 = vsel %vm222, %v3951, 0.0
  %v4014 = vsel %vm221, %v3982, 0.0
  %v4015 = vsel %vm222, %v3952, 0.0
  %v4016 = vsel %vm221, %v3983, 0.0
  %v4017 = vsel %vm222, %v3953, 0.0
  %v4018 = vsel %vm221, %v3984, 0.0
  %v4019 = vsel %vm222, %v3954, 0.0
  %v4020 = vsel %vm221, %v3985, 0.0
  %v4021 = vsel %vm222, %v3955, 0.0
  %v4022 = vsel %vm221, %v3986, 0.0
  %v4023 = vsel %vm222, %v3956, 0.0
  %v4024 = vsel %vm221, %v3987, 0.0
  %v4025 = vsel %vm222, %v3957, 0.0
  %v4026 = vsel %vm221, %v3988, 0.0
  %v4027 = vsel %vm222, %v3958, 0.0
  %v4028 = vsel %vm221, %v3989, 0.0
  %v4029 = vsel %vm222, %v3959, 0.0
  %v4030 = vsel %vm221, %v3990, 0.0
  %v4031 = vsel %vm222, %v3960, 0.0
  %v4032 = vsel %vm221, %v3991, 0.0
  %v4033 = vsel %vm222, %v3961, 0.0
  %v4034 = vsel %vm221, %v3992, 0.0
  %v4035 = vsel %vm222, %v3962, 0.0
  %v4036 = vsel %vm221, %v3993, 0.0
  %v4037 = vsel %vm222, %v3963, 0.0
  %v4038 = vsel %vm221, %v3994, 0.0
  %v4039 = vsel %vm222, %v3964, 0.0
  %v4040 = vsel %vm221, %v3995, 0.0
  %v4041 = vsel %vm222, %v3965, 0.0
  %v4042 = vsel %vm221, %v3996, 0.0
  %v4043 = vsel %vm222, %v3966, 0.0
  %v4044 = vsel %vm221, %v3997, 0.0
  %v4045 = vsel %vm222, %v3967, 0.0
  %v4046 = vsel %vm221, %v3998, 0.0
  %v4047 = vsel %vm222, %v3968, 0.0
  %v4048 = vsel %vm221, %v3999, 0.0
  %v4049 = vsel %vm222, %v3969, 0.0
  %v4050 = vsel %vm221, %v4000, 0.0
  %v4051 = vsel %vm222, %v3970, 0.0
  %v4052 = vsel %vm221, %v4001, 0.0
  %v4053 = vsel %vm222, %v3971, 0.0
  %v4054 = vsel %vm221, %v4002, 0.0
  %v4055 = vsel %vm222, %v3972, 0.0
  %v4056 = vsel %vm221, %v4003, 0.0
  %v4057 = vsel %vm222, %v3973, 0.0
  %v4058 = vsel %vm221, %v4004, 0.0
  %v4059 = vsel %vm222, %v3974, 0.0
  %v4060 = vsel %vm221, %v4005, 0.0
  %v4061 = vsel %vm222, %v3975, 0.0
  %v4062 = vsel %vm221, %v4006, 0.0
  %v4063 = vsel %vm222, %v3976, 0.0
  %v4064 = vsel %vm221, %v4007, 0.0
  %v4065 = vsel %vm222, %v3977, 0.0
  %v4066 = vsel %vm221, %v4008, 0.0
  %v4067 = vsel %vm222, %v3978, 0.0
  %v4068 = vsel %vm221, %v4009, 0.0
  %v4069 = vsel %vm222, %v3979, 0.0
  %v4070 = vrot.slane %v3826, 1
  %v4071 = vrot.slane %v3828, 1
  %v4072 = vrot.slane %v3830, 1
  %v4073 = vrot.slane %v3832, 1
  %v4074 = vrot.slane %v3834, 1
  %v4075 = vrot.slane %v3836, 1
  %v4076 = vrot.slane %v3838, 1
  %v4077 = vrot.slane %v3840, 1
  %v4078 = vrot.slane %v3842, 1
  %v4079 = vrot.slane %v3844, 1
  %v4080 = vrot.slane %v3846, 1
  %v4081 = vrot.slane %v3848, 1
  %v4082 = vrot.slane %v3850, 1
  %v4083 = vrot.slane %v3852, 1
  %v4084 = vrot.slane %v3854, 1
  %v4085 = vrot.slane %v3858, 1
  %v4086 = vrot.slane %v3860, 1
  %v4087 = vrot.slane %v3862, 1
  %v4088 = vrot.slane %v3864, 1
  %v4089 = vrot.slane %v3866, 1
  %v4090 = vrot.slane %v3868, 1
  %v4091 = vrot.slane %v3870, 1
  %v4092 = vrot.slane %v3872, 1
  %v4093 = vrot.slane %v3874, 1
  %v4094 = vrot.slane %v3876, 1
  %v4095 = vrot.slane %v3878, 1
  %v4096 = vrot.slane %v3880, 1
  %v4097 = vrot.slane %v3882, 1
  %v4098 = vrot.slane %v3884, 1
  %v4099 = vrot.slane %v3886, 1
  %v4100 = vrot.slane %v3827, 1
  %v4101 = vrot.slane %v3829, 1
  %v4102 = vrot.slane %v3831, 1
  %v4103 = vrot.slane %v3833, 1
  %v4104 = vrot.slane %v3835, 1
  %v4105 = vrot.slane %v3837, 1
  %v4106 = vrot.slane %v3839, 1
  %v4107 = vrot.slane %v3841, 1
  %v4108 = vrot.slane %v3843, 1
  %v4109 = vrot.slane %v3845, 1
  %v4110 = vrot.slane %v3847, 1
  %v4111 = vrot.slane %v3849, 1
  %v4112 = vrot.slane %v3851, 1
  %v4113 = vrot.slane %v3853, 1
  %v4114 = vrot.slane %v3855, 1
  %v4115 = vrot.slane %v3859, 1
  %v4116 = vrot.slane %v3861, 1
  %v4117 = vrot.slane %v3863, 1
  %v4118 = vrot.slane %v3865, 1
  %v4119 = vrot.slane %v3867, 1
  %v4120 = vrot.slane %v3869, 1
  %v4121 = vrot.slane %v3871, 1
  %v4122 = vrot.slane %v3873, 1
  %v4123 = vrot.slane %v3875, 1
  %v4124 = vrot.slane %v3877, 1
  %v4125 = vrot.slane %v3879, 1
  %v4126 = vrot.slane %v3881, 1
  %v4127 = vrot.slane %v3883, 1
  %v4128 = vrot.slane %v3885, 1
  %v4129 = vrot.slane %v3887, 1
  %v4130 = vsel %vm345, %v4070, %v4100
  %v4131 = vsel %vm345, %v4071, %v4101
  %v4132 = vsel %vm345, %v4072, %v4102
  %v4133 = vsel %vm345, %v4073, %v4103
  %v4134 = vsel %vm345, %v4074, %v4104
  %v4135 = vsel %vm345, %v4075, %v4105
  %v4136 = vsel %vm345, %v4076, %v4106
  %v4137 = vsel %vm345, %v4077, %v4107
  %v4138 = vsel %vm345, %v4078, %v4108
  %v4139 = vsel %vm345, %v4079, %v4109
  %v4140 = vsel %vm345, %v4080, %v4110
  %v4141 = vsel %vm345, %v4081, %v4111
  %v4142 = vsel %vm345, %v4082, %v4112
  %v4143 = vsel %vm345, %v4083, %v4113
  %v4144 = vsel %vm345, %v4084, %v4114
  %v4145 = vsel %vm345, %v4085, %v4115
  %v4146 = vsel %vm345, %v4086, %v4116
  %v4147 = vsel %vm345, %v4087, %v4117
  %v4148 = vsel %vm345, %v4088, %v4118
  %v4149 = vsel %vm345, %v4089, %v4119
  %v4150 = vsel %vm345, %v4090, %v4120
  %v4151 = vsel %vm345, %v4091, %v4121
  %v4152 = vsel %vm345, %v4092, %v4122
  %v4153 = vsel %vm345, %v4093, %v4123
  %v4154 = vsel %vm345, %v4094, %v4124
  %v4155 = vsel %vm345, %v4095, %v4125
  %v4156 = vsel %vm345, %v4096, %v4126
  %v4157 = vsel %vm345, %v4097, %v4127
  %v4158 = vsel %vm345, %v4098, %v4128
  %v4159 = vsel %vm345, %v4099, %v4129
  %v4160 = vsel %vm345, %v4100, %v4070
  %v4161 = vsel %vm345, %v4101, %v4071
  %v4162 = vsel %vm345, %v4102, %v4072
  %v4163 = vsel %vm345, %v4103, %v4073
  %v4164 = vsel %vm345, %v4104, %v4074
  %v4165 = vsel %vm345, %v4105, %v4075
  %v4166 = vsel %vm345, %v4106, %v4076
  %v4167 = vsel %vm345, %v4107, %v4077
  %v4168 = vsel %vm345, %v4108, %v4078
  %v4169 = vsel %vm345, %v4109, %v4079
  %v4170 = vsel %vm345, %v4110, %v4080
  %v4171 = vsel %vm345, %v4111, %v4081
  %v4172 = vsel %vm345, %v4112, %v4082
  %v4173 = vsel %vm345, %v4113, %v4083
  %v4174 = vsel %vm345, %v4114, %v4084
  %v4175 = vsel %vm345, %v4115, %v4085
  %v4176 = vsel %vm345, %v4116, %v4086
  %v4177 = vsel %vm345, %v4117, %v4087
  %v4178 = vsel %vm345, %v4118, %v4088
  %v4179 = vsel %vm345, %v4119, %v4089
  %v4180 = vsel %vm345, %v4120, %v4090
  %v4181 = vsel %vm345, %v4121, %v4091
  %v4182 = vsel %vm345, %v4122, %v4092
  %v4183 = vsel %vm345, %v4123, %v4093
  %v4184 = vsel %vm345, %v4124, %v4094
  %v4185 = vsel %vm345, %v4125, %v4095
  %v4186 = vsel %vm345, %v4126, %v4096
  %v4187 = vsel %vm345, %v4127, %v4097
  %v4188 = vsel %vm345, %v4128, %v4098
  %v4189 = vsel %vm345, %v4129, %v4099
  %v4190 = vsel %vm406, %v4130, 0.0
  %v4191 = vsel %vm407, %v4160, 0.0
  %v4192 = vsel %vm406, %v4131, 0.0
  %v4193 = vsel %vm407, %v4161, 0.0
  %v4194 = vsel %vm406, %v4132, 0.0
  %v4195 = vsel %vm407, %v4162, 0.0
  %v4196 = vsel %vm406, %v4133, 0.0
  %v4197 = vsel %vm407, %v4163, 0.0
  %v4198 = vsel %vm406, %v4134, 0.0
  %v4199 = vsel %vm407, %v4164, 0.0
  %v4200 = vsel %vm406, %v4135, 0.0
  %v4201 = vsel %vm407, %v4165, 0.0
  %v4202 = vsel %vm406, %v4136, 0.0
  %v4203 = vsel %vm407, %v4166, 0.0
  %v4204 = vsel %vm406, %v4137, 0.0
  %v4205 = vsel %vm407, %v4167, 0.0
  %v4206 = vsel %vm406, %v4138, 0.0
  %v4207 = vsel %vm407, %v4168, 0.0
  %v4208 = vsel %vm406, %v4139, 0.0
  %v4209 = vsel %vm407, %v4169, 0.0
  %v4210 = vsel %vm406, %v4140, 0.0
  %v4211 = vsel %vm407, %v4170, 0.0
  %v4212 = vsel %vm406, %v4141, 0.0
  %v4213 = vsel %vm407, %v4171, 0.0
  %v4214 = vsel %vm406, %v4142, 0.0
  %v4215 = vsel %vm407, %v4172, 0.0
  %v4216 = vsel %vm406, %v4143, 0.0
  %v4217 = vsel %vm407, %v4173, 0.0
  %v4218 = vsel %vm406, %v4144, 0.0
  %v4219 = vsel %vm407, %v4174, 0.0
  %v4220 = vsel %vm406, %v4145, 0.0
  %v4221 = vsel %vm407, %v4175, 0.0
  %v4222 = vsel %vm406, %v4146, 0.0
  %v4223 = vsel %vm407, %v4176, 0.0
  %v4224 = vsel %vm406, %v4147, 0.0
  %v4225 = vsel %vm407, %v4177, 0.0
  %v4226 = vsel %vm406, %v4148, 0.0
  %v4227 = vsel %vm407, %v4178, 0.0
  %v4228 = vsel %vm406, %v4149, 0.0
  %v4229 = vsel %vm407, %v4179, 0.0
  %v4230 = vsel %vm406, %v4150, 0.0
  %v4231 = vsel %vm407, %v4180, 0.0
  %v4232 = vsel %vm406, %v4151, 0.0
  %v4233 = vsel %vm407, %v4181, 0.0
  %v4234 = vsel %vm406, %v4152, 0.0
  %v4235 = vsel %vm407, %v4182, 0.0
  %v4236 = vsel %vm406, %v4153, 0.0
  %v4237 = vsel %vm407, %v4183, 0.0
  %v4238 = vsel %vm406, %v4154, 0.0
  %v4239 = vsel %vm407, %v4184, 0.0
  %v4240 = vsel %vm406, %v4155, 0.0
  %v4241 = vsel %vm407, %v4185, 0.0
  %v4242 = vsel %vm406, %v4156, 0.0
  %v4243 = vsel %vm407, %v4186, 0.0
  %v4244 = vsel %vm406, %v4157, 0.0
  %v4245 = vsel %vm407, %v4187, 0.0
  %v4246 = vsel %vm406, %v4158, 0.0
  %v4247 = vsel %vm407, %v4188, 0.0
  %v4248 = vsel %vm406, %v4159, 0.0
  %v4249 = vsel %vm407, %v4189, 0.0
  %v4250 = vrot.slane %v3856, 7
  %v4251 = vrot.slane %v3888, 7
  %v4252 = vrot.slane %v3857, 7
  %v4253 = vrot.slane %v3889, 7
  %v4254 = vsel %vm159, %v4250, %v4252
  %v4255 = vsel %vm159, %v4251, %v4253
  %v4256 = vsel %vm159, %v4252, %v4250
  %v4257 = vsel %vm159, %v4253, %v4251
  %v4258 = vsel %vm221, %v4256, 0.0
  %v4259 = vsel %vm222, %v4254, 0.0
  %v4260 = vsel %vm221, %v4257, 0.0
  %v4261 = vsel %vm222, %v4255, 0.0
  %v4262 = vrot.slane %v3856, 1
  %v4263 = vrot.slane %v3888, 1
  %v4264 = vrot.slane %v3857, 1
  %v4265 = vrot.slane %v3889, 1
  %v4266 = vsel %vm345, %v4262, %v4264
  %v4267 = vsel %vm345, %v4263, %v4265
  %v4268 = vsel %vm345, %v4264, %v4262
  %v4269 = vsel %vm345, %v4265, %v4263
  %v4270 = vsel %vm406, %v4266, 0.0
  %v4271 = vsel %vm407, %v4268, 0.0
  %v4272 = vsel %vm406, %v4267, 0.0
  %v4273 = vsel %vm407, %v4269, 0.0
  %4334 = vrot.lane.b32.xlu0 %v3826, 4
  %v4335 = vpop.permute.xlu0 %4334
  %4336 = vrot.lane.b32.xlu0 %v3827, 4
  %v4337 = vpop.permute.xlu0 %4336
  %4338 = vrot.lane.b32.xlu0 %v3828, 4
  %v4339 = vpop.permute.xlu0 %4338
  %4340 = vrot.lane.b32.xlu0 %v3829, 4
  %v4341 = vpop.permute.xlu0 %4340
  %4342 = vrot.lane.b32.xlu0 %v3830, 4
  %v4343 = vpop.permute.xlu0 %4342
  %4344 = vrot.lane.b32.xlu0 %v3831, 4
  %v4345 = vpop.permute.xlu0 %4344
  %4346 = vrot.lane.b32.xlu0 %v3832, 4
  %v4347 = vpop.permute.xlu0 %4346
  %4348 = vrot.lane.b32.xlu0 %v3833, 4
  %v4349 = vpop.permute.xlu0 %4348
  %4350 = vrot.lane.b32.xlu0 %v3834, 4
  %v4351 = vpop.permute.xlu0 %4350
  %4352 = vrot.lane.b32.xlu0 %v3835, 4
  %v4353 = vpop.permute.xlu0 %4352
  %4354 = vrot.lane.b32.xlu0 %v3836, 4
  %v4355 = vpop.permute.xlu0 %4354
  %4356 = vrot.lane.b32.xlu0 %v3837, 4
  %v4357 = vpop.permute.xlu0 %4356
  %4358 = vrot.lane.b32.xlu0 %v3838, 4
  %v4359 = vpop.permute.xlu0 %4358
  %4360 = vrot.lane.b32.xlu0 %v3839, 4
  %v4361 = vpop.permute.xlu0 %4360
  %4362 = vrot.lane.b32.xlu0 %v3840, 4
  %v4363 = vpop.permute.xlu0 %4362
  %4364 = vrot.lane.b32.xlu0 %v3841, 4
  %v4365 = vpop.permute.xlu0 %4364
  %4366 = vrot.lane.b32.xlu0 %v3842, 4
  %v4367 = vpop.permute.xlu0 %4366
  %4368 = vrot.lane.b32.xlu0 %v3843, 4
  %v4369 = vpop.permute.xlu0 %4368
  %4370 = vrot.lane.b32.xlu0 %v3844, 4
  %v4371 = vpop.permute.xlu0 %4370
  %4372 = vrot.lane.b32.xlu0 %v3845, 4
  %v4373 = vpop.permute.xlu0 %4372
  %4374 = vrot.lane.b32.xlu0 %v3846, 4
  %v4375 = vpop.permute.xlu0 %4374
  %4376 = vrot.lane.b32.xlu0 %v3847, 4
  %v4377 = vpop.permute.xlu0 %4376
  %4378 = vrot.lane.b32.xlu0 %v3848, 4
  %v4379 = vpop.permute.xlu0 %4378
  %4380 = vrot.lane.b32.xlu0 %v3849, 4
  %v4381 = vpop.permute.xlu0 %4380
  %4382 = vrot.lane.b32.xlu0 %v3850, 4
  %v4383 = vpop.permute.xlu0 %4382
  %4384 = vrot.lane.b32.xlu0 %v3851, 4
  %v4385 = vpop.permute.xlu0 %4384
  %4386 = vrot.lane.b32.xlu0 %v3852, 4
  %v4387 = vpop.permute.xlu0 %4386
  %4388 = vrot.lane.b32.xlu0 %v3853, 4
  %v4389 = vpop.permute.xlu0 %4388
  %4390 = vrot.lane.b32.xlu0 %v3854, 4
  %v4391 = vpop.permute.xlu0 %4390
  %4392 = vrot.lane.b32.xlu0 %v3855, 4
  %v4393 = vpop.permute.xlu0 %4392
  %4394 = vrot.lane.b32.xlu0 %v3858, 4
  %v4395 = vpop.permute.xlu0 %4394
  %4396 = vrot.lane.b32.xlu0 %v3859, 4
  %v4397 = vpop.permute.xlu0 %4396
  %4398 = vrot.lane.b32.xlu0 %v3860, 4
  %v4399 = vpop.permute.xlu0 %4398
  %4400 = vrot.lane.b32.xlu0 %v3861, 4
  %v4401 = vpop.permute.xlu0 %4400
  %4402 = vrot.lane.b32.xlu0 %v3862, 4
  %v4403 = vpop.permute.xlu0 %4402
  %4404 = vrot.lane.b32.xlu0 %v3863, 4
  %v4405 = vpop.permute.xlu0 %4404
  %4406 = vrot.lane.b32.xlu0 %v3864, 4
  %v4407 = vpop.permute.xlu0 %4406
  %4408 = vrot.lane.b32.xlu0 %v3865, 4
  %v4409 = vpop.permute.xlu0 %4408
  %4410 = vrot.lane.b32.xlu0 %v3866, 4
  %v4411 = vpop.permute.xlu0 %4410
  %4412 = vrot.lane.b32.xlu0 %v3867, 4
  %v4413 = vpop.permute.xlu0 %4412
  %4414 = vrot.lane.b32.xlu0 %v3868, 4
  %v4415 = vpop.permute.xlu0 %4414
  %4416 = vrot.lane.b32.xlu0 %v3869, 4
  %v4417 = vpop.permute.xlu0 %4416
  %4418 = vrot.lane.b32.xlu0 %v3870, 4
  %v4419 = vpop.permute.xlu0 %4418
  %4420 = vrot.lane.b32.xlu0 %v3871, 4
  %v4421 = vpop.permute.xlu0 %4420
  %4422 = vrot.lane.b32.xlu0 %v3872, 4
  %v4423 = vpop.permute.xlu0 %4422
  %4424 = vrot.lane.b32.xlu0 %v3873, 4
  %v4425 = vpop.permute.xlu0 %4424
  %4426 = vrot.lane.b32.xlu0 %v3874, 4
  %v4427 = vpop.permute.xlu0 %4426
  %4428 = vrot.lane.b32.xlu0 %v3875, 4
  %v4429 = vpop.permute.xlu0 %4428
  %4430 = vrot.lane.b32.xlu0 %v3876, 4
  %v4431 = vpop.permute.xlu0 %4430
  %4432 = vrot.lane.b32.xlu0 %v3877, 4
  %v4433 = vpop.permute.xlu0 %4432
  %4434 = vrot.lane.b32.xlu0 %v3878, 4
  %v4435 = vpop.permute.xlu0 %4434
  %4436 = vrot.lane.b32.xlu0 %v3879, 4
  %v4437 = vpop.permute.xlu0 %4436
  %4438 = vrot.lane.b32.xlu0 %v3880, 4
  %v4439 = vpop.permute.xlu0 %4438
  %4440 = vrot.lane.b32.xlu0 %v3881, 4
  %v4441 = vpop.permute.xlu0 %4440
  %4442 = vrot.lane.b32.xlu0 %v3882, 4
  %v4443 = vpop.permute.xlu0 %4442
  %4444 = vrot.lane.b32.xlu0 %v3883, 4
  %v4445 = vpop.permute.xlu0 %4444
  %4446 = vrot.lane.b32.xlu0 %v3884, 4
  %v4447 = vpop.permute.xlu0 %4446
  %4448 = vrot.lane.b32.xlu0 %v3885, 4
  %v4449 = vpop.permute.xlu0 %4448
  %4450 = vrot.lane.b32.xlu0 %v3886, 4
  %v4451 = vpop.permute.xlu0 %4450
  %4452 = vrot.lane.b32.xlu0 %v3887, 4
  %v4453 = vpop.permute.xlu0 %4452
  %4574 = vrot.lane.b32.xlu0 %v4190, 8
  %v4575 = vpop.permute.xlu0 %4574
  %4576 = vrot.lane.b32.xlu0 %v4191, 8
  %v4577 = vpop.permute.xlu0 %4576
  %4578 = vrot.lane.b32.xlu0 %v4192, 8
  %v4579 = vpop.permute.xlu0 %4578
  %4580 = vrot.lane.b32.xlu0 %v4193, 8
  %v4581 = vpop.permute.xlu0 %4580
  %4582 = vrot.lane.b32.xlu0 %v4194, 8
  %v4583 = vpop.permute.xlu0 %4582
  %4584 = vrot.lane.b32.xlu0 %v4195, 8
  %v4585 = vpop.permute.xlu0 %4584
  %4586 = vrot.lane.b32.xlu0 %v4196, 8
  %v4587 = vpop.permute.xlu0 %4586
  %4588 = vrot.lane.b32.xlu0 %v4197, 8
  %v4589 = vpop.permute.xlu0 %4588
  %4590 = vrot.lane.b32.xlu0 %v4198, 8
  %v4591 = vpop.permute.xlu0 %4590
  %4592 = vrot.lane.b32.xlu0 %v4199, 8
  %v4593 = vpop.permute.xlu0 %4592
  %4594 = vrot.lane.b32.xlu0 %v4200, 8
  %v4595 = vpop.permute.xlu0 %4594
  %4596 = vrot.lane.b32.xlu0 %v4201, 8
  %v4597 = vpop.permute.xlu0 %4596
  %4598 = vrot.lane.b32.xlu0 %v4202, 8
  %v4599 = vpop.permute.xlu0 %4598
  %4600 = vrot.lane.b32.xlu0 %v4203, 8
  %v4601 = vpop.permute.xlu0 %4600
  %4602 = vrot.lane.b32.xlu0 %v4204, 8
  %v4603 = vpop.permute.xlu0 %4602
  %4604 = vrot.lane.b32.xlu0 %v4205, 8
  %v4605 = vpop.permute.xlu0 %4604
  %4606 = vrot.lane.b32.xlu0 %v4206, 8
  %v4607 = vpop.permute.xlu0 %4606
  %4608 = vrot.lane.b32.xlu0 %v4207, 8
  %v4609 = vpop.permute.xlu0 %4608
  %4610 = vrot.lane.b32.xlu0 %v4208, 8
  %v4611 = vpop.permute.xlu0 %4610
  %4612 = vrot.lane.b32.xlu0 %v4209, 8
  %v4613 = vpop.permute.xlu0 %4612
  %4614 = vrot.lane.b32.xlu0 %v4210, 8
  %v4615 = vpop.permute.xlu0 %4614
  %4616 = vrot.lane.b32.xlu0 %v4211, 8
  %v4617 = vpop.permute.xlu0 %4616
  %4618 = vrot.lane.b32.xlu0 %v4212, 8
  %v4619 = vpop.permute.xlu0 %4618
  %4620 = vrot.lane.b32.xlu0 %v4213, 8
  %v4621 = vpop.permute.xlu0 %4620
  %4622 = vrot.lane.b32.xlu0 %v4214, 8
  %v4623 = vpop.permute.xlu0 %4622
  %4624 = vrot.lane.b32.xlu0 %v4215, 8
  %v4625 = vpop.permute.xlu0 %4624
  %4626 = vrot.lane.b32.xlu0 %v4216, 8
  %v4627 = vpop.permute.xlu0 %4626
  %4628 = vrot.lane.b32.xlu0 %v4217, 8
  %v4629 = vpop.permute.xlu0 %4628
  %4630 = vrot.lane.b32.xlu0 %v4218, 8
  %v4631 = vpop.permute.xlu0 %4630
  %4632 = vrot.lane.b32.xlu0 %v4219, 8
  %v4633 = vpop.permute.xlu0 %4632
  %4634 = vrot.lane.b32.xlu0 %v4220, 8
  %v4635 = vpop.permute.xlu0 %4634
  %4636 = vrot.lane.b32.xlu0 %v4221, 8
  %v4637 = vpop.permute.xlu0 %4636
  %4638 = vrot.lane.b32.xlu0 %v4222, 8
  %v4639 = vpop.permute.xlu0 %4638
  %4640 = vrot.lane.b32.xlu0 %v4223, 8
  %v4641 = vpop.permute.xlu0 %4640
  %4642 = vrot.lane.b32.xlu0 %v4224, 8
  %v4643 = vpop.permute.xlu0 %4642
  %4644 = vrot.lane.b32.xlu0 %v4225, 8
  %v4645 = vpop.permute.xlu0 %4644
  %4646 = vrot.lane.b32.xlu0 %v4226, 8
  %v4647 = vpop.permute.xlu0 %4646
  %4648 = vrot.lane.b32.xlu0 %v4227, 8
  %v4649 = vpop.permute.xlu0 %4648
  %4650 = vrot.lane.b32.xlu0 %v4228, 8
  %v4651 = vpop.permute.xlu0 %4650
  %4652 = vrot.lane.b32.xlu0 %v4229, 8
  %v4653 = vpop.permute.xlu0 %4652
  %4654 = vrot.lane.b32.xlu0 %v4230, 8
  %v4655 = vpop.permute.xlu0 %4654
  %4656 = vrot.lane.b32.xlu0 %v4231, 8
  %v4657 = vpop.permute.xlu0 %4656
  %4658 = vrot.lane.b32.xlu0 %v4232, 8
  %v4659 = vpop.permute.xlu0 %4658
  %4660 = vrot.lane.b32.xlu0 %v4233, 8
  %v4661 = vpop.permute.xlu0 %4660
  %4662 = vrot.lane.b32.xlu0 %v4234, 8
  %v4663 = vpop.permute.xlu0 %4662
  %4664 = vrot.lane.b32.xlu0 %v4235, 8
  %v4665 = vpop.permute.xlu0 %4664
  %4666 = vrot.lane.b32.xlu0 %v4236, 8
  %v4667 = vpop.permute.xlu0 %4666
  %4668 = vrot.lane.b32.xlu0 %v4237, 8
  %v4669 = vpop.permute.xlu0 %4668
  %4670 = vrot.lane.b32.xlu0 %v4238, 8
  %v4671 = vpop.permute.xlu0 %4670
  %4672 = vrot.lane.b32.xlu0 %v4239, 8
  %v4673 = vpop.permute.xlu0 %4672
  %4674 = vrot.lane.b32.xlu0 %v4240, 8
  %v4675 = vpop.permute.xlu0 %4674
  %4676 = vrot.lane.b32.xlu0 %v4241, 8
  %v4677 = vpop.permute.xlu0 %4676
  %4678 = vrot.lane.b32.xlu0 %v4242, 8
  %v4679 = vpop.permute.xlu0 %4678
  %4680 = vrot.lane.b32.xlu0 %v4243, 8
  %v4681 = vpop.permute.xlu0 %4680
  %4682 = vrot.lane.b32.xlu0 %v4244, 8
  %v4683 = vpop.permute.xlu0 %4682
  %4684 = vrot.lane.b32.xlu0 %v4245, 8
  %v4685 = vpop.permute.xlu0 %4684
  %4686 = vrot.lane.b32.xlu0 %v4246, 8
  %v4687 = vpop.permute.xlu0 %4686
  %4688 = vrot.lane.b32.xlu0 %v4247, 8
  %v4689 = vpop.permute.xlu0 %4688
  %4690 = vrot.lane.b32.xlu0 %v4248, 8
  %v4691 = vpop.permute.xlu0 %4690
  %4692 = vrot.lane.b32.xlu0 %v4249, 8
  %v4693 = vpop.permute.xlu0 %4692
  %4818 = vrot.lane.b32.xlu0 %v4010, 12
  %v4819 = vpop.permute.xlu0 %4818
  %4820 = vrot.lane.b32.xlu0 %v4011, 12
  %v4821 = vpop.permute.xlu0 %4820
  %4822 = vrot.lane.b32.xlu0 %v4012, 12
  %v4823 = vpop.permute.xlu0 %4822
  %4824 = vrot.lane.b32.xlu0 %v4013, 12
  %v4825 = vpop.permute.xlu0 %4824
  %4826 = vrot.lane.b32.xlu0 %v4014, 12
  %v4827 = vpop.permute.xlu0 %4826
  %4828 = vrot.lane.b32.xlu0 %v4015, 12
  %v4829 = vpop.permute.xlu0 %4828
  %4830 = vrot.lane.b32.xlu0 %v4016, 12
  %v4831 = vpop.permute.xlu0 %4830
  %4832 = vrot.lane.b32.xlu0 %v4017, 12
  %v4833 = vpop.permute.xlu0 %4832
  %4834 = vrot.lane.b32.xlu0 %v4018, 12
  %v4835 = vpop.permute.xlu0 %4834
  %4836 = vrot.lane.b32.xlu0 %v4019, 12
  %v4837 = vpop.permute.xlu0 %4836
  %4838 = vrot.lane.b32.xlu0 %v4020, 12
  %v4839 = vpop.permute.xlu0 %4838
  %4840 = vrot.lane.b32.xlu0 %v4021, 12
  %v4841 = vpop.permute.xlu0 %4840
  %4842 = vrot.lane.b32.xlu0 %v4022, 12
  %v4843 = vpop.permute.xlu0 %4842
  %4844 = vrot.lane.b32.xlu0 %v4023, 12
  %v4845 = vpop.permute.xlu0 %4844
  %4846 = vrot.lane.b32.xlu0 %v4024, 12
  %v4847 = vpop.permute.xlu0 %4846
  %4848 = vrot.lane.b32.xlu0 %v4025, 12
  %v4849 = vpop.permute.xlu0 %4848
  %4850 = vrot.lane.b32.xlu0 %v4026, 12
  %v4851 = vpop.permute.xlu0 %4850
  %4852 = vrot.lane.b32.xlu0 %v4027, 12
  %v4853 = vpop.permute.xlu0 %4852
  %4854 = vrot.lane.b32.xlu0 %v4028, 12
  %v4855 = vpop.permute.xlu0 %4854
  %4856 = vrot.lane.b32.xlu0 %v4029, 12
  %v4857 = vpop.permute.xlu0 %4856
  %4858 = vrot.lane.b32.xlu0 %v4030, 12
  %v4859 = vpop.permute.xlu0 %4858
  %4860 = vrot.lane.b32.xlu0 %v4031, 12
  %v4861 = vpop.permute.xlu0 %4860
  %4862 = vrot.lane.b32.xlu0 %v4032, 12
  %v4863 = vpop.permute.xlu0 %4862
  %4864 = vrot.lane.b32.xlu0 %v4033, 12
  %v4865 = vpop.permute.xlu0 %4864
  %4866 = vrot.lane.b32.xlu0 %v4034, 12
  %v4867 = vpop.permute.xlu0 %4866
  %4868 = vrot.lane.b32.xlu0 %v4035, 12
  %v4869 = vpop.permute.xlu0 %4868
  %4870 = vrot.lane.b32.xlu0 %v4036, 12
  %v4871 = vpop.permute.xlu0 %4870
  %4872 = vrot.lane.b32.xlu0 %v4037, 12
  %v4873 = vpop.permute.xlu0 %4872
  %4874 = vrot.lane.b32.xlu0 %v4038, 12
  %v4875 = vpop.permute.xlu0 %4874
  %4876 = vrot.lane.b32.xlu0 %v4039, 12
  %v4877 = vpop.permute.xlu0 %4876
  %4878 = vrot.lane.b32.xlu0 %v4258, 12
  %v4879 = vpop.permute.xlu0 %4878
  %4880 = vrot.lane.b32.xlu0 %v4259, 12
  %v4881 = vpop.permute.xlu0 %4880
  %4882 = vrot.lane.b32.xlu0 %v4040, 12
  %v4883 = vpop.permute.xlu0 %4882
  %4884 = vrot.lane.b32.xlu0 %v4041, 12
  %v4885 = vpop.permute.xlu0 %4884
  %4886 = vrot.lane.b32.xlu0 %v4042, 12
  %v4887 = vpop.permute.xlu0 %4886
  %4888 = vrot.lane.b32.xlu0 %v4043, 12
  %v4889 = vpop.permute.xlu0 %4888
  %4890 = vrot.lane.b32.xlu0 %v4044, 12
  %v4891 = vpop.permute.xlu0 %4890
  %4892 = vrot.lane.b32.xlu0 %v4045, 12
  %v4893 = vpop.permute.xlu0 %4892
  %4894 = vrot.lane.b32.xlu0 %v4046, 12
  %v4895 = vpop.permute.xlu0 %4894
  %4896 = vrot.lane.b32.xlu0 %v4047, 12
  %v4897 = vpop.permute.xlu0 %4896
  %4898 = vrot.lane.b32.xlu0 %v4048, 12
  %v4899 = vpop.permute.xlu0 %4898
  %4900 = vrot.lane.b32.xlu0 %v4049, 12
  %v4901 = vpop.permute.xlu0 %4900
  %4902 = vrot.lane.b32.xlu0 %v4050, 12
  %v4903 = vpop.permute.xlu0 %4902
  %4904 = vrot.lane.b32.xlu0 %v4051, 12
  %v4905 = vpop.permute.xlu0 %4904
  %4906 = vrot.lane.b32.xlu0 %v4052, 12
  %v4907 = vpop.permute.xlu0 %4906
  %4908 = vrot.lane.b32.xlu0 %v4053, 12
  %v4909 = vpop.permute.xlu0 %4908
  %4910 = vrot.lane.b32.xlu0 %v4054, 12
  %v4911 = vpop.permute.xlu0 %4910
  %4912 = vrot.lane.b32.xlu0 %v4055, 12
  %v4913 = vpop.permute.xlu0 %4912
  %4914 = vrot.lane.b32.xlu0 %v4056, 12
  %v4915 = vpop.permute.xlu0 %4914
  %4916 = vrot.lane.b32.xlu0 %v4057, 12
  %v4917 = vpop.permute.xlu0 %4916
  %4918 = vrot.lane.b32.xlu0 %v4058, 12
  %v4919 = vpop.permute.xlu0 %4918
  %4920 = vrot.lane.b32.xlu0 %v4059, 12
  %v4921 = vpop.permute.xlu0 %4920
  %4922 = vrot.lane.b32.xlu0 %v4060, 12
  %v4923 = vpop.permute.xlu0 %4922
  %4924 = vrot.lane.b32.xlu0 %v4061, 12
  %v4925 = vpop.permute.xlu0 %4924
  %4926 = vrot.lane.b32.xlu0 %v4062, 12
  %v4927 = vpop.permute.xlu0 %4926
  %4928 = vrot.lane.b32.xlu0 %v4063, 12
  %v4929 = vpop.permute.xlu0 %4928
  %4930 = vrot.lane.b32.xlu0 %v4064, 12
  %v4931 = vpop.permute.xlu0 %4930
  %4932 = vrot.lane.b32.xlu0 %v4065, 12
  %v4933 = vpop.permute.xlu0 %4932
  %4934 = vrot.lane.b32.xlu0 %v4066, 12
  %v4935 = vpop.permute.xlu0 %4934
  %4936 = vrot.lane.b32.xlu0 %v4067, 12
  %v4937 = vpop.permute.xlu0 %4936
  %4938 = vrot.lane.b32.xlu0 %v4068, 12
  %v4939 = vpop.permute.xlu0 %4938
  %4940 = vrot.lane.b32.xlu0 %v4069, 12
  %v4941 = vpop.permute.xlu0 %4940
  %4942 = vrot.lane.b32.xlu0 %v4260, 12
  %v4943 = vpop.permute.xlu0 %4942
  %4944 = vrot.lane.b32.xlu0 %v4261, 12
  %v4945 = vpop.permute.xlu0 %4944
  %5014 = vrot.lane.b32.xlu0 %v3826, 16
  %v5015 = vpop.permute.xlu0 %5014
  %5016 = vrot.lane.b32.xlu0 %v3827, 16
  %v5017 = vpop.permute.xlu0 %5016
  %5018 = vrot.lane.b32.xlu0 %v3828, 16
  %v5019 = vpop.permute.xlu0 %5018
  %5020 = vrot.lane.b32.xlu0 %v3829, 16
  %v5021 = vpop.permute.xlu0 %5020
  %5022 = vrot.lane.b32.xlu0 %v3830, 16
  %v5023 = vpop.permute.xlu0 %5022
  %5024 = vrot.lane.b32.xlu0 %v3831, 16
  %v5025 = vpop.permute.xlu0 %5024
  %5026 = vrot.lane.b32.xlu0 %v3832, 16
  %v5027 = vpop.permute.xlu0 %5026
  %5028 = vrot.lane.b32.xlu0 %v3833, 16
  %v5029 = vpop.permute.xlu0 %5028
  %5030 = vrot.lane.b32.xlu0 %v3834, 16
  %v5031 = vpop.permute.xlu0 %5030
  %5032 = vrot.lane.b32.xlu0 %v3835, 16
  %v5033 = vpop.permute.xlu0 %5032
  %5034 = vrot.lane.b32.xlu0 %v3836, 16
  %v5035 = vpop.permute.xlu0 %5034
  %5036 = vrot.lane.b32.xlu0 %v3837, 16
  %v5037 = vpop.permute.xlu0 %5036
  %5038 = vrot.lane.b32.xlu0 %v3838, 16
  %v5039 = vpop.permute.xlu0 %5038
  %5040 = vrot.lane.b32.xlu0 %v3839, 16
  %v5041 = vpop.permute.xlu0 %5040
  %5042 = vrot.lane.b32.xlu0 %v3840, 16
  %v5043 = vpop.permute.xlu0 %5042
  %5044 = vrot.lane.b32.xlu0 %v3841, 16
  %v5045 = vpop.permute.xlu0 %5044
  %5046 = vrot.lane.b32.xlu0 %v3842, 16
  %v5047 = vpop.permute.xlu0 %5046
  %5048 = vrot.lane.b32.xlu0 %v3843, 16
  %v5049 = vpop.permute.xlu0 %5048
  %5050 = vrot.lane.b32.xlu0 %v3844, 16
  %v5051 = vpop.permute.xlu0 %5050
  %5052 = vrot.lane.b32.xlu0 %v3845, 16
  %v5053 = vpop.permute.xlu0 %5052
  %5054 = vrot.lane.b32.xlu0 %v3846, 16
  %v5055 = vpop.permute.xlu0 %5054
  %5056 = vrot.lane.b32.xlu0 %v3847, 16
  %v5057 = vpop.permute.xlu0 %5056
  %5058 = vrot.lane.b32.xlu0 %v3848, 16
  %v5059 = vpop.permute.xlu0 %5058
  %5060 = vrot.lane.b32.xlu0 %v3849, 16
  %v5061 = vpop.permute.xlu0 %5060
  %5062 = vrot.lane.b32.xlu0 %v3850, 16
  %v5063 = vpop.permute.xlu0 %5062
  %5064 = vrot.lane.b32.xlu0 %v3851, 16
  %v5065 = vpop.permute.xlu0 %5064
  %5066 = vrot.lane.b32.xlu0 %v3852, 16
  %v5067 = vpop.permute.xlu0 %5066
  %5068 = vrot.lane.b32.xlu0 %v3853, 16
  %v5069 = vpop.permute.xlu0 %5068
  %5070 = vrot.lane.b32.xlu0 %v3854, 16
  %v5071 = vpop.permute.xlu0 %5070
  %5072 = vrot.lane.b32.xlu0 %v3855, 16
  %v5073 = vpop.permute.xlu0 %5072
  %5074 = vrot.lane.b32.xlu0 %v3856, 16
  %v5075 = vpop.permute.xlu0 %5074
  %5076 = vrot.lane.b32.xlu0 %v3857, 16
  %v5077 = vpop.permute.xlu0 %5076
  %5078 = vrot.lane.b32.xlu0 %v3858, 16
  %v5079 = vpop.permute.xlu0 %5078
  %5080 = vrot.lane.b32.xlu0 %v3859, 16
  %v5081 = vpop.permute.xlu0 %5080
  %5082 = vrot.lane.b32.xlu0 %v3860, 16
  %v5083 = vpop.permute.xlu0 %5082
  %5084 = vrot.lane.b32.xlu0 %v3861, 16
  %v5085 = vpop.permute.xlu0 %5084
  %5086 = vrot.lane.b32.xlu0 %v3862, 16
  %v5087 = vpop.permute.xlu0 %5086
  %5088 = vrot.lane.b32.xlu0 %v3863, 16
  %v5089 = vpop.permute.xlu0 %5088
  %5090 = vrot.lane.b32.xlu0 %v3864, 16
  %v5091 = vpop.permute.xlu0 %5090
  %5092 = vrot.lane.b32.xlu0 %v3865, 16
  %v5093 = vpop.permute.xlu0 %5092
  %5094 = vrot.lane.b32.xlu0 %v3866, 16
  %v5095 = vpop.permute.xlu0 %5094
  %5096 = vrot.lane.b32.xlu0 %v3867, 16
  %v5097 = vpop.permute.xlu0 %5096
  %5098 = vrot.lane.b32.xlu0 %v3868, 16
  %v5099 = vpop.permute.xlu0 %5098
  %5100 = vrot.lane.b32.xlu0 %v3869, 16
  %v5101 = vpop.permute.xlu0 %5100
  %5102 = vrot.lane.b32.xlu0 %v3870, 16
  %v5103 = vpop.permute.xlu0 %5102
  %5104 = vrot.lane.b32.xlu0 %v3871, 16
  %v5105 = vpop.permute.xlu0 %5104
  %5106 = vrot.lane.b32.xlu0 %v3872, 16
  %v5107 = vpop.permute.xlu0 %5106
  %5108 = vrot.lane.b32.xlu0 %v3873, 16
  %v5109 = vpop.permute.xlu0 %5108
  %5110 = vrot.lane.b32.xlu0 %v3874, 16
  %v5111 = vpop.permute.xlu0 %5110
  %5112 = vrot.lane.b32.xlu0 %v3875, 16
  %v5113 = vpop.permute.xlu0 %5112
  %5114 = vrot.lane.b32.xlu0 %v3876, 16
  %v5115 = vpop.permute.xlu0 %5114
  %5116 = vrot.lane.b32.xlu0 %v3877, 16
  %v5117 = vpop.permute.xlu0 %5116
  %5118 = vrot.lane.b32.xlu0 %v3878, 16
  %v5119 = vpop.permute.xlu0 %5118
  %5120 = vrot.lane.b32.xlu0 %v3879, 16
  %v5121 = vpop.permute.xlu0 %5120
  %5122 = vrot.lane.b32.xlu0 %v3880, 16
  %v5123 = vpop.permute.xlu0 %5122
  %5124 = vrot.lane.b32.xlu0 %v3881, 16
  %v5125 = vpop.permute.xlu0 %5124
  %5126 = vrot.lane.b32.xlu0 %v3882, 16
  %v5127 = vpop.permute.xlu0 %5126
  %5128 = vrot.lane.b32.xlu0 %v3883, 16
  %v5129 = vpop.permute.xlu0 %5128
  %5130 = vrot.lane.b32.xlu0 %v3884, 16
  %v5131 = vpop.permute.xlu0 %5130
  %5132 = vrot.lane.b32.xlu0 %v3885, 16
  %v5133 = vpop.permute.xlu0 %5132
  %5134 = vrot.lane.b32.xlu0 %v3886, 16
  %v5135 = vpop.permute.xlu0 %5134
  %5136 = vrot.lane.b32.xlu0 %v3887, 16
  %v5137 = vpop.permute.xlu0 %5136
  %5138 = vrot.lane.b32.xlu0 %v3888, 16
  %v5139 = vpop.permute.xlu0 %5138
  %5140 = vrot.lane.b32.xlu0 %v3889, 16
  %v5141 = vpop.permute.xlu0 %5140
  %5210 = vrot.lane.b32.xlu0 %v4190, 20
  %v5211 = vpop.permute.xlu0 %5210
  %5212 = vrot.lane.b32.xlu0 %v4191, 20
  %v5213 = vpop.permute.xlu0 %5212
  %5214 = vrot.lane.b32.xlu0 %v4192, 20
  %v5215 = vpop.permute.xlu0 %5214
  %5216 = vrot.lane.b32.xlu0 %v4193, 20
  %v5217 = vpop.permute.xlu0 %5216
  %5218 = vrot.lane.b32.xlu0 %v4194, 20
  %v5219 = vpop.permute.xlu0 %5218
  %5220 = vrot.lane.b32.xlu0 %v4195, 20
  %v5221 = vpop.permute.xlu0 %5220
  %5222 = vrot.lane.b32.xlu0 %v4196, 20
  %v5223 = vpop.permute.xlu0 %5222
  %5224 = vrot.lane.b32.xlu0 %v4197, 20
  %v5225 = vpop.permute.xlu0 %5224
  %5226 = vrot.lane.b32.xlu0 %v4198, 20
  %v5227 = vpop.permute.xlu0 %5226
  %5228 = vrot.lane.b32.xlu0 %v4199, 20
  %v5229 = vpop.permute.xlu0 %5228
  %5230 = vrot.lane.b32.xlu0 %v4200, 20
  %v5231 = vpop.permute.xlu0 %5230
  %5232 = vrot.lane.b32.xlu0 %v4201, 20
  %v5233 = vpop.permute.xlu0 %5232
  %5234 = vrot.lane.b32.xlu0 %v4202, 20
  %v5235 = vpop.permute.xlu0 %5234
  %5236 = vrot.lane.b32.xlu0 %v4203, 20
  %v5237 = vpop.permute.xlu0 %5236
  %5238 = vrot.lane.b32.xlu0 %v4204, 20
  %v5239 = vpop.permute.xlu0 %5238
  %5240 = vrot.lane.b32.xlu0 %v4205, 20
  %v5241 = vpop.permute.xlu0 %5240
  %5242 = vrot.lane.b32.xlu0 %v4206, 20
  %v5243 = vpop.permute.xlu0 %5242
  %5244 = vrot.lane.b32.xlu0 %v4207, 20
  %v5245 = vpop.permute.xlu0 %5244
  %5246 = vrot.lane.b32.xlu0 %v4208, 20
  %v5247 = vpop.permute.xlu0 %5246
  %5248 = vrot.lane.b32.xlu0 %v4209, 20
  %v5249 = vpop.permute.xlu0 %5248
  %5250 = vrot.lane.b32.xlu0 %v4210, 20
  %v5251 = vpop.permute.xlu0 %5250
  %5252 = vrot.lane.b32.xlu0 %v4211, 20
  %v5253 = vpop.permute.xlu0 %5252
  %5254 = vrot.lane.b32.xlu0 %v4212, 20
  %v5255 = vpop.permute.xlu0 %5254
  %5256 = vrot.lane.b32.xlu0 %v4213, 20
  %v5257 = vpop.permute.xlu0 %5256
  %5258 = vrot.lane.b32.xlu0 %v4214, 20
  %v5259 = vpop.permute.xlu0 %5258
  %5260 = vrot.lane.b32.xlu0 %v4215, 20
  %v5261 = vpop.permute.xlu0 %5260
  %5262 = vrot.lane.b32.xlu0 %v4216, 20
  %v5263 = vpop.permute.xlu0 %5262
  %5264 = vrot.lane.b32.xlu0 %v4217, 20
  %v5265 = vpop.permute.xlu0 %5264
  %5266 = vrot.lane.b32.xlu0 %v4218, 20
  %v5267 = vpop.permute.xlu0 %5266
  %5268 = vrot.lane.b32.xlu0 %v4219, 20
  %v5269 = vpop.permute.xlu0 %5268
  %5270 = vrot.lane.b32.xlu0 %v4270, 20
  %v5271 = vpop.permute.xlu0 %5270
  %5272 = vrot.lane.b32.xlu0 %v4271, 20
  %v5273 = vpop.permute.xlu0 %5272
  %5274 = vrot.lane.b32.xlu0 %v4220, 20
  %v5275 = vpop.permute.xlu0 %5274
  %5276 = vrot.lane.b32.xlu0 %v4221, 20
  %v5277 = vpop.permute.xlu0 %5276
  %5278 = vrot.lane.b32.xlu0 %v4222, 20
  %v5279 = vpop.permute.xlu0 %5278
  %5280 = vrot.lane.b32.xlu0 %v4223, 20
  %v5281 = vpop.permute.xlu0 %5280
  %5282 = vrot.lane.b32.xlu0 %v4224, 20
  %v5283 = vpop.permute.xlu0 %5282
  %5284 = vrot.lane.b32.xlu0 %v4225, 20
  %v5285 = vpop.permute.xlu0 %5284
  %5286 = vrot.lane.b32.xlu0 %v4226, 20
  %v5287 = vpop.permute.xlu0 %5286
  %5288 = vrot.lane.b32.xlu0 %v4227, 20
  %v5289 = vpop.permute.xlu0 %5288
  %5290 = vrot.lane.b32.xlu0 %v4228, 20
  %v5291 = vpop.permute.xlu0 %5290
  %5292 = vrot.lane.b32.xlu0 %v4229, 20
  %v5293 = vpop.permute.xlu0 %5292
  %5294 = vrot.lane.b32.xlu0 %v4230, 20
  %v5295 = vpop.permute.xlu0 %5294
  %5296 = vrot.lane.b32.xlu0 %v4231, 20
  %v5297 = vpop.permute.xlu0 %5296
  %5298 = vrot.lane.b32.xlu0 %v4232, 20
  %v5299 = vpop.permute.xlu0 %5298
  %5300 = vrot.lane.b32.xlu0 %v4233, 20
  %v5301 = vpop.permute.xlu0 %5300
  %5302 = vrot.lane.b32.xlu0 %v4234, 20
  %v5303 = vpop.permute.xlu0 %5302
  %5304 = vrot.lane.b32.xlu0 %v4235, 20
  %v5305 = vpop.permute.xlu0 %5304
  %5306 = vrot.lane.b32.xlu0 %v4236, 20
  %v5307 = vpop.permute.xlu0 %5306
  %5308 = vrot.lane.b32.xlu0 %v4237, 20
  %v5309 = vpop.permute.xlu0 %5308
  %5310 = vrot.lane.b32.xlu0 %v4238, 20
  %v5311 = vpop.permute.xlu0 %5310
  %5312 = vrot.lane.b32.xlu0 %v4239, 20
  %v5313 = vpop.permute.xlu0 %5312
  %5314 = vrot.lane.b32.xlu0 %v4240, 20
  %v5315 = vpop.permute.xlu0 %5314
  %5316 = vrot.lane.b32.xlu0 %v4241, 20
  %v5317 = vpop.permute.xlu0 %5316
  %5318 = vrot.lane.b32.xlu0 %v4242, 20
  %v5319 = vpop.permute.xlu0 %5318
  %5320 = vrot.lane.b32.xlu0 %v4243, 20
  %v5321 = vpop.permute.xlu0 %5320
  %5322 = vrot.lane.b32.xlu0 %v4244, 20
  %v5323 = vpop.permute.xlu0 %5322
  %5324 = vrot.lane.b32.xlu0 %v4245, 20
  %v5325 = vpop.permute.xlu0 %5324
  %5326 = vrot.lane.b32.xlu0 %v4246, 20
  %v5327 = vpop.permute.xlu0 %5326
  %5328 = vrot.lane.b32.xlu0 %v4247, 20
  %v5329 = vpop.permute.xlu0 %5328
  %5330 = vrot.lane.b32.xlu0 %v4248, 20
  %v5331 = vpop.permute.xlu0 %5330
  %5332 = vrot.lane.b32.xlu0 %v4249, 20
  %v5333 = vpop.permute.xlu0 %5332
  %5334 = vrot.lane.b32.xlu0 %v4272, 20
  %v5335 = vpop.permute.xlu0 %5334
  %5336 = vrot.lane.b32.xlu0 %v4273, 20
  %v5337 = vpop.permute.xlu0 %5336
  %5402 = vrot.lane.b32.xlu0 %v4012, 24
  %v5403 = vpop.permute.xlu0 %5402
  %5404 = vrot.lane.b32.xlu0 %v4013, 24
  %v5405 = vpop.permute.xlu0 %5404
  %5406 = vrot.lane.b32.xlu0 %v4014, 24
  %v5407 = vpop.permute.xlu0 %5406
  %5408 = vrot.lane.b32.xlu0 %v4015, 24
  %v5409 = vpop.permute.xlu0 %5408
  %5410 = vrot.lane.b32.xlu0 %v4016, 24
  %v5411 = vpop.permute.xlu0 %5410
  %5412 = vrot.lane.b32.xlu0 %v4017, 24
  %v5413 = vpop.permute.xlu0 %5412
  %5414 = vrot.lane.b32.xlu0 %v4018, 24
  %v5415 = vpop.permute.xlu0 %5414
  %5416 = vrot.lane.b32.xlu0 %v4019, 24
  %v5417 = vpop.permute.xlu0 %5416
  %5418 = vrot.lane.b32.xlu0 %v4020, 24
  %v5419 = vpop.permute.xlu0 %5418
  %5420 = vrot.lane.b32.xlu0 %v4021, 24
  %v5421 = vpop.permute.xlu0 %5420
  %5422 = vrot.lane.b32.xlu0 %v4022, 24
  %v5423 = vpop.permute.xlu0 %5422
  %5424 = vrot.lane.b32.xlu0 %v4023, 24
  %v5425 = vpop.permute.xlu0 %5424
  %5426 = vrot.lane.b32.xlu0 %v4024, 24
  %v5427 = vpop.permute.xlu0 %5426
  %5428 = vrot.lane.b32.xlu0 %v4025, 24
  %v5429 = vpop.permute.xlu0 %5428
  %5430 = vrot.lane.b32.xlu0 %v4026, 24
  %v5431 = vpop.permute.xlu0 %5430
  %5432 = vrot.lane.b32.xlu0 %v4027, 24
  %v5433 = vpop.permute.xlu0 %5432
  %5434 = vrot.lane.b32.xlu0 %v4028, 24
  %v5435 = vpop.permute.xlu0 %5434
  %5436 = vrot.lane.b32.xlu0 %v4029, 24
  %v5437 = vpop.permute.xlu0 %5436
  %5438 = vrot.lane.b32.xlu0 %v4030, 24
  %v5439 = vpop.permute.xlu0 %5438
  %5440 = vrot.lane.b32.xlu0 %v4031, 24
  %v5441 = vpop.permute.xlu0 %5440
  %5442 = vrot.lane.b32.xlu0 %v4032, 24
  %v5443 = vpop.permute.xlu0 %5442
  %5444 = vrot.lane.b32.xlu0 %v4033, 24
  %v5445 = vpop.permute.xlu0 %5444
  %5446 = vrot.lane.b32.xlu0 %v4034, 24
  %v5447 = vpop.permute.xlu0 %5446
  %5448 = vrot.lane.b32.xlu0 %v4035, 24
  %v5449 = vpop.permute.xlu0 %5448
  %5450 = vrot.lane.b32.xlu0 %v4036, 24
  %v5451 = vpop.permute.xlu0 %5450
  %5452 = vrot.lane.b32.xlu0 %v4037, 24
  %v5453 = vpop.permute.xlu0 %5452
  %5454 = vrot.lane.b32.xlu0 %v4038, 24
  %v5455 = vpop.permute.xlu0 %5454
  %5456 = vrot.lane.b32.xlu0 %v4039, 24
  %v5457 = vpop.permute.xlu0 %5456
  %5458 = vrot.lane.b32.xlu0 %v4258, 24
  %v5459 = vpop.permute.xlu0 %5458
  %5460 = vrot.lane.b32.xlu0 %v4259, 24
  %v5461 = vpop.permute.xlu0 %5460
  %5462 = vrot.lane.b32.xlu0 %v4042, 24
  %v5463 = vpop.permute.xlu0 %5462
  %5464 = vrot.lane.b32.xlu0 %v4043, 24
  %v5465 = vpop.permute.xlu0 %5464
  %5466 = vrot.lane.b32.xlu0 %v4044, 24
  %v5467 = vpop.permute.xlu0 %5466
  %5468 = vrot.lane.b32.xlu0 %v4045, 24
  %v5469 = vpop.permute.xlu0 %5468
  %5470 = vrot.lane.b32.xlu0 %v4046, 24
  %v5471 = vpop.permute.xlu0 %5470
  %5472 = vrot.lane.b32.xlu0 %v4047, 24
  %v5473 = vpop.permute.xlu0 %5472
  %5474 = vrot.lane.b32.xlu0 %v4048, 24
  %v5475 = vpop.permute.xlu0 %5474
  %5476 = vrot.lane.b32.xlu0 %v4049, 24
  %v5477 = vpop.permute.xlu0 %5476
  %5478 = vrot.lane.b32.xlu0 %v4050, 24
  %v5479 = vpop.permute.xlu0 %5478
  %5480 = vrot.lane.b32.xlu0 %v4051, 24
  %v5481 = vpop.permute.xlu0 %5480
  %5482 = vrot.lane.b32.xlu0 %v4052, 24
  %v5483 = vpop.permute.xlu0 %5482
  %5484 = vrot.lane.b32.xlu0 %v4053, 24
  %v5485 = vpop.permute.xlu0 %5484
  %5486 = vrot.lane.b32.xlu0 %v4054, 24
  %v5487 = vpop.permute.xlu0 %5486
  %5488 = vrot.lane.b32.xlu0 %v4055, 24
  %v5489 = vpop.permute.xlu0 %5488
  %5490 = vrot.lane.b32.xlu0 %v4056, 24
  %v5491 = vpop.permute.xlu0 %5490
  %5492 = vrot.lane.b32.xlu0 %v4057, 24
  %v5493 = vpop.permute.xlu0 %5492
  %5494 = vrot.lane.b32.xlu0 %v4058, 24
  %v5495 = vpop.permute.xlu0 %5494
  %5496 = vrot.lane.b32.xlu0 %v4059, 24
  %v5497 = vpop.permute.xlu0 %5496
  %5498 = vrot.lane.b32.xlu0 %v4060, 24
  %v5499 = vpop.permute.xlu0 %5498
  %5500 = vrot.lane.b32.xlu0 %v4061, 24
  %v5501 = vpop.permute.xlu0 %5500
  %5502 = vrot.lane.b32.xlu0 %v4062, 24
  %v5503 = vpop.permute.xlu0 %5502
  %5504 = vrot.lane.b32.xlu0 %v4063, 24
  %v5505 = vpop.permute.xlu0 %5504
  %5506 = vrot.lane.b32.xlu0 %v4064, 24
  %v5507 = vpop.permute.xlu0 %5506
  %5508 = vrot.lane.b32.xlu0 %v4065, 24
  %v5509 = vpop.permute.xlu0 %5508
  %5510 = vrot.lane.b32.xlu0 %v4066, 24
  %v5511 = vpop.permute.xlu0 %5510
  %5512 = vrot.lane.b32.xlu0 %v4067, 24
  %v5513 = vpop.permute.xlu0 %5512
  %5514 = vrot.lane.b32.xlu0 %v4068, 24
  %v5515 = vpop.permute.xlu0 %5514
  %5516 = vrot.lane.b32.xlu0 %v4069, 24
  %v5517 = vpop.permute.xlu0 %5516
  %5518 = vrot.lane.b32.xlu0 %v4260, 24
  %v5519 = vpop.permute.xlu0 %5518
  %5520 = vrot.lane.b32.xlu0 %v4261, 24
  %v5521 = vpop.permute.xlu0 %5520
  %5582 = vrot.lane.b32.xlu0 %v3828, 28
  %v5583 = vpop.permute.xlu0 %5582
  %5584 = vrot.lane.b32.xlu0 %v3829, 28
  %v5585 = vpop.permute.xlu0 %5584
  %5586 = vrot.lane.b32.xlu0 %v3830, 28
  %v5587 = vpop.permute.xlu0 %5586
  %5588 = vrot.lane.b32.xlu0 %v3831, 28
  %v5589 = vpop.permute.xlu0 %5588
  %5590 = vrot.lane.b32.xlu0 %v3832, 28
  %v5591 = vpop.permute.xlu0 %5590
  %5592 = vrot.lane.b32.xlu0 %v3833, 28
  %v5593 = vpop.permute.xlu0 %5592
  %5594 = vrot.lane.b32.xlu0 %v3834, 28
  %v5595 = vpop.permute.xlu0 %5594
  %5596 = vrot.lane.b32.xlu0 %v3835, 28
  %v5597 = vpop.permute.xlu0 %5596
  %5598 = vrot.lane.b32.xlu0 %v3836, 28
  %v5599 = vpop.permute.xlu0 %5598
  %5600 = vrot.lane.b32.xlu0 %v3837, 28
  %v5601 = vpop.permute.xlu0 %5600
  %5602 = vrot.lane.b32.xlu0 %v3838, 28
  %v5603 = vpop.permute.xlu0 %5602
  %5604 = vrot.lane.b32.xlu0 %v3839, 28
  %v5605 = vpop.permute.xlu0 %5604
  %5606 = vrot.lane.b32.xlu0 %v3840, 28
  %v5607 = vpop.permute.xlu0 %5606
  %5608 = vrot.lane.b32.xlu0 %v3841, 28
  %v5609 = vpop.permute.xlu0 %5608
  %5610 = vrot.lane.b32.xlu0 %v3842, 28
  %v5611 = vpop.permute.xlu0 %5610
  %5612 = vrot.lane.b32.xlu0 %v3843, 28
  %v5613 = vpop.permute.xlu0 %5612
  %5614 = vrot.lane.b32.xlu0 %v3844, 28
  %v5615 = vpop.permute.xlu0 %5614
  %5616 = vrot.lane.b32.xlu0 %v3845, 28
  %v5617 = vpop.permute.xlu0 %5616
  %5618 = vrot.lane.b32.xlu0 %v3846, 28
  %v5619 = vpop.permute.xlu0 %5618
  %5620 = vrot.lane.b32.xlu0 %v3847, 28
  %v5621 = vpop.permute.xlu0 %5620
  %5622 = vrot.lane.b32.xlu0 %v3848, 28
  %v5623 = vpop.permute.xlu0 %5622
  %5624 = vrot.lane.b32.xlu0 %v3849, 28
  %v5625 = vpop.permute.xlu0 %5624
  %5626 = vrot.lane.b32.xlu0 %v3850, 28
  %v5627 = vpop.permute.xlu0 %5626
  %5628 = vrot.lane.b32.xlu0 %v3851, 28
  %v5629 = vpop.permute.xlu0 %5628
  %5630 = vrot.lane.b32.xlu0 %v3852, 28
  %v5631 = vpop.permute.xlu0 %5630
  %5632 = vrot.lane.b32.xlu0 %v3853, 28
  %v5633 = vpop.permute.xlu0 %5632
  %5634 = vrot.lane.b32.xlu0 %v3854, 28
  %v5635 = vpop.permute.xlu0 %5634
  %5636 = vrot.lane.b32.xlu0 %v3855, 28
  %v5637 = vpop.permute.xlu0 %5636
  %5638 = vrot.lane.b32.xlu0 %v3856, 28
  %v5639 = vpop.permute.xlu0 %5638
  %5640 = vrot.lane.b32.xlu0 %v3857, 28
  %v5641 = vpop.permute.xlu0 %5640
  %5642 = vrot.lane.b32.xlu0 %v3860, 28
  %v5643 = vpop.permute.xlu0 %5642
  %5644 = vrot.lane.b32.xlu0 %v3861, 28
  %v5645 = vpop.permute.xlu0 %5644
  %5646 = vrot.lane.b32.xlu0 %v3862, 28
  %v5647 = vpop.permute.xlu0 %5646
  %5648 = vrot.lane.b32.xlu0 %v3863, 28
  %v5649 = vpop.permute.xlu0 %5648
  %5650 = vrot.lane.b32.xlu0 %v3864, 28
  %v5651 = vpop.permute.xlu0 %5650
  %5652 = vrot.lane.b32.xlu0 %v3865, 28
  %v5653 = vpop.permute.xlu0 %5652
  %5654 = vrot.lane.b32.xlu0 %v3866, 28
  %v5655 = vpop.permute.xlu0 %5654
  %5656 = vrot.lane.b32.xlu0 %v3867, 28
  %v5657 = vpop.permute.xlu0 %5656
  %5658 = vrot.lane.b32.xlu0 %v3868, 28
  %v5659 = vpop.permute.xlu0 %5658
  %5660 = vrot.lane.b32.xlu0 %v3869, 28
  %v5661 = vpop.permute.xlu0 %5660
  %5662 = vrot.lane.b32.xlu0 %v3870, 28
  %v5663 = vpop.permute.xlu0 %5662
  %5664 = vrot.lane.b32.xlu0 %v3871, 28
  %v5665 = vpop.permute.xlu0 %5664
  %5666 = vrot.lane.b32.xlu0 %v3872, 28
  %v5667 = vpop.permute.xlu0 %5666
  %5668 = vrot.lane.b32.xlu0 %v3873, 28
  %v5669 = vpop.permute.xlu0 %5668
  %5670 = vrot.lane.b32.xlu0 %v3874, 28
  %v5671 = vpop.permute.xlu0 %5670
  %5672 = vrot.lane.b32.xlu0 %v3875, 28
  %v5673 = vpop.permute.xlu0 %5672
  %5674 = vrot.lane.b32.xlu0 %v3876, 28
  %v5675 = vpop.permute.xlu0 %5674
  %5676 = vrot.lane.b32.xlu0 %v3877, 28
  %v5677 = vpop.permute.xlu0 %5676
  %5678 = vrot.lane.b32.xlu0 %v3878, 28
  %v5679 = vpop.permute.xlu0 %5678
  %5680 = vrot.lane.b32.xlu0 %v3879, 28
  %v5681 = vpop.permute.xlu0 %5680
  %5682 = vrot.lane.b32.xlu0 %v3880, 28
  %v5683 = vpop.permute.xlu0 %5682
  %5684 = vrot.lane.b32.xlu0 %v3881, 28
  %v5685 = vpop.permute.xlu0 %5684
  %5686 = vrot.lane.b32.xlu0 %v3882, 28
  %v5687 = vpop.permute.xlu0 %5686
  %5688 = vrot.lane.b32.xlu0 %v3883, 28
  %v5689 = vpop.permute.xlu0 %5688
  %5690 = vrot.lane.b32.xlu0 %v3884, 28
  %v5691 = vpop.permute.xlu0 %5690
  %5692 = vrot.lane.b32.xlu0 %v3885, 28
  %v5693 = vpop.permute.xlu0 %5692
  %5694 = vrot.lane.b32.xlu0 %v3886, 28
  %v5695 = vpop.permute.xlu0 %5694
  %5696 = vrot.lane.b32.xlu0 %v3887, 28
  %v5697 = vpop.permute.xlu0 %5696
  %5698 = vrot.lane.b32.xlu0 %v3888, 28
  %v5699 = vpop.permute.xlu0 %5698
  %5700 = vrot.lane.b32.xlu0 %v3889, 28
  %v5701 = vpop.permute.xlu0 %5700
  %5762 = vrot.lane.b32.xlu0 %v4192, 32
  %v5763 = vpop.permute.xlu0 %5762
  %5764 = vrot.lane.b32.xlu0 %v4193, 32
  %v5765 = vpop.permute.xlu0 %5764
  %5766 = vrot.lane.b32.xlu0 %v4194, 32
  %v5767 = vpop.permute.xlu0 %5766
  %5768 = vrot.lane.b32.xlu0 %v4195, 32
  %v5769 = vpop.permute.xlu0 %5768
  %5770 = vrot.lane.b32.xlu0 %v4196, 32
  %v5771 = vpop.permute.xlu0 %5770
  %5772 = vrot.lane.b32.xlu0 %v4197, 32
  %v5773 = vpop.permute.xlu0 %5772
  %5774 = vrot.lane.b32.xlu0 %v4198, 32
  %v5775 = vpop.permute.xlu0 %5774
  %5776 = vrot.lane.b32.xlu0 %v4199, 32
  %v5777 = vpop.permute.xlu0 %5776
  %5778 = vrot.lane.b32.xlu0 %v4200, 32
  %v5779 = vpop.permute.xlu0 %5778
  %5780 = vrot.lane.b32.xlu0 %v4201, 32
  %v5781 = vpop.permute.xlu0 %5780
  %5782 = vrot.lane.b32.xlu0 %v4202, 32
  %v5783 = vpop.permute.xlu0 %5782
  %5784 = vrot.lane.b32.xlu0 %v4203, 32
  %v5785 = vpop.permute.xlu0 %5784
  %5786 = vrot.lane.b32.xlu0 %v4204, 32
  %v5787 = vpop.permute.xlu0 %5786
  %5788 = vrot.lane.b32.xlu0 %v4205, 32
  %v5789 = vpop.permute.xlu0 %5788
  %5790 = vrot.lane.b32.xlu0 %v4206, 32
  %v5791 = vpop.permute.xlu0 %5790
  %5792 = vrot.lane.b32.xlu0 %v4207, 32
  %v5793 = vpop.permute.xlu0 %5792
  %5794 = vrot.lane.b32.xlu0 %v4208, 32
  %v5795 = vpop.permute.xlu0 %5794
  %5796 = vrot.lane.b32.xlu0 %v4209, 32
  %v5797 = vpop.permute.xlu0 %5796
  %5798 = vrot.lane.b32.xlu0 %v4210, 32
  %v5799 = vpop.permute.xlu0 %5798
  %5800 = vrot.lane.b32.xlu0 %v4211, 32
  %v5801 = vpop.permute.xlu0 %5800
  %5802 = vrot.lane.b32.xlu0 %v4212, 32
  %v5803 = vpop.permute.xlu0 %5802
  %5804 = vrot.lane.b32.xlu0 %v4213, 32
  %v5805 = vpop.permute.xlu0 %5804
  %5806 = vrot.lane.b32.xlu0 %v4214, 32
  %v5807 = vpop.permute.xlu0 %5806
  %5808 = vrot.lane.b32.xlu0 %v4215, 32
  %v5809 = vpop.permute.xlu0 %5808
  %5810 = vrot.lane.b32.xlu0 %v4216, 32
  %v5811 = vpop.permute.xlu0 %5810
  %5812 = vrot.lane.b32.xlu0 %v4217, 32
  %v5813 = vpop.permute.xlu0 %5812
  %5814 = vrot.lane.b32.xlu0 %v4218, 32
  %v5815 = vpop.permute.xlu0 %5814
  %5816 = vrot.lane.b32.xlu0 %v4219, 32
  %v5817 = vpop.permute.xlu0 %5816
  %5818 = vrot.lane.b32.xlu0 %v4270, 32
  %v5819 = vpop.permute.xlu0 %5818
  %5820 = vrot.lane.b32.xlu0 %v4271, 32
  %v5821 = vpop.permute.xlu0 %5820
  %5822 = vrot.lane.b32.xlu0 %v4222, 32
  %v5823 = vpop.permute.xlu0 %5822
  %5824 = vrot.lane.b32.xlu0 %v4223, 32
  %v5825 = vpop.permute.xlu0 %5824
  %5826 = vrot.lane.b32.xlu0 %v4224, 32
  %v5827 = vpop.permute.xlu0 %5826
  %5828 = vrot.lane.b32.xlu0 %v4225, 32
  %v5829 = vpop.permute.xlu0 %5828
  %5830 = vrot.lane.b32.xlu0 %v4226, 32
  %v5831 = vpop.permute.xlu0 %5830
  %5832 = vrot.lane.b32.xlu0 %v4227, 32
  %v5833 = vpop.permute.xlu0 %5832
  %5834 = vrot.lane.b32.xlu0 %v4228, 32
  %v5835 = vpop.permute.xlu0 %5834
  %5836 = vrot.lane.b32.xlu0 %v4229, 32
  %v5837 = vpop.permute.xlu0 %5836
  %5838 = vrot.lane.b32.xlu0 %v4230, 32
  %v5839 = vpop.permute.xlu0 %5838
  %5840 = vrot.lane.b32.xlu0 %v4231, 32
  %v5841 = vpop.permute.xlu0 %5840
  %5842 = vrot.lane.b32.xlu0 %v4232, 32
  %v5843 = vpop.permute.xlu0 %5842
  %5844 = vrot.lane.b32.xlu0 %v4233, 32
  %v5845 = vpop.permute.xlu0 %5844
  %5846 = vrot.lane.b32.xlu0 %v4234, 32
  %v5847 = vpop.permute.xlu0 %5846
  %5848 = vrot.lane.b32.xlu0 %v4235, 32
  %v5849 = vpop.permute.xlu0 %5848
  %5850 = vrot.lane.b32.xlu0 %v4236, 32
  %v5851 = vpop.permute.xlu0 %5850
  %5852 = vrot.lane.b32.xlu0 %v4237, 32
  %v5853 = vpop.permute.xlu0 %5852
  %5854 = vrot.lane.b32.xlu0 %v4238, 32
  %v5855 = vpop.permute.xlu0 %5854
  %5856 = vrot.lane.b32.xlu0 %v4239, 32
  %v5857 = vpop.permute.xlu0 %5856
  %5858 = vrot.lane.b32.xlu0 %v4240, 32
  %v5859 = vpop.permute.xlu0 %5858
  %5860 = vrot.lane.b32.xlu0 %v4241, 32
  %v5861 = vpop.permute.xlu0 %5860
  %5862 = vrot.lane.b32.xlu0 %v4242, 32
  %v5863 = vpop.permute.xlu0 %5862
  %5864 = vrot.lane.b32.xlu0 %v4243, 32
  %v5865 = vpop.permute.xlu0 %5864
  %5866 = vrot.lane.b32.xlu0 %v4244, 32
  %v5867 = vpop.permute.xlu0 %5866
  %5868 = vrot.lane.b32.xlu0 %v4245, 32
  %v5869 = vpop.permute.xlu0 %5868
  %5870 = vrot.lane.b32.xlu0 %v4246, 32
  %v5871 = vpop.permute.xlu0 %5870
  %5872 = vrot.lane.b32.xlu0 %v4247, 32
  %v5873 = vpop.permute.xlu0 %5872
  %5874 = vrot.lane.b32.xlu0 %v4248, 32
  %v5875 = vpop.permute.xlu0 %5874
  %5876 = vrot.lane.b32.xlu0 %v4249, 32
  %v5877 = vpop.permute.xlu0 %5876
  %5878 = vrot.lane.b32.xlu0 %v4272, 32
  %v5879 = vpop.permute.xlu0 %5878
  %5880 = vrot.lane.b32.xlu0 %v4273, 32
  %v5881 = vpop.permute.xlu0 %5880
  %v5942 = vsel %vm2191, %v4010, %v4335
  %v5943 = vsel %vm2191, %v4011, %v4337
  %v5944 = vsel %vm2191, %v4012, %v4339
  %v5945 = vsel %vm2191, %v4013, %v4341
  %v5946 = vsel %vm2191, %v4014, %v4343
  %v5947 = vsel %vm2191, %v4015, %v4345
  %v5948 = vsel %vm2191, %v4016, %v4347
  %v5949 = vsel %vm2191, %v4017, %v4349
  %v5950 = vsel %vm2191, %v4018, %v4351
  %v5951 = vsel %vm2191, %v4019, %v4353
  %v5952 = vsel %vm2191, %v4020, %v4355
  %v5953 = vsel %vm2191, %v4021, %v4357
  %v5954 = vsel %vm2191, %v4022, %v4359
  %v5955 = vsel %vm2191, %v4023, %v4361
  %v5956 = vsel %vm2191, %v4024, %v4363
  %v5957 = vsel %vm2191, %v4025, %v4365
  %v5958 = vsel %vm2191, %v4026, %v4367
  %v5959 = vsel %vm2191, %v4027, %v4369
  %v5960 = vsel %vm2191, %v4028, %v4371
  %v5961 = vsel %vm2191, %v4029, %v4373
  %v5962 = vsel %vm2191, %v4030, %v4375
  %v5963 = vsel %vm2191, %v4031, %v4377
  %v5964 = vsel %vm2191, %v4032, %v4379
  %v5965 = vsel %vm2191, %v4033, %v4381
  %v5966 = vsel %vm2191, %v4034, %v4383
  %v5967 = vsel %vm2191, %v4035, %v4385
  %v5968 = vsel %vm2191, %v4036, %v4387
  %v5969 = vsel %vm2191, %v4037, %v4389
  %v5970 = vsel %vm2191, %v4038, %v4391
  %v5971 = vsel %vm2191, %v4039, %v4393
  %v5972 = vsel %vm2191, %v4040, %v4395
  %v5973 = vsel %vm2191, %v4041, %v4397
  %v5974 = vsel %vm2191, %v4042, %v4399
  %v5975 = vsel %vm2191, %v4043, %v4401
  %v5976 = vsel %vm2191, %v4044, %v4403
  %v5977 = vsel %vm2191, %v4045, %v4405
  %v5978 = vsel %vm2191, %v4046, %v4407
  %v5979 = vsel %vm2191, %v4047, %v4409
  %v5980 = vsel %vm2191, %v4048, %v4411
  %v5981 = vsel %vm2191, %v4049, %v4413
  %v5982 = vsel %vm2191, %v4050, %v4415
  %v5983 = vsel %vm2191, %v4051, %v4417
  %v5984 = vsel %vm2191, %v4052, %v4419
  %v5985 = vsel %vm2191, %v4053, %v4421
  %v5986 = vsel %vm2191, %v4054, %v4423
  %v5987 = vsel %vm2191, %v4055, %v4425
  %v5988 = vsel %vm2191, %v4056, %v4427
  %v5989 = vsel %vm2191, %v4057, %v4429
  %v5990 = vsel %vm2191, %v4058, %v4431
  %v5991 = vsel %vm2191, %v4059, %v4433
  %v5992 = vsel %vm2191, %v4060, %v4435
  %v5993 = vsel %vm2191, %v4061, %v4437
  %v5994 = vsel %vm2191, %v4062, %v4439
  %v5995 = vsel %vm2191, %v4063, %v4441
  %v5996 = vsel %vm2191, %v4064, %v4443
  %v5997 = vsel %vm2191, %v4065, %v4445
  %v5998 = vsel %vm2191, %v4066, %v4447
  %v5999 = vsel %vm2191, %v4067, %v4449
  %v6000 = vsel %vm2191, %v4068, %v4451
  %v6001 = vsel %vm2191, %v4069, %v4453
  %v6002 = vsel %vm2254, %v5942, %v4575
  %v6003 = vsel %vm2254, %v5943, %v4577
  %v6004 = vsel %vm2254, %v5944, %v4579
  %v6005 = vsel %vm2254, %v5945, %v4581
  %v6006 = vsel %vm2254, %v5946, %v4583
  %v6007 = vsel %vm2254, %v5947, %v4585
  %v6008 = vsel %vm2254, %v5948, %v4587
  %v6009 = vsel %vm2254, %v5949, %v4589
  %v6010 = vsel %vm2254, %v5950, %v4591
  %v6011 = vsel %vm2254, %v5951, %v4593
  %v6012 = vsel %vm2254, %v5952, %v4595
  %v6013 = vsel %vm2254, %v5953, %v4597
  %v6014 = vsel %vm2254, %v5954, %v4599
  %v6015 = vsel %vm2254, %v5955, %v4601
  %v6016 = vsel %vm2254, %v5956, %v4603
  %v6017 = vsel %vm2254, %v5957, %v4605
  %v6018 = vsel %vm2254, %v5958, %v4607
  %v6019 = vsel %vm2254, %v5959, %v4609
  %v6020 = vsel %vm2254, %v5960, %v4611
  %v6021 = vsel %vm2254, %v5961, %v4613
  %v6022 = vsel %vm2254, %v5962, %v4615
  %v6023 = vsel %vm2254, %v5963, %v4617
  %v6024 = vsel %vm2254, %v5964, %v4619
  %v6025 = vsel %vm2254, %v5965, %v4621
  %v6026 = vsel %vm2254, %v5966, %v4623
  %v6027 = vsel %vm2254, %v5967, %v4625
  %v6028 = vsel %vm2254, %v5968, %v4627
  %v6029 = vsel %vm2254, %v5969, %v4629
  %v6030 = vsel %vm2254, %v5970, %v4631
  %v6031 = vsel %vm2254, %v5971, %v4633
  %v6032 = vsel %vm2254, %v5972, %v4635
  %v6033 = vsel %vm2254, %v5973, %v4637
  %v6034 = vsel %vm2254, %v5974, %v4639
  %v6035 = vsel %vm2254, %v5975, %v4641
  %v6036 = vsel %vm2254, %v5976, %v4643
  %v6037 = vsel %vm2254, %v5977, %v4645
  %v6038 = vsel %vm2254, %v5978, %v4647
  %v6039 = vsel %vm2254, %v5979, %v4649
  %v6040 = vsel %vm2254, %v5980, %v4651
  %v6041 = vsel %vm2254, %v5981, %v4653
  %v6042 = vsel %vm2254, %v5982, %v4655
  %v6043 = vsel %vm2254, %v5983, %v4657
  %v6044 = vsel %vm2254, %v5984, %v4659
  %v6045 = vsel %vm2254, %v5985, %v4661
  %v6046 = vsel %vm2254, %v5986, %v4663
  %v6047 = vsel %vm2254, %v5987, %v4665
  %v6048 = vsel %vm2254, %v5988, %v4667
  %v6049 = vsel %vm2254, %v5989, %v4669
  %v6050 = vsel %vm2254, %v5990, %v4671
  %v6051 = vsel %vm2254, %v5991, %v4673
  %v6052 = vsel %vm2254, %v5992, %v4675
  %v6053 = vsel %vm2254, %v5993, %v4677
  %v6054 = vsel %vm2254, %v5994, %v4679
  %v6055 = vsel %vm2254, %v5995, %v4681
  %v6056 = vsel %vm2254, %v5996, %v4683
  %v6057 = vsel %vm2254, %v5997, %v4685
  %v6058 = vsel %vm2254, %v5998, %v4687
  %v6059 = vsel %vm2254, %v5999, %v4689
  %v6060 = vsel %vm2254, %v6000, %v4691
  %v6061 = vsel %vm2254, %v6001, %v4693
  %v6062 = vsel %vm2317, %v2255, %v4819
  %v6063 = vsel %vm2317, %v2256, %v4821
  %v6064 = vsel %vm2317, %v6002, %v4823
  %v6065 = vsel %vm2317, %v6003, %v4825
  %v6066 = vsel %vm2317, %v6004, %v4827
  %v6067 = vsel %vm2317, %v6005, %v4829
  %v6068 = vsel %vm2317, %v6006, %v4831
  %v6069 = vsel %vm2317, %v6007, %v4833
  %v6070 = vsel %vm2317, %v6008, %v4835
  %v6071 = vsel %vm2317, %v6009, %v4837
  %v6072 = vsel %vm2317, %v6010, %v4839
  %v6073 = vsel %vm2317, %v6011, %v4841
  %v6074 = vsel %vm2317, %v6012, %v4843
  %v6075 = vsel %vm2317, %v6013, %v4845
  %v6076 = vsel %vm2317, %v6014, %v4847
  %v6077 = vsel %vm2317, %v6015, %v4849
  %v6078 = vsel %vm2317, %v6016, %v4851
  %v6079 = vsel %vm2317, %v6017, %v4853
  %v6080 = vsel %vm2317, %v6018, %v4855
  %v6081 = vsel %vm2317, %v6019, %v4857
  %v6082 = vsel %vm2317, %v6020, %v4859
  %v6083 = vsel %vm2317, %v6021, %v4861
  %v6084 = vsel %vm2317, %v6022, %v4863
  %v6085 = vsel %vm2317, %v6023, %v4865
  %v6086 = vsel %vm2317, %v6024, %v4867
  %v6087 = vsel %vm2317, %v6025, %v4869
  %v6088 = vsel %vm2317, %v6026, %v4871
  %v6089 = vsel %vm2317, %v6027, %v4873
  %v6090 = vsel %vm2317, %v6028, %v4875
  %v6091 = vsel %vm2317, %v6029, %v4877
  %v6092 = vsel %vm2317, %v6030, %v4879
  %v6093 = vsel %vm2317, %v6031, %v4881
  %v6094 = vsel %vm2317, %v2255, %v4883
  %v6095 = vsel %vm2317, %v2256, %v4885
  %v6096 = vsel %vm2317, %v6032, %v4887
  %v6097 = vsel %vm2317, %v6033, %v4889
  %v6098 = vsel %vm2317, %v6034, %v4891
  %v6099 = vsel %vm2317, %v6035, %v4893
  %v6100 = vsel %vm2317, %v6036, %v4895
  %v6101 = vsel %vm2317, %v6037, %v4897
  %v6102 = vsel %vm2317, %v6038, %v4899
  %v6103 = vsel %vm2317, %v6039, %v4901
  %v6104 = vsel %vm2317, %v6040, %v4903
  %v6105 = vsel %vm2317, %v6041, %v4905
  %v6106 = vsel %vm2317, %v6042, %v4907
  %v6107 = vsel %vm2317, %v6043, %v4909
  %v6108 = vsel %vm2317, %v6044, %v4911
  %v6109 = vsel %vm2317, %v6045, %v4913
  %v6110 = vsel %vm2317, %v6046, %v4915
  %v6111 = vsel %vm2317, %v6047, %v4917
  %v6112 = vsel %vm2317, %v6048, %v4919
  %v6113 = vsel %vm2317, %v6049, %v4921
  %v6114 = vsel %vm2317, %v6050, %v4923
  %v6115 = vsel %vm2317, %v6051, %v4925
  %v6116 = vsel %vm2317, %v6052, %v4927
  %v6117 = vsel %vm2317, %v6053, %v4929
  %v6118 = vsel %vm2317, %v6054, %v4931
  %v6119 = vsel %vm2317, %v6055, %v4933
  %v6120 = vsel %vm2317, %v6056, %v4935
  %v6121 = vsel %vm2317, %v6057, %v4937
  %v6122 = vsel %vm2317, %v6058, %v4939
  %v6123 = vsel %vm2317, %v6059, %v4941
  %v6124 = vsel %vm2317, %v6060, %v4943
  %v6125 = vsel %vm2317, %v6061, %v4945
  %v6126 = vsel %vm2382, %v6062, %v5015
  %v6127 = vsel %vm2382, %v6063, %v5017
  %v6128 = vsel %vm2382, %v6064, %v5019
  %v6129 = vsel %vm2382, %v6065, %v5021
  %v6130 = vsel %vm2382, %v6066, %v5023
  %v6131 = vsel %vm2382, %v6067, %v5025
  %v6132 = vsel %vm2382, %v6068, %v5027
  %v6133 = vsel %vm2382, %v6069, %v5029
  %v6134 = vsel %vm2382, %v6070, %v5031
  %v6135 = vsel %vm2382, %v6071, %v5033
  %v6136 = vsel %vm2382, %v6072, %v5035
  %v6137 = vsel %vm2382, %v6073, %v5037
  %v6138 = vsel %vm2382, %v6074, %v5039
  %v6139 = vsel %vm2382, %v6075, %v5041
  %v6140 = vsel %vm2382, %v6076, %v5043
  %v6141 = vsel %vm2382, %v6077, %v5045
  %v6142 = vsel %vm2382, %v6078, %v5047
  %v6143 = vsel %vm2382, %v6079, %v5049
  %v6144 = vsel %vm2382, %v6080, %v5051
  %v6145 = vsel %vm2382, %v6081, %v5053
  %v6146 = vsel %vm2382, %v6082, %v5055
  %v6147 = vsel %vm2382, %v6083, %v5057
  %v6148 = vsel %vm2382, %v6084, %v5059
  %v6149 = vsel %vm2382, %v6085, %v5061
  %v6150 = vsel %vm2382, %v6086, %v5063
  %v6151 = vsel %vm2382, %v6087, %v5065
  %v6152 = vsel %vm2382, %v6088, %v5067
  %v6153 = vsel %vm2382, %v6089, %v5069
  %v6154 = vsel %vm2382, %v6090, %v5071
  %v6155 = vsel %vm2382, %v6091, %v5073
  %v6156 = vsel %vm2382, %v6092, %v5075
  %v6157 = vsel %vm2382, %v6093, %v5077
  %v6158 = vsel %vm2382, %v6094, %v5079
  %v6159 = vsel %vm2382, %v6095, %v5081
  %v6160 = vsel %vm2382, %v6096, %v5083
  %v6161 = vsel %vm2382, %v6097, %v5085
  %v6162 = vsel %vm2382, %v6098, %v5087
  %v6163 = vsel %vm2382, %v6099, %v5089
  %v6164 = vsel %vm2382, %v6100, %v5091
  %v6165 = vsel %vm2382, %v6101, %v5093
  %v6166 = vsel %vm2382, %v6102, %v5095
  %v6167 = vsel %vm2382, %v6103, %v5097
  %v6168 = vsel %vm2382, %v6104, %v5099
  %v6169 = vsel %vm2382, %v6105, %v5101
  %v6170 = vsel %vm2382, %v6106, %v5103
  %v6171 = vsel %vm2382, %v6107, %v5105
  %v6172 = vsel %vm2382, %v6108, %v5107
  %v6173 = vsel %vm2382, %v6109, %v5109
  %v6174 = vsel %vm2382, %v6110, %v5111
  %v6175 = vsel %vm2382, %v6111, %v5113
  %v6176 = vsel %vm2382, %v6112, %v5115
  %v6177 = vsel %vm2382, %v6113, %v5117
  %v6178 = vsel %vm2382, %v6114, %v5119
  %v6179 = vsel %vm2382, %v6115, %v5121
  %v6180 = vsel %vm2382, %v6116, %v5123
  %v6181 = vsel %vm2382, %v6117, %v5125
  %v6182 = vsel %vm2382, %v6118, %v5127
  %v6183 = vsel %vm2382, %v6119, %v5129
  %v6184 = vsel %vm2382, %v6120, %v5131
  %v6185 = vsel %vm2382, %v6121, %v5133
  %v6186 = vsel %vm2382, %v6122, %v5135
  %v6187 = vsel %vm2382, %v6123, %v5137
  %v6188 = vsel %vm2382, %v6124, %v5139
  %v6189 = vsel %vm2382, %v6125, %v5141
  %v6190 = vsel %vm2447, %v6126, %v5211
  %v6191 = vsel %vm2447, %v6127, %v5213
  %v6192 = vsel %vm2447, %v6128, %v5215
  %v6193 = vsel %vm2447, %v6129, %v5217
  %v6194 = vsel %vm2447, %v6130, %v5219
  %v6195 = vsel %vm2447, %v6131, %v5221
  %v6196 = vsel %vm2447, %v6132, %v5223
  %v6197 = vsel %vm2447, %v6133, %v5225
  %v6198 = vsel %vm2447, %v6134, %v5227
  %v6199 = vsel %vm2447, %v6135, %v5229
  %v6200 = vsel %vm2447, %v6136, %v5231
  %v6201 = vsel %vm2447, %v6137, %v5233
  %v6202 = vsel %vm2447, %v6138, %v5235
  %v6203 = vsel %vm2447, %v6139, %v5237
  %v6204 = vsel %vm2447, %v6140, %v5239
  %v6205 = vsel %vm2447, %v6141, %v5241
  %v6206 = vsel %vm2447, %v6142, %v5243
  %v6207 = vsel %vm2447, %v6143, %v5245
  %v6208 = vsel %vm2447, %v6144, %v5247
  %v6209 = vsel %vm2447, %v6145, %v5249
  %v6210 = vsel %vm2447, %v6146, %v5251
  %v6211 = vsel %vm2447, %v6147, %v5253
  %v6212 = vsel %vm2447, %v6148, %v5255
  %v6213 = vsel %vm2447, %v6149, %v5257
  %v6214 = vsel %vm2447, %v6150, %v5259
  %v6215 = vsel %vm2447, %v6151, %v5261
  %v6216 = vsel %vm2447, %v6152, %v5263
  %v6217 = vsel %vm2447, %v6153, %v5265
  %v6218 = vsel %vm2447, %v6154, %v5267
  %v6219 = vsel %vm2447, %v6155, %v5269
  %v6220 = vsel %vm2447, %v6156, %v5271
  %v6221 = vsel %vm2447, %v6157, %v5273
  %v6222 = vsel %vm2447, %v6158, %v5275
  %v6223 = vsel %vm2447, %v6159, %v5277
  %v6224 = vsel %vm2447, %v6160, %v5279
  %v6225 = vsel %vm2447, %v6161, %v5281
  %v6226 = vsel %vm2447, %v6162, %v5283
  %v6227 = vsel %vm2447, %v6163, %v5285
  %v6228 = vsel %vm2447, %v6164, %v5287
  %v6229 = vsel %vm2447, %v6165, %v5289
  %v6230 = vsel %vm2447, %v6166, %v5291
  %v6231 = vsel %vm2447, %v6167, %v5293
  %v6232 = vsel %vm2447, %v6168, %v5295
  %v6233 = vsel %vm2447, %v6169, %v5297
  %v6234 = vsel %vm2447, %v6170, %v5299
  %v6235 = vsel %vm2447, %v6171, %v5301
  %v6236 = vsel %vm2447, %v6172, %v5303
  %v6237 = vsel %vm2447, %v6173, %v5305
  %v6238 = vsel %vm2447, %v6174, %v5307
  %v6239 = vsel %vm2447, %v6175, %v5309
  %v6240 = vsel %vm2447, %v6176, %v5311
  %v6241 = vsel %vm2447, %v6177, %v5313
  %v6242 = vsel %vm2447, %v6178, %v5315
  %v6243 = vsel %vm2447, %v6179, %v5317
  %v6244 = vsel %vm2447, %v6180, %v5319
  %v6245 = vsel %vm2447, %v6181, %v5321
  %v6246 = vsel %vm2447, %v6182, %v5323
  %v6247 = vsel %vm2447, %v6183, %v5325
  %v6248 = vsel %vm2447, %v6184, %v5327
  %v6249 = vsel %vm2447, %v6185, %v5329
  %v6250 = vsel %vm2447, %v6186, %v5331
  %v6251 = vsel %vm2447, %v6187, %v5333
  %v6252 = vsel %vm2447, %v6188, %v5335
  %v6253 = vsel %vm2447, %v6189, %v5337
  %v6254 = vsel %vm2512, %v6190, %v5403
  %v6255 = vsel %vm2512, %v6191, %v5405
  %v6256 = vsel %vm2512, %v6192, %v5407
  %v6257 = vsel %vm2512, %v6193, %v5409
  %v6258 = vsel %vm2512, %v6194, %v5411
  %v6259 = vsel %vm2512, %v6195, %v5413
  %v6260 = vsel %vm2512, %v6196, %v5415
  %v6261 = vsel %vm2512, %v6197, %v5417
  %v6262 = vsel %vm2512, %v6198, %v5419
  %v6263 = vsel %vm2512, %v6199, %v5421
  %v6264 = vsel %vm2512, %v6200, %v5423
  %v6265 = vsel %vm2512, %v6201, %v5425
  %v6266 = vsel %vm2512, %v6202, %v5427
  %v6267 = vsel %vm2512, %v6203, %v5429
  %v6268 = vsel %vm2512, %v6204, %v5431
  %v6269 = vsel %vm2512, %v6205, %v5433
  %v6270 = vsel %vm2512, %v6206, %v5435
  %v6271 = vsel %vm2512, %v6207, %v5437
  %v6272 = vsel %vm2512, %v6208, %v5439
  %v6273 = vsel %vm2512, %v6209, %v5441
  %v6274 = vsel %vm2512, %v6210, %v5443
  %v6275 = vsel %vm2512, %v6211, %v5445
  %v6276 = vsel %vm2512, %v6212, %v5447
  %v6277 = vsel %vm2512, %v6213, %v5449
  %v6278 = vsel %vm2512, %v6214, %v5451
  %v6279 = vsel %vm2512, %v6215, %v5453
  %v6280 = vsel %vm2512, %v6216, %v5455
  %v6281 = vsel %vm2512, %v6217, %v5457
  %v6282 = vsel %vm2512, %v6218, %v5459
  %v6283 = vsel %vm2512, %v6219, %v5461
  %v6284 = vsel %vm2512, %v6220, %v1697
  %v6285 = vsel %vm2512, %v6221, %v1699
  %v6286 = vsel %vm2512, %v6222, %v5463
  %v6287 = vsel %vm2512, %v6223, %v5465
  %v6288 = vsel %vm2512, %v6224, %v5467
  %v6289 = vsel %vm2512, %v6225, %v5469
  %v6290 = vsel %vm2512, %v6226, %v5471
  %v6291 = vsel %vm2512, %v6227, %v5473
  %v6292 = vsel %vm2512, %v6228, %v5475
  %v6293 = vsel %vm2512, %v6229, %v5477
  %v6294 = vsel %vm2512, %v6230, %v5479
  %v6295 = vsel %vm2512, %v6231, %v5481
  %v6296 = vsel %vm2512, %v6232, %v5483
  %v6297 = vsel %vm2512, %v6233, %v5485
  %v6298 = vsel %vm2512, %v6234, %v5487
  %v6299 = vsel %vm2512, %v6235, %v5489
  %v6300 = vsel %vm2512, %v6236, %v5491
  %v6301 = vsel %vm2512, %v6237, %v5493
  %v6302 = vsel %vm2512, %v6238, %v5495
  %v6303 = vsel %vm2512, %v6239, %v5497
  %v6304 = vsel %vm2512, %v6240, %v5499
  %v6305 = vsel %vm2512, %v6241, %v5501
  %v6306 = vsel %vm2512, %v6242, %v5503
  %v6307 = vsel %vm2512, %v6243, %v5505
  %v6308 = vsel %vm2512, %v6244, %v5507
  %v6309 = vsel %vm2512, %v6245, %v5509
  %v6310 = vsel %vm2512, %v6246, %v5511
  %v6311 = vsel %vm2512, %v6247, %v5513
  %v6312 = vsel %vm2512, %v6248, %v5515
  %v6313 = vsel %vm2512, %v6249, %v5517
  %v6314 = vsel %vm2512, %v6250, %v5519
  %v6315 = vsel %vm2512, %v6251, %v5521
  %v6316 = vsel %vm2512, %v6252, %v1697
  %v6317 = vsel %vm2512, %v6253, %v1699
  %v6318 = vsel %vm2577, %v6254, %v5583
  %v6319 = vsel %vm2577, %v6255, %v5585
  %v6320 = vsel %vm2577, %v6256, %v5587
  %v6321 = vsel %vm2577, %v6257, %v5589
  %v6322 = vsel %vm2577, %v6258, %v5591
  %v6323 = vsel %vm2577, %v6259, %v5593
  %v6324 = vsel %vm2577, %v6260, %v5595
  %v6325 = vsel %vm2577, %v6261, %v5597
  %v6326 = vsel %vm2577, %v6262, %v5599
  %v6327 = vsel %vm2577, %v6263, %v5601
  %v6328 = vsel %vm2577, %v6264, %v5603
  %v6329 = vsel %vm2577, %v6265, %v5605
  %v6330 = vsel %vm2577, %v6266, %v5607
  %v6331 = vsel %vm2577, %v6267, %v5609
  %v6332 = vsel %vm2577, %v6268, %v5611
  %v6333 = vsel %vm2577, %v6269, %v5613
  %v6334 = vsel %vm2577, %v6270, %v5615
  %v6335 = vsel %vm2577, %v6271, %v5617
  %v6336 = vsel %vm2577, %v6272, %v5619
  %v6337 = vsel %vm2577, %v6273, %v5621
  %v6338 = vsel %vm2577, %v6274, %v5623
  %v6339 = vsel %vm2577, %v6275, %v5625
  %v6340 = vsel %vm2577, %v6276, %v5627
  %v6341 = vsel %vm2577, %v6277, %v5629
  %v6342 = vsel %vm2577, %v6278, %v5631
  %v6343 = vsel %vm2577, %v6279, %v5633
  %v6344 = vsel %vm2577, %v6280, %v5635
  %v6345 = vsel %vm2577, %v6281, %v5637
  %v6346 = vsel %vm2577, %v6282, %v5639
  %v6347 = vsel %vm2577, %v6283, %v5641
  %v6348 = vsel %vm2577, %v6284, %v1883
  %v6349 = vsel %vm2577, %v6285, %v1883
  %v6350 = vsel %vm2577, %v6286, %v5643
  %v6351 = vsel %vm2577, %v6287, %v5645
  %v6352 = vsel %vm2577, %v6288, %v5647
  %v6353 = vsel %vm2577, %v6289, %v5649
  %v6354 = vsel %vm2577, %v6290, %v5651
  %v6355 = vsel %vm2577, %v6291, %v5653
  %v6356 = vsel %vm2577, %v6292, %v5655
  %v6357 = vsel %vm2577, %v6293, %v5657
  %v6358 = vsel %vm2577, %v6294, %v5659
  %v6359 = vsel %vm2577, %v6295, %v5661
  %v6360 = vsel %vm2577, %v6296, %v5663
  %v6361 = vsel %vm2577, %v6297, %v5665
  %v6362 = vsel %vm2577, %v6298, %v5667
  %v6363 = vsel %vm2577, %v6299, %v5669
  %v6364 = vsel %vm2577, %v6300, %v5671
  %v6365 = vsel %vm2577, %v6301, %v5673
  %v6366 = vsel %vm2577, %v6302, %v5675
  %v6367 = vsel %vm2577, %v6303, %v5677
  %v6368 = vsel %vm2577, %v6304, %v5679
  %v6369 = vsel %vm2577, %v6305, %v5681
  %v6370 = vsel %vm2577, %v6306, %v5683
  %v6371 = vsel %vm2577, %v6307, %v5685
  %v6372 = vsel %vm2577, %v6308, %v5687
  %v6373 = vsel %vm2577, %v6309, %v5689
  %v6374 = vsel %vm2577, %v6310, %v5691
  %v6375 = vsel %vm2577, %v6311, %v5693
  %v6376 = vsel %vm2577, %v6312, %v5695
  %v6377 = vsel %vm2577, %v6313, %v5697
  %v6378 = vsel %vm2577, %v6314, %v5699
  %v6379 = vsel %vm2577, %v6315, %v5701
  %v6380 = vsel %vm2577, %v6316, %v1883
  %v6381 = vsel %vm2577, %v6317, %v1883
  %v6382 = vsel %vm2642, %v6318, %v5763
  %v6383 = vsel %vm2642, %v6319, %v5765
  %v6384 = vsel %vm2642, %v6320, %v5767
  %v6385 = vsel %vm2642, %v6321, %v5769
  %v6386 = vsel %vm2642, %v6322, %v5771
  %v6387 = vsel %vm2642, %v6323, %v5773
  %v6388 = vsel %vm2642, %v6324, %v5775
  %v6389 = vsel %vm2642, %v6325, %v5777
  %v6390 = vsel %vm2642, %v6326, %v5779
  %v6391 = vsel %vm2642, %v6327, %v5781
  %v6392 = vsel %vm2642, %v6328, %v5783
  %v6393 = vsel %vm2642, %v6329, %v5785
  %v6394 = vsel %vm2642, %v6330, %v5787
  %v6395 = vsel %vm2642, %v6331, %v5789
  %v6396 = vsel %vm2642, %v6332, %v5791
  %v6397 = vsel %vm2642, %v6333, %v5793
  %v6398 = vsel %vm2642, %v6334, %v5795
  %v6399 = vsel %vm2642, %v6335, %v5797
  %v6400 = vsel %vm2642, %v6336, %v5799
  %v6401 = vsel %vm2642, %v6337, %v5801
  %v6402 = vsel %vm2642, %v6338, %v5803
  %v6403 = vsel %vm2642, %v6339, %v5805
  %v6404 = vsel %vm2642, %v6340, %v5807
  %v6405 = vsel %vm2642, %v6341, %v5809
  %v6406 = vsel %vm2642, %v6342, %v5811
  %v6407 = vsel %vm2642, %v6343, %v5813
  %v6408 = vsel %vm2642, %v6344, %v5815
  %v6409 = vsel %vm2642, %v6345, %v5817
  %v6410 = vsel %vm2642, %v6346, %v5819
  %v6411 = vsel %vm2642, %v6347, %v5821
  %v6412 = vsel %vm2642, %v6348, %v2066
  %v6413 = vsel %vm2642, %v6349, %v2068
  %v6414 = vsel %vm2642, %v6350, %v5823
  %v6415 = vsel %vm2642, %v6351, %v5825
  %v6416 = vsel %vm2642, %v6352, %v5827
  %v6417 = vsel %vm2642, %v6353, %v5829
  %v6418 = vsel %vm2642, %v6354, %v5831
  %v6419 = vsel %vm2642, %v6355, %v5833
  %v6420 = vsel %vm2642, %v6356, %v5835
  %v6421 = vsel %vm2642, %v6357, %v5837
  %v6422 = vsel %vm2642, %v6358, %v5839
  %v6423 = vsel %vm2642, %v6359, %v5841
  %v6424 = vsel %vm2642, %v6360, %v5843
  %v6425 = vsel %vm2642, %v6361, %v5845
  %v6426 = vsel %vm2642, %v6362, %v5847
  %v6427 = vsel %vm2642, %v6363, %v5849
  %v6428 = vsel %vm2642, %v6364, %v5851
  %v6429 = vsel %vm2642, %v6365, %v5853
  %v6430 = vsel %vm2642, %v6366, %v5855
  %v6431 = vsel %vm2642, %v6367, %v5857
  %v6432 = vsel %vm2642, %v6368, %v5859
  %v6433 = vsel %vm2642, %v6369, %v5861
  %v6434 = vsel %vm2642, %v6370, %v5863
  %v6435 = vsel %vm2642, %v6371, %v5865
  %v6436 = vsel %vm2642, %v6372, %v5867
  %v6437 = vsel %vm2642, %v6373, %v5869
  %v6438 = vsel %vm2642, %v6374, %v5871
  %v6439 = vsel %vm2642, %v6375, %v5873
  %v6440 = vsel %vm2642, %v6376, %v5875
  %v6441 = vsel %vm2642, %v6377, %v5877
  %v6442 = vsel %vm2642, %v6378, %v5879
  %v6443 = vsel %vm2642, %v6379, %v5881
  %v6444 = vsel %vm2642, %v6380, %v2066
  %v6445 = vsel %vm2642, %v6381, %v2068
  %v6446 = vpack.c.bf16 %v6383, %v6382
  %v6447 = vpack.c.bf16 %v6385, %v6384
  %v6448 = vpack.c.bf16 %v6387, %v6386
  %v6449 = vpack.c.bf16 %v6389, %v6388
  %v6450 = vpack.c.bf16 %v6391, %v6390
  %v6451 = vpack.c.bf16 %v6393, %v6392
  %v6452 = vpack.c.bf16 %v6395, %v6394
  %v6453 = vpack.c.bf16 %v6397, %v6396
  %v6454 = vpack.c.bf16 %v6399, %v6398
  %v6455 = vpack.c.bf16 %v6401, %v6400
  %v6456 = vpack.c.bf16 %v6403, %v6402
  %v6457 = vpack.c.bf16 %v6405, %v6404
  %v6458 = vpack.c.bf16 %v6407, %v6406
  %v6459 = vpack.c.bf16 %v6409, %v6408
  %v6460 = vpack.c.bf16 %v6411, %v6410
  %v6461 = vpack.c.bf16 %v6413, %v6412
  %v6462 = vpack.c.bf16 %v6415, %v6414
  %v6463 = vpack.c.bf16 %v6417, %v6416
  %v6464 = vpack.c.bf16 %v6419, %v6418
  %v6465 = vpack.c.bf16 %v6421, %v6420
  %v6466 = vpack.c.bf16 %v6423, %v6422
  %v6467 = vpack.c.bf16 %v6425, %v6424
  %v6468 = vpack.c.bf16 %v6427, %v6426
  %v6469 = vpack.c.bf16 %v6429, %v6428
  %v6470 = vpack.c.bf16 %v6431, %v6430
  %v6471 = vpack.c.bf16 %v6433, %v6432
  %v6472 = vpack.c.bf16 %v6435, %v6434
  %v6473 = vpack.c.bf16 %v6437, %v6436
  %v6474 = vpack.c.bf16 %v6439, %v6438
  %v6475 = vpack.c.bf16 %v6441, %v6440
  %v6476 = vpack.c.bf16 %v6443, %v6442
  %v6477 = vpack.c.bf16 %v6445, %v6444
  %v6478 = vld [vmem:[%s5] sm:$0xf]
  %v6479 = vld [vmem:[%s5 + $0x4] sm:$0xf]
  %v6480 = vld [vmem:[%s5 + $0x8] sm:$0xf]
  %v6481 = vld [vmem:[%s5 + $0xc] sm:$0xf]
  %v6482 = vld [vmem:[%s5 + $0x10] sm:$0x3]
  %v6483 = vld [vmem:[%s6] sm:$0x1]
  %v6485 = vlaneseq
  %v6486 = vshrl.u32 %v6485, 7
  %v6487 = vsub.s32 0, %v6486
  %v6488 = vrot.slane %v6483, %v6487
  %v6495 = vunpack.c.l.b16 %v6478
  %v6496 = vunpack.c.l.b16 %v6479
  %v6497 = vunpack.c.l.b16 %v6480
  %v6498 = vunpack.c.l.b16 %v6481
  %v6499 = vunpack.c.l.b16 %v6482
  %v6500 = vpack.c.b16 %v6496, %v6495
  %v6501 = vpack.c.b16 %v6498, %v6497
  %v6502 = vpack.c.b16 %v6499, %v6499
  %v6506 = vsel %vm2766, %v6446, 0
  %v6509 = vsel %vm2766, %v6447, 0
  %v6512 = vsel %vm2766, %v6448, 0
  %v6515 = vsel %vm2766, %v6449, 0
  %v6518 = vsel %vm2766, %v6450, 0
  %v6521 = vsel %vm2766, %v6451, 0
  %v6524 = vsel %vm2766, %v6452, 0
  %v6527 = vsel %vm2766, %v6453, 0
  %v6530 = vsel %vm2766, %v6454, 0
  %v6533 = vsel %vm2766, %v6455, 0
  %v6536 = vsel %vm2766, %v6456, 0
  %v6539 = vsel %vm2766, %v6457, 0
  %v6542 = vsel %vm2766, %v6458, 0
  %v6545 = vsel %vm2766, %v6459, 0
  %v6548 = vsel %vm2766, %v6460, 0
  %v6551 = vsel %vm2766, %v6461, 0
  %v6554 = vsel %vm2766, %v6462, 0
  %v6557 = vsel %vm2766, %v6463, 0
  %v6560 = vsel %vm2766, %v6464, 0
  %v6563 = vsel %vm2766, %v6465, 0
  %v6566 = vsel %vm2766, %v6466, 0
  %v6569 = vsel %vm2766, %v6467, 0
  %v6572 = vsel %vm2766, %v6468, 0
  %v6575 = vsel %vm2766, %v6469, 0
  %v6578 = vsel %vm2766, %v6470, 0
  %v6581 = vsel %vm2766, %v6471, 0
  %v6584 = vsel %vm2766, %v6472, 0
  %v6587 = vsel %vm2766, %v6473, 0
  %v6590 = vsel %vm2766, %v6474, 0
  %v6593 = vsel %vm2766, %v6475, 0
  %v6596 = vsel %vm2766, %v6476, 0
  %v6599 = vsel %vm2766, %v6477, 0
  %v6602 = vsel %vm2863, %v6502, 0
  %6604 = vmatprep.subr.bf16.mxu0 0
  %6605 = vmatpush1.bf16.msra.mxu0 0
  %6606 = vmatprep.subr.bf16.mxu0 0
  %6607 = vmatpush1.bf16.msra.mxu0 0
  %6608 = vmatprep.subr.bf16.mxu0 0
  %6609 = vmatpush1.bf16.msra.mxu0 0
  %6610 = vmatprep.subr.bf16.mxu0 0
  %6611 = vmatpush1.bf16.msra.mxu0 0
  %6612 = vmatprep.subr.bf16.mxu0 0
  %6613 = vmatpush1.bf16.msra.mxu0 0
  %6614 = vmatprep.subr.bf16.mxu0 0
  %6615 = vmatpush1.bf16.msra.mxu0 %v6602
  %6616 = vmatprep.subr.bf16.mxu0 0
  %6617 = vmatpush1.bf16.msra.mxu0 %v6501
  %6618 = vmatprep.subr.bf16.mxu0 0
  %6619 = vmatpush1.bf16.msra.mxu0 %v6500
  %6620 = vmatprep.subr.bf16.mxu0 0
  %6621 = vmatpush2.bf16.msra.mxu0 0
  %6622 = vmatprep.subr.bf16.mxu0 0
  %6623 = vmatpush2.bf16.msra.mxu0 0
  %6624 = vmatprep.subr.bf16.mxu0 0
  %6625 = vmatpush2.bf16.msra.mxu0 0
  %6626 = vmatprep.subr.bf16.mxu0 0
  %6627 = vmatpush2.bf16.msra.mxu0 0
  %6628 = vmatprep.subr.bf16.mxu0 0
  %6629 = vmatpush2.bf16.msra.mxu0 0
  %6630 = vmatprep.subr.bf16.mxu0 0
  %6631 = vmatpush2.bf16.msra.mxu0 0
  %6632 = vmatprep.subr.bf16.mxu0 0
  %6633 = vmatpush2.bf16.msra.mxu0 0
  %6634 = vmatprep.subr.bf16.mxu0 0
  %6635 = vmatpush2.bf16.msra.mxu0 0
  %6636 = vmatprep.mubr.bf16.mxu0 0
  %6637 = vmatmul.mubr.bf16.gmra.mxu0 %v6506
  %v6638 = vpop.f32.mrf.mxu0
  %v6639 = vadd.f32 %v6488, %v6638
  %v6640 = vpop.f32.mrf.mxu0
  %v6641 = vpop.f32.mrf.mxu0
  %v6642 = vadd.f32 %v6488, %v6641
  %v6643 = vpop.f32.mrf.mxu0
  %6644 = vmatprep.mubr.bf16.mxu0 0
  %6645 = vmatmul.mubr.bf16.gmra.mxu0 %v6509
  %v6646 = vpop.f32.mrf.mxu0
  %v6647 = vadd.f32 %v6488, %v6646
  %v6648 = vpop.f32.mrf.mxu0
  %v6649 = vpop.f32.mrf.mxu0
  %v6650 = vadd.f32 %v6488, %v6649
  %v6651 = vpop.f32.mrf.mxu0
  %6652 = vmatprep.mubr.bf16.mxu0 0
  %6653 = vmatmul.mubr.bf16.gmra.mxu0 %v6512
  %v6654 = vpop.f32.mrf.mxu0
  %v6655 = vadd.f32 %v6488, %v6654
  %v6656 = vpop.f32.mrf.mxu0
  %v6657 = vpop.f32.mrf.mxu0
  %v6658 = vadd.f32 %v6488, %v6657
  %v6659 = vpop.f32.mrf.mxu0
  %6660 = vmatprep.mubr.bf16.mxu0 0
  %6661 = vmatmul.mubr.bf16.gmra.mxu0 %v6515
  %v6662 = vpop.f32.mrf.mxu0
  %v6663 = vadd.f32 %v6488, %v6662
  %v6664 = vpop.f32.mrf.mxu0
  %v6665 = vpop.f32.mrf.mxu0
  %v6666 = vadd.f32 %v6488, %v6665
  %v6667 = vpop.f32.mrf.mxu0
  %6668 = vmatprep.mubr.bf16.mxu0 0
  %6669 = vmatmul.mubr.bf16.gmra.mxu0 %v6518
  %v6670 = vpop.f32.mrf.mxu0
  %v6671 = vadd.f32 %v6488, %v6670
  %v6672 = vpop.f32.mrf.mxu0
  %v6673 = vpop.f32.mrf.mxu0
  %v6674 = vadd.f32 %v6488, %v6673
  %v6675 = vpop.f32.mrf.mxu0
  %6676 = vmatprep.mubr.bf16.mxu0 0
  %6677 = vmatmul.mubr.bf16.gmra.mxu0 %v6521
  %v6678 = vpop.f32.mrf.mxu0
  %v6679 = vadd.f32 %v6488, %v6678
  %v6680 = vpop.f32.mrf.mxu0
  %v6681 = vpop.f32.mrf.mxu0
  %v6682 = vadd.f32 %v6488, %v6681
  %v6683 = vpop.f32.mrf.mxu0
  %6684 = vmatprep.mubr.bf16.mxu0 0
  %6685 = vmatmul.mubr.bf16.gmra.mxu0 %v6524
  %v6686 = vpop.f32.mrf.mxu0
  %v6687 = vadd.f32 %v6488, %v6686
  %v6688 = vpop.f32.mrf.mxu0
  %v6689 = vpop.f32.mrf.mxu0
  %v6690 = vadd.f32 %v6488, %v6689
  %v6691 = vpop.f32.mrf.mxu0
  %6692 = vmatprep.mubr.bf16.mxu0 0
  %6693 = vmatmul.mubr.bf16.gmra.mxu0 %v6527
  %v6694 = vpop.f32.mrf.mxu0
  %v6695 = vadd.f32 %v6488, %v6694
  %v6696 = vpop.f32.mrf.mxu0
  %v6697 = vpop.f32.mrf.mxu0
  %v6698 = vadd.f32 %v6488, %v6697
  %v6699 = vpop.f32.mrf.mxu0
  %6700 = vmatprep.mubr.bf16.mxu0 0
  %6701 = vmatmul.mubr.bf16.gmra.mxu0 %v6530
  %v6702 = vpop.f32.mrf.mxu0
  %v6703 = vadd.f32 %v6488, %v6702
  %v6704 = vpop.f32.mrf.mxu0
  %v6705 = vpop.f32.mrf.mxu0
  %v6706 = vadd.f32 %v6488, %v6705
  %v6707 = vpop.f32.mrf.mxu0
  %6708 = vmatprep.mubr.bf16.mxu0 0
  %6709 = vmatmul.mubr.bf16.gmra.mxu0 %v6533
  %v6710 = vpop.f32.mrf.mxu0
  %v6711 = vadd.f32 %v6488, %v6710
  %v6712 = vpop.f32.mrf.mxu0
  %v6713 = vpop.f32.mrf.mxu0
  %v6714 = vadd.f32 %v6488, %v6713
  %v6715 = vpop.f32.mrf.mxu0
  %6716 = vmatprep.mubr.bf16.mxu0 0
  %6717 = vmatmul.mubr.bf16.gmra.mxu0 %v6536
  %v6718 = vpop.f32.mrf.mxu0
  %v6719 = vadd.f32 %v6488, %v6718
  %v6720 = vpop.f32.mrf.mxu0
  %v6721 = vpop.f32.mrf.mxu0
  %v6722 = vadd.f32 %v6488, %v6721
  %v6723 = vpop.f32.mrf.mxu0
  %6724 = vmatprep.mubr.bf16.mxu0 0
  %6725 = vmatmul.mubr.bf16.gmra.mxu0 %v6539
  %v6726 = vpop.f32.mrf.mxu0
  %v6727 = vadd.f32 %v6488, %v6726
  %v6728 = vpop.f32.mrf.mxu0
  %v6729 = vpop.f32.mrf.mxu0
  %v6730 = vadd.f32 %v6488, %v6729
  %v6731 = vpop.f32.mrf.mxu0
  %6732 = vmatprep.mubr.bf16.mxu0 0
  %6733 = vmatmul.mubr.bf16.gmra.mxu0 %v6542
  %v6734 = vpop.f32.mrf.mxu0
  %v6735 = vadd.f32 %v6488, %v6734
  %v6736 = vpop.f32.mrf.mxu0
  %v6737 = vpop.f32.mrf.mxu0
  %v6738 = vadd.f32 %v6488, %v6737
  %v6739 = vpop.f32.mrf.mxu0
  %6740 = vmatprep.mubr.bf16.mxu0 0
  %6741 = vmatmul.mubr.bf16.gmra.mxu0 %v6545
  %v6742 = vpop.f32.mrf.mxu0
  %v6743 = vadd.f32 %v6488, %v6742
  %v6744 = vpop.f32.mrf.mxu0
  %v6745 = vpop.f32.mrf.mxu0
  %v6746 = vadd.f32 %v6488, %v6745
  %v6747 = vpop.f32.mrf.mxu0
  %6748 = vmatprep.mubr.bf16.mxu0 0
  %6749 = vmatmul.mubr.bf16.gmra.mxu0 %v6548
  %v6750 = vpop.f32.mrf.mxu0
  %v6751 = vadd.f32 %v6488, %v6750
  %v6752 = vpop.f32.mrf.mxu0
  %v6753 = vpop.f32.mrf.mxu0
  %v6754 = vadd.f32 %v6488, %v6753
  %v6755 = vpop.f32.mrf.mxu0
  %6756 = vmatprep.mubr.bf16.mxu0 0
  %6757 = vmatmul.mubr.bf16.gmra.mxu0 %v6551
  %v6758 = vpop.f32.mrf.mxu0
  %v6759 = vadd.f32 %v6488, %v6758
  %v6760 = vpop.f32.mrf.mxu0
  %v6761 = vpop.f32.mrf.mxu0
  %v6762 = vadd.f32 %v6488, %v6761
  %v6763 = vpop.f32.mrf.mxu0
  %6764 = vmatprep.mubr.bf16.mxu0 0
  %6765 = vmatmul.mubr.bf16.gmra.mxu0 %v6554
  %v6766 = vpop.f32.mrf.mxu0
  %v6767 = vadd.f32 %v6488, %v6766
  %v6768 = vpop.f32.mrf.mxu0
  %v6769 = vpop.f32.mrf.mxu0
  %v6770 = vadd.f32 %v6488, %v6769
  %v6771 = vpop.f32.mrf.mxu0
  %6772 = vmatprep.mubr.bf16.mxu0 0
  %6773 = vmatmul.mubr.bf16.gmra.mxu0 %v6557
  %v6774 = vpop.f32.mrf.mxu0
  %v6775 = vadd.f32 %v6488, %v6774
  %v6776 = vpop.f32.mrf.mxu0
  %v6777 = vpop.f32.mrf.mxu0
  %v6778 = vadd.f32 %v6488, %v6777
  %v6779 = vpop.f32.mrf.mxu0
  %6780 = vmatprep.mubr.bf16.mxu0 0
  %6781 = vmatmul.mubr.bf16.gmra.mxu0 %v6560
  %v6782 = vpop.f32.mrf.mxu0
  %v6783 = vadd.f32 %v6488, %v6782
  %v6784 = vpop.f32.mrf.mxu0
  %v6785 = vpop.f32.mrf.mxu0
  %v6786 = vadd.f32 %v6488, %v6785
  %v6787 = vpop.f32.mrf.mxu0
  %6788 = vmatprep.mubr.bf16.mxu0 0
  %6789 = vmatmul.mubr.bf16.gmra.mxu0 %v6563
  %v6790 = vpop.f32.mrf.mxu0
  %v6791 = vadd.f32 %v6488, %v6790
  %v6792 = vpop.f32.mrf.mxu0
  %v6793 = vpop.f32.mrf.mxu0
  %v6794 = vadd.f32 %v6488, %v6793
  %v6795 = vpop.f32.mrf.mxu0
  %6796 = vmatprep.mubr.bf16.mxu0 0
  %6797 = vmatmul.mubr.bf16.gmra.mxu0 %v6566
  %v6798 = vpop.f32.mrf.mxu0
  %v6799 = vadd.f32 %v6488, %v6798
  %v6800 = vpop.f32.mrf.mxu0
  %v6801 = vpop.f32.mrf.mxu0
  %v6802 = vadd.f32 %v6488, %v6801
  %v6803 = vpop.f32.mrf.mxu0
  %6804 = vmatprep.mubr.bf16.mxu0 0
  %6805 = vmatmul.mubr.bf16.gmra.mxu0 %v6569
  %v6806 = vpop.f32.mrf.mxu0
  %v6807 = vadd.f32 %v6488, %v6806
  %v6808 = vpop.f32.mrf.mxu0
  %v6809 = vpop.f32.mrf.mxu0
  %v6810 = vadd.f32 %v6488, %v6809
  %v6811 = vpop.f32.mrf.mxu0
  %6812 = vmatprep.mubr.bf16.mxu0 0
  %6813 = vmatmul.mubr.bf16.gmra.mxu0 %v6572
  %v6814 = vpop.f32.mrf.mxu0
  %v6815 = vadd.f32 %v6488, %v6814
  %v6816 = vpop.f32.mrf.mxu0
  %v6817 = vpop.f32.mrf.mxu0
  %v6818 = vadd.f32 %v6488, %v6817
  %v6819 = vpop.f32.mrf.mxu0
  %6820 = vmatprep.mubr.bf16.mxu0 0
  %6821 = vmatmul.mubr.bf16.gmra.mxu0 %v6575
  %v6822 = vpop.f32.mrf.mxu0
  %v6823 = vadd.f32 %v6488, %v6822
  %v6824 = vpop.f32.mrf.mxu0
  %v6825 = vpop.f32.mrf.mxu0
  %v6826 = vadd.f32 %v6488, %v6825
  %v6827 = vpop.f32.mrf.mxu0
  %6828 = vmatprep.mubr.bf16.mxu0 0
  %6829 = vmatmul.mubr.bf16.gmra.mxu0 %v6578
  %v6830 = vpop.f32.mrf.mxu0
  %v6831 = vadd.f32 %v6488, %v6830
  %v6832 = vpop.f32.mrf.mxu0
  %v6833 = vpop.f32.mrf.mxu0
  %v6834 = vadd.f32 %v6488, %v6833
  %v6835 = vpop.f32.mrf.mxu0
  %6836 = vmatprep.mubr.bf16.mxu0 0
  %6837 = vmatmul.mubr.bf16.gmra.mxu0 %v6581
  %v6838 = vpop.f32.mrf.mxu0
  %v6839 = vadd.f32 %v6488, %v6838
  %v6840 = vpop.f32.mrf.mxu0
  %v6841 = vpop.f32.mrf.mxu0
  %v6842 = vadd.f32 %v6488, %v6841
  %v6843 = vpop.f32.mrf.mxu0
  %6844 = vmatprep.mubr.bf16.mxu0 0
  %6845 = vmatmul.mubr.bf16.gmra.mxu0 %v6584
  %v6846 = vpop.f32.mrf.mxu0
  %v6847 = vadd.f32 %v6488, %v6846
  %v6848 = vpop.f32.mrf.mxu0
  %v6849 = vpop.f32.mrf.mxu0
  %v6850 = vadd.f32 %v6488, %v6849
  %v6851 = vpop.f32.mrf.mxu0
  %6852 = vmatprep.mubr.bf16.mxu0 0
  %6853 = vmatmul.mubr.bf16.gmra.mxu0 %v6587
  %v6854 = vpop.f32.mrf.mxu0
  %v6855 = vadd.f32 %v6488, %v6854
  %v6856 = vpop.f32.mrf.mxu0
  %v6857 = vpop.f32.mrf.mxu0
  %v6858 = vadd.f32 %v6488, %v6857
  %v6859 = vpop.f32.mrf.mxu0
  %6860 = vmatprep.mubr.bf16.mxu0 0
  %6861 = vmatmul.mubr.bf16.gmra.mxu0 %v6590
  %v6862 = vpop.f32.mrf.mxu0
  %v6863 = vadd.f32 %v6488, %v6862
  %v6864 = vpop.f32.mrf.mxu0
  %v6865 = vpop.f32.mrf.mxu0
  %v6866 = vadd.f32 %v6488, %v6865
  %v6867 = vpop.f32.mrf.mxu0
  %6868 = vmatprep.mubr.bf16.mxu0 0
  %6869 = vmatmul.mubr.bf16.gmra.mxu0 %v6593
  %v6870 = vpop.f32.mrf.mxu0
  %v6871 = vadd.f32 %v6488, %v6870
  %v6872 = vpop.f32.mrf.mxu0
  %v6873 = vpop.f32.mrf.mxu0
  %v6874 = vadd.f32 %v6488, %v6873
  %v6875 = vpop.f32.mrf.mxu0
  %6876 = vmatprep.mubr.bf16.mxu0 0
  %6877 = vmatmul.mubr.bf16.gmra.mxu0 %v6596
  %v6878 = vpop.f32.mrf.mxu0
  %v6879 = vadd.f32 %v6488, %v6878
  %v6880 = vpop.f32.mrf.mxu0
  %v6881 = vpop.f32.mrf.mxu0
  %v6882 = vadd.f32 %v6488, %v6881
  %v6883 = vpop.f32.mrf.mxu0
  %6884 = vmatprep.mubr.bf16.mxu0 0
  %6885 = vmatmul.mubr.bf16.gmra.mxu0 %v6599
  %v6886 = vpop.f32.mrf.mxu0
  %v6887 = vadd.f32 %v6488, %v6886
  %v6888 = vpop.f32.mrf.mxu0
  %v6889 = vpop.f32.mrf.mxu0
  %v6890 = vadd.f32 %v6488, %v6889
  %v6891 = vpop.f32.mrf.mxu0
  %6892 = vdwg.mxu0
  %v6893 = vsel %vm2191, %v6639, 0.0
  %v6894 = vsel %vm2191, %v6642, 0.0
  %v6895 = vadd.f32 %v6893, %v6894
  %v6896 = vsel %vm2191, %v6647, 0.0
  %v6897 = vadd.f32 %v6895, %v6896
  %v6898 = vsel %vm2191, %v6650, 0.0
  %v6899 = vadd.f32 %v6897, %v6898
  %v6900 = vsel %vm2191, %v6655, 0.0
  %v6901 = vadd.f32 %v6899, %v6900
  %v6902 = vsel %vm2191, %v6658, 0.0
  %v6903 = vadd.f32 %v6901, %v6902
  %v6904 = vsel %vm2191, %v6663, 0.0
  %v6905 = vadd.f32 %v6903, %v6904
  %v6906 = vsel %vm2191, %v6666, 0.0
  %v6907 = vadd.f32 %v6905, %v6906
  %v6908 = vsel %vm2191, %v6671, 0.0
  %v6909 = vadd.f32 %v6907, %v6908
  %v6910 = vsel %vm2191, %v6674, 0.0
  %v6911 = vadd.f32 %v6909, %v6910
  %v6912 = vsel %vm2191, %v6679, 0.0
  %v6913 = vadd.f32 %v6911, %v6912
  %v6914 = vsel %vm2191, %v6682, 0.0
  %v6915 = vadd.f32 %v6913, %v6914
  %v6916 = vsel %vm2191, %v6687, 0.0
  %v6917 = vadd.f32 %v6915, %v6916
  %v6918 = vsel %vm2191, %v6690, 0.0
  %v6919 = vadd.f32 %v6917, %v6918
  %v6920 = vsel %vm2191, %v6695, 0.0
  %v6921 = vadd.f32 %v6919, %v6920
  %v6922 = vsel %vm2191, %v6698, 0.0
  %v6923 = vadd.f32 %v6921, %v6922
  %v6924 = vsel %vm2191, %v6703, 0.0
  %v6925 = vadd.f32 %v6923, %v6924
  %v6926 = vsel %vm2191, %v6706, 0.0
  %v6927 = vadd.f32 %v6925, %v6926
  %v6928 = vsel %vm2191, %v6711, 0.0
  %v6929 = vadd.f32 %v6927, %v6928
  %v6930 = vsel %vm2191, %v6714, 0.0
  %v6931 = vadd.f32 %v6929, %v6930
  %v6932 = vsel %vm2191, %v6719, 0.0
  %v6933 = vadd.f32 %v6931, %v6932
  %v6934 = vsel %vm2191, %v6722, 0.0
  %v6935 = vadd.f32 %v6933, %v6934
  %v6936 = vsel %vm2191, %v6727, 0.0
  %v6937 = vadd.f32 %v6935, %v6936
  %v6938 = vsel %vm2191, %v6730, 0.0
  %v6939 = vadd.f32 %v6937, %v6938
  %v6940 = vsel %vm2191, %v6735, 0.0
  %v6941 = vadd.f32 %v6939, %v6940
  %v6942 = vsel %vm2191, %v6738, 0.0
  %v6943 = vadd.f32 %v6941, %v6942
  %v6944 = vsel %vm2191, %v6743, 0.0
  %v6945 = vadd.f32 %v6943, %v6944
  %v6946 = vsel %vm2191, %v6746, 0.0
  %v6947 = vadd.f32 %v6945, %v6946
  %v6948 = vsel %vm2191, %v6751, 0.0
  %v6949 = vadd.f32 %v6947, %v6948
  %v6950 = vsel %vm2191, %v6754, 0.0
  %v6951 = vadd.f32 %v6949, %v6950
  %v6952 = vsel %vm2191, %v6759, 0.0
  %v6953 = vadd.f32 %v6951, %v6952
  %v6954 = vsel %vm2191, %v6762, 0.0
  %v6955 = vadd.f32 %v6953, %v6954
  %v6956 = vsel %vm2191, %v6767, 0.0
  %v6957 = vadd.f32 %v6955, %v6956
  %v6958 = vsel %vm2191, %v6770, 0.0
  %v6959 = vadd.f32 %v6957, %v6958
  %v6960 = vsel %vm2191, %v6775, 0.0
  %v6961 = vadd.f32 %v6959, %v6960
  %v6962 = vsel %vm2191, %v6778, 0.0
  %v6963 = vadd.f32 %v6961, %v6962
  %v6964 = vsel %vm2191, %v6783, 0.0
  %v6965 = vadd.f32 %v6963, %v6964
  %v6966 = vsel %vm2191, %v6786, 0.0
  %v6967 = vadd.f32 %v6965, %v6966
  %v6968 = vsel %vm2191, %v6791, 0.0
  %v6969 = vadd.f32 %v6967, %v6968
  %v6970 = vsel %vm2191, %v6794, 0.0
  %v6971 = vadd.f32 %v6969, %v6970
  %v6972 = vsel %vm2191, %v6799, 0.0
  %v6973 = vadd.f32 %v6971, %v6972
  %v6974 = vsel %vm2191, %v6802, 0.0
  %v6975 = vadd.f32 %v6973, %v6974
  %v6976 = vsel %vm2191, %v6807, 0.0
  %v6977 = vadd.f32 %v6975, %v6976
  %v6978 = vsel %vm2191, %v6810, 0.0
  %v6979 = vadd.f32 %v6977, %v6978
  %v6980 = vsel %vm2191, %v6815, 0.0
  %v6981 = vadd.f32 %v6979, %v6980
  %v6982 = vsel %vm2191, %v6818, 0.0
  %v6983 = vadd.f32 %v6981, %v6982
  %v6984 = vsel %vm2191, %v6823, 0.0
  %v6985 = vadd.f32 %v6983, %v6984
  %v6986 = vsel %vm2191, %v6826, 0.0
  %v6987 = vadd.f32 %v6985, %v6986
  %v6988 = vsel %vm2191, %v6831, 0.0
  %v6989 = vadd.f32 %v6987, %v6988
  %v6990 = vsel %vm2191, %v6834, 0.0
  %v6991 = vadd.f32 %v6989, %v6990
  %v6992 = vsel %vm2191, %v6839, 0.0
  %v6993 = vadd.f32 %v6991, %v6992
  %v6994 = vsel %vm2191, %v6842, 0.0
  %v6995 = vadd.f32 %v6993, %v6994
  %v6996 = vsel %vm2191, %v6847, 0.0
  %v6997 = vadd.f32 %v6995, %v6996
  %v6998 = vsel %vm2191, %v6850, 0.0
  %v6999 = vadd.f32 %v6997, %v6998
  %v7000 = vsel %vm2191, %v6855, 0.0
  %v7001 = vadd.f32 %v6999, %v7000
  %v7002 = vsel %vm2191, %v6858, 0.0
  %v7003 = vadd.f32 %v7001, %v7002
  %v7004 = vsel %vm2191, %v6863, 0.0
  %v7005 = vadd.f32 %v7003, %v7004
  %v7006 = vsel %vm2191, %v6866, 0.0
  %v7007 = vadd.f32 %v7005, %v7006
  %v7008 = vsel %vm2191, %v6871, 0.0
  %v7009 = vadd.f32 %v7007, %v7008
  %v7010 = vsel %vm2191, %v6874, 0.0
  %v7011 = vadd.f32 %v7009, %v7010
  %v7012 = vsel %vm2191, %v6879, 0.0
  %v7013 = vadd.f32 %v7011, %v7012
  %v7014 = vsel %vm2191, %v6882, 0.0
  %v7015 = vadd.f32 %v7013, %v7014
  %v7016 = vsel %vm2191, %v6887, 0.0
  %v7017 = vadd.f32 %v7015, %v7016
  %v7018 = vsel %vm2191, %v6890, 0.0
  %v7019 = vadd.f32 %v7017, %v7018
  %v7020 = vrot.slane %v7019, 4
  %v7021 = vadd.f32 %v7019, %v7020
  %v7022 = vrot.slane %v7021, 2
  %v7023 = vadd.f32 %v7021, %v7022
  %v7024 = vrot.slane %v7023, 1
  %v7025 = vadd.f32 %v7023, %v7024
  %v7026 = vmul.f32 %v6639, %v6639
  %v7027 = vmul.f32 %v6642, %v6642
  %v7028 = vmul.f32 %v6647, %v6647
  %v7029 = vmul.f32 %v6650, %v6650
  %v7030 = vmul.f32 %v6655, %v6655
  %v7031 = vmul.f32 %v6658, %v6658
  %v7032 = vmul.f32 %v6663, %v6663
  %v7033 = vmul.f32 %v6666, %v6666
  %v7034 = vmul.f32 %v6671, %v6671
  %v7035 = vmul.f32 %v6674, %v6674
  %v7036 = vmul.f32 %v6679, %v6679
  %v7037 = vmul.f32 %v6682, %v6682
  %v7038 = vmul.f32 %v6687, %v6687
  %v7039 = vmul.f32 %v6690, %v6690
  %v7040 = vmul.f32 %v6695, %v6695
  %v7041 = vmul.f32 %v6698, %v6698
  %v7042 = vmul.f32 %v6703, %v6703
  %v7043 = vmul.f32 %v6706, %v6706
  %v7044 = vmul.f32 %v6711, %v6711
  %v7045 = vmul.f32 %v6714, %v6714
  %v7046 = vmul.f32 %v6719, %v6719
  %v7047 = vmul.f32 %v6722, %v6722
  %v7048 = vmul.f32 %v6727, %v6727
  %v7049 = vmul.f32 %v6730, %v6730
  %v7050 = vmul.f32 %v6735, %v6735
  %v7051 = vmul.f32 %v6738, %v6738
  %v7052 = vmul.f32 %v6743, %v6743
  %v7053 = vmul.f32 %v6746, %v6746
  %v7054 = vmul.f32 %v6751, %v6751
  %v7055 = vmul.f32 %v6754, %v6754
  %v7056 = vmul.f32 %v6759, %v6759
  %v7057 = vmul.f32 %v6762, %v6762
  %v7058 = vmul.f32 %v6767, %v6767
  %v7059 = vmul.f32 %v6770, %v6770
  %v7060 = vmul.f32 %v6775, %v6775
  %v7061 = vmul.f32 %v6778, %v6778
  %v7062 = vmul.f32 %v6783, %v6783
  %v7063 = vmul.f32 %v6786, %v6786
  %v7064 = vmul.f32 %v6791, %v6791
  %v7065 = vmul.f32 %v6794, %v6794
  %v7066 = vmul.f32 %v6799, %v6799
  %v7067 = vmul.f32 %v6802, %v6802
  %v7068 = vmul.f32 %v6807, %v6807
  %v7069 = vmul.f32 %v6810, %v6810
  %v7070 = vmul.f32 %v6815, %v6815
  %v7071 = vmul.f32 %v6818, %v6818
  %v7072 = vmul.f32 %v6823, %v6823
  %v7073 = vmul.f32 %v6826, %v6826
  %v7074 = vmul.f32 %v6831, %v6831
  %v7075 = vmul.f32 %v6834, %v6834
  %v7076 = vmul.f32 %v6839, %v6839
  %v7077 = vmul.f32 %v6842, %v6842
  %v7078 = vmul.f32 %v6847, %v6847
  %v7079 = vmul.f32 %v6850, %v6850
  %v7080 = vmul.f32 %v6855, %v6855
  %v7081 = vmul.f32 %v6858, %v6858
  %v7082 = vmul.f32 %v6863, %v6863
  %v7083 = vmul.f32 %v6866, %v6866
  %v7084 = vmul.f32 %v6871, %v6871
  %v7085 = vmul.f32 %v6874, %v6874
  %v7086 = vmul.f32 %v6879, %v6879
  %v7087 = vmul.f32 %v6882, %v6882
  %v7088 = vmul.f32 %v6887, %v6887
  %v7089 = vmul.f32 %v6890, %v6890
  %v7090 = vsel %vm2191, %v7026, 0.0
  %v7091 = vsel %vm2191, %v7027, 0.0
  %v7092 = vadd.f32 %v7090, %v7091
  %v7093 = vsel %vm2191, %v7028, 0.0
  %v7094 = vadd.f32 %v7092, %v7093
  %v7095 = vsel %vm2191, %v7029, 0.0
  %v7096 = vadd.f32 %v7094, %v7095
  %v7097 = vsel %vm2191, %v7030, 0.0
  %v7098 = vadd.f32 %v7096, %v7097
  %v7099 = vsel %vm2191, %v7031, 0.0
  %v7100 = vadd.f32 %v7098, %v7099
  %v7101 = vsel %vm2191, %v7032, 0.0
  %v7102 = vadd.f32 %v7100, %v7101
  %v7103 = vsel %vm2191, %v7033, 0.0
  %v7104 = vadd.f32 %v7102, %v7103
  %v7105 = vsel %vm2191, %v7034, 0.0
  %v7106 = vadd.f32 %v7104, %v7105
  %v7107 = vsel %vm2191, %v7035, 0.0
  %v7108 = vadd.f32 %v7106, %v7107
  %v7109 = vsel %vm2191, %v7036, 0.0
  %v7110 = vadd.f32 %v7108, %v7109
  %v7111 = vsel %vm2191, %v7037, 0.0
  %v7112 = vadd.f32 %v7110, %v7111
  %v7113 = vsel %vm2191, %v7038, 0.0
  %v7114 = vadd.f32 %v7112, %v7113
  %v7115 = vsel %vm2191, %v7039, 0.0
  %v7116 = vadd.f32 %v7114, %v7115
  %v7117 = vsel %vm2191, %v7040, 0.0
  %v7118 = vadd.f32 %v7116, %v7117
  %v7119 = vsel %vm2191, %v7041, 0.0
  %v7120 = vadd.f32 %v7118, %v7119
  %v7121 = vsel %vm2191, %v7042, 0.0
  %v7122 = vadd.f32 %v7120, %v7121
  %v7123 = vsel %vm2191, %v7043, 0.0
  %v7124 = vadd.f32 %v7122, %v7123
  %v7125 = vsel %vm2191, %v7044, 0.0
  %v7126 = vadd.f32 %v7124, %v7125
  %v7127 = vsel %vm2191, %v7045, 0.0
  %v7128 = vadd.f32 %v7126, %v7127
  %v7129 = vsel %vm2191, %v7046, 0.0
  %v7130 = vadd.f32 %v7128, %v7129
  %v7131 = vsel %vm2191, %v7047, 0.0
  %v7132 = vadd.f32 %v7130, %v7131
  %v7133 = vsel %vm2191, %v7048, 0.0
  %v7134 = vadd.f32 %v7132, %v7133
  %v7135 = vsel %vm2191, %v7049, 0.0
  %v7136 = vadd.f32 %v7134, %v7135
  %v7137 = vsel %vm2191, %v7050, 0.0
  %v7138 = vadd.f32 %v7136, %v7137
  %v7139 = vsel %vm2191, %v7051, 0.0
  %v7140 = vadd.f32 %v7138, %v7139
  %v7141 = vsel %vm2191, %v7052, 0.0
  %v7142 = vadd.f32 %v7140, %v7141
  %v7143 = vsel %vm2191, %v7053, 0.0
  %v7144 = vadd.f32 %v7142, %v7143
  %v7145 = vsel %vm2191, %v7054, 0.0
  %v7146 = vadd.f32 %v7144, %v7145
  %v7147 = vsel %vm2191, %v7055, 0.0
  %v7148 = vadd.f32 %v7146, %v7147
  %v7149 = vsel %vm2191, %v7056, 0.0
  %v7150 = vadd.f32 %v7148, %v7149
  %v7151 = vsel %vm2191, %v7057, 0.0
  %v7152 = vadd.f32 %v7150, %v7151
  %v7153 = vsel %vm2191, %v7058, 0.0
  %v7154 = vadd.f32 %v7152, %v7153
  %v7155 = vsel %vm2191, %v7059, 0.0
  %v7156 = vadd.f32 %v7154, %v7155
  %v7157 = vsel %vm2191, %v7060, 0.0
  %v7158 = vadd.f32 %v7156, %v7157
  %v7159 = vsel %vm2191, %v7061, 0.0
  %v7160 = vadd.f32 %v7158, %v7159
  %v7161 = vsel %vm2191, %v7062, 0.0
  %v7162 = vadd.f32 %v7160, %v7161
  %v7163 = vsel %vm2191, %v7063, 0.0
  %v7164 = vadd.f32 %v7162, %v7163
  %v7165 = vsel %vm2191, %v7064, 0.0
  %v7166 = vadd.f32 %v7164, %v7165
  %v7167 = vsel %vm2191, %v7065, 0.0
  %v7168 = vadd.f32 %v7166, %v7167
  %v7169 = vsel %vm2191, %v7066, 0.0
  %v7170 = vadd.f32 %v7168, %v7169
  %v7171 = vsel %vm2191, %v7067, 0.0
  %v7172 = vadd.f32 %v7170, %v7171
  %v7173 = vsel %vm2191, %v7068, 0.0
  %v7174 = vadd.f32 %v7172, %v7173
  %v7175 = vsel %vm2191, %v7069, 0.0
  %v7176 = vadd.f32 %v7174, %v7175
  %v7177 = vsel %vm2191, %v7070, 0.0
  %v7178 = vadd.f32 %v7176, %v7177
  %v7179 = vsel %vm2191, %v7071, 0.0
  %v7180 = vadd.f32 %v7178, %v7179
  %v7181 = vsel %vm2191, %v7072, 0.0
  %v7182 = vadd.f32 %v7180, %v7181
  %v7183 = vsel %vm2191, %v7073, 0.0
  %v7184 = vadd.f32 %v7182, %v7183
  %v7185 = vsel %vm2191, %v7074, 0.0
  %v7186 = vadd.f32 %v7184, %v7185
  %v7187 = vsel %vm2191, %v7075, 0.0
  %v7188 = vadd.f32 %v7186, %v7187
  %v7189 = vsel %vm2191, %v7076, 0.0
  %v7190 = vadd.f32 %v7188, %v7189
  %v7191 = vsel %vm2191, %v7077, 0.0
  %v7192 = vadd.f32 %v7190, %v7191
  %v7193 = vsel %vm2191, %v7078, 0.0
  %v7194 = vadd.f32 %v7192, %v7193
  %v7195 = vsel %vm2191, %v7079, 0.0
  %v7196 = vadd.f32 %v7194, %v7195
  %v7197 = vsel %vm2191, %v7080, 0.0
  %v7198 = vadd.f32 %v7196, %v7197
  %v7199 = vsel %vm2191, %v7081, 0.0
  %v7200 = vadd.f32 %v7198, %v7199
  %v7201 = vsel %vm2191, %v7082, 0.0
  %v7202 = vadd.f32 %v7200, %v7201
  %v7203 = vsel %vm2191, %v7083, 0.0
  %v7204 = vadd.f32 %v7202, %v7203
  %v7205 = vsel %vm2191, %v7084, 0.0
  %v7206 = vadd.f32 %v7204, %v7205
  %v7207 = vsel %vm2191, %v7085, 0.0
  %v7208 = vadd.f32 %v7206, %v7207
  %v7209 = vsel %vm2191, %v7086, 0.0
  %v7210 = vadd.f32 %v7208, %v7209
  %v7211 = vsel %vm2191, %v7087, 0.0
  %v7212 = vadd.f32 %v7210, %v7211
  %v7213 = vsel %vm2191, %v7088, 0.0
  %v7214 = vadd.f32 %v7212, %v7213
  %v7215 = vsel %vm2191, %v7089, 0.0
  %v7216 = vadd.f32 %v7214, %v7215
  %v7217 = vrot.slane %v7216, 4
  %v7218 = vadd.f32 %v7216, %v7217
  %v7219 = vrot.slane %v7218, 2
  %v7220 = vadd.f32 %v7218, %v7219
  %v7221 = vrot.slane %v7220, 1
  %v7222 = vadd.f32 %v7220, %v7221
  %v7223 = vmul.f32 %v7025, 0.001953125
  %v7224 = vmul.f32 %v7222, 0.001953125
  %v7225 = vmul.f32 %v7223, %v7223
  %v7226 = vsub.f32 %v7224, %v7225
  %v7227 = vmax.f32 %v7226, 0.0
  %v7228 = vadd.f32 %v7227, 1e-05
  %v7229 = vrsqrt.pop %v7228
  %v7230 = vsub.f32 %v6639, %v7223
  %v7231 = vsub.f32 %v6642, %v7223
  %v7232 = vsub.f32 %v6647, %v7223
  %v7233 = vsub.f32 %v6650, %v7223
  %v7234 = vsub.f32 %v6655, %v7223
  %v7235 = vsub.f32 %v6658, %v7223
  %v7236 = vsub.f32 %v6663, %v7223
  %v7237 = vsub.f32 %v6666, %v7223
  %v7238 = vsub.f32 %v6671, %v7223
  %v7239 = vsub.f32 %v6674, %v7223
  %v7240 = vsub.f32 %v6679, %v7223
  %v7241 = vsub.f32 %v6682, %v7223
  %v7242 = vsub.f32 %v6687, %v7223
  %v7243 = vsub.f32 %v6690, %v7223
  %v7244 = vsub.f32 %v6695, %v7223
  %v7245 = vsub.f32 %v6698, %v7223
  %v7246 = vsub.f32 %v6703, %v7223
  %v7247 = vsub.f32 %v6706, %v7223
  %v7248 = vsub.f32 %v6711, %v7223
  %v7249 = vsub.f32 %v6714, %v7223
  %v7250 = vsub.f32 %v6719, %v7223
  %v7251 = vsub.f32 %v6722, %v7223
  %v7252 = vsub.f32 %v6727, %v7223
  %v7253 = vsub.f32 %v6730, %v7223
  %v7254 = vsub.f32 %v6735, %v7223
  %v7255 = vsub.f32 %v6738, %v7223
  %v7256 = vsub.f32 %v6743, %v7223
  %v7257 = vsub.f32 %v6746, %v7223
  %v7258 = vsub.f32 %v6751, %v7223
  %v7259 = vsub.f32 %v6754, %v7223
  %v7260 = vsub.f32 %v6759, %v7223
  %v7261 = vsub.f32 %v6762, %v7223
  %v7262 = vsub.f32 %v6767, %v7223
  %v7263 = vsub.f32 %v6770, %v7223
  %v7264 = vsub.f32 %v6775, %v7223
  %v7265 = vsub.f32 %v6778, %v7223
  %v7266 = vsub.f32 %v6783, %v7223
  %v7267 = vsub.f32 %v6786, %v7223
  %v7268 = vsub.f32 %v6791, %v7223
  %v7269 = vsub.f32 %v6794, %v7223
  %v7270 = vsub.f32 %v6799, %v7223
  %v7271 = vsub.f32 %v6802, %v7223
  %v7272 = vsub.f32 %v6807, %v7223
  %v7273 = vsub.f32 %v6810, %v7223
  %v7274 = vsub.f32 %v6815, %v7223
  %v7275 = vsub.f32 %v6818, %v7223
  %v7276 = vsub.f32 %v6823, %v7223
  %v7277 = vsub.f32 %v6826, %v7223
  %v7278 = vsub.f32 %v6831, %v7223
  %v7279 = vsub.f32 %v6834, %v7223
  %v7280 = vsub.f32 %v6839, %v7223
  %v7281 = vsub.f32 %v6842, %v7223
  %v7282 = vsub.f32 %v6847, %v7223
  %v7283 = vsub.f32 %v6850, %v7223
  %v7284 = vsub.f32 %v6855, %v7223
  %v7285 = vsub.f32 %v6858, %v7223
  %v7286 = vsub.f32 %v6863, %v7223
  %v7287 = vsub.f32 %v6866, %v7223
  %v7288 = vsub.f32 %v6871, %v7223
  %v7289 = vsub.f32 %v6874, %v7223
  %v7290 = vsub.f32 %v6879, %v7223
  %v7291 = vsub.f32 %v6882, %v7223
  %v7292 = vsub.f32 %v6887, %v7223
  %v7293 = vsub.f32 %v6890, %v7223
  %v7294 = vld [vmem:[%s7] sm:$0x1]
  %v7295 = vmul.f32 %v7229, %v7294
  %v7296 = vlaneseq
  %v7297 = vshrl.u32 %v7296, 7
  %v7298 = vsub.s32 0, %v7297
  %v7299 = vrot.slane %v7295, %v7298
  %v7300 = vmul.f32 %v7230, %v7299
  %v7301 = vmul.f32 %v7231, %v7299
  %v7302 = vmul.f32 %v7232, %v7299
  %v7303 = vmul.f32 %v7233, %v7299
  %v7304 = vmul.f32 %v7234, %v7299
  %v7305 = vmul.f32 %v7235, %v7299
  %v7306 = vmul.f32 %v7236, %v7299
  %v7307 = vmul.f32 %v7237, %v7299
  %v7308 = vmul.f32 %v7238, %v7299
  %v7309 = vmul.f32 %v7239, %v7299
  %v7310 = vmul.f32 %v7240, %v7299
  %v7311 = vmul.f32 %v7241, %v7299
  %v7312 = vmul.f32 %v7242, %v7299
  %v7313 = vmul.f32 %v7243, %v7299
  %v7314 = vmul.f32 %v7244, %v7299
  %v7315 = vmul.f32 %v7245, %v7299
  %v7316 = vmul.f32 %v7246, %v7299
  %v7317 = vmul.f32 %v7247, %v7299
  %v7318 = vmul.f32 %v7248, %v7299
  %v7319 = vmul.f32 %v7249, %v7299
  %v7320 = vmul.f32 %v7250, %v7299
  %v7321 = vmul.f32 %v7251, %v7299
  %v7322 = vmul.f32 %v7252, %v7299
  %v7323 = vmul.f32 %v7253, %v7299
  %v7324 = vmul.f32 %v7254, %v7299
  %v7325 = vmul.f32 %v7255, %v7299
  %v7326 = vmul.f32 %v7256, %v7299
  %v7327 = vmul.f32 %v7257, %v7299
  %v7328 = vmul.f32 %v7258, %v7299
  %v7329 = vmul.f32 %v7259, %v7299
  %v7330 = vmul.f32 %v7260, %v7299
  %v7331 = vmul.f32 %v7261, %v7299
  %v7332 = vmul.f32 %v7262, %v7299
  %v7333 = vmul.f32 %v7263, %v7299
  %v7334 = vmul.f32 %v7264, %v7299
  %v7335 = vmul.f32 %v7265, %v7299
  %v7336 = vmul.f32 %v7266, %v7299
  %v7337 = vmul.f32 %v7267, %v7299
  %v7338 = vmul.f32 %v7268, %v7299
  %v7339 = vmul.f32 %v7269, %v7299
  %v7340 = vmul.f32 %v7270, %v7299
  %v7341 = vmul.f32 %v7271, %v7299
  %v7342 = vmul.f32 %v7272, %v7299
  %v7343 = vmul.f32 %v7273, %v7299
  %v7344 = vmul.f32 %v7274, %v7299
  %v7345 = vmul.f32 %v7275, %v7299
  %v7346 = vmul.f32 %v7276, %v7299
  %v7347 = vmul.f32 %v7277, %v7299
  %v7348 = vmul.f32 %v7278, %v7299
  %v7349 = vmul.f32 %v7279, %v7299
  %v7350 = vmul.f32 %v7280, %v7299
  %v7351 = vmul.f32 %v7281, %v7299
  %v7352 = vmul.f32 %v7282, %v7299
  %v7353 = vmul.f32 %v7283, %v7299
  %v7354 = vmul.f32 %v7284, %v7299
  %v7355 = vmul.f32 %v7285, %v7299
  %v7356 = vmul.f32 %v7286, %v7299
  %v7357 = vmul.f32 %v7287, %v7299
  %v7358 = vmul.f32 %v7288, %v7299
  %v7359 = vmul.f32 %v7289, %v7299
  %v7360 = vmul.f32 %v7290, %v7299
  %v7361 = vmul.f32 %v7291, %v7299
  %v7362 = vmul.f32 %v7292, %v7299
  %v7363 = vmul.f32 %v7293, %v7299
  %v7364 = vld [vmem:[%s8] sm:$0x1]
  %v7366 = vlaneseq
  %v7367 = vshrl.u32 %v7366, 7
  %v7368 = vsub.s32 0, %v7367
  %v7369 = vrot.slane %v7364, %v7368
  %v7371 = vadd.f32 %v7300, %v7369
  %v7372 = vadd.f32 %v7301, %v7369
  %v7373 = vadd.f32 %v7302, %v7369
  %v7374 = vadd.f32 %v7303, %v7369
  %v7375 = vadd.f32 %v7304, %v7369
  %v7376 = vadd.f32 %v7305, %v7369
  %v7377 = vadd.f32 %v7306, %v7369
  %v7378 = vadd.f32 %v7307, %v7369
  %v7379 = vadd.f32 %v7308, %v7369
  %v7380 = vadd.f32 %v7309, %v7369
  %v7381 = vadd.f32 %v7310, %v7369
  %v7382 = vadd.f32 %v7311, %v7369
  %v7383 = vadd.f32 %v7312, %v7369
  %v7384 = vadd.f32 %v7313, %v7369
  %v7385 = vadd.f32 %v7314, %v7369
  %v7386 = vadd.f32 %v7315, %v7369
  %v7387 = vadd.f32 %v7316, %v7369
  %v7388 = vadd.f32 %v7317, %v7369
  %v7389 = vadd.f32 %v7318, %v7369
  %v7390 = vadd.f32 %v7319, %v7369
  %v7391 = vadd.f32 %v7320, %v7369
  %v7392 = vadd.f32 %v7321, %v7369
  %v7393 = vadd.f32 %v7322, %v7369
  %v7394 = vadd.f32 %v7323, %v7369
  %v7395 = vadd.f32 %v7324, %v7369
  %v7396 = vadd.f32 %v7325, %v7369
  %v7397 = vadd.f32 %v7326, %v7369
  %v7398 = vadd.f32 %v7327, %v7369
  %v7399 = vadd.f32 %v7328, %v7369
  %v7400 = vadd.f32 %v7329, %v7369
  %v7401 = vadd.f32 %v7330, %v7369
  %v7402 = vadd.f32 %v7331, %v7369
  %v7403 = vadd.f32 %v7332, %v7369
  %v7404 = vadd.f32 %v7333, %v7369
  %v7405 = vadd.f32 %v7334, %v7369
  %v7406 = vadd.f32 %v7335, %v7369
  %v7407 = vadd.f32 %v7336, %v7369
  %v7408 = vadd.f32 %v7337, %v7369
  %v7409 = vadd.f32 %v7338, %v7369
  %v7410 = vadd.f32 %v7339, %v7369
  %v7411 = vadd.f32 %v7340, %v7369
  %v7412 = vadd.f32 %v7341, %v7369
  %v7413 = vadd.f32 %v7342, %v7369
  %v7414 = vadd.f32 %v7343, %v7369
  %v7415 = vadd.f32 %v7344, %v7369
  %v7416 = vadd.f32 %v7345, %v7369
  %v7417 = vadd.f32 %v7346, %v7369
  %v7418 = vadd.f32 %v7347, %v7369
  %v7419 = vadd.f32 %v7348, %v7369
  %v7420 = vadd.f32 %v7349, %v7369
  %v7421 = vadd.f32 %v7350, %v7369
  %v7422 = vadd.f32 %v7351, %v7369
  %v7423 = vadd.f32 %v7352, %v7369
  %v7424 = vadd.f32 %v7353, %v7369
  %v7425 = vadd.f32 %v7354, %v7369
  %v7426 = vadd.f32 %v7355, %v7369
  %v7427 = vadd.f32 %v7356, %v7369
  %v7428 = vadd.f32 %v7357, %v7369
  %v7429 = vadd.f32 %v7358, %v7369
  %v7430 = vadd.f32 %v7359, %v7369
  %v7431 = vadd.f32 %v7360, %v7369
  %v7432 = vadd.f32 %v7361, %v7369
  %v7433 = vadd.f32 %v7362, %v7369
  %v7434 = vadd.f32 %v7363, %v7369
  %v7435 = vadd.f32 %v7371, %v33
  %v7436 = vadd.f32 %v7372, %v34
  %v7437 = vadd.f32 %v7373, %v35
  %v7438 = vadd.f32 %v7374, %v36
  %v7439 = vadd.f32 %v7375, %v37
  %v7440 = vadd.f32 %v7376, %v38
  %v7441 = vadd.f32 %v7377, %v39
  %v7442 = vadd.f32 %v7378, %v40
  %v7443 = vadd.f32 %v7379, %v41
  %v7444 = vadd.f32 %v7380, %v42
  %v7445 = vadd.f32 %v7381, %v43
  %v7446 = vadd.f32 %v7382, %v44
  %v7447 = vadd.f32 %v7383, %v45
  %v7448 = vadd.f32 %v7384, %v46
  %v7449 = vadd.f32 %v7385, %v47
  %v7450 = vadd.f32 %v7386, %v48
  %v7451 = vadd.f32 %v7387, %v49
  %v7452 = vadd.f32 %v7388, %v50
  %v7453 = vadd.f32 %v7389, %v51
  %v7454 = vadd.f32 %v7390, %v52
  %v7455 = vadd.f32 %v7391, %v53
  %v7456 = vadd.f32 %v7392, %v54
  %v7457 = vadd.f32 %v7393, %v55
  %v7458 = vadd.f32 %v7394, %v56
  %v7459 = vadd.f32 %v7395, %v57
  %v7460 = vadd.f32 %v7396, %v58
  %v7461 = vadd.f32 %v7397, %v59
  %v7462 = vadd.f32 %v7398, %v60
  %v7463 = vadd.f32 %v7399, %v61
  %v7464 = vadd.f32 %v7400, %v62
  %v7465 = vadd.f32 %v7401, %v63
  %v7466 = vadd.f32 %v7402, %v64
  %v7467 = vadd.f32 %v7403, %v65
  %v7468 = vadd.f32 %v7404, %v66
  %v7469 = vadd.f32 %v7405, %v67
  %v7470 = vadd.f32 %v7406, %v68
  %v7471 = vadd.f32 %v7407, %v69
  %v7472 = vadd.f32 %v7408, %v70
  %v7473 = vadd.f32 %v7409, %v71
  %v7474 = vadd.f32 %v7410, %v72
  %v7475 = vadd.f32 %v7411, %v73
  %v7476 = vadd.f32 %v7412, %v74
  %v7477 = vadd.f32 %v7413, %v75
  %v7478 = vadd.f32 %v7414, %v76
  %v7479 = vadd.f32 %v7415, %v77
  %v7480 = vadd.f32 %v7416, %v78
  %v7481 = vadd.f32 %v7417, %v79
  %v7482 = vadd.f32 %v7418, %v80
  %v7483 = vadd.f32 %v7419, %v81
  %v7484 = vadd.f32 %v7420, %v82
  %v7485 = vadd.f32 %v7421, %v83
  %v7486 = vadd.f32 %v7422, %v84
  %v7487 = vadd.f32 %v7423, %v85
  %v7488 = vadd.f32 %v7424, %v86
  %v7489 = vadd.f32 %v7425, %v87
  %v7490 = vadd.f32 %v7426, %v88
  %v7491 = vadd.f32 %v7427, %v89
  %v7492 = vadd.f32 %v7428, %v90
  %v7493 = vadd.f32 %v7429, %v91
  %v7494 = vadd.f32 %v7430, %v92
  %v7495 = vadd.f32 %v7431, %v93
  %v7496 = vadd.f32 %v7432, %v94
  %v7497 = vadd.f32 %v7433, %v95
  %v7498 = vadd.f32 %v7434, %v96
  %vm7499 = vcmp.gt.f32.partialorder %v7435, 0.0
  %vm7500 = vcmp.gt.f32.partialorder %v7436, 0.0
  %vm7501 = vcmp.gt.f32.partialorder %v7437, 0.0
  %vm7502 = vcmp.gt.f32.partialorder %v7438, 0.0
  %vm7503 = vcmp.gt.f32.partialorder %v7439, 0.0
  %vm7504 = vcmp.gt.f32.partialorder %v7440, 0.0
  %vm7505 = vcmp.gt.f32.partialorder %v7441, 0.0
  %vm7506 = vcmp.gt.f32.partialorder %v7442, 0.0
  %vm7507 = vcmp.gt.f32.partialorder %v7443, 0.0
  %vm7508 = vcmp.gt.f32.partialorder %v7444, 0.0
  %vm7509 = vcmp.gt.f32.partialorder %v7445, 0.0
  %vm7510 = vcmp.gt.f32.partialorder %v7446, 0.0
  %vm7511 = vcmp.gt.f32.partialorder %v7447, 0.0
  %vm7512 = vcmp.gt.f32.partialorder %v7448, 0.0
  %vm7513 = vcmp.gt.f32.partialorder %v7449, 0.0
  %vm7514 = vcmp.gt.f32.partialorder %v7450, 0.0
  %vm7515 = vcmp.gt.f32.partialorder %v7451, 0.0
  %vm7516 = vcmp.gt.f32.partialorder %v7452, 0.0
  %vm7517 = vcmp.gt.f32.partialorder %v7453, 0.0
  %vm7518 = vcmp.gt.f32.partialorder %v7454, 0.0
  %vm7519 = vcmp.gt.f32.partialorder %v7455, 0.0
  %vm7520 = vcmp.gt.f32.partialorder %v7456, 0.0
  %vm7521 = vcmp.gt.f32.partialorder %v7457, 0.0
  %vm7522 = vcmp.gt.f32.partialorder %v7458, 0.0
  %vm7523 = vcmp.gt.f32.partialorder %v7459, 0.0
  %vm7524 = vcmp.gt.f32.partialorder %v7460, 0.0
  %vm7525 = vcmp.gt.f32.partialorder %v7461, 0.0
  %vm7526 = vcmp.gt.f32.partialorder %v7462, 0.0
  %vm7527 = vcmp.gt.f32.partialorder %v7463, 0.0
  %vm7528 = vcmp.gt.f32.partialorder %v7464, 0.0
  %vm7529 = vcmp.gt.f32.partialorder %v7465, 0.0
  %vm7530 = vcmp.gt.f32.partialorder %v7466, 0.0
  %vm7531 = vcmp.gt.f32.partialorder %v7467, 0.0
  %vm7532 = vcmp.gt.f32.partialorder %v7468, 0.0
  %vm7533 = vcmp.gt.f32.partialorder %v7469, 0.0
  %vm7534 = vcmp.gt.f32.partialorder %v7470, 0.0
  %vm7535 = vcmp.gt.f32.partialorder %v7471, 0.0
  %vm7536 = vcmp.gt.f32.partialorder %v7472, 0.0
  %vm7537 = vcmp.gt.f32.partialorder %v7473, 0.0
  %vm7538 = vcmp.gt.f32.partialorder %v7474, 0.0
  %vm7539 = vcmp.gt.f32.partialorder %v7475, 0.0
  %vm7540 = vcmp.gt.f32.partialorder %v7476, 0.0
  %vm7541 = vcmp.gt.f32.partialorder %v7477, 0.0
  %vm7542 = vcmp.gt.f32.partialorder %v7478, 0.0
  %vm7543 = vcmp.gt.f32.partialorder %v7479, 0.0
  %vm7544 = vcmp.gt.f32.partialorder %v7480, 0.0
  %vm7545 = vcmp.gt.f32.partialorder %v7481, 0.0
  %vm7546 = vcmp.gt.f32.partialorder %v7482, 0.0
  %vm7547 = vcmp.gt.f32.partialorder %v7483, 0.0
  %vm7548 = vcmp.gt.f32.partialorder %v7484, 0.0
  %vm7549 = vcmp.gt.f32.partialorder %v7485, 0.0
  %vm7550 = vcmp.gt.f32.partialorder %v7486, 0.0
  %vm7551 = vcmp.gt.f32.partialorder %v7487, 0.0
  %vm7552 = vcmp.gt.f32.partialorder %v7488, 0.0
  %vm7553 = vcmp.gt.f32.partialorder %v7489, 0.0
  %vm7554 = vcmp.gt.f32.partialorder %v7490, 0.0
  %vm7555 = vcmp.gt.f32.partialorder %v7491, 0.0
  %vm7556 = vcmp.gt.f32.partialorder %v7492, 0.0
  %vm7557 = vcmp.gt.f32.partialorder %v7493, 0.0
  %vm7558 = vcmp.gt.f32.partialorder %v7494, 0.0
  %vm7559 = vcmp.gt.f32.partialorder %v7495, 0.0
  %vm7560 = vcmp.gt.f32.partialorder %v7496, 0.0
  %vm7561 = vcmp.gt.f32.partialorder %v7497, 0.0
  %vm7562 = vcmp.gt.f32.partialorder %v7498, 0.0
  %v7563 = vmul.f32 %v7435, 0.01
  %v7564 = vmul.f32 %v7436, 0.01
  %v7565 = vmul.f32 %v7437, 0.01
  %v7566 = vmul.f32 %v7438, 0.01
  %v7567 = vmul.f32 %v7439, 0.01
  %v7568 = vmul.f32 %v7440, 0.01
  %v7569 = vmul.f32 %v7441, 0.01
  %v7570 = vmul.f32 %v7442, 0.01
  %v7571 = vmul.f32 %v7443, 0.01
  %v7572 = vmul.f32 %v7444, 0.01
  %v7573 = vmul.f32 %v7445, 0.01
  %v7574 = vmul.f32 %v7446, 0.01
  %v7575 = vmul.f32 %v7447, 0.01
  %v7576 = vmul.f32 %v7448, 0.01
  %v7577 = vmul.f32 %v7449, 0.01
  %v7578 = vmul.f32 %v7450, 0.01
  %v7579 = vmul.f32 %v7451, 0.01
  %v7580 = vmul.f32 %v7452, 0.01
  %v7581 = vmul.f32 %v7453, 0.01
  %v7582 = vmul.f32 %v7454, 0.01
  %v7583 = vmul.f32 %v7455, 0.01
  %v7584 = vmul.f32 %v7456, 0.01
  %v7585 = vmul.f32 %v7457, 0.01
  %v7586 = vmul.f32 %v7458, 0.01
  %v7587 = vmul.f32 %v7459, 0.01
  %v7588 = vmul.f32 %v7460, 0.01
  %v7589 = vmul.f32 %v7461, 0.01
  %v7590 = vmul.f32 %v7462, 0.01
  %v7591 = vmul.f32 %v7463, 0.01
  %v7592 = vmul.f32 %v7464, 0.01
  %v7593 = vmul.f32 %v7465, 0.01
  %v7594 = vmul.f32 %v7466, 0.01
  %v7595 = vmul.f32 %v7467, 0.01
  %v7596 = vmul.f32 %v7468, 0.01
  %v7597 = vmul.f32 %v7469, 0.01
  %v7598 = vmul.f32 %v7470, 0.01
  %v7599 = vmul.f32 %v7471, 0.01
  %v7600 = vmul.f32 %v7472, 0.01
  %v7601 = vmul.f32 %v7473, 0.01
  %v7602 = vmul.f32 %v7474, 0.01
  %v7603 = vmul.f32 %v7475, 0.01
  %v7604 = vmul.f32 %v7476, 0.01
  %v7605 = vmul.f32 %v7477, 0.01
  %v7606 = vmul.f32 %v7478, 0.01
  %v7607 = vmul.f32 %v7479, 0.01
  %v7608 = vmul.f32 %v7480, 0.01
  %v7609 = vmul.f32 %v7481, 0.01
  %v7610 = vmul.f32 %v7482, 0.01
  %v7611 = vmul.f32 %v7483, 0.01
  %v7612 = vmul.f32 %v7484, 0.01
  %v7613 = vmul.f32 %v7485, 0.01
  %v7614 = vmul.f32 %v7486, 0.01
  %v7615 = vmul.f32 %v7487, 0.01
  %v7616 = vmul.f32 %v7488, 0.01
  %v7617 = vmul.f32 %v7489, 0.01
  %v7618 = vmul.f32 %v7490, 0.01
  %v7619 = vmul.f32 %v7491, 0.01
  %v7620 = vmul.f32 %v7492, 0.01
  %v7621 = vmul.f32 %v7493, 0.01
  %v7622 = vmul.f32 %v7494, 0.01
  %v7623 = vmul.f32 %v7495, 0.01
  %v7624 = vmul.f32 %v7496, 0.01
  %v7625 = vmul.f32 %v7497, 0.01
  %v7626 = vmul.f32 %v7498, 0.01
  %v7627 = vsel %vm7499, %v7435, %v7563
  %v7628 = vsel %vm7500, %v7436, %v7564
  %v7629 = vsel %vm7501, %v7437, %v7565
  %v7630 = vsel %vm7502, %v7438, %v7566
  %v7631 = vsel %vm7503, %v7439, %v7567
  %v7632 = vsel %vm7504, %v7440, %v7568
  %v7633 = vsel %vm7505, %v7441, %v7569
  %v7634 = vsel %vm7506, %v7442, %v7570
  %v7635 = vsel %vm7507, %v7443, %v7571
  %v7636 = vsel %vm7508, %v7444, %v7572
  %v7637 = vsel %vm7509, %v7445, %v7573
  %v7638 = vsel %vm7510, %v7446, %v7574
  %v7639 = vsel %vm7511, %v7447, %v7575
  %v7640 = vsel %vm7512, %v7448, %v7576
  %v7641 = vsel %vm7513, %v7449, %v7577
  %v7642 = vsel %vm7514, %v7450, %v7578
  %v7643 = vsel %vm7515, %v7451, %v7579
  %v7644 = vsel %vm7516, %v7452, %v7580
  %v7645 = vsel %vm7517, %v7453, %v7581
  %v7646 = vsel %vm7518, %v7454, %v7582
  %v7647 = vsel %vm7519, %v7455, %v7583
  %v7648 = vsel %vm7520, %v7456, %v7584
  %v7649 = vsel %vm7521, %v7457, %v7585
  %v7650 = vsel %vm7522, %v7458, %v7586
  %v7651 = vsel %vm7523, %v7459, %v7587
  %v7652 = vsel %vm7524, %v7460, %v7588
  %v7653 = vsel %vm7525, %v7461, %v7589
  %v7654 = vsel %vm7526, %v7462, %v7590
  %v7655 = vsel %vm7527, %v7463, %v7591
  %v7656 = vsel %vm7528, %v7464, %v7592
  %v7657 = vsel %vm7529, %v7465, %v7593
  %v7658 = vsel %vm7530, %v7466, %v7594
  %v7659 = vsel %vm7531, %v7467, %v7595
  %v7660 = vsel %vm7532, %v7468, %v7596
  %v7661 = vsel %vm7533, %v7469, %v7597
  %v7662 = vsel %vm7534, %v7470, %v7598
  %v7663 = vsel %vm7535, %v7471, %v7599
  %v7664 = vsel %vm7536, %v7472, %v7600
  %v7665 = vsel %vm7537, %v7473, %v7601
  %v7666 = vsel %vm7538, %v7474, %v7602
  %v7667 = vsel %vm7539, %v7475, %v7603
  %v7668 = vsel %vm7540, %v7476, %v7604
  %v7669 = vsel %vm7541, %v7477, %v7605
  %v7670 = vsel %vm7542, %v7478, %v7606
  %v7671 = vsel %vm7543, %v7479, %v7607
  %v7672 = vsel %vm7544, %v7480, %v7608
  %v7673 = vsel %vm7545, %v7481, %v7609
  %v7674 = vsel %vm7546, %v7482, %v7610
  %v7675 = vsel %vm7547, %v7483, %v7611
  %v7676 = vsel %vm7548, %v7484, %v7612
  %v7677 = vsel %vm7549, %v7485, %v7613
  %v7678 = vsel %vm7550, %v7486, %v7614
  %v7679 = vsel %vm7551, %v7487, %v7615
  %v7680 = vsel %vm7552, %v7488, %v7616
  %v7681 = vsel %vm7553, %v7489, %v7617
  %v7682 = vsel %vm7554, %v7490, %v7618
  %v7683 = vsel %vm7555, %v7491, %v7619
  %v7684 = vsel %vm7556, %v7492, %v7620
  %v7685 = vsel %vm7557, %v7493, %v7621
  %v7686 = vsel %vm7558, %v7494, %v7622
  %v7687 = vsel %vm7559, %v7495, %v7623
  %v7688 = vsel %vm7560, %v7496, %v7624
  %v7689 = vsel %vm7561, %v7497, %v7625
  %v7690 = vsel %vm7562, %v7498, %v7626
  %7691 = vst.msk [vmem:[%s9] sm:$0xff] %vm2191, %v7627
  %7692 = vst.msk [vmem:[%s9 + $0x8] sm:$0xff] %vm2191, %v7628
  %7693 = vst.msk [vmem:[%s9 + $0x10] sm:$0xff] %vm2191, %v7629
  %7694 = vst.msk [vmem:[%s9 + $0x18] sm:$0xff] %vm2191, %v7630
  %7695 = vst.msk [vmem:[%s9 + $0x20] sm:$0xff] %vm2191, %v7631
  %7696 = vst.msk [vmem:[%s9 + $0x28] sm:$0xff] %vm2191, %v7632
  %7697 = vst.msk [vmem:[%s9 + $0x30] sm:$0xff] %vm2191, %v7633
  %7698 = vst.msk [vmem:[%s9 + $0x38] sm:$0xff] %vm2191, %v7634
  %7699 = vst.msk [vmem:[%s9 + $0x40] sm:$0xff] %vm2191, %v7635
  %7700 = vst.msk [vmem:[%s9 + $0x48] sm:$0xff] %vm2191, %v7636
  %7701 = vst.msk [vmem:[%s9 + $0x50] sm:$0xff] %vm2191, %v7637
  %7702 = vst.msk [vmem:[%s9 + $0x58] sm:$0xff] %vm2191, %v7638
  %7703 = vst.msk [vmem:[%s9 + $0x60] sm:$0xff] %vm2191, %v7639
  %7704 = vst.msk [vmem:[%s9 + $0x68] sm:$0xff] %vm2191, %v7640
  %7705 = vst.msk [vmem:[%s9 + $0x70] sm:$0xff] %vm2191, %v7641
  %7706 = vst.msk [vmem:[%s9 + $0x78] sm:$0xff] %vm2191, %v7642
  %7707 = vst.msk [vmem:[%s9 + $0x80] sm:$0xff] %vm2191, %v7643
  %7708 = vst.msk [vmem:[%s9 + $0x88] sm:$0xff] %vm2191, %v7644
  %7709 = vst.msk [vmem:[%s9 + $0x90] sm:$0xff] %vm2191, %v7645
  %7710 = vst.msk [vmem:[%s9 + $0x98] sm:$0xff] %vm2191, %v7646
  %7711 = vst.msk [vmem:[%s9 + $0xa0] sm:$0xff] %vm2191, %v7647
  %7712 = vst.msk [vmem:[%s9 + $0xa8] sm:$0xff] %vm2191, %v7648
  %7713 = vst.msk [vmem:[%s9 + $0xb0] sm:$0xff] %vm2191, %v7649
  %7714 = vst.msk [vmem:[%s9 + $0xb8] sm:$0xff] %vm2191, %v7650
  %7715 = vst.msk [vmem:[%s9 + $0xc0] sm:$0xff] %vm2191, %v7651
  %7716 = vst.msk [vmem:[%s9 + $0xc8] sm:$0xff] %vm2191, %v7652
  %7717 = vst.msk [vmem:[%s9 + $0xd0] sm:$0xff] %vm2191, %v7653
  %7718 = vst.msk [vmem:[%s9 + $0xd8] sm:$0xff] %vm2191, %v7654
  %7719 = vst.msk [vmem:[%s9 + $0xe0] sm:$0xff] %vm2191, %v7655
  %7720 = vst.msk [vmem:[%s9 + $0xe8] sm:$0xff] %vm2191, %v7656
  %7721 = vst.msk [vmem:[%s9 + $0xf0] sm:$0xff] %vm2191, %v7657
  %7722 = vst.msk [vmem:[%s9 + $0xf8] sm:$0xff] %vm2191, %v7658
  %7723 = vst.msk [vmem:[%s9 + $0x100] sm:$0xff] %vm2191, %v7659
  %7724 = vst.msk [vmem:[%s9 + $0x108] sm:$0xff] %vm2191, %v7660
  %7725 = vst.msk [vmem:[%s9 + $0x110] sm:$0xff] %vm2191, %v7661
  %7726 = vst.msk [vmem:[%s9 + $0x118] sm:$0xff] %vm2191, %v7662
  %7727 = vst.msk [vmem:[%s9 + $0x120] sm:$0xff] %vm2191, %v7663
  %7728 = vst.msk [vmem:[%s9 + $0x128] sm:$0xff] %vm2191, %v7664
  %7729 = vst.msk [vmem:[%s9 + $0x130] sm:$0xff] %vm2191, %v7665
  %7730 = vst.msk [vmem:[%s9 + $0x138] sm:$0xff] %vm2191, %v7666
  %7731 = vst.msk [vmem:[%s9 + $0x140] sm:$0xff] %vm2191, %v7667
  %7732 = vst.msk [vmem:[%s9 + $0x148] sm:$0xff] %vm2191, %v7668
  %7733 = vst.msk [vmem:[%s9 + $0x150] sm:$0xff] %vm2191, %v7669
  %7734 = vst.msk [vmem:[%s9 + $0x158] sm:$0xff] %vm2191, %v7670
  %7735 = vst.msk [vmem:[%s9 + $0x160] sm:$0xff] %vm2191, %v7671
  %7736 = vst.msk [vmem:[%s9 + $0x168] sm:$0xff] %vm2191, %v7672
  %7737 = vst.msk [vmem:[%s9 + $0x170] sm:$0xff] %vm2191, %v7673
  %7738 = vst.msk [vmem:[%s9 + $0x178] sm:$0xff] %vm2191, %v7674
  %7739 = vst.msk [vmem:[%s9 + $0x180] sm:$0xff] %vm2191, %v7675
  %7740 = vst.msk [vmem:[%s9 + $0x188] sm:$0xff] %vm2191, %v7676
  %7741 = vst.msk [vmem:[%s9 + $0x190] sm:$0xff] %vm2191, %v7677
  %7742 = vst.msk [vmem:[%s9 + $0x198] sm:$0xff] %vm2191, %v7678
  %7743 = vst.msk [vmem:[%s9 + $0x1a0] sm:$0xff] %vm2191, %v7679
  %7744 = vst.msk [vmem:[%s9 + $0x1a8] sm:$0xff] %vm2191, %v7680
  %7745 = vst.msk [vmem:[%s9 + $0x1b0] sm:$0xff] %vm2191, %v7681
  %7746 = vst.msk [vmem:[%s9 + $0x1b8] sm:$0xff] %vm2191, %v7682
  %7747 = vst.msk [vmem:[%s9 + $0x1c0] sm:$0xff] %vm2191, %v7683
  %7748 = vst.msk [vmem:[%s9 + $0x1c8] sm:$0xff] %vm2191, %v7684
  %7749 = vst.msk [vmem:[%s9 + $0x1d0] sm:$0xff] %vm2191, %v7685
  %7750 = vst.msk [vmem:[%s9 + $0x1d8] sm:$0xff] %vm2191, %v7686
  %7751 = vst.msk [vmem:[%s9 + $0x1e0] sm:$0xff] %vm2191, %v7687
  %7752 = vst.msk [vmem:[%s9 + $0x1e8] sm:$0xff] %vm2191, %v7688
  %7753 = vst.msk [vmem:[%s9 + $0x1f0] sm:$0xff] %vm2191, %v7689
  %7754 = vst.msk [vmem:[%s9 + $0x1f8] sm:$0xff] %vm2191, %v7690
  // Predicated region
  $region38: #{residual_block.1} parent=0 // pred_check
    _
  $region39: #{residual_block.1} parent=0 // pred_check_branch
    %7756 = sbr.rel (0) target = $region41
  $region40: #{residual_block.1} parent=0 // pred_region
    _
  $region41: #{residual_block.1} parent=0 // pred_fallthru
    _
  // Predicated region
  $region42: #{residual_block.1} parent=0 // pred_check
    _
  $region43: #{residual_block.1} parent=0 // pred_check_branch
    %7758 = sbr.rel (0) target = $region45
  $region44: #{residual_block.1} parent=0 // pred_region
    _
  $region45: #{residual_block.1} parent=0 // pred_fallthru
    _

</llo_original>
